<compile_context>
chip_gen: v5e
topology: v5e:2x2
jax: 0.10.0
libtpu: 0.0.40
codegen_flags: <defaults>
</compile_context>

<pallas_src>
import functools

import numpy as np
import jax
import jax.numpy as jnp
from jax.experimental import pallas as pl
from jax.experimental.pallas import tpu as pltpu

INPUT_CHANNELS = 4
OUTPUT_SIZE = 1
EPS = 1e-5
LANES = 128          # channel padding so all conv/BN/pool tiles are lane-dense


# ----------------------------- Pallas kernels --------------------------------

def _stem_kernel(pB_ref, pC_ref, w_ref, b_ref, o_ref, *, pool_rows, total_rows):
    """conv1(4x4,s2) as one im2col matmul + bias + ReLU + BN(batch) + 2x2/s2 pool.

    pB_ref: (4*pool_rows, 64) patches, four pool-phase blocks of `pool_rows` rows,
            rows inside a block ordered (n, oh, ow).
    pC_ref: (edge_rows, 64) patches for conv outputs the pool drops (row/col 38)
            -- needed only for the BatchNorm statistics.
    o_ref : (pool_rows, 128) pooled + normalized output (16 real channels, rest 0).
    """
    w = w_ref[...]                                   # (64, 128), cols >= 16 are zero
    b = b_ref[...]                                   # (1, 128)
    yB = jnp.maximum(jnp.dot(pB_ref[...], w, preferred_element_type=jnp.float32) + b, 0.0)
    yC = jnp.maximum(jnp.dot(pC_ref[...], w, preferred_element_type=jnp.float32) + b, 0.0)

    # one-pass batch statistics over ALL conv outputs (pooled region + edge rows)
    s = jnp.sum(yB, axis=0, keepdims=True) + jnp.sum(yC, axis=0, keepdims=True)
    ss = jnp.sum(yB * yB, axis=0, keepdims=True) + jnp.sum(yC * yC, axis=0, keepdims=True)
    inv_n = 1.0 / total_rows
    mean = s * inv_n
    var = ss * inv_n - mean * mean
    scale = jax.lax.rsqrt(var + EPS)

    # 2x2/s2 max-pool == elementwise max of the 4 phase blocks.
    # BN is a positive per-channel affine, so it commutes with max: pool, then normalize.
    nb = pool_rows
    pooled = jnp.maximum(jnp.maximum(yB[0:nb], yB[nb:2 * nb]),
                         jnp.maximum(yB[2 * nb:3 * nb], yB[3 * nb:4 * nb]))
    o_ref[...] = (pooled - mean) * scale


def _head_kernel(p2_ref, w2_ref, b2_ref, w3_ref, b3_ref, m3_ref,
                 wf1_ref, bf1_ref, wf2_ref, bf2_ref, o_ref, *,
                 batch, n2_rows, n2_block, n3_valid):
    """conv2 -> ReLU -> BN -> pool -> conv3 -> ReLU -> BN -> pool -> fc1 -> ReLU -> fc2.

    p2_ref : (batch*4*81, 64) conv2 im2col patches in pool-phase order
             (4 blocks of batch*81 rows; rows inside a block ordered (n, o, p)).
    w3_ref : (512, 128) conv3 weight, 4 tap blocks of 128 rows each (Cin padded).
    m3_ref : (81*batch-10, 1) validity mask for the flat conv3 row domain.
    wf1_ref: (2048, 256) fc1 weight, rows permuted to the kernel's (i*4+j)*128+c
             flatten order (so NCHW flatten semantics are preserved).
    o_ref  : (batch, 128) final output (real logits in the first columns).
    """
    # ---------------- conv2 + ReLU + BN(batch) + 2x2 pool ----------------
    y2 = jnp.maximum(jnp.dot(p2_ref[...], w2_ref[...],
                             preferred_element_type=jnp.float32) + b2_ref[...], 0.0)
    inv2 = 1.0 / n2_rows
    mean2 = jnp.sum(y2, axis=0, keepdims=True) * inv2
    var2 = jnp.sum(y2 * y2, axis=0, keepdims=True) * inv2 - mean2 * mean2
    sc2 = jax.lax.rsqrt(var2 + EPS)
    nb = n2_block
    pooled2 = jnp.maximum(jnp.maximum(y2[0:nb], y2[nb:2 * nb]),
                          jnp.maximum(y2[2 * nb:3 * nb], y2[3 * nb:4 * nb]))
    P2 = (pooled2 - mean2) * sc2                      # (batch*81, 128), rows (n, o, p)

    # ---------------- conv3 (2x2, s1) as shifted-slice matmuls ----------------
    # flat index q = 81*n + 9*h3 + w3 ; tap (a, b) reads P2[q + 9a + b]
    w3 = w3_ref[...]                                  # (512, 128)
    QC = 81 * batch - 10
    y3 = jnp.dot(P2[0:QC], w3[0:LANES], preferred_element_type=jnp.float32)
    y3 = y3 + jnp.dot(P2[1:1 + QC], w3[LANES:2 * LANES], preferred_element_type=jnp.float32)
    y3 = y3 + jnp.dot(P2[9:9 + QC], w3[2 * LANES:3 * LANES], preferred_element_type=jnp.float32)
    y3 = y3 + jnp.dot(P2[10:10 + QC], w3[3 * LANES:4 * LANES], preferred_element_type=jnp.float32)
    y3 = jnp.maximum(y3 + b3_ref[...], 0.0)           # (QC, 128)

    # BN3 statistics only over the valid (h3 < 8, w3 < 8) rows
    m3 = m3_ref[...]                                   # (QC, 1)
    y3m = y3 * m3
    inv3 = 1.0 / n3_valid
    mean3 = jnp.sum(y3m, axis=0, keepdims=True) * inv3
    var3 = jnp.sum(y3m * y3, axis=0, keepdims=True) * inv3 - mean3 * mean3
    sc3 = jax.lax.rsqrt(var3 + EPS)

    # 2x2/s2 pool of the 8x8 conv3 output, again via shifted slices; normalize after.
    RC = 81 * batch - 20
    P3 = jnp.maximum(jnp.maximum(y3[0:RC], y3[1:1 + RC]),
                     jnp.maximum(y3[9:9 + RC], y3[10:10 + RC]))
    P3 = (P3 - mean3) * sc3                            # valid pooled rows at 81n+18i+2j

    # ---------------- flatten (order folded into wf1) + fc1 + ReLU + fc2 ----------------
    pieces = []
    for i in range(4):
        for j in range(4):
            r = 18 * i + 2 * j
            if batch == 1:
                pieces.append(P3[r:r + 1, :])
            else:
                pieces.append(jnp.concatenate(
                    [P3[81 * n + r:81 * n + r + 1, :] for n in range(batch)], axis=0))
    xfc = jnp.concatenate(pieces, axis=1)              # (batch, 16*128) = (batch, 2048)
    h = jnp.maximum(jnp.dot(xfc, wf1_ref[...], preferred_element_type=jnp.float32)
                    + bf1_ref[...], 0.0)               # (batch, 256)
    o_ref[...] = jnp.dot(h, wf2_ref[...], preferred_element_type=jnp.float32) + bf2_ref[...]


# ----------------------------- pallas_call glue -------------------------------

def _vmem_call(kernel, out_shape, *args):
    # Everything fits comfortably in VMEM -> grid-less full-array blocks.
    return pl.pallas_call(
        kernel,
        out_shape=out_shape,
        in_specs=[pl.BlockSpec(memory_space=pltpu.MemorySpace.VMEM) for _ in args],
        out_specs=pl.BlockSpec(memory_space=pltpu.MemorySpace.VMEM),
        compiler_params=pltpu.CompilerParams(vmem_limit_bytes=48 * 1024 * 1024),
    )(*args)


# ----------------------------- parameters -------------------------------------

def init_params(key, input_channels=INPUT_CHANNELS, output_size=OUTPUT_SIZE):
    """PyTorch-layout parameters mirroring Network.init_weights():
    weights ~ N(0, 0.01), biases = 0, BatchNorm affine at default (gamma=1, beta=0)."""
    std = 0.01
    k1, k2, k3, k4, k5 = jax.random.split(key, 5)
    return {
        "conv1_w": jax.random.normal(k1, (16, input_channels, 4, 4), jnp.float32) * std,
        "conv1_b": jnp.zeros((16,), jnp.float32),
        "conv2_w": jax.random.normal(k2, (32, 16, 2, 2), jnp.float32) * std,
        "conv2_b": jnp.zeros((32,), jnp.float32),
        "conv3_w": jax.random.normal(k3, (64, 32, 2, 2), jnp.float32) * std,
        "conv3_b": jnp.zeros((64,), jnp.float32),
        "fc1_w": jax.random.normal(k4, (256, 1024), jnp.float32) * std,
        "fc1_b": jnp.zeros((256,), jnp.float32),
        "fc2_w": jax.random.normal(k5, (output_size, 256), jnp.float32) * std,
        "fc2_b": jnp.zeros((output_size,), jnp.float32),
    }


def _pad_cols(a, width):
    return jnp.pad(a, ((0, 0), (0, width - a.shape[1])))


def prepare_params(p):
    """Convert PyTorch-layout params to the lane-padded layouts the kernels use."""
    # conv1: (16,4,4,4) -> (kh,kw,cin,cout) -> (64,16) -> pad cout to 128
    w1 = _pad_cols(jnp.transpose(p["conv1_w"], (2, 3, 1, 0)).reshape(64, 16), LANES)
    b1 = _pad_cols(p["conv1_b"][None, :], LANES)
    # conv2: (32,16,2,2) -> (kh,kw,cin,cout) -> (64,32) -> pad cout to 128
    w2 = _pad_cols(jnp.transpose(p["conv2_w"], (2, 3, 1, 0)).reshape(64, 32), LANES)
    b2 = _pad_cols(p["conv2_b"][None, :], LANES)
    # conv3: (64,32,2,2) -> (kh,kw,cin,cout); pad cin 32->128 and cout 64->128 -> (512,128)
    w3 = jnp.transpose(p["conv3_w"], (2, 3, 1, 0))                  # (2,2,32,64)
    w3 = jnp.pad(w3, ((0, 0), (0, 0), (0, LANES - 32), (0, LANES - 64)))
    w3 = w3.reshape(4 * LANES, LANES)
    b3 = _pad_cols(p["conv3_b"][None, :], LANES)
    # fc1: NCHW flatten index c*16 + i*4 + j  ->  kernel lane index (i*4+j)*128 + c
    wf1 = p["fc1_w"].reshape(256, 64, 4, 4)                          # (m, c, i, j)
    wf1 = jnp.transpose(wf1, (2, 3, 1, 0))                           # (i, j, c, m)
    wf1 = jnp.pad(wf1, ((0, 0), (0, 0), (0, LANES - 64), (0, 0)))    # (4,4,128,256)
    wf1 = wf1.reshape(16 * LANES, 256)
    bf1 = p["fc1_b"][None, :]                                        # (1, 256)
    # fc2: (out,256) -> (256,out) -> pad out to 128 (sliced back in the wrapper)
    wf2 = _pad_cols(p["fc2_w"].T, LANES)
    bf2 = _pad_cols(p["fc2_b"][None, :], LANES)
    return {"w1": w1, "b1": b1, "w2": w2, "b2": b2, "w3": w3, "b3": b3,
            "wf1": wf1, "bf1": bf1, "wf2": wf2, "bf2": bf2}


# ----------------------------- forward -----------------------------------------

def forward(kparams, x, *, out_dim):
    # Mirror the module's unsqueeze-if-unbatched behaviour.
    if x.ndim == 3 and x.shape[0] == INPUT_CHANNELS:
        x = x[None]
    if x.shape[2] != 80 or x.shape[3] != 80:
        raise ValueError("Network requires 80x80 spatial input (Linear(1024, 256)).")
    x = jnp.transpose(x.astype(jnp.float32), (0, 2, 3, 1))           # NCHW -> NHWC
    n = x.shape[0]

    oh1 = ow1 = 39                     # conv1 output; pool -> 19x19
    ph = pw = 19

    # ---- conv1 im2col on the tiny input (static XLA slicing only) ----
    cols = []
    for i in range(4):
        for j in range(4):
            cols.append(x[:, i:i + 2 * (oh1 - 1) + 1:2, j:j + 2 * (ow1 - 1) + 1:2, :])
    pfull = jnp.concatenate(cols, axis=-1)                           # (n, 39, 39, 64)

    # pool-phase ordered patches: 4 blocks (d,e), rows (n, oh, ow) with oh,ow in [0,19)
    blocks = []
    for d in (0, 1):
        for e in (0, 1):
            blk = pfull[:, d:d + 2 * (ph - 1) + 1:2, e:e + 2 * (pw - 1) + 1:2, :]
            blocks.append(blk.reshape(n * ph * pw, 64))
    pB = jnp.concatenate(blocks, axis=0)                             # (n*1444, 64)
    # edge rows (h=38 / w=38) dropped by the pool, only needed for BN statistics
    pC = jnp.concatenate([pfull[:, oh1 - 1, :, :].reshape(n * ow1, 64),
                          pfull[:, :oh1 - 1, ow1 - 1, :].reshape(n * (oh1 - 1), 64)],
                         axis=0)                                     # (n*77, 64)

    # ---- call A: conv1 + ReLU + BN + pool ----
    pool_rows = n * ph * pw                                          # 722
    stem = functools.partial(_stem_kernel, pool_rows=pool_rows,
                             total_rows=float(n * oh1 * ow1))
    pooled1 = _vmem_call(stem, jax.ShapeDtypeStruct((pool_rows, LANES), jnp.float32),
                         pB, pC, kparams["w1"], kparams["b1"])

    # ---- conv2 patches (phase ordered) from the tiny pooled1 tensor ----
    p1 = pooled1[:, :16].reshape(n, ph, pw, 16)                      # (n, 19, 19, 16)
    qh = qw = 9                                                      # conv2 18x18 -> pool 9x9
    blocks2 = []
    for d in (0, 1):
        for e in (0, 1):
            taps = []
            for a in (0, 1):
                for b in (0, 1):
                    taps.append(p1[:, d + a:d + a + 2 * (qh - 1) + 1:2,
                                   e + b:e + b + 2 * (qw - 1) + 1:2, :])
            blocks2.append(jnp.concatenate(taps, axis=-1).reshape(n * qh * qw, 64))
    p2 = jnp.concatenate(blocks2, axis=0)                            # (n*324, 64)

    # validity mask for the flat conv3 row domain (q = 81n + 9*h3 + w3; valid iff h3,w3 < 8)
    QC = 81 * n - 10
    q = np.arange(QC)
    m3 = (((q % 81) // 9 < 8) & ((q % 81) % 9 < 8)).astype(np.float32).reshape(QC, 1)
    m3 = jnp.asarray(m3)

    # ---- call B: conv2 .. fc2 ----
    head = functools.partial(_head_kernel, batch=n,
                             n2_rows=float(n * 18 * 18),
                             n2_block=n * qh * qw,
                             n3_valid=float(n * 8 * 8))
    out = _vmem_call(head, jax.ShapeDtypeStruct((n, LANES), jnp.float32),
                     p2, kparams["w2"], kparams["b2"], kparams["w3"], kparams["b3"], m3,
                     kparams["wf1"], kparams["bf1"], kparams["wf2"], kparams["bf2"])
    return out[:, :out_dim]


# ----------------------------- main --------------------------------------------

if __name__ == "__main__":
    key = jax.random.PRNGKey(0)
    pkey, xkey = jax.random.split(key)
    raw_params = init_params(pkey)
    kparams = prepare_params(raw_params)
    out_dim = raw_params["fc2_w"].shape[0]

    # batch=2, channels=4, spatial=80x80 (required so the flatten is exactly 1024)
    x = jax.random.normal(xkey, (2, INPUT_CHANNELS, 80, 80), jnp.float32)

    fwd = jax.jit(functools.partial(forward, out_dim=out_dim))
    out = jax.block_until_ready(fwd(kparams, x))
    assert out.shape == (2, OUTPUT_SIZE), out.shape
    assert out.dtype == jnp.float32
    print("KERNEL_OK")
</pallas_src>

<mosaic_0001>
module attributes {stable_mosaic.version = 11 : i64} {
  func.func @_stem_kernel(%arg0: memref<2888x64xf32, #tpu.memory_space<vmem>>, %arg1: memref<154x64xf32, #tpu.memory_space<vmem>>, %arg2: memref<64x128xf32, #tpu.memory_space<vmem>>, %arg3: memref<1x128xf32, #tpu.memory_space<vmem>>, %arg4: memref<722x128xf32, #tpu.memory_space<vmem>>) attributes {dimension_semantics = [], scalar_prefetch = 0 : i64, scratch_operands = 0 : i64, tpu.core_type = #tpu.core_type<tc>} {
    %c0 = arith.constant 0 : index
    %c0_0 = arith.constant 0 : index
    %0 = vector.load %arg2[%c0, %c0_0] : memref<64x128xf32, #tpu.memory_space<vmem>>, vector<64x128xf32>
    %c0_1 = arith.constant 0 : index
    %c0_2 = arith.constant 0 : index
    %1 = vector.load %arg3[%c0_1, %c0_2] : memref<1x128xf32, #tpu.memory_space<vmem>>, vector<1x128xf32>
    %c0_3 = arith.constant 0 : index
    %c0_4 = arith.constant 0 : index
    %2 = vector.load %arg0[%c0_3, %c0_4] : memref<2888x64xf32, #tpu.memory_space<vmem>>, vector<2888x64xf32>
    %cst = arith.constant dense<0.000000e+00> : vector<2888x128xf32>
    %3 = tpu.matmul %2, %0, %cst {dimension_numbers = #tpu.dot_dimension_numbers<[1], [0], [0], [1], [0, 0, 1, 1], [], []>} : vector<2888x64xf32>, vector<64x128xf32>, vector<2888x128xf32> -> vector<2888x128xf32>
    %4 = vector.broadcast %1 : vector<1x128xf32> to vector<2888x128xf32>
    %5 = arith.addf %3, %4 : vector<2888x128xf32>
    %cst_5 = arith.constant 0.000000e+00 : f32
    %6 = vector.broadcast %cst_5 : f32 to vector<2888x128xf32>
    %7 = arith.maximumf %5, %6 : vector<2888x128xf32>
    %c0_6 = arith.constant 0 : index
    %c0_7 = arith.constant 0 : index
    %8 = vector.load %arg1[%c0_6, %c0_7] : memref<154x64xf32, #tpu.memory_space<vmem>>, vector<154x64xf32>
    %cst_8 = arith.constant dense<0.000000e+00> : vector<154x128xf32>
    %9 = tpu.matmul %8, %0, %cst_8 {dimension_numbers = #tpu.dot_dimension_numbers<[1], [0], [0], [1], [0, 0, 1, 1], [], []>} : vector<154x64xf32>, vector<64x128xf32>, vector<154x128xf32> -> vector<154x128xf32>
    %10 = vector.broadcast %1 : vector<1x128xf32> to vector<154x128xf32>
    %11 = arith.addf %9, %10 : vector<154x128xf32>
    %cst_9 = arith.constant 0.000000e+00 : f32
    %12 = vector.broadcast %cst_9 : f32 to vector<154x128xf32>
    %13 = arith.maximumf %11, %12 : vector<154x128xf32>
    %cst_10 = arith.constant dense<0.000000e+00> : vector<128xf32>
    %14 = vector.multi_reduction <add>, %7, %cst_10 [0] : vector<2888x128xf32> to vector<128xf32>
    %15 = vector.shape_cast %14 : vector<128xf32> to vector<1x128xf32>
    %cst_11 = arith.constant dense<0.000000e+00> : vector<128xf32>
    %16 = vector.multi_reduction <add>, %13, %cst_11 [0] : vector<154x128xf32> to vector<128xf32>
    %17 = vector.shape_cast %16 : vector<128xf32> to vector<1x128xf32>
    %18 = arith.addf %15, %17 : vector<1x128xf32>
    %19 = arith.mulf %7, %7 : vector<2888x128xf32>
    %cst_12 = arith.constant dense<0.000000e+00> : vector<128xf32>
    %20 = vector.multi_reduction <add>, %19, %cst_12 [0] : vector<2888x128xf32> to vector<128xf32>
    %21 = vector.shape_cast %20 : vector<128xf32> to vector<1x128xf32>
    %22 = arith.mulf %13, %13 : vector<154x128xf32>
    %cst_13 = arith.constant dense<0.000000e+00> : vector<128xf32>
    %23 = vector.multi_reduction <add>, %22, %cst_13 [0] : vector<154x128xf32> to vector<128xf32>
    %24 = vector.shape_cast %23 : vector<128xf32> to vector<1x128xf32>
    %25 = arith.addf %21, %24 : vector<1x128xf32>
    %cst_14 = arith.constant 3.28731112E-4 : f32
    %26 = vector.broadcast %cst_14 : f32 to vector<1x128xf32>
    %27 = arith.mulf %18, %26 : vector<1x128xf32>
    %cst_15 = arith.constant 3.28731112E-4 : f32
    %28 = vector.broadcast %cst_15 : f32 to vector<1x128xf32>
    %29 = arith.mulf %25, %28 : vector<1x128xf32>
    %30 = arith.mulf %27, %27 : vector<1x128xf32>
    %31 = arith.subf %29, %30 : vector<1x128xf32>
    %cst_16 = arith.constant 9.99999974E-6 : f32
    %32 = vector.broadcast %cst_16 : f32 to vector<1x128xf32>
    %33 = arith.addf %31, %32 : vector<1x128xf32>
    %34 = math.rsqrt %33 : vector<1x128xf32>
    %35 = vector.extract_strided_slice %7 {offsets = [0, 0], sizes = [722, 128], strides = [1, 1]} : vector<2888x128xf32> to vector<722x128xf32>
    %36 = vector.extract_strided_slice %7 {offsets = [722, 0], sizes = [722, 128], strides = [1, 1]} : vector<2888x128xf32> to vector<722x128xf32>
    %37 = arith.maximumf %35, %36 : vector<722x128xf32>
    %38 = vector.extract_strided_slice %7 {offsets = [1444, 0], sizes = [722, 128], strides = [1, 1]} : vector<2888x128xf32> to vector<722x128xf32>
    %39 = vector.extract_strided_slice %7 {offsets = [2166, 0], sizes = [722, 128], strides = [1, 1]} : vector<2888x128xf32> to vector<722x128xf32>
    %40 = arith.maximumf %38, %39 : vector<722x128xf32>
    %41 = arith.maximumf %37, %40 : vector<722x128xf32>
    %42 = vector.broadcast %27 : vector<1x128xf32> to vector<722x128xf32>
    %43 = arith.subf %41, %42 : vector<722x128xf32>
    %44 = vector.broadcast %34 : vector<1x128xf32> to vector<722x128xf32>
    %45 = arith.mulf %43, %44 : vector<722x128xf32>
    %c0_17 = arith.constant 0 : index
    %c0_18 = arith.constant 0 : index
    %46 = vector.load %arg4[%c0_17, %c0_18] : memref<722x128xf32, #tpu.memory_space<vmem>>, vector<722x128xf32>
    tpu.vector_store %arg4[%c0_17, %c0_18], %45 {strides = array<i32>} : memref<722x128xf32, #tpu.memory_space<vmem>>, vector<722x128xf32>,
    return
  }
}

module attributes {stable_mosaic.version = 11 : i64} {
  func.func @_head_kernel(%arg0: memref<648x64xf32, #tpu.memory_space<vmem>>, %arg1: memref<64x128xf32, #tpu.memory_space<vmem>>, %arg2: memref<1x128xf32, #tpu.memory_space<vmem>>, %arg3: memref<512x128xf32, #tpu.memory_space<vmem>>, %arg4: memref<1x128xf32, #tpu.memory_space<vmem>>, %arg5: memref<152x1xf32, #tpu.memory_space<vmem>>, %arg6: memref<2048x256xf32, #tpu.memory_space<vmem>>, %arg7: memref<1x256xf32, #tpu.memory_space<vmem>>, %arg8: memref<256x128xf32, #tpu.memory_space<vmem>>, %arg9: memref<1x128xf32, #tpu.memory_space<vmem>>, %arg10: memref<2x128xf32, #tpu.memory_space<vmem>>) attributes {dimension_semantics = [], scalar_prefetch = 0 : i64, scratch_operands = 0 : i64, tpu.core_type = #tpu.core_type<tc>} {
    %c0 = arith.constant 0 : index
    %c0_0 = arith.constant 0 : index
    %0 = vector.load %arg0[%c0, %c0_0] : memref<648x64xf32, #tpu.memory_space<vmem>>, vector<648x64xf32>
    %c0_1 = arith.constant 0 : index
    %c0_2 = arith.constant 0 : index
    %1 = vector.load %arg1[%c0_1, %c0_2] : memref<64x128xf32, #tpu.memory_space<vmem>>, vector<64x128xf32>
    %cst = arith.constant dense<0.000000e+00> : vector<648x128xf32>
    %2 = tpu.matmul %0, %1, %cst {dimension_numbers = #tpu.dot_dimension_numbers<[1], [0], [0], [1], [0, 0, 1, 1], [], []>} : vector<648x64xf32>, vector<64x128xf32>, vector<648x128xf32> -> vector<648x128xf32>
    %c0_3 = arith.constant 0 : index
    %c0_4 = arith.constant 0 : index
    %3 = vector.load %arg2[%c0_3, %c0_4] : memref<1x128xf32, #tpu.memory_space<vmem>>, vector<1x128xf32>
    %4 = vector.broadcast %3 : vector<1x128xf32> to vector<648x128xf32>
    %5 = arith.addf %2, %4 : vector<648x128xf32>
    %cst_5 = arith.constant 0.000000e+00 : f32
    %6 = vector.broadcast %cst_5 : f32 to vector<648x128xf32>
    %7 = arith.maximumf %5, %6 : vector<648x128xf32>
    %cst_6 = arith.constant dense<0.000000e+00> : vector<128xf32>
    %8 = vector.multi_reduction <add>, %7, %cst_6 [0] : vector<648x128xf32> to vector<128xf32>
    %9 = vector.shape_cast %8 : vector<128xf32> to vector<1x128xf32>
    %cst_7 = arith.constant 0.00154320989 : f32
    %10 = vector.broadcast %cst_7 : f32 to vector<1x128xf32>
    %11 = arith.mulf %9, %10 : vector<1x128xf32>
    %12 = arith.mulf %7, %7 : vector<648x128xf32>
    %cst_8 = arith.constant dense<0.000000e+00> : vector<128xf32>
    %13 = vector.multi_reduction <add>, %12, %cst_8 [0] : vector<648x128xf32> to vector<128xf32>
    %14 = vector.shape_cast %13 : vector<128xf32> to vector<1x128xf32>
    %cst_9 = arith.constant 0.00154320989 : f32
    %15 = vector.broadcast %cst_9 : f32 to vector<1x128xf32>
    %16 = arith.mulf %14, %15 : vector<1x128xf32>
    %17 = arith.mulf %11, %11 : vector<1x128xf32>
    %18 = arith.subf %16, %17 : vector<1x128xf32>
    %cst_10 = arith.constant 9.99999974E-6 : f32
    %19 = vector.broadcast %cst_10 : f32 to vector<1x128xf32>
    %20 = arith.addf %18, %19 : vector<1x128xf32>
    %21 = math.rsqrt %20 : vector<1x128xf32>
    %22 = vector.extract_strided_slice %7 {offsets = [0, 0], sizes = [162, 128], strides = [1, 1]} : vector<648x128xf32> to vector<162x128xf32>
    %23 = vector.extract_strided_slice %7 {offsets = [162, 0], sizes = [162, 128], strides = [1, 1]} : vector<648x128xf32> to vector<162x128xf32>
    %24 = arith.maximumf %22, %23 : vector<162x128xf32>
    %25 = vector.extract_strided_slice %7 {offsets = [324, 0], sizes = [162, 128], strides = [1, 1]} : vector<648x128xf32> to vector<162x128xf32>
    %26 = vector.extract_strided_slice %7 {offsets = [486, 0], sizes = [162, 128], strides = [1, 1]} : vector<648x128xf32> to vector<162x128xf32>
    %27 = arith.maximumf %25, %26 : vector<162x128xf32>
    %28 = arith.maximumf %24, %27 : vector<162x128xf32>
    %29 = vector.broadcast %11 : vector<1x128xf32> to vector<162x128xf32>
    %30 = arith.subf %28, %29 : vector<162x128xf32>
    %31 = vector.broadcast %21 : vector<1x128xf32> to vector<162x128xf32>
    %32 = arith.mulf %30, %31 : vector<162x128xf32>
    %c0_11 = arith.constant 0 : index
    %c0_12 = arith.constant 0 : index
    %33 = vector.load %arg3[%c0_11, %c0_12] : memref<512x128xf32, #tpu.memory_space<vmem>>, vector<512x128xf32>
    %34 = vector.extract_strided_slice %32 {offsets = [0, 0], sizes = [152, 128], strides = [1, 1]} : vector<162x128xf32> to vector<152x128xf32>
    %35 = vector.extract_strided_slice %33 {offsets = [0, 0], sizes = [128, 128], strides = [1, 1]} : vector<512x128xf32> to vector<128x128xf32>
    %cst_13 = arith.constant dense<0.000000e+00> : vector<152x128xf32>
    %36 = tpu.matmul %34, %35, %cst_13 {dimension_numbers = #tpu.dot_dimension_numbers<[1], [0], [0], [1], [0, 0, 1, 1], [], []>} : vector<152x128xf32>, vector<128x128xf32>, vector<152x128xf32> -> vector<152x128xf32>
    %37 = vector.extract_strided_slice %32 {offsets = [1, 0], sizes = [152, 128], strides = [1, 1]} : vector<162x128xf32> to vector<152x128xf32>
    %38 = vector.extract_strided_slice %33 {offsets = [128, 0], sizes = [128, 128], strides = [1, 1]} : vector<512x128xf32> to vector<128x128xf32>
    %cst_14 = arith.constant dense<0.000000e+00> : vector<152x128xf32>
    %39 = tpu.matmul %37, %38, %cst_14 {dimension_numbers = #tpu.dot_dimension_numbers<[1], [0], [0], [1], [0, 0, 1, 1], [], []>} : vector<152x128xf32>, vector<128x128xf32>, vector<152x128xf32> -> vector<152x128xf32>
    %40 = arith.addf %36, %39 : vector<152x128xf32>
    %41 = vector.extract_strided_slice %32 {offsets = [9, 0], sizes = [152, 128], strides = [1, 1]} : vector<162x128xf32> to vector<152x128xf32>
    %42 = vector.extract_strided_slice %33 {offsets = [256, 0], sizes = [128, 128], strides = [1, 1]} : vector<512x128xf32> to vector<128x128xf32>
    %cst_15 = arith.constant dense<0.000000e+00> : vector<152x128xf32>
    %43 = tpu.matmul %41, %42, %cst_15 {dimension_numbers = #tpu.dot_dimension_numbers<[1], [0], [0], [1], [0, 0, 1, 1], [], []>} : vector<152x128xf32>, vector<128x128xf32>, vector<152x128xf32> -> vector<152x128xf32>
    %44 = arith.addf %40, %43 : vector<152x128xf32>
    %45 = vector.extract_strided_slice %32 {offsets = [10, 0], sizes = [152, 128], strides = [1, 1]} : vector<162x128xf32> to vector<152x128xf32>
    %46 = vector.extract_strided_slice %33 {offsets = [384, 0], sizes = [128, 128], strides = [1, 1]} : vector<512x128xf32> to vector<128x128xf32>
    %cst_16 = arith.constant dense<0.000000e+00> : vector<152x128xf32>
    %47 = tpu.matmul %45, %46, %cst_16 {dimension_numbers = #tpu.dot_dimension_numbers<[1], [0], [0], [1], [0, 0, 1, 1], [], []>} : vector<152x128xf32>, vector<128x128xf32>, vector<152x128xf32> -> vector<152x128xf32>
    %48 = arith.addf %44, %47 : vector<152x128xf32>
    %c0_17 = arith.constant 0 : index
    %c0_18 = arith.constant 0 : index
    %49 = vector.load %arg4[%c0_17, %c0_18] : memref<1x128xf32, #tpu.memory_space<vmem>>, vector<1x128xf32>
    %50 = vector.broadcast %49 : vector<1x128xf32> to vector<152x128xf32>
    %51 = arith.addf %48, %50 : vector<152x128xf32>
    %cst_19 = arith.constant 0.000000e+00 : f32
    %52 = vector.broadcast %cst_19 : f32 to vector<152x128xf32>
    %53 = arith.maximumf %51, %52 : vector<152x128xf32>
    %c0_20 = arith.constant 0 : index
    %c0_21 = arith.constant 0 : index
    %54 = vector.load %arg5[%c0_20, %c0_21] : memref<152x1xf32, #tpu.memory_space<vmem>>, vector<152x1xf32>
    %55 = vector.broadcast %54 : vector<152x1xf32> to vector<152x128xf32>
    %56 = arith.mulf %53, %55 : vector<152x128xf32>
    %cst_22 = arith.constant dense<0.000000e+00> : vector<128xf32>
    %57 = vector.multi_reduction <add>, %56, %cst_22 [0] : vector<152x128xf32> to vector<128xf32>
    %58 = vector.shape_cast %57 : vector<128xf32> to vector<1x128xf32>
    %cst_23 = arith.constant 7.812500e-03 : f32
    %59 = vector.broadcast %cst_23 : f32 to vector<1x128xf32>
    %60 = arith.mulf %58, %59 : vector<1x128xf32>
    %61 = arith.mulf %56, %53 : vector<152x128xf32>
    %cst_24 = arith.constant dense<0.000000e+00> : vector<128xf32>
    %62 = vector.multi_reduction <add>, %61, %cst_24 [0] : vector<152x128xf32> to vector<128xf32>
    %63 = vector.shape_cast %62 : vector<128xf32> to vector<1x128xf32>
    %cst_25 = arith.constant 7.812500e-03 : f32
    %64 = vector.broadcast %cst_25 : f32 to vector<1x128xf32>
    %65 = arith.mulf %63, %64 : vector<1x128xf32>
    %66 = arith.mulf %60, %60 : vector<1x128xf32>
    %67 = arith.subf %65, %66 : vector<1x128xf32>
    %cst_26 = arith.constant 9.99999974E-6 : f32
    %68 = vector.broadcast %cst_26 : f32 to vector<1x128xf32>
    %69 = arith.addf %67, %68 : vector<1x128xf32>
    %70 = math.rsqrt %69 : vector<1x128xf32>
    %71 = vector.extract_strided_slice %53 {offsets = [0, 0], sizes = [142, 128], strides = [1, 1]} : vector<152x128xf32> to vector<142x128xf32>
    %72 = vector.extract_strided_slice %53 {offsets = [1, 0], sizes = [142, 128], strides = [1, 1]} : vector<152x128xf32> to vector<142x128xf32>
    %73 = arith.maximumf %71, %72 : vector<142x128xf32>
    %74 = vector.extract_strided_slice %53 {offsets = [9, 0], sizes = [142, 128], strides = [1, 1]} : vector<152x128xf32> to vector<142x128xf32>
    %75 = vector.extract_strided_slice %53 {offsets = [10, 0], sizes = [142, 128], strides = [1, 1]} : vector<152x128xf32> to vector<142x128xf32>
    %76 = arith.maximumf %74, %75 : vector<142x128xf32>
    %77 = arith.maximumf %73, %76 : vector<142x128xf32>
    %78 = vector.broadcast %60 : vector<1x128xf32> to vector<142x128xf32>
    %79 = arith.subf %77, %78 : vector<142x128xf32>
    %80 = vector.broadcast %70 : vector<1x128xf32> to vector<142x128xf32>
    %81 = arith.mulf %79, %80 : vector<142x128xf32>
    %82 = vector.extract_strided_slice %81 {offsets = [0, 0], sizes = [1, 128], strides = [1, 1]} : vector<142x128xf32> to vector<1x128xf32>
    %83 = vector.extract_strided_slice %81 {offsets = [81, 0], sizes = [1, 128], strides = [1, 1]} : vector<142x128xf32> to vector<1x128xf32>
    %84 = tpu.concatenate %82, %83 in 0 : vector<1x128xf32>, vector<1x128xf32> -> vector<2x128xf32>
    %85 = vector.extract_strided_slice %81 {offsets = [2, 0], sizes = [1, 128], strides = [1, 1]} : vector<142x128xf32> to vector<1x128xf32>
    %86 = vector.extract_strided_slice %81 {offsets = [83, 0], sizes = [1, 128], strides = [1, 1]} : vector<142x128xf32> to vector<1x128xf32>
    %87 = tpu.concatenate %85, %86 in 0 : vector<1x128xf32>, vector<1x128xf32> -> vector<2x128xf32>
    %88 = vector.extract_strided_slice %81 {offsets = [4, 0], sizes = [1, 128], strides = [1, 1]} : vector<142x128xf32> to vector<1x128xf32>
    %89 = vector.extract_strided_slice %81 {offsets = [85, 0], sizes = [1, 128], strides = [1, 1]} : vector<142x128xf32> to vector<1x128xf32>
    %90 = tpu.concatenate %88, %89 in 0 : vector<1x128xf32>, vector<1x128xf32> -> vector<2x128xf32>
    %91 = vector.extract_strided_slice %81 {offsets = [6, 0], sizes = [1, 128], strides = [1, 1]} : vector<142x128xf32> to vector<1x128xf32>
    %92 = vector.extract_strided_slice %81 {offsets = [87, 0], sizes = [1, 128], strides = [1, 1]} : vector<142x128xf32> to vector<1x128xf32>
    %93 = tpu.concatenate %91, %92 in 0 : vector<1x128xf32>, vector<1x128xf32> -> vector<2x128xf32>
    %94 = vector.extract_strided_slice %81 {offsets = [18, 0], sizes = [1, 128], strides = [1, 1]} : vector<142x128xf32> to vector<1x128xf32>
    %95 = vector.extract_strided_slice %81 {offsets = [99, 0], sizes = [1, 128], strides = [1, 1]} : vector<142x128xf32> to vector<1x128xf32>
    %96 = tpu.concatenate %94, %95 in 0 : vector<1x128xf32>, vector<1x128xf32> -> vector<2x128xf32>
    %97 = vector.extract_strided_slice %81 {offsets = [20, 0], sizes = [1, 128], strides = [1, 1]} : vector<142x128xf32> to vector<1x128xf32>
    %98 = vector.extract_strided_slice %81 {offsets = [101, 0], sizes = [1, 128], strides = [1, 1]} : vector<142x128xf32> to vector<1x128xf32>
    %99 = tpu.concatenate %97, %98 in 0 : vector<1x128xf32>, vector<1x128xf32> -> vector<2x128xf32>
    %100 = vector.extract_strided_slice %81 {offsets = [22, 0], sizes = [1, 128], strides = [1, 1]} : vector<142x128xf32> to vector<1x128xf32>
    %101 = vector.extract_strided_slice %81 {offsets = [103, 0], sizes = [1, 128], strides = [1, 1]} : vector<142x128xf32> to vector<1x128xf32>
    %102 = tpu.concatenate %100, %101 in 0 : vector<1x128xf32>, vector<1x128xf32> -> vector<2x128xf32>
    %103 = vector.extract_strided_slice %81 {offsets = [24, 0], sizes = [1, 128], strides = [1, 1]} : vector<142x128xf32> to vector<1x128xf32>
    %104 = vector.extract_strided_slice %81 {offsets = [105, 0], sizes = [1, 128], strides = [1, 1]} : vector<142x128xf32> to vector<1x128xf32>
    %105 = tpu.concatenate %103, %104 in 0 : vector<1x128xf32>, vector<1x128xf32> -> vector<2x128xf32>
    %106 = vector.extract_strided_slice %81 {offsets = [36, 0], sizes = [1, 128], strides = [1, 1]} : vector<142x128xf32> to vector<1x128xf32>
    %107 = vector.extract_strided_slice %81 {offsets = [117, 0], sizes = [1, 128], strides = [1, 1]} : vector<142x128xf32> to vector<1x128xf32>
    %108 = tpu.concatenate %106, %107 in 0 : vector<1x128xf32>, vector<1x128xf32> -> vector<2x128xf32>
    %109 = vector.extract_strided_slice %81 {offsets = [38, 0], sizes = [1, 128], strides = [1, 1]} : vector<142x128xf32> to vector<1x128xf32>
    %110 = vector.extract_strided_slice %81 {offsets = [119, 0], sizes = [1, 128], strides = [1, 1]} : vector<142x128xf32> to vector<1x128xf32>
    %111 = tpu.concatenate %109, %110 in 0 : vector<1x128xf32>, vector<1x128xf32> -> vector<2x128xf32>
    %112 = vector.extract_strided_slice %81 {offsets = [40, 0], sizes = [1, 128], strides = [1, 1]} : vector<142x128xf32> to vector<1x128xf32>
    %113 = vector.extract_strided_slice %81 {offsets = [121, 0], sizes = [1, 128], strides = [1, 1]} : vector<142x128xf32> to vector<1x128xf32>
    %114 = tpu.concatenate %112, %113 in 0 : vector<1x128xf32>, vector<1x128xf32> -> vector<2x128xf32>
    %115 = vector.extract_strided_slice %81 {offsets = [42, 0], sizes = [1, 128], strides = [1, 1]} : vector<142x128xf32> to vector<1x128xf32>
    %116 = vector.extract_strided_slice %81 {offsets = [123, 0], sizes = [1, 128], strides = [1, 1]} : vector<142x128xf32> to vector<1x128xf32>
    %117 = tpu.concatenate %115, %116 in 0 : vector<1x128xf32>, vector<1x128xf32> -> vector<2x128xf32>
    %118 = vector.extract_strided_slice %81 {offsets = [54, 0], sizes = [1, 128], strides = [1, 1]} : vector<142x128xf32> to vector<1x128xf32>
    %119 = vector.extract_strided_slice %81 {offsets = [135, 0], sizes = [1, 128], strides = [1, 1]} : vector<142x128xf32> to vector<1x128xf32>
    %120 = tpu.concatenate %118, %119 in 0 : vector<1x128xf32>, vector<1x128xf32> -> vector<2x128xf32>
    %121 = vector.extract_strided_slice %81 {offsets = [56, 0], sizes = [1, 128], strides = [1, 1]} : vector<142x128xf32> to vector<1x128xf32>
    %122 = vector.extract_strided_slice %81 {offsets = [137, 0], sizes = [1, 128], strides = [1, 1]} : vector<142x128xf32> to vector<1x128xf32>
    %123 = tpu.concatenate %121, %122 in 0 : vector<1x128xf32>, vector<1x128xf32> -> vector<2x128xf32>
    %124 = vector.extract_strided_slice %81 {offsets = [58, 0], sizes = [1, 128], strides = [1, 1]} : vector<142x128xf32> to vector<1x128xf32>
    %125 = vector.extract_strided_slice %81 {offsets = [139, 0], sizes = [1, 128], strides = [1, 1]} : vector<142x128xf32> to vector<1x128xf32>
    %126 = tpu.concatenate %124, %125 in 0 : vector<1x128xf32>, vector<1x128xf32> -> vector<2x128xf32>
    %127 = vector.extract_strided_slice %81 {offsets = [60, 0], sizes = [1, 128], strides = [1, 1]} : vector<142x128xf32> to vector<1x128xf32>
    %128 = vector.extract_strided_slice %81 {offsets = [141, 0], sizes = [1, 128], strides = [1, 1]} : vector<142x128xf32> to vector<1x128xf32>
    %129 = tpu.concatenate %127, %128 in 0 : vector<1x128xf32>, vector<1x128xf32> -> vector<2x128xf32>
    %130 = tpu.concatenate %84, %87, %90, %93, %96, %99, %102, %105, %108, %111, %114, %117, %120, %123, %126, %129 in 1 : vector<2x128xf32>, vector<2x128xf32>, vector<2x128xf32>, vector<2x128xf32>, vector<2x128xf32>, vector<2x128xf32>, vector<2x128xf32>, vector<2x128xf32>, vector<2x128xf32>, vector<2x128xf32>, vector<2x128xf32>, vector<2x128xf32>, vector<2x128xf32>, vector<2x128xf32>, vector<2x128xf32>, vector<2x128xf32> -> vector<2x2048xf32>
    %c0_27 = arith.constant 0 : index
    %c0_28 = arith.constant 0 : index
    %131 = vector.load %arg6[%c0_27, %c0_28] : memref<2048x256xf32, #tpu.memory_space<vmem>>, vector<2048x256xf32>
    %cst_29 = arith.constant dense<0.000000e+00> : vector<2x256xf32>
    %132 = tpu.matmul %130, %131, %cst_29 {dimension_numbers = #tpu.dot_dimension_numbers<[1], [0], [0], [1], [0, 0, 1, 1], [], []>} : vector<2x2048xf32>, vector<2048x256xf32>, vector<2x256xf32> -> vector<2x256xf32>
    %c0_30 = arith.constant 0 : index
    %c0_31 = arith.constant 0 : index
    %133 = vector.load %arg7[%c0_30, %c0_31] : memref<1x256xf32, #tpu.memory_space<vmem>>, vector<1x256xf32>
    %134 = vector.broadcast %133 : vector<1x256xf32> to vector<2x256xf32>
    %135 = arith.addf %132, %134 : vector<2x256xf32>
    %cst_32 = arith.constant 0.000000e+00 : f32
    %136 = vector.broadcast %cst_32 : f32 to vector<2x256xf32>
    %137 = arith.maximumf %135, %136 : vector<2x256xf32>
    %c0_33 = arith.constant 0 : index
    %c0_34 = arith.constant 0 : index
    %138 = vector.load %arg8[%c0_33, %c0_34] : memref<256x128xf32, #tpu.memory_space<vmem>>, vector<256x128xf32>
    %cst_35 = arith.constant dense<0.000000e+00> : vector<2x128xf32>
    %139 = tpu.matmul %137, %138, %cst_35 {dimension_numbers = #tpu.dot_dimension_numbers<[1], [0], [0], [1], [0, 0, 1, 1], [], []>} : vector<2x256xf32>, vector<256x128xf32>, vector<2x128xf32> -> vector<2x128xf32>
    %c0_36 = arith.constant 0 : index
    %c0_37 = arith.constant 0 : index
    %140 = vector.load %arg9[%c0_36, %c0_37] : memref<1x128xf32, #tpu.memory_space<vmem>>, vector<1x128xf32>
    %141 = vector.broadcast %140 : vector<1x128xf32> to vector<2x128xf32>
    %142 = arith.addf %139, %141 : vector<2x128xf32>
    %c0_38 = arith.constant 0 : index
    %c0_39 = arith.constant 0 : index
    %143 = vector.load %arg10[%c0_38, %c0_39] : memref<2x128xf32, #tpu.memory_space<vmem>>, vector<2x128xf32>
    tpu.vector_store %arg10[%c0_38, %c0_39], %142 {strides = array<i32>} : memref<2x128xf32, #tpu.memory_space<vmem>>, vector<2x128xf32>,
    return
  }
}

</mosaic_0001>

<llo_original>
// kernel: squeeze.3
$region0: #{squeeze.3}
  %s0 = inlined_call_operand.vmem [shape: f32[2,38,1,64], index: 0, kind: input, shape index: {}]
  %s1 = inlined_call_operand.vmem [shape: f32[76,64], index: 1, kind: output, shape index: {}]
  %v2 = vld [vmem:[%s0] sm:$0xff]
  %vm3 = vcmask 523264
  %4 = vst.msk [vmem:[%s1] sm:$0xff] %vm3, %v2
  %s5 = scalar_lea.vmem %s0, 8
  %v6 = vld [vmem:[%s5] sm:$0xff]
  %vm7 = vcmask 523264
  %s8 = scalar_lea.vmem %s1, 8
  %9 = vst.msk [vmem:[%s8] sm:$0xff] %vm7, %v6
  %s10 = scalar_lea.vmem %s0, 16
  %v11 = vld [vmem:[%s10] sm:$0xff]
  %vm12 = vcmask 523264
  %s13 = scalar_lea.vmem %s1, 16
  %14 = vst.msk [vmem:[%s13] sm:$0xff] %vm12, %v11
  %s15 = scalar_lea.vmem %s0, 24
  %v16 = vld [vmem:[%s15] sm:$0xff]
  %vm17 = vcmask 523264
  %s18 = scalar_lea.vmem %s1, 24
  %19 = vst.msk [vmem:[%s18] sm:$0xff] %vm17, %v16
  %s20 = scalar_lea.vmem %s0, 32
  %v21 = vld [vmem:[%s20] sm:$0x3f]
  %vm22 = vcmask 523264
  %s23 = scalar_lea.vmem %s1, 32
  %24 = vst.msk [vmem:[%s23] sm:$0x3f] %vm22, %v21
  %s25 = scalar_lea.vmem %s0, 40
  %v26 = vld [vmem:[%s25] sm:$0xff]
  %vm27 = vcmask 523264
  %s28 = scalar_lea.vmem %s1, 38
  %29 = vst.msk [vmem:[%s28] sm:$0xff] %vm27, %v26
  %s30 = scalar_lea.vmem %s0, 48
  %v31 = vld [vmem:[%s30] sm:$0xff]
  %vm32 = vcmask 523264
  %s33 = scalar_lea.vmem %s1, 46
  %34 = vst.msk [vmem:[%s33] sm:$0xff] %vm32, %v31
  %s35 = scalar_lea.vmem %s0, 56
  %v36 = vld [vmem:[%s35] sm:$0xff]
  %vm37 = vcmask 523264
  %s38 = scalar_lea.vmem %s1, 54
  %39 = vst.msk [vmem:[%s38] sm:$0xff] %vm37, %v36
  %s40 = scalar_lea.vmem %s0, 64
  %v41 = vld [vmem:[%s40] sm:$0xff]
  %vm42 = vcmask 523264
  %s43 = scalar_lea.vmem %s1, 62
  %44 = vst.msk [vmem:[%s43] sm:$0xff] %vm42, %v41
  %s45 = scalar_lea.vmem %s0, 72
  %v46 = vld [vmem:[%s45] sm:$0x3f]
  %vm47 = vcmask 523264
  %s48 = scalar_lea.vmem %s1, 70
  %49 = vst.msk [vmem:[%s48] sm:$0x3f] %vm47, %v46

// kernel: squeeze.2
$region0: #{squeeze.2}
  %s0 = inlined_call_operand.vmem [shape: f32[2,1,39,64], index: 0, kind: input, shape index: {}]
  %s1 = inlined_call_operand.vmem [shape: f32[78,64], index: 1, kind: output, shape index: {}]
  %v2 = vld [vmem:[%s0] sm:$0xff]
  %vm3 = vcmask 523264
  %4 = vst.msk [vmem:[%s1] sm:$0xff] %vm3, %v2
  %s5 = scalar_lea.vmem %s0, 8
  %v6 = vld [vmem:[%s5] sm:$0xff]
  %vm7 = vcmask 523264
  %s8 = scalar_lea.vmem %s1, 8
  %9 = vst.msk [vmem:[%s8] sm:$0xff] %vm7, %v6
  %s10 = scalar_lea.vmem %s0, 16
  %v11 = vld [vmem:[%s10] sm:$0xff]
  %vm12 = vcmask 523264
  %s13 = scalar_lea.vmem %s1, 16
  %14 = vst.msk [vmem:[%s13] sm:$0xff] %vm12, %v11
  %s15 = scalar_lea.vmem %s0, 24
  %v16 = vld [vmem:[%s15] sm:$0xff]
  %vm17 = vcmask 523264
  %s18 = scalar_lea.vmem %s1, 24
  %19 = vst.msk [vmem:[%s18] sm:$0xff] %vm17, %v16
  %s20 = scalar_lea.vmem %s0, 32
  %v21 = vld [vmem:[%s20] sm:$0x7f]
  %vm22 = vcmask 523264
  %s23 = scalar_lea.vmem %s1, 32
  %24 = vst.msk [vmem:[%s23] sm:$0x7f] %vm22, %v21
  %s25 = scalar_lea.vmem %s0, 40
  %v26 = vld [vmem:[%s25] sm:$0xff]
  %vm27 = vcmask 523264
  %s28 = scalar_lea.vmem %s1, 39
  %29 = vst.msk [vmem:[%s28] sm:$0xff] %vm27, %v26
  %s30 = scalar_lea.vmem %s0, 48
  %v31 = vld [vmem:[%s30] sm:$0xff]
  %vm32 = vcmask 523264
  %s33 = scalar_lea.vmem %s1, 47
  %34 = vst.msk [vmem:[%s33] sm:$0xff] %vm32, %v31
  %s35 = scalar_lea.vmem %s0, 56
  %v36 = vld [vmem:[%s35] sm:$0xff]
  %vm37 = vcmask 523264
  %s38 = scalar_lea.vmem %s1, 55
  %39 = vst.msk [vmem:[%s38] sm:$0xff] %vm37, %v36
  %s40 = scalar_lea.vmem %s0, 64
  %v41 = vld [vmem:[%s40] sm:$0xff]
  %vm42 = vcmask 523264
  %s43 = scalar_lea.vmem %s1, 63
  %44 = vst.msk [vmem:[%s43] sm:$0xff] %vm42, %v41
  %s45 = scalar_lea.vmem %s0, 72
  %v46 = vld [vmem:[%s45] sm:$0x7f]
  %vm47 = vcmask 523264
  %s48 = scalar_lea.vmem %s1, 71
  %49 = vst.msk [vmem:[%s48] sm:$0x7f] %vm47, %v46

// kernel: forward.2
$region0: #{forward.2}
  #allocation0 [shape = 'u32[]', space=smem, size = 0x4, offset = 0x4, fixed_abs, tag = 'smem constant byte address 0x4 - core index']
  #allocation1 [shape = 'u32[72,128]{1,0:T(1,128)}', space=vmem, size = 0x9000, scoped, tag = 'internal scratch']
  %s0 = inlined_call_operand.vmem [shape: f32[2888,64], index: 0, kind: input, shape index: {}]
  %s1 = inlined_call_operand.vmem [shape: f32[154,64], index: 1, kind: input, shape index: {}]
  %s2 = inlined_call_operand.vmem [shape: f32[64,128], index: 2, kind: input, shape index: {}]
  %s3 = inlined_call_operand.vmem [shape: f32[1,128], index: 3, kind: input, shape index: {}]
  %s4 = inlined_call_operand.vmem [shape: f32[722,128], index: 4, kind: output, shape index: {}]
  %s5 = sld [smem:[#allocation0]]
  $region26: #{forward.2} parent=0
    _
  %s7 = ssub.s32 1, %s5
  %s8 = scalar_select 0, %s7, %s5
  // Predicated region
  $region2: #{forward.2} parent=0 // pred_check
    _
  $region3: #{forward.2} parent=0 // pred_check_branch
    %10 = sbr.rel (0) target = $region5
  $region4: #{forward.2} parent=0 // pred_region
    _
  $region5: #{forward.2} parent=0 // pred_fallthru
    _
  // Predicated region
  $region6: #{forward.2} parent=0 // pred_check
    _
  $region7: #{forward.2} parent=0 // pred_check_branch
    %12 = sbr.rel (0) target = $region9
  $region8: #{forward.2} parent=0 // pred_region
    _
  $region9: #{forward.2} parent=0 // pred_fallthru
    _
  // Predicated region
  $region10: #{forward.2} parent=0 // pred_check
    _
  $region11: #{forward.2} parent=0 // pred_check_branch
    %14 = sbr.rel (0) target = $region13
  $region12: #{forward.2} parent=0 // pred_region
    _
  $region13: #{forward.2} parent=0 // pred_fallthru
    _
  // Predicated region
  $region14: #{forward.2} parent=0 // pred_check
    _
  $region15: #{forward.2} parent=0 // pred_check_branch
    %16 = sbr.rel (0) target = $region17
  $region16: #{forward.2} parent=0 // pred_region
    _
  $region17: #{forward.2} parent=0 // pred_fallthru
    _
  %v17 = vld [vmem:[%s2] sm:$0xff]
  %v18 = vld [vmem:[%s2 + $0x8] sm:$0xff]
  %v19 = vld [vmem:[%s2 + $0x10] sm:$0xff]
  %v20 = vld [vmem:[%s2 + $0x18] sm:$0xff]
  %v21 = vld [vmem:[%s2 + $0x20] sm:$0xff]
  %v22 = vld [vmem:[%s2 + $0x28] sm:$0xff]
  %v23 = vld [vmem:[%s2 + $0x30] sm:$0xff]
  %v24 = vld [vmem:[%s2 + $0x38] sm:$0xff]
  %v25 = vld [vmem:[%s3] sm:$0x1]
  %v26 = vld [vmem:[%s0] sm:$0xff]
  %v27 = vld [vmem:[%s0 + $0x8] sm:$0xff]
  %v28 = vld [vmem:[%s0 + $0x10] sm:$0xff]
  %v29 = vld [vmem:[%s0 + $0x18] sm:$0xff]
  %v30 = vld [vmem:[%s0 + $0x20] sm:$0xff]
  %v31 = vld [vmem:[%s0 + $0x28] sm:$0xff]
  %v32 = vld [vmem:[%s0 + $0x30] sm:$0xff]
  %v33 = vld [vmem:[%s0 + $0x38] sm:$0xff]
  %v34 = vld [vmem:[%s0 + $0x40] sm:$0xff]
  %v35 = vld [vmem:[%s0 + $0x48] sm:$0xff]
  %v36 = vld [vmem:[%s0 + $0x50] sm:$0xff]
  %v37 = vld [vmem:[%s0 + $0x58] sm:$0xff]
  %v38 = vld [vmem:[%s0 + $0x60] sm:$0xff]
  %v39 = vld [vmem:[%s0 + $0x68] sm:$0xff]
  %v40 = vld [vmem:[%s0 + $0x70] sm:$0xff]
  %v41 = vld [vmem:[%s0 + $0x78] sm:$0xff]
  %v42 = vld [vmem:[%s0 + $0x80] sm:$0xff]
  %v43 = vld [vmem:[%s0 + $0x88] sm:$0xff]
  %v44 = vld [vmem:[%s0 + $0x90] sm:$0xff]
  %v45 = vld [vmem:[%s0 + $0x98] sm:$0xff]
  %v46 = vld [vmem:[%s0 + $0xa0] sm:$0xff]
  %v47 = vld [vmem:[%s0 + $0xa8] sm:$0xff]
  %v48 = vld [vmem:[%s0 + $0xb0] sm:$0xff]
  %v49 = vld [vmem:[%s0 + $0xb8] sm:$0xff]
  %v50 = vld [vmem:[%s0 + $0xc0] sm:$0xff]
  %v51 = vld [vmem:[%s0 + $0xc8] sm:$0xff]
  %v52 = vld [vmem:[%s0 + $0xd0] sm:$0xff]
  %v53 = vld [vmem:[%s0 + $0xd8] sm:$0xff]
  %v54 = vld [vmem:[%s0 + $0xe0] sm:$0xff]
  %v55 = vld [vmem:[%s0 + $0xe8] sm:$0xff]
  %v56 = vld [vmem:[%s0 + $0xf0] sm:$0xff]
  %v57 = vld [vmem:[%s0 + $0xf8] sm:$0xff]
  %v58 = vld [vmem:[%s0 + $0x100] sm:$0xff]
  %v59 = vld [vmem:[%s0 + $0x108] sm:$0xff]
  %v60 = vld [vmem:[%s0 + $0x110] sm:$0xff]
  %v61 = vld [vmem:[%s0 + $0x118] sm:$0xff]
  %v62 = vld [vmem:[%s0 + $0x120] sm:$0xff]
  %v63 = vld [vmem:[%s0 + $0x128] sm:$0xff]
  %v64 = vld [vmem:[%s0 + $0x130] sm:$0xff]
  %v65 = vld [vmem:[%s0 + $0x138] sm:$0xff]
  %v66 = vld [vmem:[%s0 + $0x140] sm:$0xff]
  %v67 = vld [vmem:[%s0 + $0x148] sm:$0xff]
  %v68 = vld [vmem:[%s0 + $0x150] sm:$0xff]
  %v69 = vld [vmem:[%s0 + $0x158] sm:$0xff]
  %v70 = vld [vmem:[%s0 + $0x160] sm:$0xff]
  %v71 = vld [vmem:[%s0 + $0x168] sm:$0xff]
  %v72 = vld [vmem:[%s0 + $0x170] sm:$0xff]
  %v73 = vld [vmem:[%s0 + $0x178] sm:$0xff]
  %v74 = vld [vmem:[%s0 + $0x180] sm:$0xff]
  %v75 = vld [vmem:[%s0 + $0x188] sm:$0xff]
  %v76 = vld [vmem:[%s0 + $0x190] sm:$0xff]
  %v77 = vld [vmem:[%s0 + $0x198] sm:$0xff]
  %v78 = vld [vmem:[%s0 + $0x1a0] sm:$0xff]
  %v79 = vld [vmem:[%s0 + $0x1a8] sm:$0xff]
  %v80 = vld [vmem:[%s0 + $0x1b0] sm:$0xff]
  %v81 = vld [vmem:[%s0 + $0x1b8] sm:$0xff]
  %v82 = vld [vmem:[%s0 + $0x1c0] sm:$0xff]
  %v83 = vld [vmem:[%s0 + $0x1c8] sm:$0xff]
  %v84 = vld [vmem:[%s0 + $0x1d0] sm:$0xff]
  %v85 = vld [vmem:[%s0 + $0x1d8] sm:$0xff]
  %v86 = vld [vmem:[%s0 + $0x1e0] sm:$0xff]
  %v87 = vld [vmem:[%s0 + $0x1e8] sm:$0xff]
  %v88 = vld [vmem:[%s0 + $0x1f0] sm:$0xff]
  %v89 = vld [vmem:[%s0 + $0x1f8] sm:$0xff]
  %v90 = vld [vmem:[%s0 + $0x200] sm:$0xff]
  %v91 = vld [vmem:[%s0 + $0x208] sm:$0xff]
  %v92 = vld [vmem:[%s0 + $0x210] sm:$0xff]
  %v93 = vld [vmem:[%s0 + $0x218] sm:$0xff]
  %v94 = vld [vmem:[%s0 + $0x220] sm:$0xff]
  %v95 = vld [vmem:[%s0 + $0x228] sm:$0xff]
  %v96 = vld [vmem:[%s0 + $0x230] sm:$0xff]
  %v97 = vld [vmem:[%s0 + $0x238] sm:$0xff]
  %v98 = vld [vmem:[%s0 + $0x240] sm:$0xff]
  %v99 = vld [vmem:[%s0 + $0x248] sm:$0xff]
  %v100 = vld [vmem:[%s0 + $0x250] sm:$0xff]
  %v101 = vld [vmem:[%s0 + $0x258] sm:$0xff]
  %v102 = vld [vmem:[%s0 + $0x260] sm:$0xff]
  %v103 = vld [vmem:[%s0 + $0x268] sm:$0xff]
  %v104 = vld [vmem:[%s0 + $0x270] sm:$0xff]
  %v105 = vld [vmem:[%s0 + $0x278] sm:$0xff]
  %v106 = vld [vmem:[%s0 + $0x280] sm:$0xff]
  %v107 = vld [vmem:[%s0 + $0x288] sm:$0xff]
  %v108 = vld [vmem:[%s0 + $0x290] sm:$0xff]
  %v109 = vld [vmem:[%s0 + $0x298] sm:$0xff]
  %v110 = vld [vmem:[%s0 + $0x2a0] sm:$0xff]
  %v111 = vld [vmem:[%s0 + $0x2a8] sm:$0xff]
  %v112 = vld [vmem:[%s0 + $0x2b0] sm:$0xff]
  %v113 = vld [vmem:[%s0 + $0x2b8] sm:$0xff]
  %v114 = vld [vmem:[%s0 + $0x2c0] sm:$0xff]
  %v115 = vld [vmem:[%s0 + $0x2c8] sm:$0xff]
  %v116 = vld [vmem:[%s0 + $0x2d0] sm:$0xff]
  %v117 = vld [vmem:[%s0 + $0x2d8] sm:$0xff]
  %v118 = vld [vmem:[%s0 + $0x2e0] sm:$0xff]
  %v119 = vld [vmem:[%s0 + $0x2e8] sm:$0xff]
  %v120 = vld [vmem:[%s0 + $0x2f0] sm:$0xff]
  %v121 = vld [vmem:[%s0 + $0x2f8] sm:$0xff]
  %v122 = vld [vmem:[%s0 + $0x300] sm:$0xff]
  %v123 = vld [vmem:[%s0 + $0x308] sm:$0xff]
  %v124 = vld [vmem:[%s0 + $0x310] sm:$0xff]
  %v125 = vld [vmem:[%s0 + $0x318] sm:$0xff]
  %v126 = vld [vmem:[%s0 + $0x320] sm:$0xff]
  %v127 = vld [vmem:[%s0 + $0x328] sm:$0xff]
  %v128 = vld [vmem:[%s0 + $0x330] sm:$0xff]
  %v129 = vld [vmem:[%s0 + $0x338] sm:$0xff]
  %v130 = vld [vmem:[%s0 + $0x340] sm:$0xff]
  %v131 = vld [vmem:[%s0 + $0x348] sm:$0xff]
  %v132 = vld [vmem:[%s0 + $0x350] sm:$0xff]
  %v133 = vld [vmem:[%s0 + $0x358] sm:$0xff]
  %v134 = vld [vmem:[%s0 + $0x360] sm:$0xff]
  %v135 = vld [vmem:[%s0 + $0x368] sm:$0xff]
  %v136 = vld [vmem:[%s0 + $0x370] sm:$0xff]
  %v137 = vld [vmem:[%s0 + $0x378] sm:$0xff]
  %v138 = vld [vmem:[%s0 + $0x380] sm:$0xff]
  %v139 = vld [vmem:[%s0 + $0x388] sm:$0xff]
  %v140 = vld [vmem:[%s0 + $0x390] sm:$0xff]
  %v141 = vld [vmem:[%s0 + $0x398] sm:$0xff]
  %v142 = vld [vmem:[%s0 + $0x3a0] sm:$0xff]
  %v143 = vld [vmem:[%s0 + $0x3a8] sm:$0xff]
  %v144 = vld [vmem:[%s0 + $0x3b0] sm:$0xff]
  %v145 = vld [vmem:[%s0 + $0x3b8] sm:$0xff]
  %v146 = vld [vmem:[%s0 + $0x3c0] sm:$0xff]
  %v147 = vld [vmem:[%s0 + $0x3c8] sm:$0xff]
  %v148 = vld [vmem:[%s0 + $0x3d0] sm:$0xff]
  %v149 = vld [vmem:[%s0 + $0x3d8] sm:$0xff]
  %v150 = vld [vmem:[%s0 + $0x3e0] sm:$0xff]
  %v151 = vld [vmem:[%s0 + $0x3e8] sm:$0xff]
  %v152 = vld [vmem:[%s0 + $0x3f0] sm:$0xff]
  %v153 = vld [vmem:[%s0 + $0x3f8] sm:$0xff]
  %v154 = vld [vmem:[%s0 + $0x400] sm:$0xff]
  %v155 = vld [vmem:[%s0 + $0x408] sm:$0xff]
  %v156 = vld [vmem:[%s0 + $0x410] sm:$0xff]
  %v157 = vld [vmem:[%s0 + $0x418] sm:$0xff]
  %v158 = vld [vmem:[%s0 + $0x420] sm:$0xff]
  %v159 = vld [vmem:[%s0 + $0x428] sm:$0xff]
  %v160 = vld [vmem:[%s0 + $0x430] sm:$0xff]
  %v161 = vld [vmem:[%s0 + $0x438] sm:$0xff]
  %v162 = vld [vmem:[%s0 + $0x440] sm:$0xff]
  %v163 = vld [vmem:[%s0 + $0x448] sm:$0xff]
  %v164 = vld [vmem:[%s0 + $0x450] sm:$0xff]
  %v165 = vld [vmem:[%s0 + $0x458] sm:$0xff]
  %v166 = vld [vmem:[%s0 + $0x460] sm:$0xff]
  %v167 = vld [vmem:[%s0 + $0x468] sm:$0xff]
  %v168 = vld [vmem:[%s0 + $0x470] sm:$0xff]
  %v169 = vld [vmem:[%s0 + $0x478] sm:$0xff]
  %v170 = vld [vmem:[%s0 + $0x480] sm:$0xff]
  %v171 = vld [vmem:[%s0 + $0x488] sm:$0xff]
  %v172 = vld [vmem:[%s0 + $0x490] sm:$0xff]
  %v173 = vld [vmem:[%s0 + $0x498] sm:$0xff]
  %v174 = vld [vmem:[%s0 + $0x4a0] sm:$0xff]
  %v175 = vld [vmem:[%s0 + $0x4a8] sm:$0xff]
  %v176 = vld [vmem:[%s0 + $0x4b0] sm:$0xff]
  %v177 = vld [vmem:[%s0 + $0x4b8] sm:$0xff]
  %v178 = vld [vmem:[%s0 + $0x4c0] sm:$0xff]
  %v179 = vld [vmem:[%s0 + $0x4c8] sm:$0xff]
  %v180 = vld [vmem:[%s0 + $0x4d0] sm:$0xff]
  %v181 = vld [vmem:[%s0 + $0x4d8] sm:$0xff]
  %v182 = vld [vmem:[%s0 + $0x4e0] sm:$0xff]
  %v183 = vld [vmem:[%s0 + $0x4e8] sm:$0xff]
  %v184 = vld [vmem:[%s0 + $0x4f0] sm:$0xff]
  %v185 = vld [vmem:[%s0 + $0x4f8] sm:$0xff]
  %v186 = vld [vmem:[%s0 + $0x500] sm:$0xff]
  %v187 = vld [vmem:[%s0 + $0x508] sm:$0xff]
  %v188 = vld [vmem:[%s0 + $0x510] sm:$0xff]
  %v189 = vld [vmem:[%s0 + $0x518] sm:$0xff]
  %v190 = vld [vmem:[%s0 + $0x520] sm:$0xff]
  %v191 = vld [vmem:[%s0 + $0x528] sm:$0xff]
  %v192 = vld [vmem:[%s0 + $0x530] sm:$0xff]
  %v193 = vld [vmem:[%s0 + $0x538] sm:$0xff]
  %v194 = vld [vmem:[%s0 + $0x540] sm:$0xff]
  %v195 = vld [vmem:[%s0 + $0x548] sm:$0xff]
  %v196 = vld [vmem:[%s0 + $0x550] sm:$0xff]
  %v197 = vld [vmem:[%s0 + $0x558] sm:$0xff]
  %v198 = vld [vmem:[%s0 + $0x560] sm:$0xff]
  %v199 = vld [vmem:[%s0 + $0x568] sm:$0xff]
  %v200 = vld [vmem:[%s0 + $0x570] sm:$0xff]
  %v201 = vld [vmem:[%s0 + $0x578] sm:$0xff]
  %v202 = vld [vmem:[%s0 + $0x580] sm:$0xff]
  %v203 = vld [vmem:[%s0 + $0x588] sm:$0xff]
  %v204 = vld [vmem:[%s0 + $0x590] sm:$0xff]
  %v205 = vld [vmem:[%s0 + $0x598] sm:$0xff]
  %v206 = vld [vmem:[%s0 + $0x5a0] sm:$0xff]
  %v207 = vld [vmem:[%s0 + $0x5a8] sm:$0xff]
  %v208 = vld [vmem:[%s0 + $0x5b0] sm:$0xff]
  %v209 = vld [vmem:[%s0 + $0x5b8] sm:$0xff]
  %v210 = vld [vmem:[%s0 + $0x5c0] sm:$0xff]
  %v211 = vld [vmem:[%s0 + $0x5c8] sm:$0xff]
  %v212 = vld [vmem:[%s0 + $0x5d0] sm:$0xff]
  %v213 = vld [vmem:[%s0 + $0x5d8] sm:$0xff]
  %v214 = vld [vmem:[%s0 + $0x5e0] sm:$0xff]
  %v215 = vld [vmem:[%s0 + $0x5e8] sm:$0xff]
  %v216 = vld [vmem:[%s0 + $0x5f0] sm:$0xff]
  %v217 = vld [vmem:[%s0 + $0x5f8] sm:$0xff]
  %v218 = vld [vmem:[%s0 + $0x600] sm:$0xff]
  %v219 = vld [vmem:[%s0 + $0x608] sm:$0xff]
  %v220 = vld [vmem:[%s0 + $0x610] sm:$0xff]
  %v221 = vld [vmem:[%s0 + $0x618] sm:$0xff]
  %v222 = vld [vmem:[%s0 + $0x620] sm:$0xff]
  %v223 = vld [vmem:[%s0 + $0x628] sm:$0xff]
  %v224 = vld [vmem:[%s0 + $0x630] sm:$0xff]
  %v225 = vld [vmem:[%s0 + $0x638] sm:$0xff]
  %v226 = vld [vmem:[%s0 + $0x640] sm:$0xff]
  %v227 = vld [vmem:[%s0 + $0x648] sm:$0xff]
  %v228 = vld [vmem:[%s0 + $0x650] sm:$0xff]
  %v229 = vld [vmem:[%s0 + $0x658] sm:$0xff]
  %v230 = vld [vmem:[%s0 + $0x660] sm:$0xff]
  %v231 = vld [vmem:[%s0 + $0x668] sm:$0xff]
  %v232 = vld [vmem:[%s0 + $0x670] sm:$0xff]
  %v233 = vld [vmem:[%s0 + $0x678] sm:$0xff]
  %v234 = vld [vmem:[%s0 + $0x680] sm:$0xff]
  %v235 = vld [vmem:[%s0 + $0x688] sm:$0xff]
  %v236 = vld [vmem:[%s0 + $0x690] sm:$0xff]
  %v237 = vld [vmem:[%s0 + $0x698] sm:$0xff]
  %v238 = vld [vmem:[%s0 + $0x6a0] sm:$0xff]
  %v239 = vld [vmem:[%s0 + $0x6a8] sm:$0xff]
  %v240 = vld [vmem:[%s0 + $0x6b0] sm:$0xff]
  %v241 = vld [vmem:[%s0 + $0x6b8] sm:$0xff]
  %v242 = vld [vmem:[%s0 + $0x6c0] sm:$0xff]
  %v243 = vld [vmem:[%s0 + $0x6c8] sm:$0xff]
  %v244 = vld [vmem:[%s0 + $0x6d0] sm:$0xff]
  %v245 = vld [vmem:[%s0 + $0x6d8] sm:$0xff]
  %v246 = vld [vmem:[%s0 + $0x6e0] sm:$0xff]
  %v247 = vld [vmem:[%s0 + $0x6e8] sm:$0xff]
  %v248 = vld [vmem:[%s0 + $0x6f0] sm:$0xff]
  %v249 = vld [vmem:[%s0 + $0x6f8] sm:$0xff]
  %v250 = vld [vmem:[%s0 + $0x700] sm:$0xff]
  %v251 = vld [vmem:[%s0 + $0x708] sm:$0xff]
  %v252 = vld [vmem:[%s0 + $0x710] sm:$0xff]
  %v253 = vld [vmem:[%s0 + $0x718] sm:$0xff]
  %v254 = vld [vmem:[%s0 + $0x720] sm:$0xff]
  %v255 = vld [vmem:[%s0 + $0x728] sm:$0xff]
  %v256 = vld [vmem:[%s0 + $0x730] sm:$0xff]
  %v257 = vld [vmem:[%s0 + $0x738] sm:$0xff]
  %v258 = vld [vmem:[%s0 + $0x740] sm:$0xff]
  %v259 = vld [vmem:[%s0 + $0x748] sm:$0xff]
  %v260 = vld [vmem:[%s0 + $0x750] sm:$0xff]
  %v261 = vld [vmem:[%s0 + $0x758] sm:$0xff]
  %v262 = vld [vmem:[%s0 + $0x760] sm:$0xff]
  %v263 = vld [vmem:[%s0 + $0x768] sm:$0xff]
  %v264 = vld [vmem:[%s0 + $0x770] sm:$0xff]
  %v265 = vld [vmem:[%s0 + $0x778] sm:$0xff]
  %v266 = vld [vmem:[%s0 + $0x780] sm:$0xff]
  %v267 = vld [vmem:[%s0 + $0x788] sm:$0xff]
  %v268 = vld [vmem:[%s0 + $0x790] sm:$0xff]
  %v269 = vld [vmem:[%s0 + $0x798] sm:$0xff]
  %v270 = vld [vmem:[%s0 + $0x7a0] sm:$0xff]
  %v271 = vld [vmem:[%s0 + $0x7a8] sm:$0xff]
  %v272 = vld [vmem:[%s0 + $0x7b0] sm:$0xff]
  %v273 = vld [vmem:[%s0 + $0x7b8] sm:$0xff]
  %v274 = vld [vmem:[%s0 + $0x7c0] sm:$0xff]
  %v275 = vld [vmem:[%s0 + $0x7c8] sm:$0xff]
  %v276 = vld [vmem:[%s0 + $0x7d0] sm:$0xff]
  %v277 = vld [vmem:[%s0 + $0x7d8] sm:$0xff]
  %v278 = vld [vmem:[%s0 + $0x7e0] sm:$0xff]
  %v279 = vld [vmem:[%s0 + $0x7e8] sm:$0xff]
  %v280 = vld [vmem:[%s0 + $0x7f0] sm:$0xff]
  %v281 = vld [vmem:[%s0 + $0x7f8] sm:$0xff]
  %v282 = vld [vmem:[%s0 + $0x800] sm:$0xff]
  %v283 = vld [vmem:[%s0 + $0x808] sm:$0xff]
  %v284 = vld [vmem:[%s0 + $0x810] sm:$0xff]
  %v285 = vld [vmem:[%s0 + $0x818] sm:$0xff]
  %v286 = vld [vmem:[%s0 + $0x820] sm:$0xff]
  %v287 = vld [vmem:[%s0 + $0x828] sm:$0xff]
  %v288 = vld [vmem:[%s0 + $0x830] sm:$0xff]
  %v289 = vld [vmem:[%s0 + $0x838] sm:$0xff]
  %v290 = vld [vmem:[%s0 + $0x840] sm:$0xff]
  %v291 = vld [vmem:[%s0 + $0x848] sm:$0xff]
  %v292 = vld [vmem:[%s0 + $0x850] sm:$0xff]
  %v293 = vld [vmem:[%s0 + $0x858] sm:$0xff]
  %v294 = vld [vmem:[%s0 + $0x860] sm:$0xff]
  %v295 = vld [vmem:[%s0 + $0x868] sm:$0xff]
  %v296 = vld [vmem:[%s0 + $0x870] sm:$0xff]
  %v297 = vld [vmem:[%s0 + $0x878] sm:$0xff]
  %v298 = vld [vmem:[%s0 + $0x880] sm:$0xff]
  %v299 = vld [vmem:[%s0 + $0x888] sm:$0xff]
  %v300 = vld [vmem:[%s0 + $0x890] sm:$0xff]
  %v301 = vld [vmem:[%s0 + $0x898] sm:$0xff]
  %v302 = vld [vmem:[%s0 + $0x8a0] sm:$0xff]
  %v303 = vld [vmem:[%s0 + $0x8a8] sm:$0xff]
  %v304 = vld [vmem:[%s0 + $0x8b0] sm:$0xff]
  %v305 = vld [vmem:[%s0 + $0x8b8] sm:$0xff]
  %v306 = vld [vmem:[%s0 + $0x8c0] sm:$0xff]
  %v307 = vld [vmem:[%s0 + $0x8c8] sm:$0xff]
  %v308 = vld [vmem:[%s0 + $0x8d0] sm:$0xff]
  %v309 = vld [vmem:[%s0 + $0x8d8] sm:$0xff]
  %v310 = vld [vmem:[%s0 + $0x8e0] sm:$0xff]
  %v311 = vld [vmem:[%s0 + $0x8e8] sm:$0xff]
  %v312 = vld [vmem:[%s0 + $0x8f0] sm:$0xff]
  %v313 = vld [vmem:[%s0 + $0x8f8] sm:$0xff]
  %v314 = vld [vmem:[%s0 + $0x900] sm:$0xff]
  %v315 = vld [vmem:[%s0 + $0x908] sm:$0xff]
  %v316 = vld [vmem:[%s0 + $0x910] sm:$0xff]
  %v317 = vld [vmem:[%s0 + $0x918] sm:$0xff]
  %v318 = vld [vmem:[%s0 + $0x920] sm:$0xff]
  %v319 = vld [vmem:[%s0 + $0x928] sm:$0xff]
  %v320 = vld [vmem:[%s0 + $0x930] sm:$0xff]
  %v321 = vld [vmem:[%s0 + $0x938] sm:$0xff]
  %v322 = vld [vmem:[%s0 + $0x940] sm:$0xff]
  %v323 = vld [vmem:[%s0 + $0x948] sm:$0xff]
  %v324 = vld [vmem:[%s0 + $0x950] sm:$0xff]
  %v325 = vld [vmem:[%s0 + $0x958] sm:$0xff]
  %v326 = vld [vmem:[%s0 + $0x960] sm:$0xff]
  %v327 = vld [vmem:[%s0 + $0x968] sm:$0xff]
  %v328 = vld [vmem:[%s0 + $0x970] sm:$0xff]
  %v329 = vld [vmem:[%s0 + $0x978] sm:$0xff]
  %v330 = vld [vmem:[%s0 + $0x980] sm:$0xff]
  %v331 = vld [vmem:[%s0 + $0x988] sm:$0xff]
  %v332 = vld [vmem:[%s0 + $0x990] sm:$0xff]
  %v333 = vld [vmem:[%s0 + $0x998] sm:$0xff]
  %v334 = vld [vmem:[%s0 + $0x9a0] sm:$0xff]
  %v335 = vld [vmem:[%s0 + $0x9a8] sm:$0xff]
  %v336 = vld [vmem:[%s0 + $0x9b0] sm:$0xff]
  %v337 = vld [vmem:[%s0 + $0x9b8] sm:$0xff]
  %v338 = vld [vmem:[%s0 + $0x9c0] sm:$0xff]
  %v339 = vld [vmem:[%s0 + $0x9c8] sm:$0xff]
  %v340 = vld [vmem:[%s0 + $0x9d0] sm:$0xff]
  %v341 = vld [vmem:[%s0 + $0x9d8] sm:$0xff]
  %v342 = vld [vmem:[%s0 + $0x9e0] sm:$0xff]
  %v343 = vld [vmem:[%s0 + $0x9e8] sm:$0xff]
  %v344 = vld [vmem:[%s0 + $0x9f0] sm:$0xff]
  %v345 = vld [vmem:[%s0 + $0x9f8] sm:$0xff]
  %v346 = vld [vmem:[%s0 + $0xa00] sm:$0xff]
  %v347 = vld [vmem:[%s0 + $0xa08] sm:$0xff]
  %v348 = vld [vmem:[%s0 + $0xa10] sm:$0xff]
  %v349 = vld [vmem:[%s0 + $0xa18] sm:$0xff]
  %v350 = vld [vmem:[%s0 + $0xa20] sm:$0xff]
  %v351 = vld [vmem:[%s0 + $0xa28] sm:$0xff]
  %v352 = vld [vmem:[%s0 + $0xa30] sm:$0xff]
  %v353 = vld [vmem:[%s0 + $0xa38] sm:$0xff]
  %v354 = vld [vmem:[%s0 + $0xa40] sm:$0xff]
  %v355 = vld [vmem:[%s0 + $0xa48] sm:$0xff]
  %v356 = vld [vmem:[%s0 + $0xa50] sm:$0xff]
  %v357 = vld [vmem:[%s0 + $0xa58] sm:$0xff]
  %v358 = vld [vmem:[%s0 + $0xa60] sm:$0xff]
  %v359 = vld [vmem:[%s0 + $0xa68] sm:$0xff]
  %v360 = vld [vmem:[%s0 + $0xa70] sm:$0xff]
  %v361 = vld [vmem:[%s0 + $0xa78] sm:$0xff]
  %v362 = vld [vmem:[%s0 + $0xa80] sm:$0xff]
  %v363 = vld [vmem:[%s0 + $0xa88] sm:$0xff]
  %v364 = vld [vmem:[%s0 + $0xa90] sm:$0xff]
  %v365 = vld [vmem:[%s0 + $0xa98] sm:$0xff]
  %v366 = vld [vmem:[%s0 + $0xaa0] sm:$0xff]
  %v367 = vld [vmem:[%s0 + $0xaa8] sm:$0xff]
  %v368 = vld [vmem:[%s0 + $0xab0] sm:$0xff]
  %v369 = vld [vmem:[%s0 + $0xab8] sm:$0xff]
  %v370 = vld [vmem:[%s0 + $0xac0] sm:$0xff]
  %v371 = vld [vmem:[%s0 + $0xac8] sm:$0xff]
  %v372 = vld [vmem:[%s0 + $0xad0] sm:$0xff]
  %v373 = vld [vmem:[%s0 + $0xad8] sm:$0xff]
  %v374 = vld [vmem:[%s0 + $0xae0] sm:$0xff]
  %v375 = vld [vmem:[%s0 + $0xae8] sm:$0xff]
  %v376 = vld [vmem:[%s0 + $0xaf0] sm:$0xff]
  %v377 = vld [vmem:[%s0 + $0xaf8] sm:$0xff]
  %v378 = vld [vmem:[%s0 + $0xb00] sm:$0xff]
  %v379 = vld [vmem:[%s0 + $0xb08] sm:$0xff]
  %v380 = vld [vmem:[%s0 + $0xb10] sm:$0xff]
  %v381 = vld [vmem:[%s0 + $0xb18] sm:$0xff]
  %v382 = vld [vmem:[%s0 + $0xb20] sm:$0xff]
  %v383 = vld [vmem:[%s0 + $0xb28] sm:$0xff]
  %v384 = vld [vmem:[%s0 + $0xb30] sm:$0xff]
  %v385 = vld [vmem:[%s0 + $0xb38] sm:$0xff]
  %v386 = vld [vmem:[%s0 + $0xb40] sm:$0xff]
  %v388 = vperm.slane %v25, 0
  %vm390 = vcmask 523264
  %v392 = vsel %vm390, %v26, 0
  %v395 = vsel %vm390, %v27, 0
  %v398 = vsel %vm390, %v28, 0
  %v401 = vsel %vm390, %v29, 0
  %v404 = vsel %vm390, %v30, 0
  %v407 = vsel %vm390, %v31, 0
  %v410 = vsel %vm390, %v32, 0
  %v413 = vsel %vm390, %v33, 0
  %v416 = vsel %vm390, %v34, 0
  %v419 = vsel %vm390, %v35, 0
  %v422 = vsel %vm390, %v36, 0
  %v425 = vsel %vm390, %v37, 0
  %v428 = vsel %vm390, %v38, 0
  %v431 = vsel %vm390, %v39, 0
  %v434 = vsel %vm390, %v40, 0
  %v437 = vsel %vm390, %v41, 0
  %v440 = vsel %vm390, %v42, 0
  %v443 = vsel %vm390, %v43, 0
  %v446 = vsel %vm390, %v44, 0
  %v449 = vsel %vm390, %v45, 0
  %v452 = vsel %vm390, %v46, 0
  %v455 = vsel %vm390, %v47, 0
  %v458 = vsel %vm390, %v48, 0
  %v461 = vsel %vm390, %v49, 0
  %v464 = vsel %vm390, %v50, 0
  %v467 = vsel %vm390, %v51, 0
  %v470 = vsel %vm390, %v52, 0
  %v473 = vsel %vm390, %v53, 0
  %v476 = vsel %vm390, %v54, 0
  %v479 = vsel %vm390, %v55, 0
  %v482 = vsel %vm390, %v56, 0
  %v485 = vsel %vm390, %v57, 0
  %v488 = vsel %vm390, %v58, 0
  %v491 = vsel %vm390, %v59, 0
  %v494 = vsel %vm390, %v60, 0
  %v497 = vsel %vm390, %v61, 0
  %v500 = vsel %vm390, %v62, 0
  %v503 = vsel %vm390, %v63, 0
  %v506 = vsel %vm390, %v64, 0
  %v509 = vsel %vm390, %v65, 0
  %v512 = vsel %vm390, %v66, 0
  %v515 = vsel %vm390, %v67, 0
  %v518 = vsel %vm390, %v68, 0
  %v521 = vsel %vm390, %v69, 0
  %v524 = vsel %vm390, %v70, 0
  %v527 = vsel %vm390, %v71, 0
  %v530 = vsel %vm390, %v72, 0
  %v533 = vsel %vm390, %v73, 0
  %v536 = vsel %vm390, %v74, 0
  %v539 = vsel %vm390, %v75, 0
  %v542 = vsel %vm390, %v76, 0
  %v545 = vsel %vm390, %v77, 0
  %v548 = vsel %vm390, %v78, 0
  %v551 = vsel %vm390, %v79, 0
  %v554 = vsel %vm390, %v80, 0
  %v557 = vsel %vm390, %v81, 0
  %v560 = vsel %vm390, %v82, 0
  %v563 = vsel %vm390, %v83, 0
  %v566 = vsel %vm390, %v84, 0
  %v569 = vsel %vm390, %v85, 0
  %v572 = vsel %vm390, %v86, 0
  %v575 = vsel %vm390, %v87, 0
  %v578 = vsel %vm390, %v88, 0
  %v581 = vsel %vm390, %v89, 0
  %v584 = vsel %vm390, %v90, 0
  %v587 = vsel %vm390, %v91, 0
  %v590 = vsel %vm390, %v92, 0
  %v593 = vsel %vm390, %v93, 0
  %v596 = vsel %vm390, %v94, 0
  %v599 = vsel %vm390, %v95, 0
  %v602 = vsel %vm390, %v96, 0
  %v605 = vsel %vm390, %v97, 0
  %v608 = vsel %vm390, %v98, 0
  %v611 = vsel %vm390, %v99, 0
  %v614 = vsel %vm390, %v100, 0
  %v617 = vsel %vm390, %v101, 0
  %v620 = vsel %vm390, %v102, 0
  %v623 = vsel %vm390, %v103, 0
  %v626 = vsel %vm390, %v104, 0
  %v629 = vsel %vm390, %v105, 0
  %v632 = vsel %vm390, %v106, 0
  %v635 = vsel %vm390, %v107, 0
  %v638 = vsel %vm390, %v108, 0
  %v641 = vsel %vm390, %v109, 0
  %v644 = vsel %vm390, %v110, 0
  %v647 = vsel %vm390, %v111, 0
  %v650 = vsel %vm390, %v112, 0
  %v653 = vsel %vm390, %v113, 0
  %v656 = vsel %vm390, %v114, 0
  %v659 = vsel %vm390, %v115, 0
  %v662 = vsel %vm390, %v116, 0
  %v665 = vsel %vm390, %v117, 0
  %v668 = vsel %vm390, %v118, 0
  %v671 = vsel %vm390, %v119, 0
  %v674 = vsel %vm390, %v120, 0
  %v677 = vsel %vm390, %v121, 0
  %v680 = vsel %vm390, %v122, 0
  %v683 = vsel %vm390, %v123, 0
  %v686 = vsel %vm390, %v124, 0
  %v689 = vsel %vm390, %v125, 0
  %v692 = vsel %vm390, %v126, 0
  %v695 = vsel %vm390, %v127, 0
  %v698 = vsel %vm390, %v128, 0
  %v701 = vsel %vm390, %v129, 0
  %v704 = vsel %vm390, %v130, 0
  %v707 = vsel %vm390, %v131, 0
  %v710 = vsel %vm390, %v132, 0
  %v713 = vsel %vm390, %v133, 0
  %v716 = vsel %vm390, %v134, 0
  %v719 = vsel %vm390, %v135, 0
  %v722 = vsel %vm390, %v136, 0
  %v725 = vsel %vm390, %v137, 0
  %v728 = vsel %vm390, %v138, 0
  %v731 = vsel %vm390, %v139, 0
  %v734 = vsel %vm390, %v140, 0
  %v737 = vsel %vm390, %v141, 0
  %v740 = vsel %vm390, %v142, 0
  %v743 = vsel %vm390, %v143, 0
  %v746 = vsel %vm390, %v144, 0
  %v749 = vsel %vm390, %v145, 0
  %v752 = vsel %vm390, %v146, 0
  %v755 = vsel %vm390, %v147, 0
  %v758 = vsel %vm390, %v148, 0
  %v761 = vsel %vm390, %v149, 0
  %v764 = vsel %vm390, %v150, 0
  %v767 = vsel %vm390, %v151, 0
  %v770 = vsel %vm390, %v152, 0
  %v773 = vsel %vm390, %v153, 0
  %v776 = vsel %vm390, %v154, 0
  %v779 = vsel %vm390, %v155, 0
  %v782 = vsel %vm390, %v156, 0
  %v785 = vsel %vm390, %v157, 0
  %v788 = vsel %vm390, %v158, 0
  %v791 = vsel %vm390, %v159, 0
  %v794 = vsel %vm390, %v160, 0
  %v797 = vsel %vm390, %v161, 0
  %v800 = vsel %vm390, %v162, 0
  %v803 = vsel %vm390, %v163, 0
  %v806 = vsel %vm390, %v164, 0
  %v809 = vsel %vm390, %v165, 0
  %v812 = vsel %vm390, %v166, 0
  %v815 = vsel %vm390, %v167, 0
  %v818 = vsel %vm390, %v168, 0
  %v821 = vsel %vm390, %v169, 0
  %v824 = vsel %vm390, %v170, 0
  %v827 = vsel %vm390, %v171, 0
  %v830 = vsel %vm390, %v172, 0
  %v833 = vsel %vm390, %v173, 0
  %v836 = vsel %vm390, %v174, 0
  %v839 = vsel %vm390, %v175, 0
  %v842 = vsel %vm390, %v176, 0
  %v845 = vsel %vm390, %v177, 0
  %v848 = vsel %vm390, %v178, 0
  %v851 = vsel %vm390, %v179, 0
  %v854 = vsel %vm390, %v180, 0
  %v857 = vsel %vm390, %v181, 0
  %v860 = vsel %vm390, %v182, 0
  %v863 = vsel %vm390, %v183, 0
  %v866 = vsel %vm390, %v184, 0
  %v869 = vsel %vm390, %v185, 0
  %v872 = vsel %vm390, %v186, 0
  %v875 = vsel %vm390, %v187, 0
  %v878 = vsel %vm390, %v188, 0
  %v881 = vsel %vm390, %v189, 0
  %v884 = vsel %vm390, %v190, 0
  %v887 = vsel %vm390, %v191, 0
  %v890 = vsel %vm390, %v192, 0
  %v893 = vsel %vm390, %v193, 0
  %v896 = vsel %vm390, %v194, 0
  %v899 = vsel %vm390, %v195, 0
  %v902 = vsel %vm390, %v196, 0
  %v905 = vsel %vm390, %v197, 0
  %v908 = vsel %vm390, %v198, 0
  %v911 = vsel %vm390, %v199, 0
  %v914 = vsel %vm390, %v200, 0
  %v917 = vsel %vm390, %v201, 0
  %v920 = vsel %vm390, %v202, 0
  %v923 = vsel %vm390, %v203, 0
  %v926 = vsel %vm390, %v204, 0
  %v929 = vsel %vm390, %v205, 0
  %v932 = vsel %vm390, %v206, 0
  %v935 = vsel %vm390, %v207, 0
  %v938 = vsel %vm390, %v208, 0
  %v941 = vsel %vm390, %v209, 0
  %v944 = vsel %vm390, %v210, 0
  %v947 = vsel %vm390, %v211, 0
  %v950 = vsel %vm390, %v212, 0
  %v953 = vsel %vm390, %v213, 0
  %v956 = vsel %vm390, %v214, 0
  %v959 = vsel %vm390, %v215, 0
  %v962 = vsel %vm390, %v216, 0
  %v965 = vsel %vm390, %v217, 0
  %v968 = vsel %vm390, %v218, 0
  %v971 = vsel %vm390, %v219, 0
  %v974 = vsel %vm390, %v220, 0
  %v977 = vsel %vm390, %v221, 0
  %v980 = vsel %vm390, %v222, 0
  %v983 = vsel %vm390, %v223, 0
  %v986 = vsel %vm390, %v224, 0
  %v989 = vsel %vm390, %v225, 0
  %v992 = vsel %vm390, %v226, 0
  %v995 = vsel %vm390, %v227, 0
  %v998 = vsel %vm390, %v228, 0
  %v1001 = vsel %vm390, %v229, 0
  %v1004 = vsel %vm390, %v230, 0
  %v1007 = vsel %vm390, %v231, 0
  %v1010 = vsel %vm390, %v232, 0
  %v1013 = vsel %vm390, %v233, 0
  %v1016 = vsel %vm390, %v234, 0
  %v1019 = vsel %vm390, %v235, 0
  %v1022 = vsel %vm390, %v236, 0
  %v1025 = vsel %vm390, %v237, 0
  %v1028 = vsel %vm390, %v238, 0
  %v1031 = vsel %vm390, %v239, 0
  %v1034 = vsel %vm390, %v240, 0
  %v1037 = vsel %vm390, %v241, 0
  %v1040 = vsel %vm390, %v242, 0
  %v1043 = vsel %vm390, %v243, 0
  %v1046 = vsel %vm390, %v244, 0
  %v1049 = vsel %vm390, %v245, 0
  %v1052 = vsel %vm390, %v246, 0
  %v1055 = vsel %vm390, %v247, 0
  %v1058 = vsel %vm390, %v248, 0
  %v1061 = vsel %vm390, %v249, 0
  %v1064 = vsel %vm390, %v250, 0
  %v1067 = vsel %vm390, %v251, 0
  %v1070 = vsel %vm390, %v252, 0
  %v1073 = vsel %vm390, %v253, 0
  %v1076 = vsel %vm390, %v254, 0
  %v1079 = vsel %vm390, %v255, 0
  %v1082 = vsel %vm390, %v256, 0
  %v1085 = vsel %vm390, %v257, 0
  %v1088 = vsel %vm390, %v258, 0
  %v1091 = vsel %vm390, %v259, 0
  %v1094 = vsel %vm390, %v260, 0
  %v1097 = vsel %vm390, %v261, 0
  %v1100 = vsel %vm390, %v262, 0
  %v1103 = vsel %vm390, %v263, 0
  %v1106 = vsel %vm390, %v264, 0
  %v1109 = vsel %vm390, %v265, 0
  %v1112 = vsel %vm390, %v266, 0
  %v1115 = vsel %vm390, %v267, 0
  %v1118 = vsel %vm390, %v268, 0
  %v1121 = vsel %vm390, %v269, 0
  %v1124 = vsel %vm390, %v270, 0
  %v1127 = vsel %vm390, %v271, 0
  %v1130 = vsel %vm390, %v272, 0
  %v1133 = vsel %vm390, %v273, 0
  %v1136 = vsel %vm390, %v274, 0
  %v1139 = vsel %vm390, %v275, 0
  %v1142 = vsel %vm390, %v276, 0
  %v1145 = vsel %vm390, %v277, 0
  %v1148 = vsel %vm390, %v278, 0
  %v1151 = vsel %vm390, %v279, 0
  %v1154 = vsel %vm390, %v280, 0
  %v1157 = vsel %vm390, %v281, 0
  %v1160 = vsel %vm390, %v282, 0
  %v1163 = vsel %vm390, %v283, 0
  %v1166 = vsel %vm390, %v284, 0
  %v1169 = vsel %vm390, %v285, 0
  %v1172 = vsel %vm390, %v286, 0
  %v1175 = vsel %vm390, %v287, 0
  %v1178 = vsel %vm390, %v288, 0
  %v1181 = vsel %vm390, %v289, 0
  %v1184 = vsel %vm390, %v290, 0
  %v1187 = vsel %vm390, %v291, 0
  %v1190 = vsel %vm390, %v292, 0
  %v1193 = vsel %vm390, %v293, 0
  %v1196 = vsel %vm390, %v294, 0
  %v1199 = vsel %vm390, %v295, 0
  %v1202 = vsel %vm390, %v296, 0
  %v1205 = vsel %vm390, %v297, 0
  %v1208 = vsel %vm390, %v298, 0
  %v1211 = vsel %vm390, %v299, 0
  %v1214 = vsel %vm390, %v300, 0
  %v1217 = vsel %vm390, %v301, 0
  %v1220 = vsel %vm390, %v302, 0
  %v1223 = vsel %vm390, %v303, 0
  %v1226 = vsel %vm390, %v304, 0
  %v1229 = vsel %vm390, %v305, 0
  %v1232 = vsel %vm390, %v306, 0
  %v1235 = vsel %vm390, %v307, 0
  %v1238 = vsel %vm390, %v308, 0
  %v1241 = vsel %vm390, %v309, 0
  %v1244 = vsel %vm390, %v310, 0
  %v1247 = vsel %vm390, %v311, 0
  %v1250 = vsel %vm390, %v312, 0
  %v1253 = vsel %vm390, %v313, 0
  %v1256 = vsel %vm390, %v314, 0
  %v1259 = vsel %vm390, %v315, 0
  %v1262 = vsel %vm390, %v316, 0
  %v1265 = vsel %vm390, %v317, 0
  %v1268 = vsel %vm390, %v318, 0
  %v1271 = vsel %vm390, %v319, 0
  %v1274 = vsel %vm390, %v320, 0
  %v1277 = vsel %vm390, %v321, 0
  %v1280 = vsel %vm390, %v322, 0
  %v1283 = vsel %vm390, %v323, 0
  %v1286 = vsel %vm390, %v324, 0
  %v1289 = vsel %vm390, %v325, 0
  %v1292 = vsel %vm390, %v326, 0
  %v1295 = vsel %vm390, %v327, 0
  %v1298 = vsel %vm390, %v328, 0
  %v1301 = vsel %vm390, %v329, 0
  %v1304 = vsel %vm390, %v330, 0
  %v1307 = vsel %vm390, %v331, 0
  %v1310 = vsel %vm390, %v332, 0
  %v1313 = vsel %vm390, %v333, 0
  %v1316 = vsel %vm390, %v334, 0
  %v1319 = vsel %vm390, %v335, 0
  %v1322 = vsel %vm390, %v336, 0
  %v1325 = vsel %vm390, %v337, 0
  %v1328 = vsel %vm390, %v338, 0
  %v1331 = vsel %vm390, %v339, 0
  %v1334 = vsel %vm390, %v340, 0
  %v1337 = vsel %vm390, %v341, 0
  %v1340 = vsel %vm390, %v342, 0
  %v1343 = vsel %vm390, %v343, 0
  %v1346 = vsel %vm390, %v344, 0
  %v1349 = vsel %vm390, %v345, 0
  %v1352 = vsel %vm390, %v346, 0
  %v1355 = vsel %vm390, %v347, 0
  %v1358 = vsel %vm390, %v348, 0
  %v1361 = vsel %vm390, %v349, 0
  %v1364 = vsel %vm390, %v350, 0
  %v1367 = vsel %vm390, %v351, 0
  %v1370 = vsel %vm390, %v352, 0
  %v1373 = vsel %vm390, %v353, 0
  %v1376 = vsel %vm390, %v354, 0
  %v1379 = vsel %vm390, %v355, 0
  %v1382 = vsel %vm390, %v356, 0
  %v1385 = vsel %vm390, %v357, 0
  %v1388 = vsel %vm390, %v358, 0
  %v1391 = vsel %vm390, %v359, 0
  %v1394 = vsel %vm390, %v360, 0
  %v1397 = vsel %vm390, %v361, 0
  %v1400 = vsel %vm390, %v362, 0
  %v1403 = vsel %vm390, %v363, 0
  %v1406 = vsel %vm390, %v364, 0
  %v1409 = vsel %vm390, %v365, 0
  %v1412 = vsel %vm390, %v366, 0
  %v1415 = vsel %vm390, %v367, 0
  %v1418 = vsel %vm390, %v368, 0
  %v1421 = vsel %vm390, %v369, 0
  %v1424 = vsel %vm390, %v370, 0
  %v1427 = vsel %vm390, %v371, 0
  %v1430 = vsel %vm390, %v372, 0
  %v1433 = vsel %vm390, %v373, 0
  %v1436 = vsel %vm390, %v374, 0
  %v1439 = vsel %vm390, %v375, 0
  %v1442 = vsel %vm390, %v376, 0
  %v1445 = vsel %vm390, %v377, 0
  %v1448 = vsel %vm390, %v378, 0
  %v1451 = vsel %vm390, %v379, 0
  %v1454 = vsel %vm390, %v380, 0
  %v1457 = vsel %vm390, %v381, 0
  %v1460 = vsel %vm390, %v382, 0
  %v1463 = vsel %vm390, %v383, 0
  %v1466 = vsel %vm390, %v384, 0
  %v1469 = vsel %vm390, %v385, 0
  %v1472 = vsel %vm390, %v386, 0
  %1474 = vmatpush.msra.mxu0 0.0
  %1475 = vmatpush.msra.mxu0 0.0
  %1476 = vmatpush.msra.mxu0 0.0
  %1477 = vmatpush.msra.mxu0 0.0
  %1478 = vmatpush.msra.mxu0 0.0
  %1479 = vmatpush.msra.mxu0 0.0
  %1480 = vmatpush.msra.mxu0 0.0
  %1481 = vmatpush.msra.mxu0 0.0
  %1482 = vmatpush.msra.mxu0 %v24
  %1483 = vmatpush.msra.mxu0 %v23
  %1484 = vmatpush.msra.mxu0 %v22
  %1485 = vmatpush.msra.mxu0 %v21
  %1486 = vmatpush.msra.mxu0 %v20
  %1487 = vmatpush.msra.mxu0 %v19
  %1488 = vmatpush.msra.mxu0 %v18
  %1489 = vmatpush.msra.mxu0 %v17
  %1490 = vmatmul.f32.gmra.mxu0 %v392
  %v1491 = vpop.f32.mrf.mxu0
  %v1492 = vadd.f32 %v388, %v1491
  %1493 = vmatmul.f32.gmra.mxu0 %v395
  %v1494 = vpop.f32.mrf.mxu0
  %v1495 = vadd.f32 %v388, %v1494
  %1496 = vmatmul.f32.gmra.mxu0 %v398
  %v1497 = vpop.f32.mrf.mxu0
  %v1498 = vadd.f32 %v388, %v1497
  %1499 = vmatmul.f32.gmra.mxu0 %v401
  %v1500 = vpop.f32.mrf.mxu0
  %v1501 = vadd.f32 %v388, %v1500
  %1502 = vmatmul.f32.gmra.mxu0 %v404
  %v1503 = vpop.f32.mrf.mxu0
  %v1504 = vadd.f32 %v388, %v1503
  %1505 = vmatmul.f32.gmra.mxu0 %v407
  %v1506 = vpop.f32.mrf.mxu0
  %v1507 = vadd.f32 %v388, %v1506
  %1508 = vmatmul.f32.gmra.mxu0 %v410
  %v1509 = vpop.f32.mrf.mxu0
  %v1510 = vadd.f32 %v388, %v1509
  %1511 = vmatmul.f32.gmra.mxu0 %v413
  %v1512 = vpop.f32.mrf.mxu0
  %v1513 = vadd.f32 %v388, %v1512
  %1514 = vmatmul.f32.gmra.mxu0 %v416
  %v1515 = vpop.f32.mrf.mxu0
  %v1516 = vadd.f32 %v388, %v1515
  %1517 = vmatmul.f32.gmra.mxu0 %v419
  %v1518 = vpop.f32.mrf.mxu0
  %v1519 = vadd.f32 %v388, %v1518
  %1520 = vmatmul.f32.gmra.mxu0 %v422
  %v1521 = vpop.f32.mrf.mxu0
  %v1522 = vadd.f32 %v388, %v1521
  %1523 = vmatmul.f32.gmra.mxu0 %v425
  %v1524 = vpop.f32.mrf.mxu0
  %v1525 = vadd.f32 %v388, %v1524
  %1526 = vmatmul.f32.gmra.mxu0 %v428
  %v1527 = vpop.f32.mrf.mxu0
  %v1528 = vadd.f32 %v388, %v1527
  %1529 = vmatmul.f32.gmra.mxu0 %v431
  %v1530 = vpop.f32.mrf.mxu0
  %v1531 = vadd.f32 %v388, %v1530
  %1532 = vmatmul.f32.gmra.mxu0 %v434
  %v1533 = vpop.f32.mrf.mxu0
  %v1534 = vadd.f32 %v388, %v1533
  %1535 = vmatmul.f32.gmra.mxu0 %v437
  %v1536 = vpop.f32.mrf.mxu0
  %v1537 = vadd.f32 %v388, %v1536
  %1538 = vmatmul.f32.gmra.mxu0 %v440
  %v1539 = vpop.f32.mrf.mxu0
  %v1540 = vadd.f32 %v388, %v1539
  %1541 = vmatmul.f32.gmra.mxu0 %v443
  %v1542 = vpop.f32.mrf.mxu0
  %v1543 = vadd.f32 %v388, %v1542
  %1544 = vmatmul.f32.gmra.mxu0 %v446
  %v1545 = vpop.f32.mrf.mxu0
  %v1546 = vadd.f32 %v388, %v1545
  %1547 = vmatmul.f32.gmra.mxu0 %v449
  %v1548 = vpop.f32.mrf.mxu0
  %v1549 = vadd.f32 %v388, %v1548
  %1550 = vmatmul.f32.gmra.mxu0 %v452
  %v1551 = vpop.f32.mrf.mxu0
  %v1552 = vadd.f32 %v388, %v1551
  %1553 = vmatmul.f32.gmra.mxu0 %v455
  %v1554 = vpop.f32.mrf.mxu0
  %v1555 = vadd.f32 %v388, %v1554
  %1556 = vmatmul.f32.gmra.mxu0 %v458
  %v1557 = vpop.f32.mrf.mxu0
  %v1558 = vadd.f32 %v388, %v1557
  %1559 = vmatmul.f32.gmra.mxu0 %v461
  %v1560 = vpop.f32.mrf.mxu0
  %v1561 = vadd.f32 %v388, %v1560
  %1562 = vmatmul.f32.gmra.mxu0 %v464
  %v1563 = vpop.f32.mrf.mxu0
  %v1564 = vadd.f32 %v388, %v1563
  %1565 = vmatmul.f32.gmra.mxu0 %v467
  %v1566 = vpop.f32.mrf.mxu0
  %v1567 = vadd.f32 %v388, %v1566
  %1568 = vmatmul.f32.gmra.mxu0 %v470
  %v1569 = vpop.f32.mrf.mxu0
  %v1570 = vadd.f32 %v388, %v1569
  %1571 = vmatmul.f32.gmra.mxu0 %v473
  %v1572 = vpop.f32.mrf.mxu0
  %v1573 = vadd.f32 %v388, %v1572
  %1574 = vmatmul.f32.gmra.mxu0 %v476
  %v1575 = vpop.f32.mrf.mxu0
  %v1576 = vadd.f32 %v388, %v1575
  %1577 = vmatmul.f32.gmra.mxu0 %v479
  %v1578 = vpop.f32.mrf.mxu0
  %v1579 = vadd.f32 %v388, %v1578
  %1580 = vmatmul.f32.gmra.mxu0 %v482
  %v1581 = vpop.f32.mrf.mxu0
  %v1582 = vadd.f32 %v388, %v1581
  %1583 = vmatmul.f32.gmra.mxu0 %v485
  %v1584 = vpop.f32.mrf.mxu0
  %v1585 = vadd.f32 %v388, %v1584
  %1586 = vmatmul.f32.gmra.mxu0 %v488
  %v1587 = vpop.f32.mrf.mxu0
  %v1588 = vadd.f32 %v388, %v1587
  %1589 = vmatmul.f32.gmra.mxu0 %v491
  %v1590 = vpop.f32.mrf.mxu0
  %v1591 = vadd.f32 %v388, %v1590
  %1592 = vmatmul.f32.gmra.mxu0 %v494
  %v1593 = vpop.f32.mrf.mxu0
  %v1594 = vadd.f32 %v388, %v1593
  %1595 = vmatmul.f32.gmra.mxu0 %v497
  %v1596 = vpop.f32.mrf.mxu0
  %v1597 = vadd.f32 %v388, %v1596
  %1598 = vmatmul.f32.gmra.mxu0 %v500
  %v1599 = vpop.f32.mrf.mxu0
  %v1600 = vadd.f32 %v388, %v1599
  %1601 = vmatmul.f32.gmra.mxu0 %v503
  %v1602 = vpop.f32.mrf.mxu0
  %v1603 = vadd.f32 %v388, %v1602
  %1604 = vmatmul.f32.gmra.mxu0 %v506
  %v1605 = vpop.f32.mrf.mxu0
  %v1606 = vadd.f32 %v388, %v1605
  %1607 = vmatmul.f32.gmra.mxu0 %v509
  %v1608 = vpop.f32.mrf.mxu0
  %v1609 = vadd.f32 %v388, %v1608
  %1610 = vmatmul.f32.gmra.mxu0 %v512
  %v1611 = vpop.f32.mrf.mxu0
  %v1612 = vadd.f32 %v388, %v1611
  %1613 = vmatmul.f32.gmra.mxu0 %v515
  %v1614 = vpop.f32.mrf.mxu0
  %v1615 = vadd.f32 %v388, %v1614
  %1616 = vmatmul.f32.gmra.mxu0 %v518
  %v1617 = vpop.f32.mrf.mxu0
  %v1618 = vadd.f32 %v388, %v1617
  %1619 = vmatmul.f32.gmra.mxu0 %v521
  %v1620 = vpop.f32.mrf.mxu0
  %v1621 = vadd.f32 %v388, %v1620
  %1622 = vmatmul.f32.gmra.mxu0 %v524
  %v1623 = vpop.f32.mrf.mxu0
  %v1624 = vadd.f32 %v388, %v1623
  %1625 = vmatmul.f32.gmra.mxu0 %v527
  %v1626 = vpop.f32.mrf.mxu0
  %v1627 = vadd.f32 %v388, %v1626
  %1628 = vmatmul.f32.gmra.mxu0 %v530
  %v1629 = vpop.f32.mrf.mxu0
  %v1630 = vadd.f32 %v388, %v1629
  %1631 = vmatmul.f32.gmra.mxu0 %v533
  %v1632 = vpop.f32.mrf.mxu0
  %v1633 = vadd.f32 %v388, %v1632
  %1634 = vmatmul.f32.gmra.mxu0 %v536
  %v1635 = vpop.f32.mrf.mxu0
  %v1636 = vadd.f32 %v388, %v1635
  %1637 = vmatmul.f32.gmra.mxu0 %v539
  %v1638 = vpop.f32.mrf.mxu0
  %v1639 = vadd.f32 %v388, %v1638
  %1640 = vmatmul.f32.gmra.mxu0 %v542
  %v1641 = vpop.f32.mrf.mxu0
  %v1642 = vadd.f32 %v388, %v1641
  %1643 = vmatmul.f32.gmra.mxu0 %v545
  %v1644 = vpop.f32.mrf.mxu0
  %v1645 = vadd.f32 %v388, %v1644
  %1646 = vmatmul.f32.gmra.mxu0 %v548
  %v1647 = vpop.f32.mrf.mxu0
  %v1648 = vadd.f32 %v388, %v1647
  %1649 = vmatmul.f32.gmra.mxu0 %v551
  %v1650 = vpop.f32.mrf.mxu0
  %v1651 = vadd.f32 %v388, %v1650
  %1652 = vmatmul.f32.gmra.mxu0 %v554
  %v1653 = vpop.f32.mrf.mxu0
  %v1654 = vadd.f32 %v388, %v1653
  %1655 = vmatmul.f32.gmra.mxu0 %v557
  %v1656 = vpop.f32.mrf.mxu0
  %v1657 = vadd.f32 %v388, %v1656
  %1658 = vmatmul.f32.gmra.mxu0 %v560
  %v1659 = vpop.f32.mrf.mxu0
  %v1660 = vadd.f32 %v388, %v1659
  %1661 = vmatmul.f32.gmra.mxu0 %v563
  %v1662 = vpop.f32.mrf.mxu0
  %v1663 = vadd.f32 %v388, %v1662
  %1664 = vmatmul.f32.gmra.mxu0 %v566
  %v1665 = vpop.f32.mrf.mxu0
  %v1666 = vadd.f32 %v388, %v1665
  %1667 = vmatmul.f32.gmra.mxu0 %v569
  %v1668 = vpop.f32.mrf.mxu0
  %v1669 = vadd.f32 %v388, %v1668
  %1670 = vmatmul.f32.gmra.mxu0 %v572
  %v1671 = vpop.f32.mrf.mxu0
  %v1672 = vadd.f32 %v388, %v1671
  %1673 = vmatmul.f32.gmra.mxu0 %v575
  %v1674 = vpop.f32.mrf.mxu0
  %v1675 = vadd.f32 %v388, %v1674
  %1676 = vmatmul.f32.gmra.mxu0 %v578
  %v1677 = vpop.f32.mrf.mxu0
  %v1678 = vadd.f32 %v388, %v1677
  %1679 = vmatmul.f32.gmra.mxu0 %v581
  %v1680 = vpop.f32.mrf.mxu0
  %v1681 = vadd.f32 %v388, %v1680
  %1682 = vmatmul.f32.gmra.mxu0 %v584
  %v1683 = vpop.f32.mrf.mxu0
  %v1684 = vadd.f32 %v388, %v1683
  %1685 = vmatmul.f32.gmra.mxu0 %v587
  %v1686 = vpop.f32.mrf.mxu0
  %v1687 = vadd.f32 %v388, %v1686
  %1688 = vmatmul.f32.gmra.mxu0 %v590
  %v1689 = vpop.f32.mrf.mxu0
  %v1690 = vadd.f32 %v388, %v1689
  %1691 = vmatmul.f32.gmra.mxu0 %v593
  %v1692 = vpop.f32.mrf.mxu0
  %v1693 = vadd.f32 %v388, %v1692
  %1694 = vmatmul.f32.gmra.mxu0 %v596
  %v1695 = vpop.f32.mrf.mxu0
  %v1696 = vadd.f32 %v388, %v1695
  %1697 = vmatmul.f32.gmra.mxu0 %v599
  %v1698 = vpop.f32.mrf.mxu0
  %v1699 = vadd.f32 %v388, %v1698
  %1700 = vmatmul.f32.gmra.mxu0 %v602
  %v1701 = vpop.f32.mrf.mxu0
  %v1702 = vadd.f32 %v388, %v1701
  %1703 = vmatmul.f32.gmra.mxu0 %v605
  %v1704 = vpop.f32.mrf.mxu0
  %v1705 = vadd.f32 %v388, %v1704
  %1706 = vmatmul.f32.gmra.mxu0 %v608
  %v1707 = vpop.f32.mrf.mxu0
  %v1708 = vadd.f32 %v388, %v1707
  %1709 = vmatmul.f32.gmra.mxu0 %v611
  %v1710 = vpop.f32.mrf.mxu0
  %v1711 = vadd.f32 %v388, %v1710
  %1712 = vmatmul.f32.gmra.mxu0 %v614
  %v1713 = vpop.f32.mrf.mxu0
  %v1714 = vadd.f32 %v388, %v1713
  %1715 = vmatmul.f32.gmra.mxu0 %v617
  %v1716 = vpop.f32.mrf.mxu0
  %v1717 = vadd.f32 %v388, %v1716
  %1718 = vmatmul.f32.gmra.mxu0 %v620
  %v1719 = vpop.f32.mrf.mxu0
  %v1720 = vadd.f32 %v388, %v1719
  %1721 = vmatmul.f32.gmra.mxu0 %v623
  %v1722 = vpop.f32.mrf.mxu0
  %v1723 = vadd.f32 %v388, %v1722
  %1724 = vmatmul.f32.gmra.mxu0 %v626
  %v1725 = vpop.f32.mrf.mxu0
  %v1726 = vadd.f32 %v388, %v1725
  %1727 = vmatmul.f32.gmra.mxu0 %v629
  %v1728 = vpop.f32.mrf.mxu0
  %v1729 = vadd.f32 %v388, %v1728
  %1730 = vmatmul.f32.gmra.mxu0 %v632
  %v1731 = vpop.f32.mrf.mxu0
  %v1732 = vadd.f32 %v388, %v1731
  %1733 = vmatmul.f32.gmra.mxu0 %v635
  %v1734 = vpop.f32.mrf.mxu0
  %v1735 = vadd.f32 %v388, %v1734
  %1736 = vmatmul.f32.gmra.mxu0 %v638
  %v1737 = vpop.f32.mrf.mxu0
  %v1738 = vadd.f32 %v388, %v1737
  %1739 = vmatmul.f32.gmra.mxu0 %v641
  %v1740 = vpop.f32.mrf.mxu0
  %v1741 = vadd.f32 %v388, %v1740
  %1742 = vmatmul.f32.gmra.mxu0 %v644
  %v1743 = vpop.f32.mrf.mxu0
  %v1744 = vadd.f32 %v388, %v1743
  %1745 = vmatmul.f32.gmra.mxu0 %v647
  %v1746 = vpop.f32.mrf.mxu0
  %v1747 = vadd.f32 %v388, %v1746
  %1748 = vmatmul.f32.gmra.mxu0 %v650
  %v1749 = vpop.f32.mrf.mxu0
  %v1750 = vadd.f32 %v388, %v1749
  %1751 = vmatmul.f32.gmra.mxu0 %v653
  %v1752 = vpop.f32.mrf.mxu0
  %v1753 = vadd.f32 %v388, %v1752
  %1754 = vmatmul.f32.gmra.mxu0 %v656
  %v1755 = vpop.f32.mrf.mxu0
  %v1756 = vadd.f32 %v388, %v1755
  %1757 = vmatmul.f32.gmra.mxu0 %v659
  %v1758 = vpop.f32.mrf.mxu0
  %v1759 = vadd.f32 %v388, %v1758
  %1760 = vmatmul.f32.gmra.mxu0 %v662
  %v1761 = vpop.f32.mrf.mxu0
  %v1762 = vadd.f32 %v388, %v1761
  %1763 = vmatmul.f32.gmra.mxu0 %v665
  %v1764 = vpop.f32.mrf.mxu0
  %v1765 = vadd.f32 %v388, %v1764
  %1766 = vmatmul.f32.gmra.mxu0 %v668
  %v1767 = vpop.f32.mrf.mxu0
  %v1768 = vadd.f32 %v388, %v1767
  %1769 = vmatmul.f32.gmra.mxu0 %v671
  %v1770 = vpop.f32.mrf.mxu0
  %v1771 = vadd.f32 %v388, %v1770
  %1772 = vmatmul.f32.gmra.mxu0 %v674
  %v1773 = vpop.f32.mrf.mxu0
  %v1774 = vadd.f32 %v388, %v1773
  %1775 = vmatmul.f32.gmra.mxu0 %v677
  %v1776 = vpop.f32.mrf.mxu0
  %v1777 = vadd.f32 %v388, %v1776
  %1778 = vmatmul.f32.gmra.mxu0 %v680
  %v1779 = vpop.f32.mrf.mxu0
  %v1780 = vadd.f32 %v388, %v1779
  %1781 = vmatmul.f32.gmra.mxu0 %v683
  %v1782 = vpop.f32.mrf.mxu0
  %v1783 = vadd.f32 %v388, %v1782
  %1784 = vmatmul.f32.gmra.mxu0 %v686
  %v1785 = vpop.f32.mrf.mxu0
  %v1786 = vadd.f32 %v388, %v1785
  %1787 = vmatmul.f32.gmra.mxu0 %v689
  %v1788 = vpop.f32.mrf.mxu0
  %v1789 = vadd.f32 %v388, %v1788
  %1790 = vmatmul.f32.gmra.mxu0 %v692
  %v1791 = vpop.f32.mrf.mxu0
  %v1792 = vadd.f32 %v388, %v1791
  %1793 = vmatmul.f32.gmra.mxu0 %v695
  %v1794 = vpop.f32.mrf.mxu0
  %v1795 = vadd.f32 %v388, %v1794
  %1796 = vmatmul.f32.gmra.mxu0 %v698
  %v1797 = vpop.f32.mrf.mxu0
  %v1798 = vadd.f32 %v388, %v1797
  %1799 = vmatmul.f32.gmra.mxu0 %v701
  %v1800 = vpop.f32.mrf.mxu0
  %v1801 = vadd.f32 %v388, %v1800
  %1802 = vmatmul.f32.gmra.mxu0 %v704
  %v1803 = vpop.f32.mrf.mxu0
  %v1804 = vadd.f32 %v388, %v1803
  %1805 = vmatmul.f32.gmra.mxu0 %v707
  %v1806 = vpop.f32.mrf.mxu0
  %v1807 = vadd.f32 %v388, %v1806
  %1808 = vmatmul.f32.gmra.mxu0 %v710
  %v1809 = vpop.f32.mrf.mxu0
  %v1810 = vadd.f32 %v388, %v1809
  %1811 = vmatmul.f32.gmra.mxu0 %v713
  %v1812 = vpop.f32.mrf.mxu0
  %v1813 = vadd.f32 %v388, %v1812
  %1814 = vmatmul.f32.gmra.mxu0 %v716
  %v1815 = vpop.f32.mrf.mxu0
  %v1816 = vadd.f32 %v388, %v1815
  %1817 = vmatmul.f32.gmra.mxu0 %v719
  %v1818 = vpop.f32.mrf.mxu0
  %v1819 = vadd.f32 %v388, %v1818
  %1820 = vmatmul.f32.gmra.mxu0 %v722
  %v1821 = vpop.f32.mrf.mxu0
  %v1822 = vadd.f32 %v388, %v1821
  %1823 = vmatmul.f32.gmra.mxu0 %v725
  %v1824 = vpop.f32.mrf.mxu0
  %v1825 = vadd.f32 %v388, %v1824
  %1826 = vmatmul.f32.gmra.mxu0 %v728
  %v1827 = vpop.f32.mrf.mxu0
  %v1828 = vadd.f32 %v388, %v1827
  %1829 = vmatmul.f32.gmra.mxu0 %v731
  %v1830 = vpop.f32.mrf.mxu0
  %v1831 = vadd.f32 %v388, %v1830
  %1832 = vmatmul.f32.gmra.mxu0 %v734
  %v1833 = vpop.f32.mrf.mxu0
  %v1834 = vadd.f32 %v388, %v1833
  %1835 = vmatmul.f32.gmra.mxu0 %v737
  %v1836 = vpop.f32.mrf.mxu0
  %v1837 = vadd.f32 %v388, %v1836
  %1838 = vmatmul.f32.gmra.mxu0 %v740
  %v1839 = vpop.f32.mrf.mxu0
  %v1840 = vadd.f32 %v388, %v1839
  %1841 = vmatmul.f32.gmra.mxu0 %v743
  %v1842 = vpop.f32.mrf.mxu0
  %v1843 = vadd.f32 %v388, %v1842
  %1844 = vmatmul.f32.gmra.mxu0 %v746
  %v1845 = vpop.f32.mrf.mxu0
  %v1846 = vadd.f32 %v388, %v1845
  %1847 = vmatmul.f32.gmra.mxu0 %v749
  %v1848 = vpop.f32.mrf.mxu0
  %v1849 = vadd.f32 %v388, %v1848
  %1850 = vmatmul.f32.gmra.mxu0 %v752
  %v1851 = vpop.f32.mrf.mxu0
  %v1852 = vadd.f32 %v388, %v1851
  %1853 = vmatmul.f32.gmra.mxu0 %v755
  %v1854 = vpop.f32.mrf.mxu0
  %v1855 = vadd.f32 %v388, %v1854
  %1856 = vmatmul.f32.gmra.mxu0 %v758
  %v1857 = vpop.f32.mrf.mxu0
  %v1858 = vadd.f32 %v388, %v1857
  %1859 = vmatmul.f32.gmra.mxu0 %v761
  %v1860 = vpop.f32.mrf.mxu0
  %v1861 = vadd.f32 %v388, %v1860
  %1862 = vmatmul.f32.gmra.mxu0 %v764
  %v1863 = vpop.f32.mrf.mxu0
  %v1864 = vadd.f32 %v388, %v1863
  %1865 = vmatmul.f32.gmra.mxu0 %v767
  %v1866 = vpop.f32.mrf.mxu0
  %v1867 = vadd.f32 %v388, %v1866
  %1868 = vmatmul.f32.gmra.mxu0 %v770
  %v1869 = vpop.f32.mrf.mxu0
  %v1870 = vadd.f32 %v388, %v1869
  %1871 = vmatmul.f32.gmra.mxu0 %v773
  %v1872 = vpop.f32.mrf.mxu0
  %v1873 = vadd.f32 %v388, %v1872
  %1874 = vmatmul.f32.gmra.mxu0 %v776
  %v1875 = vpop.f32.mrf.mxu0
  %v1876 = vadd.f32 %v388, %v1875
  %1877 = vmatmul.f32.gmra.mxu0 %v779
  %v1878 = vpop.f32.mrf.mxu0
  %v1879 = vadd.f32 %v388, %v1878
  %1880 = vmatmul.f32.gmra.mxu0 %v782
  %v1881 = vpop.f32.mrf.mxu0
  %v1882 = vadd.f32 %v388, %v1881
  %1883 = vmatmul.f32.gmra.mxu0 %v785
  %v1884 = vpop.f32.mrf.mxu0
  %v1885 = vadd.f32 %v388, %v1884
  %1886 = vmatmul.f32.gmra.mxu0 %v788
  %v1887 = vpop.f32.mrf.mxu0
  %v1888 = vadd.f32 %v388, %v1887
  %1889 = vmatmul.f32.gmra.mxu0 %v791
  %v1890 = vpop.f32.mrf.mxu0
  %v1891 = vadd.f32 %v388, %v1890
  %1892 = vmatmul.f32.gmra.mxu0 %v794
  %v1893 = vpop.f32.mrf.mxu0
  %v1894 = vadd.f32 %v388, %v1893
  %1895 = vmatmul.f32.gmra.mxu0 %v797
  %v1896 = vpop.f32.mrf.mxu0
  %v1897 = vadd.f32 %v388, %v1896
  %1898 = vmatmul.f32.gmra.mxu0 %v800
  %v1899 = vpop.f32.mrf.mxu0
  %v1900 = vadd.f32 %v388, %v1899
  %1901 = vmatmul.f32.gmra.mxu0 %v803
  %v1902 = vpop.f32.mrf.mxu0
  %v1903 = vadd.f32 %v388, %v1902
  %1904 = vmatmul.f32.gmra.mxu0 %v806
  %v1905 = vpop.f32.mrf.mxu0
  %v1906 = vadd.f32 %v388, %v1905
  %1907 = vmatmul.f32.gmra.mxu0 %v809
  %v1908 = vpop.f32.mrf.mxu0
  %v1909 = vadd.f32 %v388, %v1908
  %1910 = vmatmul.f32.gmra.mxu0 %v812
  %v1911 = vpop.f32.mrf.mxu0
  %v1912 = vadd.f32 %v388, %v1911
  %1913 = vmatmul.f32.gmra.mxu0 %v815
  %v1914 = vpop.f32.mrf.mxu0
  %v1915 = vadd.f32 %v388, %v1914
  %1916 = vmatmul.f32.gmra.mxu0 %v818
  %v1917 = vpop.f32.mrf.mxu0
  %v1918 = vadd.f32 %v388, %v1917
  %1919 = vmatmul.f32.gmra.mxu0 %v821
  %v1920 = vpop.f32.mrf.mxu0
  %v1921 = vadd.f32 %v388, %v1920
  %1922 = vmatmul.f32.gmra.mxu0 %v824
  %v1923 = vpop.f32.mrf.mxu0
  %v1924 = vadd.f32 %v388, %v1923
  %1925 = vmatmul.f32.gmra.mxu0 %v827
  %v1926 = vpop.f32.mrf.mxu0
  %v1927 = vadd.f32 %v388, %v1926
  %1928 = vmatmul.f32.gmra.mxu0 %v830
  %v1929 = vpop.f32.mrf.mxu0
  %v1930 = vadd.f32 %v388, %v1929
  %1931 = vmatmul.f32.gmra.mxu0 %v833
  %v1932 = vpop.f32.mrf.mxu0
  %v1933 = vadd.f32 %v388, %v1932
  %1934 = vmatmul.f32.gmra.mxu0 %v836
  %v1935 = vpop.f32.mrf.mxu0
  %v1936 = vadd.f32 %v388, %v1935
  %1937 = vmatmul.f32.gmra.mxu0 %v839
  %v1938 = vpop.f32.mrf.mxu0
  %v1939 = vadd.f32 %v388, %v1938
  %1940 = vmatmul.f32.gmra.mxu0 %v842
  %v1941 = vpop.f32.mrf.mxu0
  %v1942 = vadd.f32 %v388, %v1941
  %1943 = vmatmul.f32.gmra.mxu0 %v845
  %v1944 = vpop.f32.mrf.mxu0
  %v1945 = vadd.f32 %v388, %v1944
  %1946 = vmatmul.f32.gmra.mxu0 %v848
  %v1947 = vpop.f32.mrf.mxu0
  %v1948 = vadd.f32 %v388, %v1947
  %1949 = vmatmul.f32.gmra.mxu0 %v851
  %v1950 = vpop.f32.mrf.mxu0
  %v1951 = vadd.f32 %v388, %v1950
  %1952 = vmatmul.f32.gmra.mxu0 %v854
  %v1953 = vpop.f32.mrf.mxu0
  %v1954 = vadd.f32 %v388, %v1953
  %1955 = vmatmul.f32.gmra.mxu0 %v857
  %v1956 = vpop.f32.mrf.mxu0
  %v1957 = vadd.f32 %v388, %v1956
  %1958 = vmatmul.f32.gmra.mxu0 %v860
  %v1959 = vpop.f32.mrf.mxu0
  %v1960 = vadd.f32 %v388, %v1959
  %1961 = vmatmul.f32.gmra.mxu0 %v863
  %v1962 = vpop.f32.mrf.mxu0
  %v1963 = vadd.f32 %v388, %v1962
  %1964 = vmatmul.f32.gmra.mxu0 %v866
  %v1965 = vpop.f32.mrf.mxu0
  %v1966 = vadd.f32 %v388, %v1965
  %1967 = vmatmul.f32.gmra.mxu0 %v869
  %v1968 = vpop.f32.mrf.mxu0
  %v1969 = vadd.f32 %v388, %v1968
  %1970 = vmatmul.f32.gmra.mxu0 %v872
  %v1971 = vpop.f32.mrf.mxu0
  %v1972 = vadd.f32 %v388, %v1971
  %1973 = vmatmul.f32.gmra.mxu0 %v875
  %v1974 = vpop.f32.mrf.mxu0
  %v1975 = vadd.f32 %v388, %v1974
  %1976 = vmatmul.f32.gmra.mxu0 %v878
  %v1977 = vpop.f32.mrf.mxu0
  %v1978 = vadd.f32 %v388, %v1977
  %1979 = vmatmul.f32.gmra.mxu0 %v881
  %v1980 = vpop.f32.mrf.mxu0
  %v1981 = vadd.f32 %v388, %v1980
  %1982 = vmatmul.f32.gmra.mxu0 %v884
  %v1983 = vpop.f32.mrf.mxu0
  %v1984 = vadd.f32 %v388, %v1983
  %1985 = vmatmul.f32.gmra.mxu0 %v887
  %v1986 = vpop.f32.mrf.mxu0
  %v1987 = vadd.f32 %v388, %v1986
  %1988 = vmatmul.f32.gmra.mxu0 %v890
  %v1989 = vpop.f32.mrf.mxu0
  %v1990 = vadd.f32 %v388, %v1989
  %1991 = vmatmul.f32.gmra.mxu0 %v893
  %v1992 = vpop.f32.mrf.mxu0
  %v1993 = vadd.f32 %v388, %v1992
  %1994 = vmatmul.f32.gmra.mxu0 %v896
  %v1995 = vpop.f32.mrf.mxu0
  %v1996 = vadd.f32 %v388, %v1995
  %1997 = vmatmul.f32.gmra.mxu0 %v899
  %v1998 = vpop.f32.mrf.mxu0
  %v1999 = vadd.f32 %v388, %v1998
  %2000 = vmatmul.f32.gmra.mxu0 %v902
  %v2001 = vpop.f32.mrf.mxu0
  %v2002 = vadd.f32 %v388, %v2001
  %2003 = vmatmul.f32.gmra.mxu0 %v905
  %v2004 = vpop.f32.mrf.mxu0
  %v2005 = vadd.f32 %v388, %v2004
  %2006 = vmatmul.f32.gmra.mxu0 %v908
  %v2007 = vpop.f32.mrf.mxu0
  %v2008 = vadd.f32 %v388, %v2007
  %2009 = vmatmul.f32.gmra.mxu0 %v911
  %v2010 = vpop.f32.mrf.mxu0
  %v2011 = vadd.f32 %v388, %v2010
  %2012 = vmatmul.f32.gmra.mxu0 %v914
  %v2013 = vpop.f32.mrf.mxu0
  %v2014 = vadd.f32 %v388, %v2013
  %2015 = vmatmul.f32.gmra.mxu0 %v917
  %v2016 = vpop.f32.mrf.mxu0
  %v2017 = vadd.f32 %v388, %v2016
  %2018 = vmatmul.f32.gmra.mxu0 %v920
  %v2019 = vpop.f32.mrf.mxu0
  %v2020 = vadd.f32 %v388, %v2019
  %2021 = vmatmul.f32.gmra.mxu0 %v923
  %v2022 = vpop.f32.mrf.mxu0
  %v2023 = vadd.f32 %v388, %v2022
  %2024 = vmatmul.f32.gmra.mxu0 %v926
  %v2025 = vpop.f32.mrf.mxu0
  %v2026 = vadd.f32 %v388, %v2025
  %2027 = vmatmul.f32.gmra.mxu0 %v929
  %v2028 = vpop.f32.mrf.mxu0
  %v2029 = vadd.f32 %v388, %v2028
  %2030 = vmatmul.f32.gmra.mxu0 %v932
  %v2031 = vpop.f32.mrf.mxu0
  %v2032 = vadd.f32 %v388, %v2031
  %2033 = vmatmul.f32.gmra.mxu0 %v935
  %v2034 = vpop.f32.mrf.mxu0
  %v2035 = vadd.f32 %v388, %v2034
  %2036 = vmatmul.f32.gmra.mxu0 %v938
  %v2037 = vpop.f32.mrf.mxu0
  %v2038 = vadd.f32 %v388, %v2037
  %2039 = vmatmul.f32.gmra.mxu0 %v941
  %v2040 = vpop.f32.mrf.mxu0
  %v2041 = vadd.f32 %v388, %v2040
  %2042 = vmatmul.f32.gmra.mxu0 %v944
  %v2043 = vpop.f32.mrf.mxu0
  %v2044 = vadd.f32 %v388, %v2043
  %2045 = vmatmul.f32.gmra.mxu0 %v947
  %v2046 = vpop.f32.mrf.mxu0
  %v2047 = vadd.f32 %v388, %v2046
  %2048 = vmatmul.f32.gmra.mxu0 %v950
  %v2049 = vpop.f32.mrf.mxu0
  %v2050 = vadd.f32 %v388, %v2049
  %2051 = vmatmul.f32.gmra.mxu0 %v953
  %v2052 = vpop.f32.mrf.mxu0
  %v2053 = vadd.f32 %v388, %v2052
  %2054 = vmatmul.f32.gmra.mxu0 %v956
  %v2055 = vpop.f32.mrf.mxu0
  %v2056 = vadd.f32 %v388, %v2055
  %2057 = vmatmul.f32.gmra.mxu0 %v959
  %v2058 = vpop.f32.mrf.mxu0
  %v2059 = vadd.f32 %v388, %v2058
  %2060 = vmatmul.f32.gmra.mxu0 %v962
  %v2061 = vpop.f32.mrf.mxu0
  %v2062 = vadd.f32 %v388, %v2061
  %2063 = vmatmul.f32.gmra.mxu0 %v965
  %v2064 = vpop.f32.mrf.mxu0
  %v2065 = vadd.f32 %v388, %v2064
  %2066 = vmatmul.f32.gmra.mxu0 %v968
  %v2067 = vpop.f32.mrf.mxu0
  %v2068 = vadd.f32 %v388, %v2067
  %2069 = vmatmul.f32.gmra.mxu0 %v971
  %v2070 = vpop.f32.mrf.mxu0
  %v2071 = vadd.f32 %v388, %v2070
  %2072 = vmatmul.f32.gmra.mxu0 %v974
  %v2073 = vpop.f32.mrf.mxu0
  %v2074 = vadd.f32 %v388, %v2073
  %2075 = vmatmul.f32.gmra.mxu0 %v977
  %v2076 = vpop.f32.mrf.mxu0
  %v2077 = vadd.f32 %v388, %v2076
  %2078 = vmatmul.f32.gmra.mxu0 %v980
  %v2079 = vpop.f32.mrf.mxu0
  %v2080 = vadd.f32 %v388, %v2079
  %2081 = vmatmul.f32.gmra.mxu0 %v983
  %v2082 = vpop.f32.mrf.mxu0
  %v2083 = vadd.f32 %v388, %v2082
  %2084 = vmatmul.f32.gmra.mxu0 %v986
  %v2085 = vpop.f32.mrf.mxu0
  %v2086 = vadd.f32 %v388, %v2085
  %2087 = vmatmul.f32.gmra.mxu0 %v989
  %v2088 = vpop.f32.mrf.mxu0
  %v2089 = vadd.f32 %v388, %v2088
  %2090 = vmatmul.f32.gmra.mxu0 %v992
  %v2091 = vpop.f32.mrf.mxu0
  %v2092 = vadd.f32 %v388, %v2091
  %2093 = vmatmul.f32.gmra.mxu0 %v995
  %v2094 = vpop.f32.mrf.mxu0
  %v2095 = vadd.f32 %v388, %v2094
  %2096 = vmatmul.f32.gmra.mxu0 %v998
  %v2097 = vpop.f32.mrf.mxu0
  %v2098 = vadd.f32 %v388, %v2097
  %2099 = vmatmul.f32.gmra.mxu0 %v1001
  %v2100 = vpop.f32.mrf.mxu0
  %v2101 = vadd.f32 %v388, %v2100
  %2102 = vmatmul.f32.gmra.mxu0 %v1004
  %v2103 = vpop.f32.mrf.mxu0
  %v2104 = vadd.f32 %v388, %v2103
  %2105 = vmatmul.f32.gmra.mxu0 %v1007
  %v2106 = vpop.f32.mrf.mxu0
  %v2107 = vadd.f32 %v388, %v2106
  %2108 = vmatmul.f32.gmra.mxu0 %v1010
  %v2109 = vpop.f32.mrf.mxu0
  %v2110 = vadd.f32 %v388, %v2109
  %2111 = vmatmul.f32.gmra.mxu0 %v1013
  %v2112 = vpop.f32.mrf.mxu0
  %v2113 = vadd.f32 %v388, %v2112
  %2114 = vmatmul.f32.gmra.mxu0 %v1016
  %v2115 = vpop.f32.mrf.mxu0
  %v2116 = vadd.f32 %v388, %v2115
  %2117 = vmatmul.f32.gmra.mxu0 %v1019
  %v2118 = vpop.f32.mrf.mxu0
  %v2119 = vadd.f32 %v388, %v2118
  %2120 = vmatmul.f32.gmra.mxu0 %v1022
  %v2121 = vpop.f32.mrf.mxu0
  %v2122 = vadd.f32 %v388, %v2121
  %2123 = vmatmul.f32.gmra.mxu0 %v1025
  %v2124 = vpop.f32.mrf.mxu0
  %v2125 = vadd.f32 %v388, %v2124
  %2126 = vmatmul.f32.gmra.mxu0 %v1028
  %v2127 = vpop.f32.mrf.mxu0
  %v2128 = vadd.f32 %v388, %v2127
  %2129 = vmatmul.f32.gmra.mxu0 %v1031
  %v2130 = vpop.f32.mrf.mxu0
  %v2131 = vadd.f32 %v388, %v2130
  %2132 = vmatmul.f32.gmra.mxu0 %v1034
  %v2133 = vpop.f32.mrf.mxu0
  %v2134 = vadd.f32 %v388, %v2133
  %2135 = vmatmul.f32.gmra.mxu0 %v1037
  %v2136 = vpop.f32.mrf.mxu0
  %v2137 = vadd.f32 %v388, %v2136
  %2138 = vmatmul.f32.gmra.mxu0 %v1040
  %v2139 = vpop.f32.mrf.mxu0
  %v2140 = vadd.f32 %v388, %v2139
  %2141 = vmatmul.f32.gmra.mxu0 %v1043
  %v2142 = vpop.f32.mrf.mxu0
  %v2143 = vadd.f32 %v388, %v2142
  %2144 = vmatmul.f32.gmra.mxu0 %v1046
  %v2145 = vpop.f32.mrf.mxu0
  %v2146 = vadd.f32 %v388, %v2145
  %2147 = vmatmul.f32.gmra.mxu0 %v1049
  %v2148 = vpop.f32.mrf.mxu0
  %v2149 = vadd.f32 %v388, %v2148
  %2150 = vmatmul.f32.gmra.mxu0 %v1052
  %v2151 = vpop.f32.mrf.mxu0
  %v2152 = vadd.f32 %v388, %v2151
  %2153 = vmatmul.f32.gmra.mxu0 %v1055
  %v2154 = vpop.f32.mrf.mxu0
  %v2155 = vadd.f32 %v388, %v2154
  %2156 = vmatmul.f32.gmra.mxu0 %v1058
  %v2157 = vpop.f32.mrf.mxu0
  %v2158 = vadd.f32 %v388, %v2157
  %2159 = vmatmul.f32.gmra.mxu0 %v1061
  %v2160 = vpop.f32.mrf.mxu0
  %v2161 = vadd.f32 %v388, %v2160
  %2162 = vmatmul.f32.gmra.mxu0 %v1064
  %v2163 = vpop.f32.mrf.mxu0
  %v2164 = vadd.f32 %v388, %v2163
  %2165 = vmatmul.f32.gmra.mxu0 %v1067
  %v2166 = vpop.f32.mrf.mxu0
  %v2167 = vadd.f32 %v388, %v2166
  %2168 = vmatmul.f32.gmra.mxu0 %v1070
  %v2169 = vpop.f32.mrf.mxu0
  %v2170 = vadd.f32 %v388, %v2169
  %2171 = vmatmul.f32.gmra.mxu0 %v1073
  %v2172 = vpop.f32.mrf.mxu0
  %v2173 = vadd.f32 %v388, %v2172
  %2174 = vmatmul.f32.gmra.mxu0 %v1076
  %v2175 = vpop.f32.mrf.mxu0
  %v2176 = vadd.f32 %v388, %v2175
  %2177 = vmatmul.f32.gmra.mxu0 %v1079
  %v2178 = vpop.f32.mrf.mxu0
  %v2179 = vadd.f32 %v388, %v2178
  %2180 = vmatmul.f32.gmra.mxu0 %v1082
  %v2181 = vpop.f32.mrf.mxu0
  %v2182 = vadd.f32 %v388, %v2181
  %2183 = vmatmul.f32.gmra.mxu0 %v1085
  %v2184 = vpop.f32.mrf.mxu0
  %v2185 = vadd.f32 %v388, %v2184
  %2186 = vmatmul.f32.gmra.mxu0 %v1088
  %v2187 = vpop.f32.mrf.mxu0
  %v2188 = vadd.f32 %v388, %v2187
  %2189 = vmatmul.f32.gmra.mxu0 %v1091
  %v2190 = vpop.f32.mrf.mxu0
  %v2191 = vadd.f32 %v388, %v2190
  %2192 = vmatmul.f32.gmra.mxu0 %v1094
  %v2193 = vpop.f32.mrf.mxu0
  %v2194 = vadd.f32 %v388, %v2193
  %2195 = vmatmul.f32.gmra.mxu0 %v1097
  %v2196 = vpop.f32.mrf.mxu0
  %v2197 = vadd.f32 %v388, %v2196
  %2198 = vmatmul.f32.gmra.mxu0 %v1100
  %v2199 = vpop.f32.mrf.mxu0
  %v2200 = vadd.f32 %v388, %v2199
  %2201 = vmatmul.f32.gmra.mxu0 %v1103
  %v2202 = vpop.f32.mrf.mxu0
  %v2203 = vadd.f32 %v388, %v2202
  %2204 = vmatmul.f32.gmra.mxu0 %v1106
  %v2205 = vpop.f32.mrf.mxu0
  %v2206 = vadd.f32 %v388, %v2205
  %2207 = vmatmul.f32.gmra.mxu0 %v1109
  %v2208 = vpop.f32.mrf.mxu0
  %v2209 = vadd.f32 %v388, %v2208
  %2210 = vmatmul.f32.gmra.mxu0 %v1112
  %v2211 = vpop.f32.mrf.mxu0
  %v2212 = vadd.f32 %v388, %v2211
  %2213 = vmatmul.f32.gmra.mxu0 %v1115
  %v2214 = vpop.f32.mrf.mxu0
  %v2215 = vadd.f32 %v388, %v2214
  %2216 = vmatmul.f32.gmra.mxu0 %v1118
  %v2217 = vpop.f32.mrf.mxu0
  %v2218 = vadd.f32 %v388, %v2217
  %2219 = vmatmul.f32.gmra.mxu0 %v1121
  %v2220 = vpop.f32.mrf.mxu0
  %v2221 = vadd.f32 %v388, %v2220
  %2222 = vmatmul.f32.gmra.mxu0 %v1124
  %v2223 = vpop.f32.mrf.mxu0
  %v2224 = vadd.f32 %v388, %v2223
  %2225 = vmatmul.f32.gmra.mxu0 %v1127
  %v2226 = vpop.f32.mrf.mxu0
  %v2227 = vadd.f32 %v388, %v2226
  %2228 = vmatmul.f32.gmra.mxu0 %v1130
  %v2229 = vpop.f32.mrf.mxu0
  %v2230 = vadd.f32 %v388, %v2229
  %2231 = vmatmul.f32.gmra.mxu0 %v1133
  %v2232 = vpop.f32.mrf.mxu0
  %v2233 = vadd.f32 %v388, %v2232
  %2234 = vmatmul.f32.gmra.mxu0 %v1136
  %v2235 = vpop.f32.mrf.mxu0
  %v2236 = vadd.f32 %v388, %v2235
  %2237 = vmatmul.f32.gmra.mxu0 %v1139
  %v2238 = vpop.f32.mrf.mxu0
  %v2239 = vadd.f32 %v388, %v2238
  %2240 = vmatmul.f32.gmra.mxu0 %v1142
  %v2241 = vpop.f32.mrf.mxu0
  %v2242 = vadd.f32 %v388, %v2241
  %2243 = vmatmul.f32.gmra.mxu0 %v1145
  %v2244 = vpop.f32.mrf.mxu0
  %v2245 = vadd.f32 %v388, %v2244
  %2246 = vmatmul.f32.gmra.mxu0 %v1148
  %v2247 = vpop.f32.mrf.mxu0
  %v2248 = vadd.f32 %v388, %v2247
  %2249 = vmatmul.f32.gmra.mxu0 %v1151
  %v2250 = vpop.f32.mrf.mxu0
  %v2251 = vadd.f32 %v388, %v2250
  %2252 = vmatmul.f32.gmra.mxu0 %v1154
  %v2253 = vpop.f32.mrf.mxu0
  %v2254 = vadd.f32 %v388, %v2253
  %2255 = vmatmul.f32.gmra.mxu0 %v1157
  %v2256 = vpop.f32.mrf.mxu0
  %v2257 = vadd.f32 %v388, %v2256
  %2258 = vmatmul.f32.gmra.mxu0 %v1160
  %v2259 = vpop.f32.mrf.mxu0
  %v2260 = vadd.f32 %v388, %v2259
  %2261 = vmatmul.f32.gmra.mxu0 %v1163
  %v2262 = vpop.f32.mrf.mxu0
  %v2263 = vadd.f32 %v388, %v2262
  %2264 = vmatmul.f32.gmra.mxu0 %v1166
  %v2265 = vpop.f32.mrf.mxu0
  %v2266 = vadd.f32 %v388, %v2265
  %2267 = vmatmul.f32.gmra.mxu0 %v1169
  %v2268 = vpop.f32.mrf.mxu0
  %v2269 = vadd.f32 %v388, %v2268
  %2270 = vmatmul.f32.gmra.mxu0 %v1172
  %v2271 = vpop.f32.mrf.mxu0
  %v2272 = vadd.f32 %v388, %v2271
  %2273 = vmatmul.f32.gmra.mxu0 %v1175
  %v2274 = vpop.f32.mrf.mxu0
  %v2275 = vadd.f32 %v388, %v2274
  %2276 = vmatmul.f32.gmra.mxu0 %v1178
  %v2277 = vpop.f32.mrf.mxu0
  %v2278 = vadd.f32 %v388, %v2277
  %2279 = vmatmul.f32.gmra.mxu0 %v1181
  %v2280 = vpop.f32.mrf.mxu0
  %v2281 = vadd.f32 %v388, %v2280
  %2282 = vmatmul.f32.gmra.mxu0 %v1184
  %v2283 = vpop.f32.mrf.mxu0
  %v2284 = vadd.f32 %v388, %v2283
  %2285 = vmatmul.f32.gmra.mxu0 %v1187
  %v2286 = vpop.f32.mrf.mxu0
  %v2287 = vadd.f32 %v388, %v2286
  %2288 = vmatmul.f32.gmra.mxu0 %v1190
  %v2289 = vpop.f32.mrf.mxu0
  %v2290 = vadd.f32 %v388, %v2289
  %2291 = vmatmul.f32.gmra.mxu0 %v1193
  %v2292 = vpop.f32.mrf.mxu0
  %v2293 = vadd.f32 %v388, %v2292
  %2294 = vmatmul.f32.gmra.mxu0 %v1196
  %v2295 = vpop.f32.mrf.mxu0
  %v2296 = vadd.f32 %v388, %v2295
  %2297 = vmatmul.f32.gmra.mxu0 %v1199
  %v2298 = vpop.f32.mrf.mxu0
  %v2299 = vadd.f32 %v388, %v2298
  %2300 = vmatmul.f32.gmra.mxu0 %v1202
  %v2301 = vpop.f32.mrf.mxu0
  %v2302 = vadd.f32 %v388, %v2301
  %2303 = vmatmul.f32.gmra.mxu0 %v1205
  %v2304 = vpop.f32.mrf.mxu0
  %v2305 = vadd.f32 %v388, %v2304
  %2306 = vmatmul.f32.gmra.mxu0 %v1208
  %v2307 = vpop.f32.mrf.mxu0
  %v2308 = vadd.f32 %v388, %v2307
  %2309 = vmatmul.f32.gmra.mxu0 %v1211
  %v2310 = vpop.f32.mrf.mxu0
  %v2311 = vadd.f32 %v388, %v2310
  %2312 = vmatmul.f32.gmra.mxu0 %v1214
  %v2313 = vpop.f32.mrf.mxu0
  %v2314 = vadd.f32 %v388, %v2313
  %2315 = vmatmul.f32.gmra.mxu0 %v1217
  %v2316 = vpop.f32.mrf.mxu0
  %v2317 = vadd.f32 %v388, %v2316
  %2318 = vmatmul.f32.gmra.mxu0 %v1220
  %v2319 = vpop.f32.mrf.mxu0
  %v2320 = vadd.f32 %v388, %v2319
  %2321 = vmatmul.f32.gmra.mxu0 %v1223
  %v2322 = vpop.f32.mrf.mxu0
  %v2323 = vadd.f32 %v388, %v2322
  %2324 = vmatmul.f32.gmra.mxu0 %v1226
  %v2325 = vpop.f32.mrf.mxu0
  %v2326 = vadd.f32 %v388, %v2325
  %2327 = vmatmul.f32.gmra.mxu0 %v1229
  %v2328 = vpop.f32.mrf.mxu0
  %v2329 = vadd.f32 %v388, %v2328
  %2330 = vmatmul.f32.gmra.mxu0 %v1232
  %v2331 = vpop.f32.mrf.mxu0
  %v2332 = vadd.f32 %v388, %v2331
  %2333 = vmatmul.f32.gmra.mxu0 %v1235
  %v2334 = vpop.f32.mrf.mxu0
  %v2335 = vadd.f32 %v388, %v2334
  %2336 = vmatmul.f32.gmra.mxu0 %v1238
  %v2337 = vpop.f32.mrf.mxu0
  %v2338 = vadd.f32 %v388, %v2337
  %2339 = vmatmul.f32.gmra.mxu0 %v1241
  %v2340 = vpop.f32.mrf.mxu0
  %v2341 = vadd.f32 %v388, %v2340
  %2342 = vmatmul.f32.gmra.mxu0 %v1244
  %v2343 = vpop.f32.mrf.mxu0
  %v2344 = vadd.f32 %v388, %v2343
  %2345 = vmatmul.f32.gmra.mxu0 %v1247
  %v2346 = vpop.f32.mrf.mxu0
  %v2347 = vadd.f32 %v388, %v2346
  %2348 = vmatmul.f32.gmra.mxu0 %v1250
  %v2349 = vpop.f32.mrf.mxu0
  %v2350 = vadd.f32 %v388, %v2349
  %2351 = vmatmul.f32.gmra.mxu0 %v1253
  %v2352 = vpop.f32.mrf.mxu0
  %v2353 = vadd.f32 %v388, %v2352
  %2354 = vmatmul.f32.gmra.mxu0 %v1256
  %v2355 = vpop.f32.mrf.mxu0
  %v2356 = vadd.f32 %v388, %v2355
  %2357 = vmatmul.f32.gmra.mxu0 %v1259
  %v2358 = vpop.f32.mrf.mxu0
  %v2359 = vadd.f32 %v388, %v2358
  %2360 = vmatmul.f32.gmra.mxu0 %v1262
  %v2361 = vpop.f32.mrf.mxu0
  %v2362 = vadd.f32 %v388, %v2361
  %2363 = vmatmul.f32.gmra.mxu0 %v1265
  %v2364 = vpop.f32.mrf.mxu0
  %v2365 = vadd.f32 %v388, %v2364
  %2366 = vmatmul.f32.gmra.mxu0 %v1268
  %v2367 = vpop.f32.mrf.mxu0
  %v2368 = vadd.f32 %v388, %v2367
  %2369 = vmatmul.f32.gmra.mxu0 %v1271
  %v2370 = vpop.f32.mrf.mxu0
  %v2371 = vadd.f32 %v388, %v2370
  %2372 = vmatmul.f32.gmra.mxu0 %v1274
  %v2373 = vpop.f32.mrf.mxu0
  %v2374 = vadd.f32 %v388, %v2373
  %2375 = vmatmul.f32.gmra.mxu0 %v1277
  %v2376 = vpop.f32.mrf.mxu0
  %v2377 = vadd.f32 %v388, %v2376
  %2378 = vmatmul.f32.gmra.mxu0 %v1280
  %v2379 = vpop.f32.mrf.mxu0
  %v2380 = vadd.f32 %v388, %v2379
  %2381 = vmatmul.f32.gmra.mxu0 %v1283
  %v2382 = vpop.f32.mrf.mxu0
  %v2383 = vadd.f32 %v388, %v2382
  %2384 = vmatmul.f32.gmra.mxu0 %v1286
  %v2385 = vpop.f32.mrf.mxu0
  %v2386 = vadd.f32 %v388, %v2385
  %2387 = vmatmul.f32.gmra.mxu0 %v1289
  %v2388 = vpop.f32.mrf.mxu0
  %v2389 = vadd.f32 %v388, %v2388
  %2390 = vmatmul.f32.gmra.mxu0 %v1292
  %v2391 = vpop.f32.mrf.mxu0
  %v2392 = vadd.f32 %v388, %v2391
  %2393 = vmatmul.f32.gmra.mxu0 %v1295
  %v2394 = vpop.f32.mrf.mxu0
  %v2395 = vadd.f32 %v388, %v2394
  %2396 = vmatmul.f32.gmra.mxu0 %v1298
  %v2397 = vpop.f32.mrf.mxu0
  %v2398 = vadd.f32 %v388, %v2397
  %2399 = vmatmul.f32.gmra.mxu0 %v1301
  %v2400 = vpop.f32.mrf.mxu0
  %v2401 = vadd.f32 %v388, %v2400
  %2402 = vmatmul.f32.gmra.mxu0 %v1304
  %v2403 = vpop.f32.mrf.mxu0
  %v2404 = vadd.f32 %v388, %v2403
  %2405 = vmatmul.f32.gmra.mxu0 %v1307
  %v2406 = vpop.f32.mrf.mxu0
  %v2407 = vadd.f32 %v388, %v2406
  %2408 = vmatmul.f32.gmra.mxu0 %v1310
  %v2409 = vpop.f32.mrf.mxu0
  %v2410 = vadd.f32 %v388, %v2409
  %2411 = vmatmul.f32.gmra.mxu0 %v1313
  %v2412 = vpop.f32.mrf.mxu0
  %v2413 = vadd.f32 %v388, %v2412
  %2414 = vmatmul.f32.gmra.mxu0 %v1316
  %v2415 = vpop.f32.mrf.mxu0
  %v2416 = vadd.f32 %v388, %v2415
  %2417 = vmatmul.f32.gmra.mxu0 %v1319
  %v2418 = vpop.f32.mrf.mxu0
  %v2419 = vadd.f32 %v388, %v2418
  %2420 = vmatmul.f32.gmra.mxu0 %v1322
  %v2421 = vpop.f32.mrf.mxu0
  %v2422 = vadd.f32 %v388, %v2421
  %2423 = vmatmul.f32.gmra.mxu0 %v1325
  %v2424 = vpop.f32.mrf.mxu0
  %v2425 = vadd.f32 %v388, %v2424
  %2426 = vmatmul.f32.gmra.mxu0 %v1328
  %v2427 = vpop.f32.mrf.mxu0
  %v2428 = vadd.f32 %v388, %v2427
  %2429 = vmatmul.f32.gmra.mxu0 %v1331
  %v2430 = vpop.f32.mrf.mxu0
  %v2431 = vadd.f32 %v388, %v2430
  %2432 = vmatmul.f32.gmra.mxu0 %v1334
  %v2433 = vpop.f32.mrf.mxu0
  %v2434 = vadd.f32 %v388, %v2433
  %2435 = vmatmul.f32.gmra.mxu0 %v1337
  %v2436 = vpop.f32.mrf.mxu0
  %v2437 = vadd.f32 %v388, %v2436
  %2438 = vmatmul.f32.gmra.mxu0 %v1340
  %v2439 = vpop.f32.mrf.mxu0
  %v2440 = vadd.f32 %v388, %v2439
  %2441 = vmatmul.f32.gmra.mxu0 %v1343
  %v2442 = vpop.f32.mrf.mxu0
  %v2443 = vadd.f32 %v388, %v2442
  %2444 = vmatmul.f32.gmra.mxu0 %v1346
  %v2445 = vpop.f32.mrf.mxu0
  %v2446 = vadd.f32 %v388, %v2445
  %2447 = vmatmul.f32.gmra.mxu0 %v1349
  %v2448 = vpop.f32.mrf.mxu0
  %v2449 = vadd.f32 %v388, %v2448
  %2450 = vmatmul.f32.gmra.mxu0 %v1352
  %v2451 = vpop.f32.mrf.mxu0
  %v2452 = vadd.f32 %v388, %v2451
  %2453 = vmatmul.f32.gmra.mxu0 %v1355
  %v2454 = vpop.f32.mrf.mxu0
  %v2455 = vadd.f32 %v388, %v2454
  %2456 = vmatmul.f32.gmra.mxu0 %v1358
  %v2457 = vpop.f32.mrf.mxu0
  %v2458 = vadd.f32 %v388, %v2457
  %2459 = vmatmul.f32.gmra.mxu0 %v1361
  %v2460 = vpop.f32.mrf.mxu0
  %v2461 = vadd.f32 %v388, %v2460
  %2462 = vmatmul.f32.gmra.mxu0 %v1364
  %v2463 = vpop.f32.mrf.mxu0
  %v2464 = vadd.f32 %v388, %v2463
  %2465 = vmatmul.f32.gmra.mxu0 %v1367
  %v2466 = vpop.f32.mrf.mxu0
  %v2467 = vadd.f32 %v388, %v2466
  %2468 = vmatmul.f32.gmra.mxu0 %v1370
  %v2469 = vpop.f32.mrf.mxu0
  %v2470 = vadd.f32 %v388, %v2469
  %2471 = vmatmul.f32.gmra.mxu0 %v1373
  %v2472 = vpop.f32.mrf.mxu0
  %v2473 = vadd.f32 %v388, %v2472
  %2474 = vmatmul.f32.gmra.mxu0 %v1376
  %v2475 = vpop.f32.mrf.mxu0
  %v2476 = vadd.f32 %v388, %v2475
  %2477 = vmatmul.f32.gmra.mxu0 %v1379
  %v2478 = vpop.f32.mrf.mxu0
  %v2479 = vadd.f32 %v388, %v2478
  %2480 = vmatmul.f32.gmra.mxu0 %v1382
  %v2481 = vpop.f32.mrf.mxu0
  %v2482 = vadd.f32 %v388, %v2481
  %2483 = vmatmul.f32.gmra.mxu0 %v1385
  %v2484 = vpop.f32.mrf.mxu0
  %v2485 = vadd.f32 %v388, %v2484
  %2486 = vmatmul.f32.gmra.mxu0 %v1388
  %v2487 = vpop.f32.mrf.mxu0
  %v2488 = vadd.f32 %v388, %v2487
  %2489 = vmatmul.f32.gmra.mxu0 %v1391
  %v2490 = vpop.f32.mrf.mxu0
  %v2491 = vadd.f32 %v388, %v2490
  %2492 = vmatmul.f32.gmra.mxu0 %v1394
  %v2493 = vpop.f32.mrf.mxu0
  %v2494 = vadd.f32 %v388, %v2493
  %2495 = vmatmul.f32.gmra.mxu0 %v1397
  %v2496 = vpop.f32.mrf.mxu0
  %v2497 = vadd.f32 %v388, %v2496
  %2498 = vmatmul.f32.gmra.mxu0 %v1400
  %v2499 = vpop.f32.mrf.mxu0
  %v2500 = vadd.f32 %v388, %v2499
  %2501 = vmatmul.f32.gmra.mxu0 %v1403
  %v2502 = vpop.f32.mrf.mxu0
  %v2503 = vadd.f32 %v388, %v2502
  %2504 = vmatmul.f32.gmra.mxu0 %v1406
  %v2505 = vpop.f32.mrf.mxu0
  %v2506 = vadd.f32 %v388, %v2505
  %2507 = vmatmul.f32.gmra.mxu0 %v1409
  %v2508 = vpop.f32.mrf.mxu0
  %v2509 = vadd.f32 %v388, %v2508
  %2510 = vmatmul.f32.gmra.mxu0 %v1412
  %v2511 = vpop.f32.mrf.mxu0
  %v2512 = vadd.f32 %v388, %v2511
  %2513 = vmatmul.f32.gmra.mxu0 %v1415
  %v2514 = vpop.f32.mrf.mxu0
  %v2515 = vadd.f32 %v388, %v2514
  %2516 = vmatmul.f32.gmra.mxu0 %v1418
  %v2517 = vpop.f32.mrf.mxu0
  %v2518 = vadd.f32 %v388, %v2517
  %2519 = vmatmul.f32.gmra.mxu0 %v1421
  %v2520 = vpop.f32.mrf.mxu0
  %v2521 = vadd.f32 %v388, %v2520
  %2522 = vmatmul.f32.gmra.mxu0 %v1424
  %v2523 = vpop.f32.mrf.mxu0
  %v2524 = vadd.f32 %v388, %v2523
  %2525 = vmatmul.f32.gmra.mxu0 %v1427
  %v2526 = vpop.f32.mrf.mxu0
  %v2527 = vadd.f32 %v388, %v2526
  %2528 = vmatmul.f32.gmra.mxu0 %v1430
  %v2529 = vpop.f32.mrf.mxu0
  %v2530 = vadd.f32 %v388, %v2529
  %2531 = vmatmul.f32.gmra.mxu0 %v1433
  %v2532 = vpop.f32.mrf.mxu0
  %v2533 = vadd.f32 %v388, %v2532
  %2534 = vmatmul.f32.gmra.mxu0 %v1436
  %v2535 = vpop.f32.mrf.mxu0
  %v2536 = vadd.f32 %v388, %v2535
  %2537 = vmatmul.f32.gmra.mxu0 %v1439
  %v2538 = vpop.f32.mrf.mxu0
  %v2539 = vadd.f32 %v388, %v2538
  %2540 = vmatmul.f32.gmra.mxu0 %v1442
  %v2541 = vpop.f32.mrf.mxu0
  %v2542 = vadd.f32 %v388, %v2541
  %2543 = vmatmul.f32.gmra.mxu0 %v1445
  %v2544 = vpop.f32.mrf.mxu0
  %v2545 = vadd.f32 %v388, %v2544
  %2546 = vmatmul.f32.gmra.mxu0 %v1448
  %v2547 = vpop.f32.mrf.mxu0
  %v2548 = vadd.f32 %v388, %v2547
  %2549 = vmatmul.f32.gmra.mxu0 %v1451
  %v2550 = vpop.f32.mrf.mxu0
  %v2551 = vadd.f32 %v388, %v2550
  %2552 = vmatmul.f32.gmra.mxu0 %v1454
  %v2553 = vpop.f32.mrf.mxu0
  %v2554 = vadd.f32 %v388, %v2553
  %2555 = vmatmul.f32.gmra.mxu0 %v1457
  %v2556 = vpop.f32.mrf.mxu0
  %v2557 = vadd.f32 %v388, %v2556
  %2558 = vmatmul.f32.gmra.mxu0 %v1460
  %v2559 = vpop.f32.mrf.mxu0
  %v2560 = vadd.f32 %v388, %v2559
  %2561 = vmatmul.f32.gmra.mxu0 %v1463
  %v2562 = vpop.f32.mrf.mxu0
  %v2563 = vadd.f32 %v388, %v2562
  %2564 = vmatmul.f32.gmra.mxu0 %v1466
  %v2565 = vpop.f32.mrf.mxu0
  %v2566 = vadd.f32 %v388, %v2565
  %2567 = vmatmul.f32.gmra.mxu0 %v1469
  %v2568 = vpop.f32.mrf.mxu0
  %v2569 = vadd.f32 %v388, %v2568
  %2570 = vmatmul.f32.gmra.mxu0 %v1472
  %v2571 = vpop.f32.mrf.mxu0
  %v2572 = vadd.f32 %v388, %v2571
  %2573 = vdwg.mxu0
  %v2574 = vmax.f32 %v1492, 0.0
  %v2575 = vmax.f32 %v1495, 0.0
  %v2576 = vmax.f32 %v1498, 0.0
  %v2577 = vmax.f32 %v1501, 0.0
  %v2578 = vmax.f32 %v1504, 0.0
  %v2579 = vmax.f32 %v1507, 0.0
  %v2580 = vmax.f32 %v1510, 0.0
  %v2581 = vmax.f32 %v1513, 0.0
  %v2582 = vmax.f32 %v1516, 0.0
  %v2583 = vmax.f32 %v1519, 0.0
  %v2584 = vmax.f32 %v1522, 0.0
  %v2585 = vmax.f32 %v1525, 0.0
  %v2586 = vmax.f32 %v1528, 0.0
  %v2587 = vmax.f32 %v1531, 0.0
  %v2588 = vmax.f32 %v1534, 0.0
  %v2589 = vmax.f32 %v1537, 0.0
  %v2590 = vmax.f32 %v1540, 0.0
  %v2591 = vmax.f32 %v1543, 0.0
  %v2592 = vmax.f32 %v1546, 0.0
  %v2593 = vmax.f32 %v1549, 0.0
  %v2594 = vmax.f32 %v1552, 0.0
  %v2595 = vmax.f32 %v1555, 0.0
  %v2596 = vmax.f32 %v1558, 0.0
  %v2597 = vmax.f32 %v1561, 0.0
  %v2598 = vmax.f32 %v1564, 0.0
  %v2599 = vmax.f32 %v1567, 0.0
  %v2600 = vmax.f32 %v1570, 0.0
  %v2601 = vmax.f32 %v1573, 0.0
  %v2602 = vmax.f32 %v1576, 0.0
  %v2603 = vmax.f32 %v1579, 0.0
  %v2604 = vmax.f32 %v1582, 0.0
  %v2605 = vmax.f32 %v1585, 0.0
  %v2606 = vmax.f32 %v1588, 0.0
  %v2607 = vmax.f32 %v1591, 0.0
  %v2608 = vmax.f32 %v1594, 0.0
  %v2609 = vmax.f32 %v1597, 0.0
  %v2610 = vmax.f32 %v1600, 0.0
  %v2611 = vmax.f32 %v1603, 0.0
  %v2612 = vmax.f32 %v1606, 0.0
  %v2613 = vmax.f32 %v1609, 0.0
  %v2614 = vmax.f32 %v1612, 0.0
  %v2615 = vmax.f32 %v1615, 0.0
  %v2616 = vmax.f32 %v1618, 0.0
  %v2617 = vmax.f32 %v1621, 0.0
  %v2618 = vmax.f32 %v1624, 0.0
  %v2619 = vmax.f32 %v1627, 0.0
  %v2620 = vmax.f32 %v1630, 0.0
  %v2621 = vmax.f32 %v1633, 0.0
  %v2622 = vmax.f32 %v1636, 0.0
  %v2623 = vmax.f32 %v1639, 0.0
  %v2624 = vmax.f32 %v1642, 0.0
  %v2625 = vmax.f32 %v1645, 0.0
  %v2626 = vmax.f32 %v1648, 0.0
  %v2627 = vmax.f32 %v1651, 0.0
  %v2628 = vmax.f32 %v1654, 0.0
  %v2629 = vmax.f32 %v1657, 0.0
  %v2630 = vmax.f32 %v1660, 0.0
  %v2631 = vmax.f32 %v1663, 0.0
  %v2632 = vmax.f32 %v1666, 0.0
  %v2633 = vmax.f32 %v1669, 0.0
  %v2634 = vmax.f32 %v1672, 0.0
  %v2635 = vmax.f32 %v1675, 0.0
  %v2636 = vmax.f32 %v1678, 0.0
  %v2637 = vmax.f32 %v1681, 0.0
  %v2638 = vmax.f32 %v1684, 0.0
  %v2639 = vmax.f32 %v1687, 0.0
  %v2640 = vmax.f32 %v1690, 0.0
  %v2641 = vmax.f32 %v1693, 0.0
  %v2642 = vmax.f32 %v1696, 0.0
  %v2643 = vmax.f32 %v1699, 0.0
  %v2644 = vmax.f32 %v1702, 0.0
  %v2645 = vmax.f32 %v1705, 0.0
  %v2646 = vmax.f32 %v1708, 0.0
  %v2647 = vmax.f32 %v1711, 0.0
  %v2648 = vmax.f32 %v1714, 0.0
  %v2649 = vmax.f32 %v1717, 0.0
  %v2650 = vmax.f32 %v1720, 0.0
  %v2651 = vmax.f32 %v1723, 0.0
  %v2652 = vmax.f32 %v1726, 0.0
  %v2653 = vmax.f32 %v1729, 0.0
  %v2654 = vmax.f32 %v1732, 0.0
  %v2655 = vmax.f32 %v1735, 0.0
  %v2656 = vmax.f32 %v1738, 0.0
  %v2657 = vmax.f32 %v1741, 0.0
  %v2658 = vmax.f32 %v1744, 0.0
  %v2659 = vmax.f32 %v1747, 0.0
  %v2660 = vmax.f32 %v1750, 0.0
  %v2661 = vmax.f32 %v1753, 0.0
  %v2662 = vmax.f32 %v1756, 0.0
  %v2663 = vmax.f32 %v1759, 0.0
  %v2664 = vmax.f32 %v1762, 0.0
  %v2665 = vmax.f32 %v1765, 0.0
  %v2666 = vmax.f32 %v1768, 0.0
  %v2667 = vmax.f32 %v1771, 0.0
  %v2668 = vmax.f32 %v1774, 0.0
  %v2669 = vmax.f32 %v1777, 0.0
  %v2670 = vmax.f32 %v1780, 0.0
  %v2671 = vmax.f32 %v1783, 0.0
  %v2672 = vmax.f32 %v1786, 0.0
  %v2673 = vmax.f32 %v1789, 0.0
  %v2674 = vmax.f32 %v1792, 0.0
  %v2675 = vmax.f32 %v1795, 0.0
  %v2676 = vmax.f32 %v1798, 0.0
  %v2677 = vmax.f32 %v1801, 0.0
  %v2678 = vmax.f32 %v1804, 0.0
  %v2679 = vmax.f32 %v1807, 0.0
  %v2680 = vmax.f32 %v1810, 0.0
  %v2681 = vmax.f32 %v1813, 0.0
  %v2682 = vmax.f32 %v1816, 0.0
  %v2683 = vmax.f32 %v1819, 0.0
  %v2684 = vmax.f32 %v1822, 0.0
  %v2685 = vmax.f32 %v1825, 0.0
  %v2686 = vmax.f32 %v1828, 0.0
  %v2687 = vmax.f32 %v1831, 0.0
  %v2688 = vmax.f32 %v1834, 0.0
  %v2689 = vmax.f32 %v1837, 0.0
  %v2690 = vmax.f32 %v1840, 0.0
  %v2691 = vmax.f32 %v1843, 0.0
  %v2692 = vmax.f32 %v1846, 0.0
  %v2693 = vmax.f32 %v1849, 0.0
  %v2694 = vmax.f32 %v1852, 0.0
  %v2695 = vmax.f32 %v1855, 0.0
  %v2696 = vmax.f32 %v1858, 0.0
  %v2697 = vmax.f32 %v1861, 0.0
  %v2698 = vmax.f32 %v1864, 0.0
  %v2699 = vmax.f32 %v1867, 0.0
  %v2700 = vmax.f32 %v1870, 0.0
  %v2701 = vmax.f32 %v1873, 0.0
  %v2702 = vmax.f32 %v1876, 0.0
  %v2703 = vmax.f32 %v1879, 0.0
  %v2704 = vmax.f32 %v1882, 0.0
  %v2705 = vmax.f32 %v1885, 0.0
  %v2706 = vmax.f32 %v1888, 0.0
  %v2707 = vmax.f32 %v1891, 0.0
  %v2708 = vmax.f32 %v1894, 0.0
  %v2709 = vmax.f32 %v1897, 0.0
  %v2710 = vmax.f32 %v1900, 0.0
  %v2711 = vmax.f32 %v1903, 0.0
  %v2712 = vmax.f32 %v1906, 0.0
  %v2713 = vmax.f32 %v1909, 0.0
  %v2714 = vmax.f32 %v1912, 0.0
  %v2715 = vmax.f32 %v1915, 0.0
  %v2716 = vmax.f32 %v1918, 0.0
  %v2717 = vmax.f32 %v1921, 0.0
  %v2718 = vmax.f32 %v1924, 0.0
  %v2719 = vmax.f32 %v1927, 0.0
  %v2720 = vmax.f32 %v1930, 0.0
  %v2721 = vmax.f32 %v1933, 0.0
  %v2722 = vmax.f32 %v1936, 0.0
  %v2723 = vmax.f32 %v1939, 0.0
  %v2724 = vmax.f32 %v1942, 0.0
  %v2725 = vmax.f32 %v1945, 0.0
  %v2726 = vmax.f32 %v1948, 0.0
  %v2727 = vmax.f32 %v1951, 0.0
  %v2728 = vmax.f32 %v1954, 0.0
  %v2729 = vmax.f32 %v1957, 0.0
  %v2730 = vmax.f32 %v1960, 0.0
  %v2731 = vmax.f32 %v1963, 0.0
  %v2732 = vmax.f32 %v1966, 0.0
  %v2733 = vmax.f32 %v1969, 0.0
  %v2734 = vmax.f32 %v1972, 0.0
  %v2735 = vmax.f32 %v1975, 0.0
  %v2736 = vmax.f32 %v1978, 0.0
  %v2737 = vmax.f32 %v1981, 0.0
  %v2738 = vmax.f32 %v1984, 0.0
  %v2739 = vmax.f32 %v1987, 0.0
  %v2740 = vmax.f32 %v1990, 0.0
  %v2741 = vmax.f32 %v1993, 0.0
  %v2742 = vmax.f32 %v1996, 0.0
  %v2743 = vmax.f32 %v1999, 0.0
  %v2744 = vmax.f32 %v2002, 0.0
  %v2745 = vmax.f32 %v2005, 0.0
  %v2746 = vmax.f32 %v2008, 0.0
  %v2747 = vmax.f32 %v2011, 0.0
  %v2748 = vmax.f32 %v2014, 0.0
  %v2749 = vmax.f32 %v2017, 0.0
  %v2750 = vmax.f32 %v2020, 0.0
  %v2751 = vmax.f32 %v2023, 0.0
  %v2752 = vmax.f32 %v2026, 0.0
  %v2753 = vmax.f32 %v2029, 0.0
  %v2754 = vmax.f32 %v2032, 0.0
  %v2755 = vmax.f32 %v2035, 0.0
  %v2756 = vmax.f32 %v2038, 0.0
  %v2757 = vmax.f32 %v2041, 0.0
  %v2758 = vmax.f32 %v2044, 0.0
  %v2759 = vmax.f32 %v2047, 0.0
  %v2760 = vmax.f32 %v2050, 0.0
  %v2761 = vmax.f32 %v2053, 0.0
  %v2762 = vmax.f32 %v2056, 0.0
  %v2763 = vmax.f32 %v2059, 0.0
  %v2764 = vmax.f32 %v2062, 0.0
  %v2765 = vmax.f32 %v2065, 0.0
  %v2766 = vmax.f32 %v2068, 0.0
  %v2767 = vmax.f32 %v2071, 0.0
  %v2768 = vmax.f32 %v2074, 0.0
  %v2769 = vmax.f32 %v2077, 0.0
  %v2770 = vmax.f32 %v2080, 0.0
  %v2771 = vmax.f32 %v2083, 0.0
  %v2772 = vmax.f32 %v2086, 0.0
  %v2773 = vmax.f32 %v2089, 0.0
  %v2774 = vmax.f32 %v2092, 0.0
  %v2775 = vmax.f32 %v2095, 0.0
  %v2776 = vmax.f32 %v2098, 0.0
  %v2777 = vmax.f32 %v2101, 0.0
  %v2778 = vmax.f32 %v2104, 0.0
  %v2779 = vmax.f32 %v2107, 0.0
  %v2780 = vmax.f32 %v2110, 0.0
  %v2781 = vmax.f32 %v2113, 0.0
  %v2782 = vmax.f32 %v2116, 0.0
  %v2783 = vmax.f32 %v2119, 0.0
  %v2784 = vmax.f32 %v2122, 0.0
  %v2785 = vmax.f32 %v2125, 0.0
  %v2786 = vmax.f32 %v2128, 0.0
  %v2787 = vmax.f32 %v2131, 0.0
  %v2788 = vmax.f32 %v2134, 0.0
  %v2789 = vmax.f32 %v2137, 0.0
  %v2790 = vmax.f32 %v2140, 0.0
  %v2791 = vmax.f32 %v2143, 0.0
  %v2792 = vmax.f32 %v2146, 0.0
  %v2793 = vmax.f32 %v2149, 0.0
  %v2794 = vmax.f32 %v2152, 0.0
  %v2795 = vmax.f32 %v2155, 0.0
  %v2796 = vmax.f32 %v2158, 0.0
  %v2797 = vmax.f32 %v2161, 0.0
  %v2798 = vmax.f32 %v2164, 0.0
  %v2799 = vmax.f32 %v2167, 0.0
  %v2800 = vmax.f32 %v2170, 0.0
  %v2801 = vmax.f32 %v2173, 0.0
  %v2802 = vmax.f32 %v2176, 0.0
  %v2803 = vmax.f32 %v2179, 0.0
  %v2804 = vmax.f32 %v2182, 0.0
  %v2805 = vmax.f32 %v2185, 0.0
  %v2806 = vmax.f32 %v2188, 0.0
  %v2807 = vmax.f32 %v2191, 0.0
  %v2808 = vmax.f32 %v2194, 0.0
  %v2809 = vmax.f32 %v2197, 0.0
  %v2810 = vmax.f32 %v2200, 0.0
  %v2811 = vmax.f32 %v2203, 0.0
  %v2812 = vmax.f32 %v2206, 0.0
  %v2813 = vmax.f32 %v2209, 0.0
  %v2814 = vmax.f32 %v2212, 0.0
  %v2815 = vmax.f32 %v2215, 0.0
  %v2816 = vmax.f32 %v2218, 0.0
  %v2817 = vmax.f32 %v2221, 0.0
  %v2818 = vmax.f32 %v2224, 0.0
  %v2819 = vmax.f32 %v2227, 0.0
  %v2820 = vmax.f32 %v2230, 0.0
  %v2821 = vmax.f32 %v2233, 0.0
  %v2822 = vmax.f32 %v2236, 0.0
  %v2823 = vmax.f32 %v2239, 0.0
  %v2824 = vmax.f32 %v2242, 0.0
  %v2825 = vmax.f32 %v2245, 0.0
  %v2826 = vmax.f32 %v2248, 0.0
  %v2827 = vmax.f32 %v2251, 0.0
  %v2828 = vmax.f32 %v2254, 0.0
  %v2829 = vmax.f32 %v2257, 0.0
  %v2830 = vmax.f32 %v2260, 0.0
  %v2831 = vmax.f32 %v2263, 0.0
  %v2832 = vmax.f32 %v2266, 0.0
  %v2833 = vmax.f32 %v2269, 0.0
  %v2834 = vmax.f32 %v2272, 0.0
  %v2835 = vmax.f32 %v2275, 0.0
  %v2836 = vmax.f32 %v2278, 0.0
  %v2837 = vmax.f32 %v2281, 0.0
  %v2838 = vmax.f32 %v2284, 0.0
  %v2839 = vmax.f32 %v2287, 0.0
  %v2840 = vmax.f32 %v2290, 0.0
  %v2841 = vmax.f32 %v2293, 0.0
  %v2842 = vmax.f32 %v2296, 0.0
  %v2843 = vmax.f32 %v2299, 0.0
  %v2844 = vmax.f32 %v2302, 0.0
  %v2845 = vmax.f32 %v2305, 0.0
  %v2846 = vmax.f32 %v2308, 0.0
  %v2847 = vmax.f32 %v2311, 0.0
  %v2848 = vmax.f32 %v2314, 0.0
  %v2849 = vmax.f32 %v2317, 0.0
  %v2850 = vmax.f32 %v2320, 0.0
  %v2851 = vmax.f32 %v2323, 0.0
  %v2852 = vmax.f32 %v2326, 0.0
  %v2853 = vmax.f32 %v2329, 0.0
  %v2854 = vmax.f32 %v2332, 0.0
  %v2855 = vmax.f32 %v2335, 0.0
  %v2856 = vmax.f32 %v2338, 0.0
  %v2857 = vmax.f32 %v2341, 0.0
  %v2858 = vmax.f32 %v2344, 0.0
  %v2859 = vmax.f32 %v2347, 0.0
  %v2860 = vmax.f32 %v2350, 0.0
  %v2861 = vmax.f32 %v2353, 0.0
  %v2862 = vmax.f32 %v2356, 0.0
  %v2863 = vmax.f32 %v2359, 0.0
  %v2864 = vmax.f32 %v2362, 0.0
  %v2865 = vmax.f32 %v2365, 0.0
  %v2866 = vmax.f32 %v2368, 0.0
  %v2867 = vmax.f32 %v2371, 0.0
  %v2868 = vmax.f32 %v2374, 0.0
  %v2869 = vmax.f32 %v2377, 0.0
  %v2870 = vmax.f32 %v2380, 0.0
  %v2871 = vmax.f32 %v2383, 0.0
  %v2872 = vmax.f32 %v2386, 0.0
  %v2873 = vmax.f32 %v2389, 0.0
  %v2874 = vmax.f32 %v2392, 0.0
  %v2875 = vmax.f32 %v2395, 0.0
  %v2876 = vmax.f32 %v2398, 0.0
  %v2877 = vmax.f32 %v2401, 0.0
  %v2878 = vmax.f32 %v2404, 0.0
  %v2879 = vmax.f32 %v2407, 0.0
  %v2880 = vmax.f32 %v2410, 0.0
  %v2881 = vmax.f32 %v2413, 0.0
  %v2882 = vmax.f32 %v2416, 0.0
  %v2883 = vmax.f32 %v2419, 0.0
  %v2884 = vmax.f32 %v2422, 0.0
  %v2885 = vmax.f32 %v2425, 0.0
  %v2886 = vmax.f32 %v2428, 0.0
  %v2887 = vmax.f32 %v2431, 0.0
  %v2888 = vmax.f32 %v2434, 0.0
  %v2889 = vmax.f32 %v2437, 0.0
  %v2890 = vmax.f32 %v2440, 0.0
  %v2891 = vmax.f32 %v2443, 0.0
  %v2892 = vmax.f32 %v2446, 0.0
  %v2893 = vmax.f32 %v2449, 0.0
  %v2894 = vmax.f32 %v2452, 0.0
  %v2895 = vmax.f32 %v2455, 0.0
  %v2896 = vmax.f32 %v2458, 0.0
  %v2897 = vmax.f32 %v2461, 0.0
  %v2898 = vmax.f32 %v2464, 0.0
  %v2899 = vmax.f32 %v2467, 0.0
  %v2900 = vmax.f32 %v2470, 0.0
  %v2901 = vmax.f32 %v2473, 0.0
  %v2902 = vmax.f32 %v2476, 0.0
  %v2903 = vmax.f32 %v2479, 0.0
  %v2904 = vmax.f32 %v2482, 0.0
  %v2905 = vmax.f32 %v2485, 0.0
  %v2906 = vmax.f32 %v2488, 0.0
  %v2907 = vmax.f32 %v2491, 0.0
  %v2908 = vmax.f32 %v2494, 0.0
  %v2909 = vmax.f32 %v2497, 0.0
  %v2910 = vmax.f32 %v2500, 0.0
  %v2911 = vmax.f32 %v2503, 0.0
  %v2912 = vmax.f32 %v2506, 0.0
  %v2913 = vmax.f32 %v2509, 0.0
  %v2914 = vmax.f32 %v2512, 0.0
  %v2915 = vmax.f32 %v2515, 0.0
  %v2916 = vmax.f32 %v2518, 0.0
  %v2917 = vmax.f32 %v2521, 0.0
  %v2918 = vmax.f32 %v2524, 0.0
  %v2919 = vmax.f32 %v2527, 0.0
  %v2920 = vmax.f32 %v2530, 0.0
  %v2921 = vmax.f32 %v2533, 0.0
  %v2922 = vmax.f32 %v2536, 0.0
  %v2923 = vmax.f32 %v2539, 0.0
  %v2924 = vmax.f32 %v2542, 0.0
  %v2925 = vmax.f32 %v2545, 0.0
  %v2926 = vmax.f32 %v2548, 0.0
  %v2927 = vmax.f32 %v2551, 0.0
  %v2928 = vmax.f32 %v2554, 0.0
  %v2929 = vmax.f32 %v2557, 0.0
  %v2930 = vmax.f32 %v2560, 0.0
  %v2931 = vmax.f32 %v2563, 0.0
  %v2932 = vmax.f32 %v2566, 0.0
  %v2933 = vmax.f32 %v2569, 0.0
  %v2934 = vmax.f32 %v2572, 0.0
  %v2935 = vld [vmem:[%s1] sm:$0xff]
  %v2936 = vld [vmem:[%s1 + $0x8] sm:$0xff]
  %v2937 = vld [vmem:[%s1 + $0x10] sm:$0xff]
  %v2938 = vld [vmem:[%s1 + $0x18] sm:$0xff]
  %v2939 = vld [vmem:[%s1 + $0x20] sm:$0xff]
  %v2940 = vld [vmem:[%s1 + $0x28] sm:$0xff]
  %v2941 = vld [vmem:[%s1 + $0x30] sm:$0xff]
  %v2942 = vld [vmem:[%s1 + $0x38] sm:$0xff]
  %v2943 = vld [vmem:[%s1 + $0x40] sm:$0xff]
  %v2944 = vld [vmem:[%s1 + $0x48] sm:$0xff]
  %v2945 = vld [vmem:[%s1 + $0x50] sm:$0xff]
  %v2946 = vld [vmem:[%s1 + $0x58] sm:$0xff]
  %v2947 = vld [vmem:[%s1 + $0x60] sm:$0xff]
  %v2948 = vld [vmem:[%s1 + $0x68] sm:$0xff]
  %v2949 = vld [vmem:[%s1 + $0x70] sm:$0xff]
  %v2950 = vld [vmem:[%s1 + $0x78] sm:$0xff]
  %v2951 = vld [vmem:[%s1 + $0x80] sm:$0xff]
  %v2952 = vld [vmem:[%s1 + $0x88] sm:$0xff]
  %v2953 = vld [vmem:[%s1 + $0x90] sm:$0xff]
  %v2954 = vld [vmem:[%s1 + $0x98] sm:$0x3]
  %v2956 = vsel %vm390, %v2935, 0
  %v2959 = vsel %vm390, %v2936, 0
  %v2962 = vsel %vm390, %v2937, 0
  %v2965 = vsel %vm390, %v2938, 0
  %v2968 = vsel %vm390, %v2939, 0
  %v2971 = vsel %vm390, %v2940, 0
  %v2974 = vsel %vm390, %v2941, 0
  %v2977 = vsel %vm390, %v2942, 0
  %v2980 = vsel %vm390, %v2943, 0
  %v2983 = vsel %vm390, %v2944, 0
  %v2986 = vsel %vm390, %v2945, 0
  %v2989 = vsel %vm390, %v2946, 0
  %v2992 = vsel %vm390, %v2947, 0
  %v2995 = vsel %vm390, %v2948, 0
  %v2998 = vsel %vm390, %v2949, 0
  %v3001 = vsel %vm390, %v2950, 0
  %v3004 = vsel %vm390, %v2951, 0
  %v3007 = vsel %vm390, %v2952, 0
  %v3010 = vsel %vm390, %v2953, 0
  %v3013 = vsel %vm390, %v2954, 0
  %3015 = vmatpush.msra.mxu0 0.0
  %3016 = vmatpush.msra.mxu0 0.0
  %3017 = vmatpush.msra.mxu0 0.0
  %3018 = vmatpush.msra.mxu0 0.0
  %3019 = vmatpush.msra.mxu0 0.0
  %3020 = vmatpush.msra.mxu0 0.0
  %3021 = vmatpush.msra.mxu0 0.0
  %3022 = vmatpush.msra.mxu0 0.0
  %3023 = vmatpush.msra.mxu0 %v24
  %3024 = vmatpush.msra.mxu0 %v23
  %3025 = vmatpush.msra.mxu0 %v22
  %3026 = vmatpush.msra.mxu0 %v21
  %3027 = vmatpush.msra.mxu0 %v20
  %3028 = vmatpush.msra.mxu0 %v19
  %3029 = vmatpush.msra.mxu0 %v18
  %3030 = vmatpush.msra.mxu0 %v17
  %3031 = vmatmul.f32.gmra.mxu0 %v2956
  %v3032 = vpop.f32.mrf.mxu0
  %v3033 = vadd.f32 %v388, %v3032
  %3034 = vmatmul.f32.gmra.mxu0 %v2959
  %v3035 = vpop.f32.mrf.mxu0
  %v3036 = vadd.f32 %v388, %v3035
  %3037 = vmatmul.f32.gmra.mxu0 %v2962
  %v3038 = vpop.f32.mrf.mxu0
  %v3039 = vadd.f32 %v388, %v3038
  %3040 = vmatmul.f32.gmra.mxu0 %v2965
  %v3041 = vpop.f32.mrf.mxu0
  %v3042 = vadd.f32 %v388, %v3041
  %3043 = vmatmul.f32.gmra.mxu0 %v2968
  %v3044 = vpop.f32.mrf.mxu0
  %v3045 = vadd.f32 %v388, %v3044
  %3046 = vmatmul.f32.gmra.mxu0 %v2971
  %v3047 = vpop.f32.mrf.mxu0
  %v3048 = vadd.f32 %v388, %v3047
  %3049 = vmatmul.f32.gmra.mxu0 %v2974
  %v3050 = vpop.f32.mrf.mxu0
  %v3051 = vadd.f32 %v388, %v3050
  %3052 = vmatmul.f32.gmra.mxu0 %v2977
  %v3053 = vpop.f32.mrf.mxu0
  %v3054 = vadd.f32 %v388, %v3053
  %3055 = vmatmul.f32.gmra.mxu0 %v2980
  %v3056 = vpop.f32.mrf.mxu0
  %v3057 = vadd.f32 %v388, %v3056
  %3058 = vmatmul.f32.gmra.mxu0 %v2983
  %v3059 = vpop.f32.mrf.mxu0
  %v3060 = vadd.f32 %v388, %v3059
  %3061 = vmatmul.f32.gmra.mxu0 %v2986
  %v3062 = vpop.f32.mrf.mxu0
  %v3063 = vadd.f32 %v388, %v3062
  %3064 = vmatmul.f32.gmra.mxu0 %v2989
  %v3065 = vpop.f32.mrf.mxu0
  %v3066 = vadd.f32 %v388, %v3065
  %3067 = vmatmul.f32.gmra.mxu0 %v2992
  %v3068 = vpop.f32.mrf.mxu0
  %v3069 = vadd.f32 %v388, %v3068
  %3070 = vmatmul.f32.gmra.mxu0 %v2995
  %v3071 = vpop.f32.mrf.mxu0
  %v3072 = vadd.f32 %v388, %v3071
  %3073 = vmatmul.f32.gmra.mxu0 %v2998
  %v3074 = vpop.f32.mrf.mxu0
  %v3075 = vadd.f32 %v388, %v3074
  %3076 = vmatmul.f32.gmra.mxu0 %v3001
  %v3077 = vpop.f32.mrf.mxu0
  %v3078 = vadd.f32 %v388, %v3077
  %3079 = vmatmul.f32.gmra.mxu0 %v3004
  %v3080 = vpop.f32.mrf.mxu0
  %v3081 = vadd.f32 %v388, %v3080
  %3082 = vmatmul.f32.gmra.mxu0 %v3007
  %v3083 = vpop.f32.mrf.mxu0
  %v3084 = vadd.f32 %v388, %v3083
  %3085 = vmatmul.f32.gmra.mxu0 %v3010
  %v3086 = vpop.f32.mrf.mxu0
  %v3087 = vadd.f32 %v388, %v3086
  %3088 = vmatmul.f32.gmra.mxu0 %v3013
  %v3089 = vpop.f32.mrf.mxu0
  %v3090 = vadd.f32 %v388, %v3089
  %3091 = vdwg.mxu0
  %v3092 = vmax.f32 %v3033, 0.0
  %v3093 = vmax.f32 %v3036, 0.0
  %v3094 = vmax.f32 %v3039, 0.0
  %v3095 = vmax.f32 %v3042, 0.0
  %v3096 = vmax.f32 %v3045, 0.0
  %v3097 = vmax.f32 %v3048, 0.0
  %v3098 = vmax.f32 %v3051, 0.0
  %v3099 = vmax.f32 %v3054, 0.0
  %v3100 = vmax.f32 %v3057, 0.0
  %v3101 = vmax.f32 %v3060, 0.0
  %v3102 = vmax.f32 %v3063, 0.0
  %v3103 = vmax.f32 %v3066, 0.0
  %v3104 = vmax.f32 %v3069, 0.0
  %v3105 = vmax.f32 %v3072, 0.0
  %v3106 = vmax.f32 %v3075, 0.0
  %v3107 = vmax.f32 %v3078, 0.0
  %v3108 = vmax.f32 %v3081, 0.0
  %v3109 = vmax.f32 %v3084, 0.0
  %v3110 = vmax.f32 %v3087, 0.0
  %v3111 = vmax.f32 %v3090, 0.0
  %v3112 = vadd.f32 %v2574, %v2575
  %v3113 = vadd.f32 %v3112, %v2576
  %v3114 = vadd.f32 %v3113, %v2577
  %v3115 = vadd.f32 %v3114, %v2578
  %v3116 = vadd.f32 %v3115, %v2579
  %v3117 = vadd.f32 %v3116, %v2580
  %v3118 = vadd.f32 %v3117, %v2581
  %v3119 = vadd.f32 %v3118, %v2582
  %v3120 = vadd.f32 %v3119, %v2583
  %v3121 = vadd.f32 %v3120, %v2584
  %v3122 = vadd.f32 %v3121, %v2585
  %v3123 = vadd.f32 %v3122, %v2586
  %v3124 = vadd.f32 %v3123, %v2587
  %v3125 = vadd.f32 %v3124, %v2588
  %v3126 = vadd.f32 %v3125, %v2589
  %v3127 = vadd.f32 %v3126, %v2590
  %v3128 = vadd.f32 %v3127, %v2591
  %v3129 = vadd.f32 %v3128, %v2592
  %v3130 = vadd.f32 %v3129, %v2593
  %v3131 = vadd.f32 %v3130, %v2594
  %v3132 = vadd.f32 %v3131, %v2595
  %v3133 = vadd.f32 %v3132, %v2596
  %v3134 = vadd.f32 %v3133, %v2597
  %v3135 = vadd.f32 %v3134, %v2598
  %v3136 = vadd.f32 %v3135, %v2599
  %v3137 = vadd.f32 %v3136, %v2600
  %v3138 = vadd.f32 %v3137, %v2601
  %v3139 = vadd.f32 %v3138, %v2602
  %v3140 = vadd.f32 %v3139, %v2603
  %v3141 = vadd.f32 %v3140, %v2604
  %v3142 = vadd.f32 %v3141, %v2605
  %v3143 = vadd.f32 %v3142, %v2606
  %v3144 = vadd.f32 %v3143, %v2607
  %v3145 = vadd.f32 %v3144, %v2608
  %v3146 = vadd.f32 %v3145, %v2609
  %v3147 = vadd.f32 %v3146, %v2610
  %v3148 = vadd.f32 %v3147, %v2611
  %v3149 = vadd.f32 %v3148, %v2612
  %v3150 = vadd.f32 %v3149, %v2613
  %v3151 = vadd.f32 %v3150, %v2614
  %v3152 = vadd.f32 %v3151, %v2615
  %v3153 = vadd.f32 %v3152, %v2616
  %v3154 = vadd.f32 %v3153, %v2617
  %v3155 = vadd.f32 %v3154, %v2618
  %v3156 = vadd.f32 %v3155, %v2619
  %v3157 = vadd.f32 %v3156, %v2620
  %v3158 = vadd.f32 %v3157, %v2621
  %v3159 = vadd.f32 %v3158, %v2622
  %v3160 = vadd.f32 %v3159, %v2623
  %v3161 = vadd.f32 %v3160, %v2624
  %v3162 = vadd.f32 %v3161, %v2625
  %v3163 = vadd.f32 %v3162, %v2626
  %v3164 = vadd.f32 %v3163, %v2627
  %v3165 = vadd.f32 %v3164, %v2628
  %v3166 = vadd.f32 %v3165, %v2629
  %v3167 = vadd.f32 %v3166, %v2630
  %v3168 = vadd.f32 %v3167, %v2631
  %v3169 = vadd.f32 %v3168, %v2632
  %v3170 = vadd.f32 %v3169, %v2633
  %v3171 = vadd.f32 %v3170, %v2634
  %v3172 = vadd.f32 %v3171, %v2635
  %v3173 = vadd.f32 %v3172, %v2636
  %v3174 = vadd.f32 %v3173, %v2637
  %v3175 = vadd.f32 %v3174, %v2638
  %v3176 = vadd.f32 %v3175, %v2639
  %v3177 = vadd.f32 %v3176, %v2640
  %v3178 = vadd.f32 %v3177, %v2641
  %v3179 = vadd.f32 %v3178, %v2642
  %v3180 = vadd.f32 %v3179, %v2643
  %v3181 = vadd.f32 %v3180, %v2644
  %v3182 = vadd.f32 %v3181, %v2645
  %v3183 = vadd.f32 %v3182, %v2646
  %v3184 = vadd.f32 %v3183, %v2647
  %v3185 = vadd.f32 %v3184, %v2648
  %v3186 = vadd.f32 %v3185, %v2649
  %v3187 = vadd.f32 %v3186, %v2650
  %v3188 = vadd.f32 %v3187, %v2651
  %v3189 = vadd.f32 %v3188, %v2652
  %v3190 = vadd.f32 %v3189, %v2653
  %v3191 = vadd.f32 %v3190, %v2654
  %v3192 = vadd.f32 %v3191, %v2655
  %v3193 = vadd.f32 %v3192, %v2656
  %v3194 = vadd.f32 %v3193, %v2657
  %v3195 = vadd.f32 %v3194, %v2658
  %v3196 = vadd.f32 %v3195, %v2659
  %v3197 = vadd.f32 %v3196, %v2660
  %v3198 = vadd.f32 %v3197, %v2661
  %v3199 = vadd.f32 %v3198, %v2662
  %v3200 = vadd.f32 %v3199, %v2663
  %v3201 = vadd.f32 %v3200, %v2664
  %v3202 = vadd.f32 %v3201, %v2665
  %v3203 = vadd.f32 %v3202, %v2666
  %v3204 = vadd.f32 %v3203, %v2667
  %v3205 = vadd.f32 %v3204, %v2668
  %v3206 = vadd.f32 %v3205, %v2669
  %v3207 = vadd.f32 %v3206, %v2670
  %v3208 = vadd.f32 %v3207, %v2671
  %v3209 = vadd.f32 %v3208, %v2672
  %v3210 = vadd.f32 %v3209, %v2673
  %v3211 = vadd.f32 %v3210, %v2674
  %v3212 = vadd.f32 %v3211, %v2675
  %v3213 = vadd.f32 %v3212, %v2676
  %v3214 = vadd.f32 %v3213, %v2677
  %v3215 = vadd.f32 %v3214, %v2678
  %v3216 = vadd.f32 %v3215, %v2679
  %v3217 = vadd.f32 %v3216, %v2680
  %v3218 = vadd.f32 %v3217, %v2681
  %v3219 = vadd.f32 %v3218, %v2682
  %v3220 = vadd.f32 %v3219, %v2683
  %v3221 = vadd.f32 %v3220, %v2684
  %v3222 = vadd.f32 %v3221, %v2685
  %v3223 = vadd.f32 %v3222, %v2686
  %v3224 = vadd.f32 %v3223, %v2687
  %v3225 = vadd.f32 %v3224, %v2688
  %v3226 = vadd.f32 %v3225, %v2689
  %v3227 = vadd.f32 %v3226, %v2690
  %v3228 = vadd.f32 %v3227, %v2691
  %v3229 = vadd.f32 %v3228, %v2692
  %v3230 = vadd.f32 %v3229, %v2693
  %v3231 = vadd.f32 %v3230, %v2694
  %v3232 = vadd.f32 %v3231, %v2695
  %v3233 = vadd.f32 %v3232, %v2696
  %v3234 = vadd.f32 %v3233, %v2697
  %v3235 = vadd.f32 %v3234, %v2698
  %v3236 = vadd.f32 %v3235, %v2699
  %v3237 = vadd.f32 %v3236, %v2700
  %v3238 = vadd.f32 %v3237, %v2701
  %v3239 = vadd.f32 %v3238, %v2702
  %v3240 = vadd.f32 %v3239, %v2703
  %v3241 = vadd.f32 %v3240, %v2704
  %v3242 = vadd.f32 %v3241, %v2705
  %v3243 = vadd.f32 %v3242, %v2706
  %v3244 = vadd.f32 %v3243, %v2707
  %v3245 = vadd.f32 %v3244, %v2708
  %v3246 = vadd.f32 %v3245, %v2709
  %v3247 = vadd.f32 %v3246, %v2710
  %v3248 = vadd.f32 %v3247, %v2711
  %v3249 = vadd.f32 %v3248, %v2712
  %v3250 = vadd.f32 %v3249, %v2713
  %v3251 = vadd.f32 %v3250, %v2714
  %v3252 = vadd.f32 %v3251, %v2715
  %v3253 = vadd.f32 %v3252, %v2716
  %v3254 = vadd.f32 %v3253, %v2717
  %v3255 = vadd.f32 %v3254, %v2718
  %v3256 = vadd.f32 %v3255, %v2719
  %v3257 = vadd.f32 %v3256, %v2720
  %v3258 = vadd.f32 %v3257, %v2721
  %v3259 = vadd.f32 %v3258, %v2722
  %v3260 = vadd.f32 %v3259, %v2723
  %v3261 = vadd.f32 %v3260, %v2724
  %v3262 = vadd.f32 %v3261, %v2725
  %v3263 = vadd.f32 %v3262, %v2726
  %v3264 = vadd.f32 %v3263, %v2727
  %v3265 = vadd.f32 %v3264, %v2728
  %v3266 = vadd.f32 %v3265, %v2729
  %v3267 = vadd.f32 %v3266, %v2730
  %v3268 = vadd.f32 %v3267, %v2731
  %v3269 = vadd.f32 %v3268, %v2732
  %v3270 = vadd.f32 %v3269, %v2733
  %v3271 = vadd.f32 %v3270, %v2734
  %v3272 = vadd.f32 %v3271, %v2735
  %v3273 = vadd.f32 %v3272, %v2736
  %v3274 = vadd.f32 %v3273, %v2737
  %v3275 = vadd.f32 %v3274, %v2738
  %v3276 = vadd.f32 %v3275, %v2739
  %v3277 = vadd.f32 %v3276, %v2740
  %v3278 = vadd.f32 %v3277, %v2741
  %v3279 = vadd.f32 %v3278, %v2742
  %v3280 = vadd.f32 %v3279, %v2743
  %v3281 = vadd.f32 %v3280, %v2744
  %v3282 = vadd.f32 %v3281, %v2745
  %v3283 = vadd.f32 %v3282, %v2746
  %v3284 = vadd.f32 %v3283, %v2747
  %v3285 = vadd.f32 %v3284, %v2748
  %v3286 = vadd.f32 %v3285, %v2749
  %v3287 = vadd.f32 %v3286, %v2750
  %v3288 = vadd.f32 %v3287, %v2751
  %v3289 = vadd.f32 %v3288, %v2752
  %v3290 = vadd.f32 %v3289, %v2753
  %v3291 = vadd.f32 %v3290, %v2754
  %v3292 = vadd.f32 %v3291, %v2755
  %v3293 = vadd.f32 %v3292, %v2756
  %v3294 = vadd.f32 %v3293, %v2757
  %v3295 = vadd.f32 %v3294, %v2758
  %v3296 = vadd.f32 %v3295, %v2759
  %v3297 = vadd.f32 %v3296, %v2760
  %v3298 = vadd.f32 %v3297, %v2761
  %v3299 = vadd.f32 %v3298, %v2762
  %v3300 = vadd.f32 %v3299, %v2763
  %v3301 = vadd.f32 %v3300, %v2764
  %v3302 = vadd.f32 %v3301, %v2765
  %v3303 = vadd.f32 %v3302, %v2766
  %v3304 = vadd.f32 %v3303, %v2767
  %v3305 = vadd.f32 %v3304, %v2768
  %v3306 = vadd.f32 %v3305, %v2769
  %v3307 = vadd.f32 %v3306, %v2770
  %v3308 = vadd.f32 %v3307, %v2771
  %v3309 = vadd.f32 %v3308, %v2772
  %v3310 = vadd.f32 %v3309, %v2773
  %v3311 = vadd.f32 %v3310, %v2774
  %v3312 = vadd.f32 %v3311, %v2775
  %v3313 = vadd.f32 %v3312, %v2776
  %v3314 = vadd.f32 %v3313, %v2777
  %v3315 = vadd.f32 %v3314, %v2778
  %v3316 = vadd.f32 %v3315, %v2779
  %v3317 = vadd.f32 %v3316, %v2780
  %v3318 = vadd.f32 %v3317, %v2781
  %v3319 = vadd.f32 %v3318, %v2782
  %v3320 = vadd.f32 %v3319, %v2783
  %v3321 = vadd.f32 %v3320, %v2784
  %v3322 = vadd.f32 %v3321, %v2785
  %v3323 = vadd.f32 %v3322, %v2786
  %v3324 = vadd.f32 %v3323, %v2787
  %v3325 = vadd.f32 %v3324, %v2788
  %v3326 = vadd.f32 %v3325, %v2789
  %v3327 = vadd.f32 %v3326, %v2790
  %v3328 = vadd.f32 %v3327, %v2791
  %v3329 = vadd.f32 %v3328, %v2792
  %v3330 = vadd.f32 %v3329, %v2793
  %v3331 = vadd.f32 %v3330, %v2794
  %v3332 = vadd.f32 %v3331, %v2795
  %v3333 = vadd.f32 %v3332, %v2796
  %v3334 = vadd.f32 %v3333, %v2797
  %v3335 = vadd.f32 %v3334, %v2798
  %v3336 = vadd.f32 %v3335, %v2799
  %v3337 = vadd.f32 %v3336, %v2800
  %v3338 = vadd.f32 %v3337, %v2801
  %v3339 = vadd.f32 %v3338, %v2802
  %v3340 = vadd.f32 %v3339, %v2803
  %v3341 = vadd.f32 %v3340, %v2804
  %v3342 = vadd.f32 %v3341, %v2805
  %v3343 = vadd.f32 %v3342, %v2806
  %v3344 = vadd.f32 %v3343, %v2807
  %v3345 = vadd.f32 %v3344, %v2808
  %v3346 = vadd.f32 %v3345, %v2809
  %v3347 = vadd.f32 %v3346, %v2810
  %v3348 = vadd.f32 %v3347, %v2811
  %v3349 = vadd.f32 %v3348, %v2812
  %v3350 = vadd.f32 %v3349, %v2813
  %v3351 = vadd.f32 %v3350, %v2814
  %v3352 = vadd.f32 %v3351, %v2815
  %v3353 = vadd.f32 %v3352, %v2816
  %v3354 = vadd.f32 %v3353, %v2817
  %v3355 = vadd.f32 %v3354, %v2818
  %v3356 = vadd.f32 %v3355, %v2819
  %v3357 = vadd.f32 %v3356, %v2820
  %v3358 = vadd.f32 %v3357, %v2821
  %v3359 = vadd.f32 %v3358, %v2822
  %v3360 = vadd.f32 %v3359, %v2823
  %v3361 = vadd.f32 %v3360, %v2824
  %v3362 = vadd.f32 %v3361, %v2825
  %v3363 = vadd.f32 %v3362, %v2826
  %v3364 = vadd.f32 %v3363, %v2827
  %v3365 = vadd.f32 %v3364, %v2828
  %v3366 = vadd.f32 %v3365, %v2829
  %v3367 = vadd.f32 %v3366, %v2830
  %v3368 = vadd.f32 %v3367, %v2831
  %v3369 = vadd.f32 %v3368, %v2832
  %v3370 = vadd.f32 %v3369, %v2833
  %v3371 = vadd.f32 %v3370, %v2834
  %v3372 = vadd.f32 %v3371, %v2835
  %v3373 = vadd.f32 %v3372, %v2836
  %v3374 = vadd.f32 %v3373, %v2837
  %v3375 = vadd.f32 %v3374, %v2838
  %v3376 = vadd.f32 %v3375, %v2839
  %v3377 = vadd.f32 %v3376, %v2840
  %v3378 = vadd.f32 %v3377, %v2841
  %v3379 = vadd.f32 %v3378, %v2842
  %v3380 = vadd.f32 %v3379, %v2843
  %v3381 = vadd.f32 %v3380, %v2844
  %v3382 = vadd.f32 %v3381, %v2845
  %v3383 = vadd.f32 %v3382, %v2846
  %v3384 = vadd.f32 %v3383, %v2847
  %v3385 = vadd.f32 %v3384, %v2848
  %v3386 = vadd.f32 %v3385, %v2849
  %v3387 = vadd.f32 %v3386, %v2850
  %v3388 = vadd.f32 %v3387, %v2851
  %v3389 = vadd.f32 %v3388, %v2852
  %v3390 = vadd.f32 %v3389, %v2853
  %v3391 = vadd.f32 %v3390, %v2854
  %v3392 = vadd.f32 %v3391, %v2855
  %v3393 = vadd.f32 %v3392, %v2856
  %v3394 = vadd.f32 %v3393, %v2857
  %v3395 = vadd.f32 %v3394, %v2858
  %v3396 = vadd.f32 %v3395, %v2859
  %v3397 = vadd.f32 %v3396, %v2860
  %v3398 = vadd.f32 %v3397, %v2861
  %v3399 = vadd.f32 %v3398, %v2862
  %v3400 = vadd.f32 %v3399, %v2863
  %v3401 = vadd.f32 %v3400, %v2864
  %v3402 = vadd.f32 %v3401, %v2865
  %v3403 = vadd.f32 %v3402, %v2866
  %v3404 = vadd.f32 %v3403, %v2867
  %v3405 = vadd.f32 %v3404, %v2868
  %v3406 = vadd.f32 %v3405, %v2869
  %v3407 = vadd.f32 %v3406, %v2870
  %v3408 = vadd.f32 %v3407, %v2871
  %v3409 = vadd.f32 %v3408, %v2872
  %v3410 = vadd.f32 %v3409, %v2873
  %v3411 = vadd.f32 %v3410, %v2874
  %v3412 = vadd.f32 %v3411, %v2875
  %v3413 = vadd.f32 %v3412, %v2876
  %v3414 = vadd.f32 %v3413, %v2877
  %v3415 = vadd.f32 %v3414, %v2878
  %v3416 = vadd.f32 %v3415, %v2879
  %v3417 = vadd.f32 %v3416, %v2880
  %v3418 = vadd.f32 %v3417, %v2881
  %v3419 = vadd.f32 %v3418, %v2882
  %v3420 = vadd.f32 %v3419, %v2883
  %v3421 = vadd.f32 %v3420, %v2884
  %v3422 = vadd.f32 %v3421, %v2885
  %v3423 = vadd.f32 %v3422, %v2886
  %v3424 = vadd.f32 %v3423, %v2887
  %v3425 = vadd.f32 %v3424, %v2888
  %v3426 = vadd.f32 %v3425, %v2889
  %v3427 = vadd.f32 %v3426, %v2890
  %v3428 = vadd.f32 %v3427, %v2891
  %v3429 = vadd.f32 %v3428, %v2892
  %v3430 = vadd.f32 %v3429, %v2893
  %v3431 = vadd.f32 %v3430, %v2894
  %v3432 = vadd.f32 %v3431, %v2895
  %v3433 = vadd.f32 %v3432, %v2896
  %v3434 = vadd.f32 %v3433, %v2897
  %v3435 = vadd.f32 %v3434, %v2898
  %v3436 = vadd.f32 %v3435, %v2899
  %v3437 = vadd.f32 %v3436, %v2900
  %v3438 = vadd.f32 %v3437, %v2901
  %v3439 = vadd.f32 %v3438, %v2902
  %v3440 = vadd.f32 %v3439, %v2903
  %v3441 = vadd.f32 %v3440, %v2904
  %v3442 = vadd.f32 %v3441, %v2905
  %v3443 = vadd.f32 %v3442, %v2906
  %v3444 = vadd.f32 %v3443, %v2907
  %v3445 = vadd.f32 %v3444, %v2908
  %v3446 = vadd.f32 %v3445, %v2909
  %v3447 = vadd.f32 %v3446, %v2910
  %v3448 = vadd.f32 %v3447, %v2911
  %v3449 = vadd.f32 %v3448, %v2912
  %v3450 = vadd.f32 %v3449, %v2913
  %v3451 = vadd.f32 %v3450, %v2914
  %v3452 = vadd.f32 %v3451, %v2915
  %v3453 = vadd.f32 %v3452, %v2916
  %v3454 = vadd.f32 %v3453, %v2917
  %v3455 = vadd.f32 %v3454, %v2918
  %v3456 = vadd.f32 %v3455, %v2919
  %v3457 = vadd.f32 %v3456, %v2920
  %v3458 = vadd.f32 %v3457, %v2921
  %v3459 = vadd.f32 %v3458, %v2922
  %v3460 = vadd.f32 %v3459, %v2923
  %v3461 = vadd.f32 %v3460, %v2924
  %v3462 = vadd.f32 %v3461, %v2925
  %v3463 = vadd.f32 %v3462, %v2926
  %v3464 = vadd.f32 %v3463, %v2927
  %v3465 = vadd.f32 %v3464, %v2928
  %v3466 = vadd.f32 %v3465, %v2929
  %v3467 = vadd.f32 %v3466, %v2930
  %v3468 = vadd.f32 %v3467, %v2931
  %v3469 = vadd.f32 %v3468, %v2932
  %v3470 = vadd.f32 %v3469, %v2933
  %v3471 = vadd.f32 %v3470, %v2934
  %v3472 = vrot.slane %v3471, 4
  %v3473 = vadd.f32 %v3471, %v3472
  %v3474 = vrot.slane %v3473, 2
  %v3475 = vadd.f32 %v3473, %v3474
  %v3476 = vrot.slane %v3475, 1
  %v3477 = vadd.f32 %v3475, %v3476
  %v3478 = vadd.f32 %v3092, %v3093
  %v3479 = vadd.f32 %v3478, %v3094
  %v3480 = vadd.f32 %v3479, %v3095
  %v3481 = vadd.f32 %v3480, %v3096
  %v3482 = vadd.f32 %v3481, %v3097
  %v3483 = vadd.f32 %v3482, %v3098
  %v3484 = vadd.f32 %v3483, %v3099
  %v3485 = vadd.f32 %v3484, %v3100
  %v3486 = vadd.f32 %v3485, %v3101
  %v3487 = vadd.f32 %v3486, %v3102
  %v3488 = vadd.f32 %v3487, %v3103
  %v3489 = vadd.f32 %v3488, %v3104
  %v3490 = vadd.f32 %v3489, %v3105
  %v3491 = vadd.f32 %v3490, %v3106
  %v3492 = vadd.f32 %v3491, %v3107
  %v3493 = vadd.f32 %v3492, %v3108
  %v3494 = vadd.f32 %v3493, %v3109
  %v3495 = vadd.f32 %v3494, %v3110
  %vm3496 = vcmask 1041408
  %v3497 = vsel %vm3496, %v3111, 0.0
  %v3498 = vadd.f32 %v3495, %v3497
  %v3499 = vrot.slane %v3498, 4
  %v3500 = vadd.f32 %v3498, %v3499
  %v3501 = vrot.slane %v3500, 2
  %v3502 = vadd.f32 %v3500, %v3501
  %v3503 = vrot.slane %v3502, 1
  %v3504 = vadd.f32 %v3502, %v3503
  %v3505 = vadd.f32 %v3477, %v3504
  %v3506 = vmul.f32 %v2574, %v2574
  %v3507 = vmul.f32 %v2575, %v2575
  %v3508 = vmul.f32 %v2576, %v2576
  %v3509 = vmul.f32 %v2577, %v2577
  %v3510 = vmul.f32 %v2578, %v2578
  %v3511 = vmul.f32 %v2579, %v2579
  %v3512 = vmul.f32 %v2580, %v2580
  %v3513 = vmul.f32 %v2581, %v2581
  %v3514 = vmul.f32 %v2582, %v2582
  %v3515 = vmul.f32 %v2583, %v2583
  %v3516 = vmul.f32 %v2584, %v2584
  %v3517 = vmul.f32 %v2585, %v2585
  %v3518 = vmul.f32 %v2586, %v2586
  %v3519 = vmul.f32 %v2587, %v2587
  %v3520 = vmul.f32 %v2588, %v2588
  %v3521 = vmul.f32 %v2589, %v2589
  %v3522 = vmul.f32 %v2590, %v2590
  %v3523 = vmul.f32 %v2591, %v2591
  %v3524 = vmul.f32 %v2592, %v2592
  %v3525 = vmul.f32 %v2593, %v2593
  %v3526 = vmul.f32 %v2594, %v2594
  %v3527 = vmul.f32 %v2595, %v2595
  %v3528 = vmul.f32 %v2596, %v2596
  %v3529 = vmul.f32 %v2597, %v2597
  %v3530 = vmul.f32 %v2598, %v2598
  %v3531 = vmul.f32 %v2599, %v2599
  %v3532 = vmul.f32 %v2600, %v2600
  %v3533 = vmul.f32 %v2601, %v2601
  %v3534 = vmul.f32 %v2602, %v2602
  %v3535 = vmul.f32 %v2603, %v2603
  %v3536 = vmul.f32 %v2604, %v2604
  %v3537 = vmul.f32 %v2605, %v2605
  %v3538 = vmul.f32 %v2606, %v2606
  %v3539 = vmul.f32 %v2607, %v2607
  %v3540 = vmul.f32 %v2608, %v2608
  %v3541 = vmul.f32 %v2609, %v2609
  %v3542 = vmul.f32 %v2610, %v2610
  %v3543 = vmul.f32 %v2611, %v2611
  %v3544 = vmul.f32 %v2612, %v2612
  %v3545 = vmul.f32 %v2613, %v2613
  %v3546 = vmul.f32 %v2614, %v2614
  %v3547 = vmul.f32 %v2615, %v2615
  %v3548 = vmul.f32 %v2616, %v2616
  %v3549 = vmul.f32 %v2617, %v2617
  %v3550 = vmul.f32 %v2618, %v2618
  %v3551 = vmul.f32 %v2619, %v2619
  %v3552 = vmul.f32 %v2620, %v2620
  %v3553 = vmul.f32 %v2621, %v2621
  %v3554 = vmul.f32 %v2622, %v2622
  %v3555 = vmul.f32 %v2623, %v2623
  %v3556 = vmul.f32 %v2624, %v2624
  %v3557 = vmul.f32 %v2625, %v2625
  %v3558 = vmul.f32 %v2626, %v2626
  %v3559 = vmul.f32 %v2627, %v2627
  %v3560 = vmul.f32 %v2628, %v2628
  %v3561 = vmul.f32 %v2629, %v2629
  %v3562 = vmul.f32 %v2630, %v2630
  %v3563 = vmul.f32 %v2631, %v2631
  %v3564 = vmul.f32 %v2632, %v2632
  %v3565 = vmul.f32 %v2633, %v2633
  %v3566 = vmul.f32 %v2634, %v2634
  %v3567 = vmul.f32 %v2635, %v2635
  %v3568 = vmul.f32 %v2636, %v2636
  %v3569 = vmul.f32 %v2637, %v2637
  %v3570 = vmul.f32 %v2638, %v2638
  %v3571 = vmul.f32 %v2639, %v2639
  %v3572 = vmul.f32 %v2640, %v2640
  %v3573 = vmul.f32 %v2641, %v2641
  %v3574 = vmul.f32 %v2642, %v2642
  %v3575 = vmul.f32 %v2643, %v2643
  %v3576 = vmul.f32 %v2644, %v2644
  %v3577 = vmul.f32 %v2645, %v2645
  %v3578 = vmul.f32 %v2646, %v2646
  %v3579 = vmul.f32 %v2647, %v2647
  %v3580 = vmul.f32 %v2648, %v2648
  %v3581 = vmul.f32 %v2649, %v2649
  %v3582 = vmul.f32 %v2650, %v2650
  %v3583 = vmul.f32 %v2651, %v2651
  %v3584 = vmul.f32 %v2652, %v2652
  %v3585 = vmul.f32 %v2653, %v2653
  %v3586 = vmul.f32 %v2654, %v2654
  %v3587 = vmul.f32 %v2655, %v2655
  %v3588 = vmul.f32 %v2656, %v2656
  %v3589 = vmul.f32 %v2657, %v2657
  %v3590 = vmul.f32 %v2658, %v2658
  %v3591 = vmul.f32 %v2659, %v2659
  %v3592 = vmul.f32 %v2660, %v2660
  %v3593 = vmul.f32 %v2661, %v2661
  %v3594 = vmul.f32 %v2662, %v2662
  %v3595 = vmul.f32 %v2663, %v2663
  %v3596 = vmul.f32 %v2664, %v2664
  %v3597 = vmul.f32 %v2665, %v2665
  %v3598 = vmul.f32 %v2666, %v2666
  %v3599 = vmul.f32 %v2667, %v2667
  %v3600 = vmul.f32 %v2668, %v2668
  %v3601 = vmul.f32 %v2669, %v2669
  %v3602 = vmul.f32 %v2670, %v2670
  %v3603 = vmul.f32 %v2671, %v2671
  %v3604 = vmul.f32 %v2672, %v2672
  %v3605 = vmul.f32 %v2673, %v2673
  %v3606 = vmul.f32 %v2674, %v2674
  %v3607 = vmul.f32 %v2675, %v2675
  %v3608 = vmul.f32 %v2676, %v2676
  %v3609 = vmul.f32 %v2677, %v2677
  %v3610 = vmul.f32 %v2678, %v2678
  %v3611 = vmul.f32 %v2679, %v2679
  %v3612 = vmul.f32 %v2680, %v2680
  %v3613 = vmul.f32 %v2681, %v2681
  %v3614 = vmul.f32 %v2682, %v2682
  %v3615 = vmul.f32 %v2683, %v2683
  %v3616 = vmul.f32 %v2684, %v2684
  %v3617 = vmul.f32 %v2685, %v2685
  %v3618 = vmul.f32 %v2686, %v2686
  %v3619 = vmul.f32 %v2687, %v2687
  %v3620 = vmul.f32 %v2688, %v2688
  %v3621 = vmul.f32 %v2689, %v2689
  %v3622 = vmul.f32 %v2690, %v2690
  %v3623 = vmul.f32 %v2691, %v2691
  %v3624 = vmul.f32 %v2692, %v2692
  %v3625 = vmul.f32 %v2693, %v2693
  %v3626 = vmul.f32 %v2694, %v2694
  %v3627 = vmul.f32 %v2695, %v2695
  %v3628 = vmul.f32 %v2696, %v2696
  %v3629 = vmul.f32 %v2697, %v2697
  %v3630 = vmul.f32 %v2698, %v2698
  %v3631 = vmul.f32 %v2699, %v2699
  %v3632 = vmul.f32 %v2700, %v2700
  %v3633 = vmul.f32 %v2701, %v2701
  %v3634 = vmul.f32 %v2702, %v2702
  %v3635 = vmul.f32 %v2703, %v2703
  %v3636 = vmul.f32 %v2704, %v2704
  %v3637 = vmul.f32 %v2705, %v2705
  %v3638 = vmul.f32 %v2706, %v2706
  %v3639 = vmul.f32 %v2707, %v2707
  %v3640 = vmul.f32 %v2708, %v2708
  %v3641 = vmul.f32 %v2709, %v2709
  %v3642 = vmul.f32 %v2710, %v2710
  %v3643 = vmul.f32 %v2711, %v2711
  %v3644 = vmul.f32 %v2712, %v2712
  %v3645 = vmul.f32 %v2713, %v2713
  %v3646 = vmul.f32 %v2714, %v2714
  %v3647 = vmul.f32 %v2715, %v2715
  %v3648 = vmul.f32 %v2716, %v2716
  %v3649 = vmul.f32 %v2717, %v2717
  %v3650 = vmul.f32 %v2718, %v2718
  %v3651 = vmul.f32 %v2719, %v2719
  %v3652 = vmul.f32 %v2720, %v2720
  %v3653 = vmul.f32 %v2721, %v2721
  %v3654 = vmul.f32 %v2722, %v2722
  %v3655 = vmul.f32 %v2723, %v2723
  %v3656 = vmul.f32 %v2724, %v2724
  %v3657 = vmul.f32 %v2725, %v2725
  %v3658 = vmul.f32 %v2726, %v2726
  %v3659 = vmul.f32 %v2727, %v2727
  %v3660 = vmul.f32 %v2728, %v2728
  %v3661 = vmul.f32 %v2729, %v2729
  %v3662 = vmul.f32 %v2730, %v2730
  %v3663 = vmul.f32 %v2731, %v2731
  %v3664 = vmul.f32 %v2732, %v2732
  %v3665 = vmul.f32 %v2733, %v2733
  %v3666 = vmul.f32 %v2734, %v2734
  %v3667 = vmul.f32 %v2735, %v2735
  %v3668 = vmul.f32 %v2736, %v2736
  %v3669 = vmul.f32 %v2737, %v2737
  %v3670 = vmul.f32 %v2738, %v2738
  %v3671 = vmul.f32 %v2739, %v2739
  %v3672 = vmul.f32 %v2740, %v2740
  %v3673 = vmul.f32 %v2741, %v2741
  %v3674 = vmul.f32 %v2742, %v2742
  %v3675 = vmul.f32 %v2743, %v2743
  %v3676 = vmul.f32 %v2744, %v2744
  %v3677 = vmul.f32 %v2745, %v2745
  %v3678 = vmul.f32 %v2746, %v2746
  %v3679 = vmul.f32 %v2747, %v2747
  %v3680 = vmul.f32 %v2748, %v2748
  %v3681 = vmul.f32 %v2749, %v2749
  %v3682 = vmul.f32 %v2750, %v2750
  %v3683 = vmul.f32 %v2751, %v2751
  %v3684 = vmul.f32 %v2752, %v2752
  %v3685 = vmul.f32 %v2753, %v2753
  %v3686 = vmul.f32 %v2754, %v2754
  %v3687 = vmul.f32 %v2755, %v2755
  %v3688 = vmul.f32 %v2756, %v2756
  %v3689 = vmul.f32 %v2757, %v2757
  %v3690 = vmul.f32 %v2758, %v2758
  %v3691 = vmul.f32 %v2759, %v2759
  %v3692 = vmul.f32 %v2760, %v2760
  %v3693 = vmul.f32 %v2761, %v2761
  %v3694 = vmul.f32 %v2762, %v2762
  %v3695 = vmul.f32 %v2763, %v2763
  %v3696 = vmul.f32 %v2764, %v2764
  %v3697 = vmul.f32 %v2765, %v2765
  %v3698 = vmul.f32 %v2766, %v2766
  %v3699 = vmul.f32 %v2767, %v2767
  %v3700 = vmul.f32 %v2768, %v2768
  %v3701 = vmul.f32 %v2769, %v2769
  %v3702 = vmul.f32 %v2770, %v2770
  %v3703 = vmul.f32 %v2771, %v2771
  %v3704 = vmul.f32 %v2772, %v2772
  %v3705 = vmul.f32 %v2773, %v2773
  %v3706 = vmul.f32 %v2774, %v2774
  %v3707 = vmul.f32 %v2775, %v2775
  %v3708 = vmul.f32 %v2776, %v2776
  %v3709 = vmul.f32 %v2777, %v2777
  %v3710 = vmul.f32 %v2778, %v2778
  %v3711 = vmul.f32 %v2779, %v2779
  %v3712 = vmul.f32 %v2780, %v2780
  %v3713 = vmul.f32 %v2781, %v2781
  %v3714 = vmul.f32 %v2782, %v2782
  %v3715 = vmul.f32 %v2783, %v2783
  %v3716 = vmul.f32 %v2784, %v2784
  %v3717 = vmul.f32 %v2785, %v2785
  %v3718 = vmul.f32 %v2786, %v2786
  %v3719 = vmul.f32 %v2787, %v2787
  %v3720 = vmul.f32 %v2788, %v2788
  %v3721 = vmul.f32 %v2789, %v2789
  %v3722 = vmul.f32 %v2790, %v2790
  %v3723 = vmul.f32 %v2791, %v2791
  %v3724 = vmul.f32 %v2792, %v2792
  %v3725 = vmul.f32 %v2793, %v2793
  %v3726 = vmul.f32 %v2794, %v2794
  %v3727 = vmul.f32 %v2795, %v2795
  %v3728 = vmul.f32 %v2796, %v2796
  %v3729 = vmul.f32 %v2797, %v2797
  %v3730 = vmul.f32 %v2798, %v2798
  %v3731 = vmul.f32 %v2799, %v2799
  %v3732 = vmul.f32 %v2800, %v2800
  %v3733 = vmul.f32 %v2801, %v2801
  %v3734 = vmul.f32 %v2802, %v2802
  %v3735 = vmul.f32 %v2803, %v2803
  %v3736 = vmul.f32 %v2804, %v2804
  %v3737 = vmul.f32 %v2805, %v2805
  %v3738 = vmul.f32 %v2806, %v2806
  %v3739 = vmul.f32 %v2807, %v2807
  %v3740 = vmul.f32 %v2808, %v2808
  %v3741 = vmul.f32 %v2809, %v2809
  %v3742 = vmul.f32 %v2810, %v2810
  %v3743 = vmul.f32 %v2811, %v2811
  %v3744 = vmul.f32 %v2812, %v2812
  %v3745 = vmul.f32 %v2813, %v2813
  %v3746 = vmul.f32 %v2814, %v2814
  %v3747 = vmul.f32 %v2815, %v2815
  %v3748 = vmul.f32 %v2816, %v2816
  %v3749 = vmul.f32 %v2817, %v2817
  %v3750 = vmul.f32 %v2818, %v2818
  %v3751 = vmul.f32 %v2819, %v2819
  %v3752 = vmul.f32 %v2820, %v2820
  %v3753 = vmul.f32 %v2821, %v2821
  %v3754 = vmul.f32 %v2822, %v2822
  %v3755 = vmul.f32 %v2823, %v2823
  %v3756 = vmul.f32 %v2824, %v2824
  %v3757 = vmul.f32 %v2825, %v2825
  %v3758 = vmul.f32 %v2826, %v2826
  %v3759 = vmul.f32 %v2827, %v2827
  %v3760 = vmul.f32 %v2828, %v2828
  %v3761 = vmul.f32 %v2829, %v2829
  %v3762 = vmul.f32 %v2830, %v2830
  %v3763 = vmul.f32 %v2831, %v2831
  %v3764 = vmul.f32 %v2832, %v2832
  %v3765 = vmul.f32 %v2833, %v2833
  %v3766 = vmul.f32 %v2834, %v2834
  %v3767 = vmul.f32 %v2835, %v2835
  %v3768 = vmul.f32 %v2836, %v2836
  %v3769 = vmul.f32 %v2837, %v2837
  %v3770 = vmul.f32 %v2838, %v2838
  %v3771 = vmul.f32 %v2839, %v2839
  %v3772 = vmul.f32 %v2840, %v2840
  %v3773 = vmul.f32 %v2841, %v2841
  %v3774 = vmul.f32 %v2842, %v2842
  %v3775 = vmul.f32 %v2843, %v2843
  %v3776 = vmul.f32 %v2844, %v2844
  %v3777 = vmul.f32 %v2845, %v2845
  %v3778 = vmul.f32 %v2846, %v2846
  %v3779 = vmul.f32 %v2847, %v2847
  %v3780 = vmul.f32 %v2848, %v2848
  %v3781 = vmul.f32 %v2849, %v2849
  %v3782 = vmul.f32 %v2850, %v2850
  %v3783 = vmul.f32 %v2851, %v2851
  %v3784 = vmul.f32 %v2852, %v2852
  %v3785 = vmul.f32 %v2853, %v2853
  %v3786 = vmul.f32 %v2854, %v2854
  %v3787 = vmul.f32 %v2855, %v2855
  %v3788 = vmul.f32 %v2856, %v2856
  %v3789 = vmul.f32 %v2857, %v2857
  %v3790 = vmul.f32 %v2858, %v2858
  %v3791 = vmul.f32 %v2859, %v2859
  %v3792 = vmul.f32 %v2860, %v2860
  %v3793 = vmul.f32 %v2861, %v2861
  %v3794 = vmul.f32 %v2862, %v2862
  %v3795 = vmul.f32 %v2863, %v2863
  %v3796 = vmul.f32 %v2864, %v2864
  %v3797 = vmul.f32 %v2865, %v2865
  %v3798 = vmul.f32 %v2866, %v2866
  %v3799 = vmul.f32 %v2867, %v2867
  %v3800 = vmul.f32 %v2868, %v2868
  %v3801 = vmul.f32 %v2869, %v2869
  %v3802 = vmul.f32 %v2870, %v2870
  %v3803 = vmul.f32 %v2871, %v2871
  %v3804 = vmul.f32 %v2872, %v2872
  %v3805 = vmul.f32 %v2873, %v2873
  %v3806 = vmul.f32 %v2874, %v2874
  %v3807 = vmul.f32 %v2875, %v2875
  %v3808 = vmul.f32 %v2876, %v2876
  %v3809 = vmul.f32 %v2877, %v2877
  %v3810 = vmul.f32 %v2878, %v2878
  %v3811 = vmul.f32 %v2879, %v2879
  %v3812 = vmul.f32 %v2880, %v2880
  %v3813 = vmul.f32 %v2881, %v2881
  %v3814 = vmul.f32 %v2882, %v2882
  %v3815 = vmul.f32 %v2883, %v2883
  %v3816 = vmul.f32 %v2884, %v2884
  %v3817 = vmul.f32 %v2885, %v2885
  %v3818 = vmul.f32 %v2886, %v2886
  %v3819 = vmul.f32 %v2887, %v2887
  %v3820 = vmul.f32 %v2888, %v2888
  %v3821 = vmul.f32 %v2889, %v2889
  %v3822 = vmul.f32 %v2890, %v2890
  %v3823 = vmul.f32 %v2891, %v2891
  %v3824 = vmul.f32 %v2892, %v2892
  %v3825 = vmul.f32 %v2893, %v2893
  %v3826 = vmul.f32 %v2894, %v2894
  %v3827 = vmul.f32 %v2895, %v2895
  %v3828 = vmul.f32 %v2896, %v2896
  %v3829 = vmul.f32 %v2897, %v2897
  %v3830 = vmul.f32 %v2898, %v2898
  %v3831 = vmul.f32 %v2899, %v2899
  %v3832 = vmul.f32 %v2900, %v2900
  %v3833 = vmul.f32 %v2901, %v2901
  %v3834 = vmul.f32 %v2902, %v2902
  %v3835 = vmul.f32 %v2903, %v2903
  %v3836 = vmul.f32 %v2904, %v2904
  %v3837 = vmul.f32 %v2905, %v2905
  %v3838 = vmul.f32 %v2906, %v2906
  %v3839 = vmul.f32 %v2907, %v2907
  %v3840 = vmul.f32 %v2908, %v2908
  %v3841 = vmul.f32 %v2909, %v2909
  %v3842 = vmul.f32 %v2910, %v2910
  %v3843 = vmul.f32 %v2911, %v2911
  %v3844 = vmul.f32 %v2912, %v2912
  %v3845 = vmul.f32 %v2913, %v2913
  %v3846 = vmul.f32 %v2914, %v2914
  %v3847 = vmul.f32 %v2915, %v2915
  %v3848 = vmul.f32 %v2916, %v2916
  %v3849 = vmul.f32 %v2917, %v2917
  %v3850 = vmul.f32 %v2918, %v2918
  %v3851 = vmul.f32 %v2919, %v2919
  %v3852 = vmul.f32 %v2920, %v2920
  %v3853 = vmul.f32 %v2921, %v2921
  %v3854 = vmul.f32 %v2922, %v2922
  %v3855 = vmul.f32 %v2923, %v2923
  %v3856 = vmul.f32 %v2924, %v2924
  %v3857 = vmul.f32 %v2925, %v2925
  %v3858 = vmul.f32 %v2926, %v2926
  %v3859 = vmul.f32 %v2927, %v2927
  %v3860 = vmul.f32 %v2928, %v2928
  %v3861 = vmul.f32 %v2929, %v2929
  %v3862 = vmul.f32 %v2930, %v2930
  %v3863 = vmul.f32 %v2931, %v2931
  %v3864 = vmul.f32 %v2932, %v2932
  %v3865 = vmul.f32 %v2933, %v2933
  %v3866 = vmul.f32 %v2934, %v2934
  %v3867 = vadd.f32 %v3506, %v3507
  %v3868 = vadd.f32 %v3867, %v3508
  %v3869 = vadd.f32 %v3868, %v3509
  %v3870 = vadd.f32 %v3869, %v3510
  %v3871 = vadd.f32 %v3870, %v3511
  %v3872 = vadd.f32 %v3871, %v3512
  %v3873 = vadd.f32 %v3872, %v3513
  %v3874 = vadd.f32 %v3873, %v3514
  %v3875 = vadd.f32 %v3874, %v3515
  %v3876 = vadd.f32 %v3875, %v3516
  %v3877 = vadd.f32 %v3876, %v3517
  %v3878 = vadd.f32 %v3877, %v3518
  %v3879 = vadd.f32 %v3878, %v3519
  %v3880 = vadd.f32 %v3879, %v3520
  %v3881 = vadd.f32 %v3880, %v3521
  %v3882 = vadd.f32 %v3881, %v3522
  %v3883 = vadd.f32 %v3882, %v3523
  %v3884 = vadd.f32 %v3883, %v3524
  %v3885 = vadd.f32 %v3884, %v3525
  %v3886 = vadd.f32 %v3885, %v3526
  %v3887 = vadd.f32 %v3886, %v3527
  %v3888 = vadd.f32 %v3887, %v3528
  %v3889 = vadd.f32 %v3888, %v3529
  %v3890 = vadd.f32 %v3889, %v3530
  %v3891 = vadd.f32 %v3890, %v3531
  %v3892 = vadd.f32 %v3891, %v3532
  %v3893 = vadd.f32 %v3892, %v3533
  %v3894 = vadd.f32 %v3893, %v3534
  %v3895 = vadd.f32 %v3894, %v3535
  %v3896 = vadd.f32 %v3895, %v3536
  %v3897 = vadd.f32 %v3896, %v3537
  %v3898 = vadd.f32 %v3897, %v3538
  %v3899 = vadd.f32 %v3898, %v3539
  %v3900 = vadd.f32 %v3899, %v3540
  %v3901 = vadd.f32 %v3900, %v3541
  %v3902 = vadd.f32 %v3901, %v3542
  %v3903 = vadd.f32 %v3902, %v3543
  %v3904 = vadd.f32 %v3903, %v3544
  %v3905 = vadd.f32 %v3904, %v3545
  %v3906 = vadd.f32 %v3905, %v3546
  %v3907 = vadd.f32 %v3906, %v3547
  %v3908 = vadd.f32 %v3907, %v3548
  %v3909 = vadd.f32 %v3908, %v3549
  %v3910 = vadd.f32 %v3909, %v3550
  %v3911 = vadd.f32 %v3910, %v3551
  %v3912 = vadd.f32 %v3911, %v3552
  %v3913 = vadd.f32 %v3912, %v3553
  %v3914 = vadd.f32 %v3913, %v3554
  %v3915 = vadd.f32 %v3914, %v3555
  %v3916 = vadd.f32 %v3915, %v3556
  %v3917 = vadd.f32 %v3916, %v3557
  %v3918 = vadd.f32 %v3917, %v3558
  %v3919 = vadd.f32 %v3918, %v3559
  %v3920 = vadd.f32 %v3919, %v3560
  %v3921 = vadd.f32 %v3920, %v3561
  %v3922 = vadd.f32 %v3921, %v3562
  %v3923 = vadd.f32 %v3922, %v3563
  %v3924 = vadd.f32 %v3923, %v3564
  %v3925 = vadd.f32 %v3924, %v3565
  %v3926 = vadd.f32 %v3925, %v3566
  %v3927 = vadd.f32 %v3926, %v3567
  %v3928 = vadd.f32 %v3927, %v3568
  %v3929 = vadd.f32 %v3928, %v3569
  %v3930 = vadd.f32 %v3929, %v3570
  %v3931 = vadd.f32 %v3930, %v3571
  %v3932 = vadd.f32 %v3931, %v3572
  %v3933 = vadd.f32 %v3932, %v3573
  %v3934 = vadd.f32 %v3933, %v3574
  %v3935 = vadd.f32 %v3934, %v3575
  %v3936 = vadd.f32 %v3935, %v3576
  %v3937 = vadd.f32 %v3936, %v3577
  %v3938 = vadd.f32 %v3937, %v3578
  %v3939 = vadd.f32 %v3938, %v3579
  %v3940 = vadd.f32 %v3939, %v3580
  %v3941 = vadd.f32 %v3940, %v3581
  %v3942 = vadd.f32 %v3941, %v3582
  %v3943 = vadd.f32 %v3942, %v3583
  %v3944 = vadd.f32 %v3943, %v3584
  %v3945 = vadd.f32 %v3944, %v3585
  %v3946 = vadd.f32 %v3945, %v3586
  %v3947 = vadd.f32 %v3946, %v3587
  %v3948 = vadd.f32 %v3947, %v3588
  %v3949 = vadd.f32 %v3948, %v3589
  %v3950 = vadd.f32 %v3949, %v3590
  %v3951 = vadd.f32 %v3950, %v3591
  %v3952 = vadd.f32 %v3951, %v3592
  %v3953 = vadd.f32 %v3952, %v3593
  %v3954 = vadd.f32 %v3953, %v3594
  %v3955 = vadd.f32 %v3954, %v3595
  %v3956 = vadd.f32 %v3955, %v3596
  %v3957 = vadd.f32 %v3956, %v3597
  %v3958 = vadd.f32 %v3957, %v3598
  %v3959 = vadd.f32 %v3958, %v3599
  %v3960 = vadd.f32 %v3959, %v3600
  %v3961 = vadd.f32 %v3960, %v3601
  %v3962 = vadd.f32 %v3961, %v3602
  %v3963 = vadd.f32 %v3962, %v3603
  %v3964 = vadd.f32 %v3963, %v3604
  %v3965 = vadd.f32 %v3964, %v3605
  %v3966 = vadd.f32 %v3965, %v3606
  %v3967 = vadd.f32 %v3966, %v3607
  %v3968 = vadd.f32 %v3967, %v3608
  %v3969 = vadd.f32 %v3968, %v3609
  %v3970 = vadd.f32 %v3969, %v3610
  %v3971 = vadd.f32 %v3970, %v3611
  %v3972 = vadd.f32 %v3971, %v3612
  %v3973 = vadd.f32 %v3972, %v3613
  %v3974 = vadd.f32 %v3973, %v3614
  %v3975 = vadd.f32 %v3974, %v3615
  %v3976 = vadd.f32 %v3975, %v3616
  %v3977 = vadd.f32 %v3976, %v3617
  %v3978 = vadd.f32 %v3977, %v3618
  %v3979 = vadd.f32 %v3978, %v3619
  %v3980 = vadd.f32 %v3979, %v3620
  %v3981 = vadd.f32 %v3980, %v3621
  %v3982 = vadd.f32 %v3981, %v3622
  %v3983 = vadd.f32 %v3982, %v3623
  %v3984 = vadd.f32 %v3983, %v3624
  %v3985 = vadd.f32 %v3984, %v3625
  %v3986 = vadd.f32 %v3985, %v3626
  %v3987 = vadd.f32 %v3986, %v3627
  %v3988 = vadd.f32 %v3987, %v3628
  %v3989 = vadd.f32 %v3988, %v3629
  %v3990 = vadd.f32 %v3989, %v3630
  %v3991 = vadd.f32 %v3990, %v3631
  %v3992 = vadd.f32 %v3991, %v3632
  %v3993 = vadd.f32 %v3992, %v3633
  %v3994 = vadd.f32 %v3993, %v3634
  %v3995 = vadd.f32 %v3994, %v3635
  %v3996 = vadd.f32 %v3995, %v3636
  %v3997 = vadd.f32 %v3996, %v3637
  %v3998 = vadd.f32 %v3997, %v3638
  %v3999 = vadd.f32 %v3998, %v3639
  %v4000 = vadd.f32 %v3999, %v3640
  %v4001 = vadd.f32 %v4000, %v3641
  %v4002 = vadd.f32 %v4001, %v3642
  %v4003 = vadd.f32 %v4002, %v3643
  %v4004 = vadd.f32 %v4003, %v3644
  %v4005 = vadd.f32 %v4004, %v3645
  %v4006 = vadd.f32 %v4005, %v3646
  %v4007 = vadd.f32 %v4006, %v3647
  %v4008 = vadd.f32 %v4007, %v3648
  %v4009 = vadd.f32 %v4008, %v3649
  %v4010 = vadd.f32 %v4009, %v3650
  %v4011 = vadd.f32 %v4010, %v3651
  %v4012 = vadd.f32 %v4011, %v3652
  %v4013 = vadd.f32 %v4012, %v3653
  %v4014 = vadd.f32 %v4013, %v3654
  %v4015 = vadd.f32 %v4014, %v3655
  %v4016 = vadd.f32 %v4015, %v3656
  %v4017 = vadd.f32 %v4016, %v3657
  %v4018 = vadd.f32 %v4017, %v3658
  %v4019 = vadd.f32 %v4018, %v3659
  %v4020 = vadd.f32 %v4019, %v3660
  %v4021 = vadd.f32 %v4020, %v3661
  %v4022 = vadd.f32 %v4021, %v3662
  %v4023 = vadd.f32 %v4022, %v3663
  %v4024 = vadd.f32 %v4023, %v3664
  %v4025 = vadd.f32 %v4024, %v3665
  %v4026 = vadd.f32 %v4025, %v3666
  %v4027 = vadd.f32 %v4026, %v3667
  %v4028 = vadd.f32 %v4027, %v3668
  %v4029 = vadd.f32 %v4028, %v3669
  %v4030 = vadd.f32 %v4029, %v3670
  %v4031 = vadd.f32 %v4030, %v3671
  %v4032 = vadd.f32 %v4031, %v3672
  %v4033 = vadd.f32 %v4032, %v3673
  %v4034 = vadd.f32 %v4033, %v3674
  %v4035 = vadd.f32 %v4034, %v3675
  %v4036 = vadd.f32 %v4035, %v3676
  %v4037 = vadd.f32 %v4036, %v3677
  %v4038 = vadd.f32 %v4037, %v3678
  %v4039 = vadd.f32 %v4038, %v3679
  %v4040 = vadd.f32 %v4039, %v3680
  %v4041 = vadd.f32 %v4040, %v3681
  %v4042 = vadd.f32 %v4041, %v3682
  %v4043 = vadd.f32 %v4042, %v3683
  %v4044 = vadd.f32 %v4043, %v3684
  %v4045 = vadd.f32 %v4044, %v3685
  %v4046 = vadd.f32 %v4045, %v3686
  %v4047 = vadd.f32 %v4046, %v3687
  %v4048 = vadd.f32 %v4047, %v3688
  %v4049 = vadd.f32 %v4048, %v3689
  %v4050 = vadd.f32 %v4049, %v3690
  %v4051 = vadd.f32 %v4050, %v3691
  %v4052 = vadd.f32 %v4051, %v3692
  %v4053 = vadd.f32 %v4052, %v3693
  %v4054 = vadd.f32 %v4053, %v3694
  %v4055 = vadd.f32 %v4054, %v3695
  %v4056 = vadd.f32 %v4055, %v3696
  %v4057 = vadd.f32 %v4056, %v3697
  %v4058 = vadd.f32 %v4057, %v3698
  %v4059 = vadd.f32 %v4058, %v3699
  %v4060 = vadd.f32 %v4059, %v3700
  %v4061 = vadd.f32 %v4060, %v3701
  %v4062 = vadd.f32 %v4061, %v3702
  %v4063 = vadd.f32 %v4062, %v3703
  %v4064 = vadd.f32 %v4063, %v3704
  %v4065 = vadd.f32 %v4064, %v3705
  %v4066 = vadd.f32 %v4065, %v3706
  %v4067 = vadd.f32 %v4066, %v3707
  %v4068 = vadd.f32 %v4067, %v3708
  %v4069 = vadd.f32 %v4068, %v3709
  %v4070 = vadd.f32 %v4069, %v3710
  %v4071 = vadd.f32 %v4070, %v3711
  %v4072 = vadd.f32 %v4071, %v3712
  %v4073 = vadd.f32 %v4072, %v3713
  %v4074 = vadd.f32 %v4073, %v3714
  %v4075 = vadd.f32 %v4074, %v3715
  %v4076 = vadd.f32 %v4075, %v3716
  %v4077 = vadd.f32 %v4076, %v3717
  %v4078 = vadd.f32 %v4077, %v3718
  %v4079 = vadd.f32 %v4078, %v3719
  %v4080 = vadd.f32 %v4079, %v3720
  %v4081 = vadd.f32 %v4080, %v3721
  %v4082 = vadd.f32 %v4081, %v3722
  %v4083 = vadd.f32 %v4082, %v3723
  %v4084 = vadd.f32 %v4083, %v3724
  %v4085 = vadd.f32 %v4084, %v3725
  %v4086 = vadd.f32 %v4085, %v3726
  %v4087 = vadd.f32 %v4086, %v3727
  %v4088 = vadd.f32 %v4087, %v3728
  %v4089 = vadd.f32 %v4088, %v3729
  %v4090 = vadd.f32 %v4089, %v3730
  %v4091 = vadd.f32 %v4090, %v3731
  %v4092 = vadd.f32 %v4091, %v3732
  %v4093 = vadd.f32 %v4092, %v3733
  %v4094 = vadd.f32 %v4093, %v3734
  %v4095 = vadd.f32 %v4094, %v3735
  %v4096 = vadd.f32 %v4095, %v3736
  %v4097 = vadd.f32 %v4096, %v3737
  %v4098 = vadd.f32 %v4097, %v3738
  %v4099 = vadd.f32 %v4098, %v3739
  %v4100 = vadd.f32 %v4099, %v3740
  %v4101 = vadd.f32 %v4100, %v3741
  %v4102 = vadd.f32 %v4101, %v3742
  %v4103 = vadd.f32 %v4102, %v3743
  %v4104 = vadd.f32 %v4103, %v3744
  %v4105 = vadd.f32 %v4104, %v3745
  %v4106 = vadd.f32 %v4105, %v3746
  %v4107 = vadd.f32 %v4106, %v3747
  %v4108 = vadd.f32 %v4107, %v3748
  %v4109 = vadd.f32 %v4108, %v3749
  %v4110 = vadd.f32 %v4109, %v3750
  %v4111 = vadd.f32 %v4110, %v3751
  %v4112 = vadd.f32 %v4111, %v3752
  %v4113 = vadd.f32 %v4112, %v3753
  %v4114 = vadd.f32 %v4113, %v3754
  %v4115 = vadd.f32 %v4114, %v3755
  %v4116 = vadd.f32 %v4115, %v3756
  %v4117 = vadd.f32 %v4116, %v3757
  %v4118 = vadd.f32 %v4117, %v3758
  %v4119 = vadd.f32 %v4118, %v3759
  %v4120 = vadd.f32 %v4119, %v3760
  %v4121 = vadd.f32 %v4120, %v3761
  %v4122 = vadd.f32 %v4121, %v3762
  %v4123 = vadd.f32 %v4122, %v3763
  %v4124 = vadd.f32 %v4123, %v3764
  %v4125 = vadd.f32 %v4124, %v3765
  %v4126 = vadd.f32 %v4125, %v3766
  %v4127 = vadd.f32 %v4126, %v3767
  %v4128 = vadd.f32 %v4127, %v3768
  %v4129 = vadd.f32 %v4128, %v3769
  %v4130 = vadd.f32 %v4129, %v3770
  %v4131 = vadd.f32 %v4130, %v3771
  %v4132 = vadd.f32 %v4131, %v3772
  %v4133 = vadd.f32 %v4132, %v3773
  %v4134 = vadd.f32 %v4133, %v3774
  %v4135 = vadd.f32 %v4134, %v3775
  %v4136 = vadd.f32 %v4135, %v3776
  %v4137 = vadd.f32 %v4136, %v3777
  %v4138 = vadd.f32 %v4137, %v3778
  %v4139 = vadd.f32 %v4138, %v3779
  %v4140 = vadd.f32 %v4139, %v3780
  %v4141 = vadd.f32 %v4140, %v3781
  %v4142 = vadd.f32 %v4141, %v3782
  %v4143 = vadd.f32 %v4142, %v3783
  %v4144 = vadd.f32 %v4143, %v3784
  %v4145 = vadd.f32 %v4144, %v3785
  %v4146 = vadd.f32 %v4145, %v3786
  %v4147 = vadd.f32 %v4146, %v3787
  %v4148 = vadd.f32 %v4147, %v3788
  %v4149 = vadd.f32 %v4148, %v3789
  %v4150 = vadd.f32 %v4149, %v3790
  %v4151 = vadd.f32 %v4150, %v3791
  %v4152 = vadd.f32 %v4151, %v3792
  %v4153 = vadd.f32 %v4152, %v3793
  %v4154 = vadd.f32 %v4153, %v3794
  %v4155 = vadd.f32 %v4154, %v3795
  %v4156 = vadd.f32 %v4155, %v3796
  %v4157 = vadd.f32 %v4156, %v3797
  %v4158 = vadd.f32 %v4157, %v3798
  %v4159 = vadd.f32 %v4158, %v3799
  %v4160 = vadd.f32 %v4159, %v3800
  %v4161 = vadd.f32 %v4160, %v3801
  %v4162 = vadd.f32 %v4161, %v3802
  %v4163 = vadd.f32 %v4162, %v3803
  %v4164 = vadd.f32 %v4163, %v3804
  %v4165 = vadd.f32 %v4164, %v3805
  %v4166 = vadd.f32 %v4165, %v3806
  %v4167 = vadd.f32 %v4166, %v3807
  %v4168 = vadd.f32 %v4167, %v3808
  %v4169 = vadd.f32 %v4168, %v3809
  %v4170 = vadd.f32 %v4169, %v3810
  %v4171 = vadd.f32 %v4170, %v3811
  %v4172 = vadd.f32 %v4171, %v3812
  %v4173 = vadd.f32 %v4172, %v3813
  %v4174 = vadd.f32 %v4173, %v3814
  %v4175 = vadd.f32 %v4174, %v3815
  %v4176 = vadd.f32 %v4175, %v3816
  %v4177 = vadd.f32 %v4176, %v3817
  %v4178 = vadd.f32 %v4177, %v3818
  %v4179 = vadd.f32 %v4178, %v3819
  %v4180 = vadd.f32 %v4179, %v3820
  %v4181 = vadd.f32 %v4180, %v3821
  %v4182 = vadd.f32 %v4181, %v3822
  %v4183 = vadd.f32 %v4182, %v3823
  %v4184 = vadd.f32 %v4183, %v3824
  %v4185 = vadd.f32 %v4184, %v3825
  %v4186 = vadd.f32 %v4185, %v3826
  %v4187 = vadd.f32 %v4186, %v3827
  %v4188 = vadd.f32 %v4187, %v3828
  %v4189 = vadd.f32 %v4188, %v3829
  %v4190 = vadd.f32 %v4189, %v3830
  %v4191 = vadd.f32 %v4190, %v3831
  %v4192 = vadd.f32 %v4191, %v3832
  %v4193 = vadd.f32 %v4192, %v3833
  %v4194 = vadd.f32 %v4193, %v3834
  %v4195 = vadd.f32 %v4194, %v3835
  %v4196 = vadd.f32 %v4195, %v3836
  %v4197 = vadd.f32 %v4196, %v3837
  %v4198 = vadd.f32 %v4197, %v3838
  %v4199 = vadd.f32 %v4198, %v3839
  %v4200 = vadd.f32 %v4199, %v3840
  %v4201 = vadd.f32 %v4200, %v3841
  %v4202 = vadd.f32 %v4201, %v3842
  %v4203 = vadd.f32 %v4202, %v3843
  %v4204 = vadd.f32 %v4203, %v3844
  %v4205 = vadd.f32 %v4204, %v3845
  %v4206 = vadd.f32 %v4205, %v3846
  %v4207 = vadd.f32 %v4206, %v3847
  %v4208 = vadd.f32 %v4207, %v3848
  %v4209 = vadd.f32 %v4208, %v3849
  %v4210 = vadd.f32 %v4209, %v3850
  %v4211 = vadd.f32 %v4210, %v3851
  %v4212 = vadd.f32 %v4211, %v3852
  %v4213 = vadd.f32 %v4212, %v3853
  %v4214 = vadd.f32 %v4213, %v3854
  %v4215 = vadd.f32 %v4214, %v3855
  %v4216 = vadd.f32 %v4215, %v3856
  %v4217 = vadd.f32 %v4216, %v3857
  %v4218 = vadd.f32 %v4217, %v3858
  %v4219 = vadd.f32 %v4218, %v3859
  %v4220 = vadd.f32 %v4219, %v3860
  %v4221 = vadd.f32 %v4220, %v3861
  %v4222 = vadd.f32 %v4221, %v3862
  %v4223 = vadd.f32 %v4222, %v3863
  %v4224 = vadd.f32 %v4223, %v3864
  %v4225 = vadd.f32 %v4224, %v3865
  %v4226 = vadd.f32 %v4225, %v3866
  %v4227 = vrot.slane %v4226, 4
  %v4228 = vadd.f32 %v4226, %v4227
  %v4229 = vrot.slane %v4228, 2
  %v4230 = vadd.f32 %v4228, %v4229
  %v4231 = vrot.slane %v4230, 1
  %v4232 = vadd.f32 %v4230, %v4231
  %v4233 = vmul.f32 %v3092, %v3092
  %v4234 = vmul.f32 %v3093, %v3093
  %v4235 = vmul.f32 %v3094, %v3094
  %v4236 = vmul.f32 %v3095, %v3095
  %v4237 = vmul.f32 %v3096, %v3096
  %v4238 = vmul.f32 %v3097, %v3097
  %v4239 = vmul.f32 %v3098, %v3098
  %v4240 = vmul.f32 %v3099, %v3099
  %v4241 = vmul.f32 %v3100, %v3100
  %v4242 = vmul.f32 %v3101, %v3101
  %v4243 = vmul.f32 %v3102, %v3102
  %v4244 = vmul.f32 %v3103, %v3103
  %v4245 = vmul.f32 %v3104, %v3104
  %v4246 = vmul.f32 %v3105, %v3105
  %v4247 = vmul.f32 %v3106, %v3106
  %v4248 = vmul.f32 %v3107, %v3107
  %v4249 = vmul.f32 %v3108, %v3108
  %v4250 = vmul.f32 %v3109, %v3109
  %v4251 = vmul.f32 %v3110, %v3110
  %v4252 = vmul.f32 %v3111, %v3111
  %v4253 = vadd.f32 %v4233, %v4234
  %v4254 = vadd.f32 %v4253, %v4235
  %v4255 = vadd.f32 %v4254, %v4236
  %v4256 = vadd.f32 %v4255, %v4237
  %v4257 = vadd.f32 %v4256, %v4238
  %v4258 = vadd.f32 %v4257, %v4239
  %v4259 = vadd.f32 %v4258, %v4240
  %v4260 = vadd.f32 %v4259, %v4241
  %v4261 = vadd.f32 %v4260, %v4242
  %v4262 = vadd.f32 %v4261, %v4243
  %v4263 = vadd.f32 %v4262, %v4244
  %v4264 = vadd.f32 %v4263, %v4245
  %v4265 = vadd.f32 %v4264, %v4246
  %v4266 = vadd.f32 %v4265, %v4247
  %v4267 = vadd.f32 %v4266, %v4248
  %v4268 = vadd.f32 %v4267, %v4249
  %v4269 = vadd.f32 %v4268, %v4250
  %v4270 = vadd.f32 %v4269, %v4251
  %v4271 = vsel %vm3496, %v4252, 0.0
  %v4272 = vadd.f32 %v4270, %v4271
  %v4273 = vrot.slane %v4272, 4
  %v4274 = vadd.f32 %v4272, %v4273
  %v4275 = vrot.slane %v4274, 2
  %v4276 = vadd.f32 %v4274, %v4275
  %v4277 = vrot.slane %v4276, 1
  %v4278 = vadd.f32 %v4276, %v4277
  %v4279 = vadd.f32 %v4232, %v4278
  %v4280 = vmul.f32 %v3505, 0.0003287311
  %v4281 = vmul.f32 %v4279, 0.0003287311
  %v4282 = vmul.f32 %v4280, %v4280
  %v4283 = vsub.f32 %v4281, %v4282
  %v4284 = vadd.f32 %v4283, 1e-05
  %v4285 = vrsqrt.pop %v4284
  %v4286 = vmul.f32 %v4285, %v4284
  %v4287 = vmul.f32 %v4286, %v4285
  %v4288 = vmul.f32 0.5, %v4287
  %v4289 = vsub.f32 1.5, %v4288
  %v4290 = vmul.f32 %v4285, %v4289
  %vm4291 = vweird.f32 %v4284
  %vm4292 = vweird.f32 %v4285
  %vm4293 = vmor %vm4291, %vm4292
  %v4294 = vsel %vm4293, %v4285, %v4290
  %vm4386 = vcmask 1045504
  %v4387 = vrot.slane %v2664, 2
  %v4388 = vrot.slane %v2665, 2
  %v4389 = vsel %vm4386, %v4387, %v4388
  %v4390 = vrot.slane %v2666, 2
  %v4391 = vsel %vm4386, %v4388, %v4390
  %v4392 = vrot.slane %v2667, 2
  %v4393 = vsel %vm4386, %v4390, %v4392
  %v4394 = vrot.slane %v2668, 2
  %v4395 = vsel %vm4386, %v4392, %v4394
  %v4396 = vrot.slane %v2669, 2
  %v4397 = vsel %vm4386, %v4394, %v4396
  %v4398 = vrot.slane %v2670, 2
  %v4399 = vsel %vm4386, %v4396, %v4398
  %v4400 = vrot.slane %v2671, 2
  %v4401 = vsel %vm4386, %v4398, %v4400
  %v4402 = vrot.slane %v2672, 2
  %v4403 = vsel %vm4386, %v4400, %v4402
  %v4404 = vrot.slane %v2673, 2
  %v4405 = vsel %vm4386, %v4402, %v4404
  %v4406 = vrot.slane %v2674, 2
  %v4407 = vsel %vm4386, %v4404, %v4406
  %v4408 = vrot.slane %v2675, 2
  %v4409 = vsel %vm4386, %v4406, %v4408
  %v4410 = vrot.slane %v2676, 2
  %v4411 = vsel %vm4386, %v4408, %v4410
  %v4412 = vrot.slane %v2677, 2
  %v4413 = vsel %vm4386, %v4410, %v4412
  %v4414 = vrot.slane %v2678, 2
  %v4415 = vsel %vm4386, %v4412, %v4414
  %v4416 = vrot.slane %v2679, 2
  %v4417 = vsel %vm4386, %v4414, %v4416
  %v4418 = vrot.slane %v2680, 2
  %v4419 = vsel %vm4386, %v4416, %v4418
  %v4420 = vrot.slane %v2681, 2
  %v4421 = vsel %vm4386, %v4418, %v4420
  %v4422 = vrot.slane %v2682, 2
  %v4423 = vsel %vm4386, %v4420, %v4422
  %v4424 = vrot.slane %v2683, 2
  %v4425 = vsel %vm4386, %v4422, %v4424
  %v4426 = vrot.slane %v2684, 2
  %v4427 = vsel %vm4386, %v4424, %v4426
  %v4428 = vrot.slane %v2685, 2
  %v4429 = vsel %vm4386, %v4426, %v4428
  %v4430 = vrot.slane %v2686, 2
  %v4431 = vsel %vm4386, %v4428, %v4430
  %v4432 = vrot.slane %v2687, 2
  %v4433 = vsel %vm4386, %v4430, %v4432
  %v4434 = vrot.slane %v2688, 2
  %v4435 = vsel %vm4386, %v4432, %v4434
  %v4436 = vrot.slane %v2689, 2
  %v4437 = vsel %vm4386, %v4434, %v4436
  %v4438 = vrot.slane %v2690, 2
  %v4439 = vsel %vm4386, %v4436, %v4438
  %v4440 = vrot.slane %v2691, 2
  %v4441 = vsel %vm4386, %v4438, %v4440
  %v4442 = vrot.slane %v2692, 2
  %v4443 = vsel %vm4386, %v4440, %v4442
  %v4444 = vrot.slane %v2693, 2
  %v4445 = vsel %vm4386, %v4442, %v4444
  %v4446 = vrot.slane %v2694, 2
  %v4447 = vsel %vm4386, %v4444, %v4446
  %v4448 = vrot.slane %v2695, 2
  %v4449 = vsel %vm4386, %v4446, %v4448
  %v4450 = vrot.slane %v2696, 2
  %v4451 = vsel %vm4386, %v4448, %v4450
  %v4452 = vrot.slane %v2697, 2
  %v4453 = vsel %vm4386, %v4450, %v4452
  %v4454 = vrot.slane %v2698, 2
  %v4455 = vsel %vm4386, %v4452, %v4454
  %v4456 = vrot.slane %v2699, 2
  %v4457 = vsel %vm4386, %v4454, %v4456
  %v4458 = vrot.slane %v2700, 2
  %v4459 = vsel %vm4386, %v4456, %v4458
  %v4460 = vrot.slane %v2701, 2
  %v4461 = vsel %vm4386, %v4458, %v4460
  %v4462 = vrot.slane %v2702, 2
  %v4463 = vsel %vm4386, %v4460, %v4462
  %v4464 = vrot.slane %v2703, 2
  %v4465 = vsel %vm4386, %v4462, %v4464
  %v4466 = vrot.slane %v2704, 2
  %v4467 = vsel %vm4386, %v4464, %v4466
  %v4468 = vrot.slane %v2705, 2
  %v4469 = vsel %vm4386, %v4466, %v4468
  %v4470 = vrot.slane %v2706, 2
  %v4471 = vsel %vm4386, %v4468, %v4470
  %v4472 = vrot.slane %v2707, 2
  %v4473 = vsel %vm4386, %v4470, %v4472
  %v4474 = vrot.slane %v2708, 2
  %v4475 = vsel %vm4386, %v4472, %v4474
  %v4476 = vrot.slane %v2709, 2
  %v4477 = vsel %vm4386, %v4474, %v4476
  %v4478 = vrot.slane %v2710, 2
  %v4479 = vsel %vm4386, %v4476, %v4478
  %v4480 = vrot.slane %v2711, 2
  %v4481 = vsel %vm4386, %v4478, %v4480
  %v4482 = vrot.slane %v2712, 2
  %v4483 = vsel %vm4386, %v4480, %v4482
  %v4484 = vrot.slane %v2713, 2
  %v4485 = vsel %vm4386, %v4482, %v4484
  %v4486 = vrot.slane %v2714, 2
  %v4487 = vsel %vm4386, %v4484, %v4486
  %v4488 = vrot.slane %v2715, 2
  %v4489 = vsel %vm4386, %v4486, %v4488
  %v4490 = vrot.slane %v2716, 2
  %v4491 = vsel %vm4386, %v4488, %v4490
  %v4492 = vrot.slane %v2717, 2
  %v4493 = vsel %vm4386, %v4490, %v4492
  %v4494 = vrot.slane %v2718, 2
  %v4495 = vsel %vm4386, %v4492, %v4494
  %v4496 = vrot.slane %v2719, 2
  %v4497 = vsel %vm4386, %v4494, %v4496
  %v4498 = vrot.slane %v2720, 2
  %v4499 = vsel %vm4386, %v4496, %v4498
  %v4500 = vrot.slane %v2721, 2
  %v4501 = vsel %vm4386, %v4498, %v4500
  %v4502 = vrot.slane %v2722, 2
  %v4503 = vsel %vm4386, %v4500, %v4502
  %v4504 = vrot.slane %v2723, 2
  %v4505 = vsel %vm4386, %v4502, %v4504
  %v4506 = vrot.slane %v2724, 2
  %v4507 = vsel %vm4386, %v4504, %v4506
  %v4508 = vrot.slane %v2725, 2
  %v4509 = vsel %vm4386, %v4506, %v4508
  %v4510 = vrot.slane %v2726, 2
  %v4511 = vsel %vm4386, %v4508, %v4510
  %v4512 = vrot.slane %v2727, 2
  %v4513 = vsel %vm4386, %v4510, %v4512
  %v4514 = vrot.slane %v2728, 2
  %v4515 = vsel %vm4386, %v4512, %v4514
  %v4516 = vrot.slane %v2729, 2
  %v4517 = vsel %vm4386, %v4514, %v4516
  %v4518 = vrot.slane %v2730, 2
  %v4519 = vsel %vm4386, %v4516, %v4518
  %v4520 = vrot.slane %v2731, 2
  %v4521 = vsel %vm4386, %v4518, %v4520
  %v4522 = vrot.slane %v2732, 2
  %v4523 = vsel %vm4386, %v4520, %v4522
  %v4524 = vrot.slane %v2733, 2
  %v4525 = vsel %vm4386, %v4522, %v4524
  %v4526 = vrot.slane %v2734, 2
  %v4527 = vsel %vm4386, %v4524, %v4526
  %v4528 = vrot.slane %v2735, 2
  %v4529 = vsel %vm4386, %v4526, %v4528
  %v4530 = vrot.slane %v2736, 2
  %v4531 = vsel %vm4386, %v4528, %v4530
  %v4532 = vrot.slane %v2737, 2
  %v4533 = vsel %vm4386, %v4530, %v4532
  %v4534 = vrot.slane %v2738, 2
  %v4535 = vsel %vm4386, %v4532, %v4534
  %v4536 = vrot.slane %v2739, 2
  %v4537 = vsel %vm4386, %v4534, %v4536
  %v4538 = vrot.slane %v2740, 2
  %v4539 = vsel %vm4386, %v4536, %v4538
  %v4540 = vrot.slane %v2741, 2
  %v4541 = vsel %vm4386, %v4538, %v4540
  %v4542 = vrot.slane %v2742, 2
  %v4543 = vsel %vm4386, %v4540, %v4542
  %v4544 = vrot.slane %v2743, 2
  %v4545 = vsel %vm4386, %v4542, %v4544
  %v4546 = vrot.slane %v2744, 2
  %v4547 = vsel %vm4386, %v4544, %v4546
  %v4548 = vrot.slane %v2745, 2
  %v4549 = vsel %vm4386, %v4546, %v4548
  %v4550 = vrot.slane %v2746, 2
  %v4551 = vsel %vm4386, %v4548, %v4550
  %v4552 = vrot.slane %v2747, 2
  %v4553 = vsel %vm4386, %v4550, %v4552
  %v4554 = vrot.slane %v2748, 2
  %v4555 = vsel %vm4386, %v4552, %v4554
  %v4556 = vrot.slane %v2749, 2
  %v4557 = vsel %vm4386, %v4554, %v4556
  %v4558 = vrot.slane %v2750, 2
  %v4559 = vsel %vm4386, %v4556, %v4558
  %v4560 = vrot.slane %v2751, 2
  %v4561 = vsel %vm4386, %v4558, %v4560
  %v4562 = vrot.slane %v2752, 2
  %v4563 = vsel %vm4386, %v4560, %v4562
  %v4564 = vrot.slane %v2753, 2
  %v4565 = vsel %vm4386, %v4562, %v4564
  %v4566 = vrot.slane %v2754, 2
  %v4567 = vsel %vm4386, %v4564, %v4566
  %v4659 = vmax.f32 %v2574, %v4389
  %v4660 = vmax.f32 %v2575, %v4391
  %v4661 = vmax.f32 %v2576, %v4393
  %v4662 = vmax.f32 %v2577, %v4395
  %v4663 = vmax.f32 %v2578, %v4397
  %v4664 = vmax.f32 %v2579, %v4399
  %v4665 = vmax.f32 %v2580, %v4401
  %v4666 = vmax.f32 %v2581, %v4403
  %v4667 = vmax.f32 %v2582, %v4405
  %v4668 = vmax.f32 %v2583, %v4407
  %v4669 = vmax.f32 %v2584, %v4409
  %v4670 = vmax.f32 %v2585, %v4411
  %v4671 = vmax.f32 %v2586, %v4413
  %v4672 = vmax.f32 %v2587, %v4415
  %v4673 = vmax.f32 %v2588, %v4417
  %v4674 = vmax.f32 %v2589, %v4419
  %v4675 = vmax.f32 %v2590, %v4421
  %v4676 = vmax.f32 %v2591, %v4423
  %v4677 = vmax.f32 %v2592, %v4425
  %v4678 = vmax.f32 %v2593, %v4427
  %v4679 = vmax.f32 %v2594, %v4429
  %v4680 = vmax.f32 %v2595, %v4431
  %v4681 = vmax.f32 %v2596, %v4433
  %v4682 = vmax.f32 %v2597, %v4435
  %v4683 = vmax.f32 %v2598, %v4437
  %v4684 = vmax.f32 %v2599, %v4439
  %v4685 = vmax.f32 %v2600, %v4441
  %v4686 = vmax.f32 %v2601, %v4443
  %v4687 = vmax.f32 %v2602, %v4445
  %v4688 = vmax.f32 %v2603, %v4447
  %v4689 = vmax.f32 %v2604, %v4449
  %v4690 = vmax.f32 %v2605, %v4451
  %v4691 = vmax.f32 %v2606, %v4453
  %v4692 = vmax.f32 %v2607, %v4455
  %v4693 = vmax.f32 %v2608, %v4457
  %v4694 = vmax.f32 %v2609, %v4459
  %v4695 = vmax.f32 %v2610, %v4461
  %v4696 = vmax.f32 %v2611, %v4463
  %v4697 = vmax.f32 %v2612, %v4465
  %v4698 = vmax.f32 %v2613, %v4467
  %v4699 = vmax.f32 %v2614, %v4469
  %v4700 = vmax.f32 %v2615, %v4471
  %v4701 = vmax.f32 %v2616, %v4473
  %v4702 = vmax.f32 %v2617, %v4475
  %v4703 = vmax.f32 %v2618, %v4477
  %v4704 = vmax.f32 %v2619, %v4479
  %v4705 = vmax.f32 %v2620, %v4481
  %v4706 = vmax.f32 %v2621, %v4483
  %v4707 = vmax.f32 %v2622, %v4485
  %v4708 = vmax.f32 %v2623, %v4487
  %v4709 = vmax.f32 %v2624, %v4489
  %v4710 = vmax.f32 %v2625, %v4491
  %v4711 = vmax.f32 %v2626, %v4493
  %v4712 = vmax.f32 %v2627, %v4495
  %v4713 = vmax.f32 %v2628, %v4497
  %v4714 = vmax.f32 %v2629, %v4499
  %v4715 = vmax.f32 %v2630, %v4501
  %v4716 = vmax.f32 %v2631, %v4503
  %v4717 = vmax.f32 %v2632, %v4505
  %v4718 = vmax.f32 %v2633, %v4507
  %v4719 = vmax.f32 %v2634, %v4509
  %v4720 = vmax.f32 %v2635, %v4511
  %v4721 = vmax.f32 %v2636, %v4513
  %v4722 = vmax.f32 %v2637, %v4515
  %v4723 = vmax.f32 %v2638, %v4517
  %v4724 = vmax.f32 %v2639, %v4519
  %v4725 = vmax.f32 %v2640, %v4521
  %v4726 = vmax.f32 %v2641, %v4523
  %v4727 = vmax.f32 %v2642, %v4525
  %v4728 = vmax.f32 %v2643, %v4527
  %v4729 = vmax.f32 %v2644, %v4529
  %v4730 = vmax.f32 %v2645, %v4531
  %v4731 = vmax.f32 %v2646, %v4533
  %v4732 = vmax.f32 %v2647, %v4535
  %v4733 = vmax.f32 %v2648, %v4537
  %v4734 = vmax.f32 %v2649, %v4539
  %v4735 = vmax.f32 %v2650, %v4541
  %v4736 = vmax.f32 %v2651, %v4543
  %v4737 = vmax.f32 %v2652, %v4545
  %v4738 = vmax.f32 %v2653, %v4547
  %v4739 = vmax.f32 %v2654, %v4549
  %v4740 = vmax.f32 %v2655, %v4551
  %v4741 = vmax.f32 %v2656, %v4553
  %v4742 = vmax.f32 %v2657, %v4555
  %v4743 = vmax.f32 %v2658, %v4557
  %v4744 = vmax.f32 %v2659, %v4559
  %v4745 = vmax.f32 %v2660, %v4561
  %v4746 = vmax.f32 %v2661, %v4563
  %v4747 = vmax.f32 %v2662, %v4565
  %v4748 = vmax.f32 %v2663, %v4567
  %v4749 = vmax.f32 %v2664, %v4566
  %v4841 = vrot.slane %v2844, 2
  %v4842 = vrot.slane %v2845, 2
  %v4843 = vsel %vm4386, %v4841, %v4842
  %v4844 = vrot.slane %v2846, 2
  %v4845 = vsel %vm4386, %v4842, %v4844
  %v4846 = vrot.slane %v2847, 2
  %v4847 = vsel %vm4386, %v4844, %v4846
  %v4848 = vrot.slane %v2848, 2
  %v4849 = vsel %vm4386, %v4846, %v4848
  %v4850 = vrot.slane %v2849, 2
  %v4851 = vsel %vm4386, %v4848, %v4850
  %v4852 = vrot.slane %v2850, 2
  %v4853 = vsel %vm4386, %v4850, %v4852
  %v4854 = vrot.slane %v2851, 2
  %v4855 = vsel %vm4386, %v4852, %v4854
  %v4856 = vrot.slane %v2852, 2
  %v4857 = vsel %vm4386, %v4854, %v4856
  %v4858 = vrot.slane %v2853, 2
  %v4859 = vsel %vm4386, %v4856, %v4858
  %v4860 = vrot.slane %v2854, 2
  %v4861 = vsel %vm4386, %v4858, %v4860
  %v4862 = vrot.slane %v2855, 2
  %v4863 = vsel %vm4386, %v4860, %v4862
  %v4864 = vrot.slane %v2856, 2
  %v4865 = vsel %vm4386, %v4862, %v4864
  %v4866 = vrot.slane %v2857, 2
  %v4867 = vsel %vm4386, %v4864, %v4866
  %v4868 = vrot.slane %v2858, 2
  %v4869 = vsel %vm4386, %v4866, %v4868
  %v4870 = vrot.slane %v2859, 2
  %v4871 = vsel %vm4386, %v4868, %v4870
  %v4872 = vrot.slane %v2860, 2
  %v4873 = vsel %vm4386, %v4870, %v4872
  %v4874 = vrot.slane %v2861, 2
  %v4875 = vsel %vm4386, %v4872, %v4874
  %v4876 = vrot.slane %v2862, 2
  %v4877 = vsel %vm4386, %v4874, %v4876
  %v4878 = vrot.slane %v2863, 2
  %v4879 = vsel %vm4386, %v4876, %v4878
  %v4880 = vrot.slane %v2864, 2
  %v4881 = vsel %vm4386, %v4878, %v4880
  %v4882 = vrot.slane %v2865, 2
  %v4883 = vsel %vm4386, %v4880, %v4882
  %v4884 = vrot.slane %v2866, 2
  %v4885 = vsel %vm4386, %v4882, %v4884
  %v4886 = vrot.slane %v2867, 2
  %v4887 = vsel %vm4386, %v4884, %v4886
  %v4888 = vrot.slane %v2868, 2
  %v4889 = vsel %vm4386, %v4886, %v4888
  %v4890 = vrot.slane %v2869, 2
  %v4891 = vsel %vm4386, %v4888, %v4890
  %v4892 = vrot.slane %v2870, 2
  %v4893 = vsel %vm4386, %v4890, %v4892
  %v4894 = vrot.slane %v2871, 2
  %v4895 = vsel %vm4386, %v4892, %v4894
  %v4896 = vrot.slane %v2872, 2
  %v4897 = vsel %vm4386, %v4894, %v4896
  %v4898 = vrot.slane %v2873, 2
  %v4899 = vsel %vm4386, %v4896, %v4898
  %v4900 = vrot.slane %v2874, 2
  %v4901 = vsel %vm4386, %v4898, %v4900
  %v4902 = vrot.slane %v2875, 2
  %v4903 = vsel %vm4386, %v4900, %v4902
  %v4904 = vrot.slane %v2876, 2
  %v4905 = vsel %vm4386, %v4902, %v4904
  %v4906 = vrot.slane %v2877, 2
  %v4907 = vsel %vm4386, %v4904, %v4906
  %v4908 = vrot.slane %v2878, 2
  %v4909 = vsel %vm4386, %v4906, %v4908
  %v4910 = vrot.slane %v2879, 2
  %v4911 = vsel %vm4386, %v4908, %v4910
  %v4912 = vrot.slane %v2880, 2
  %v4913 = vsel %vm4386, %v4910, %v4912
  %v4914 = vrot.slane %v2881, 2
  %v4915 = vsel %vm4386, %v4912, %v4914
  %v4916 = vrot.slane %v2882, 2
  %v4917 = vsel %vm4386, %v4914, %v4916
  %v4918 = vrot.slane %v2883, 2
  %v4919 = vsel %vm4386, %v4916, %v4918
  %v4920 = vrot.slane %v2884, 2
  %v4921 = vsel %vm4386, %v4918, %v4920
  %v4922 = vrot.slane %v2885, 2
  %v4923 = vsel %vm4386, %v4920, %v4922
  %v4924 = vrot.slane %v2886, 2
  %v4925 = vsel %vm4386, %v4922, %v4924
  %v4926 = vrot.slane %v2887, 2
  %v4927 = vsel %vm4386, %v4924, %v4926
  %v4928 = vrot.slane %v2888, 2
  %v4929 = vsel %vm4386, %v4926, %v4928
  %v4930 = vrot.slane %v2889, 2
  %v4931 = vsel %vm4386, %v4928, %v4930
  %v4932 = vrot.slane %v2890, 2
  %v4933 = vsel %vm4386, %v4930, %v4932
  %v4934 = vrot.slane %v2891, 2
  %v4935 = vsel %vm4386, %v4932, %v4934
  %v4936 = vrot.slane %v2892, 2
  %v4937 = vsel %vm4386, %v4934, %v4936
  %v4938 = vrot.slane %v2893, 2
  %v4939 = vsel %vm4386, %v4936, %v4938
  %v4940 = vrot.slane %v2894, 2
  %v4941 = vsel %vm4386, %v4938, %v4940
  %v4942 = vrot.slane %v2895, 2
  %v4943 = vsel %vm4386, %v4940, %v4942
  %v4944 = vrot.slane %v2896, 2
  %v4945 = vsel %vm4386, %v4942, %v4944
  %v4946 = vrot.slane %v2897, 2
  %v4947 = vsel %vm4386, %v4944, %v4946
  %v4948 = vrot.slane %v2898, 2
  %v4949 = vsel %vm4386, %v4946, %v4948
  %v4950 = vrot.slane %v2899, 2
  %v4951 = vsel %vm4386, %v4948, %v4950
  %v4952 = vrot.slane %v2900, 2
  %v4953 = vsel %vm4386, %v4950, %v4952
  %v4954 = vrot.slane %v2901, 2
  %v4955 = vsel %vm4386, %v4952, %v4954
  %v4956 = vrot.slane %v2902, 2
  %v4957 = vsel %vm4386, %v4954, %v4956
  %v4958 = vrot.slane %v2903, 2
  %v4959 = vsel %vm4386, %v4956, %v4958
  %v4960 = vrot.slane %v2904, 2
  %v4961 = vsel %vm4386, %v4958, %v4960
  %v4962 = vrot.slane %v2905, 2
  %v4963 = vsel %vm4386, %v4960, %v4962
  %v4964 = vrot.slane %v2906, 2
  %v4965 = vsel %vm4386, %v4962, %v4964
  %v4966 = vrot.slane %v2907, 2
  %v4967 = vsel %vm4386, %v4964, %v4966
  %v4968 = vrot.slane %v2908, 2
  %v4969 = vsel %vm4386, %v4966, %v4968
  %v4970 = vrot.slane %v2909, 2
  %v4971 = vsel %vm4386, %v4968, %v4970
  %v4972 = vrot.slane %v2910, 2
  %v4973 = vsel %vm4386, %v4970, %v4972
  %v4974 = vrot.slane %v2911, 2
  %v4975 = vsel %vm4386, %v4972, %v4974
  %v4976 = vrot.slane %v2912, 2
  %v4977 = vsel %vm4386, %v4974, %v4976
  %v4978 = vrot.slane %v2913, 2
  %v4979 = vsel %vm4386, %v4976, %v4978
  %v4980 = vrot.slane %v2914, 2
  %v4981 = vsel %vm4386, %v4978, %v4980
  %v4982 = vrot.slane %v2915, 2
  %v4983 = vsel %vm4386, %v4980, %v4982
  %v4984 = vrot.slane %v2916, 2
  %v4985 = vsel %vm4386, %v4982, %v4984
  %v4986 = vrot.slane %v2917, 2
  %v4987 = vsel %vm4386, %v4984, %v4986
  %v4988 = vrot.slane %v2918, 2
  %v4989 = vsel %vm4386, %v4986, %v4988
  %v4990 = vrot.slane %v2919, 2
  %v4991 = vsel %vm4386, %v4988, %v4990
  %v4992 = vrot.slane %v2920, 2
  %v4993 = vsel %vm4386, %v4990, %v4992
  %v4994 = vrot.slane %v2921, 2
  %v4995 = vsel %vm4386, %v4992, %v4994
  %v4996 = vrot.slane %v2922, 2
  %v4997 = vsel %vm4386, %v4994, %v4996
  %v4998 = vrot.slane %v2923, 2
  %v4999 = vsel %vm4386, %v4996, %v4998
  %v5000 = vrot.slane %v2924, 2
  %v5001 = vsel %vm4386, %v4998, %v5000
  %v5002 = vrot.slane %v2925, 2
  %v5003 = vsel %vm4386, %v5000, %v5002
  %v5004 = vrot.slane %v2926, 2
  %v5005 = vsel %vm4386, %v5002, %v5004
  %v5006 = vrot.slane %v2927, 2
  %v5007 = vsel %vm4386, %v5004, %v5006
  %v5008 = vrot.slane %v2928, 2
  %v5009 = vsel %vm4386, %v5006, %v5008
  %v5010 = vrot.slane %v2929, 2
  %v5011 = vsel %vm4386, %v5008, %v5010
  %v5012 = vrot.slane %v2930, 2
  %v5013 = vsel %vm4386, %v5010, %v5012
  %v5014 = vrot.slane %v2931, 2
  %v5015 = vsel %vm4386, %v5012, %v5014
  %v5016 = vrot.slane %v2932, 2
  %v5017 = vsel %vm4386, %v5014, %v5016
  %v5018 = vrot.slane %v2933, 2
  %v5019 = vsel %vm4386, %v5016, %v5018
  %v5020 = vrot.slane %v2934, 2
  %v5021 = vsel %vm4386, %v5018, %v5020
  %v5113 = vmax.f32 %v2754, %v4843
  %v5114 = vmax.f32 %v2755, %v4845
  %v5115 = vmax.f32 %v2756, %v4847
  %v5116 = vmax.f32 %v2757, %v4849
  %v5117 = vmax.f32 %v2758, %v4851
  %v5118 = vmax.f32 %v2759, %v4853
  %v5119 = vmax.f32 %v2760, %v4855
  %v5120 = vmax.f32 %v2761, %v4857
  %v5121 = vmax.f32 %v2762, %v4859
  %v5122 = vmax.f32 %v2763, %v4861
  %v5123 = vmax.f32 %v2764, %v4863
  %v5124 = vmax.f32 %v2765, %v4865
  %v5125 = vmax.f32 %v2766, %v4867
  %v5126 = vmax.f32 %v2767, %v4869
  %v5127 = vmax.f32 %v2768, %v4871
  %v5128 = vmax.f32 %v2769, %v4873
  %v5129 = vmax.f32 %v2770, %v4875
  %v5130 = vmax.f32 %v2771, %v4877
  %v5131 = vmax.f32 %v2772, %v4879
  %v5132 = vmax.f32 %v2773, %v4881
  %v5133 = vmax.f32 %v2774, %v4883
  %v5134 = vmax.f32 %v2775, %v4885
  %v5135 = vmax.f32 %v2776, %v4887
  %v5136 = vmax.f32 %v2777, %v4889
  %v5137 = vmax.f32 %v2778, %v4891
  %v5138 = vmax.f32 %v2779, %v4893
  %v5139 = vmax.f32 %v2780, %v4895
  %v5140 = vmax.f32 %v2781, %v4897
  %v5141 = vmax.f32 %v2782, %v4899
  %v5142 = vmax.f32 %v2783, %v4901
  %v5143 = vmax.f32 %v2784, %v4903
  %v5144 = vmax.f32 %v2785, %v4905
  %v5145 = vmax.f32 %v2786, %v4907
  %v5146 = vmax.f32 %v2787, %v4909
  %v5147 = vmax.f32 %v2788, %v4911
  %v5148 = vmax.f32 %v2789, %v4913
  %v5149 = vmax.f32 %v2790, %v4915
  %v5150 = vmax.f32 %v2791, %v4917
  %v5151 = vmax.f32 %v2792, %v4919
  %v5152 = vmax.f32 %v2793, %v4921
  %v5153 = vmax.f32 %v2794, %v4923
  %v5154 = vmax.f32 %v2795, %v4925
  %v5155 = vmax.f32 %v2796, %v4927
  %v5156 = vmax.f32 %v2797, %v4929
  %v5157 = vmax.f32 %v2798, %v4931
  %v5158 = vmax.f32 %v2799, %v4933
  %v5159 = vmax.f32 %v2800, %v4935
  %v5160 = vmax.f32 %v2801, %v4937
  %v5161 = vmax.f32 %v2802, %v4939
  %v5162 = vmax.f32 %v2803, %v4941
  %v5163 = vmax.f32 %v2804, %v4943
  %v5164 = vmax.f32 %v2805, %v4945
  %v5165 = vmax.f32 %v2806, %v4947
  %v5166 = vmax.f32 %v2807, %v4949
  %v5167 = vmax.f32 %v2808, %v4951
  %v5168 = vmax.f32 %v2809, %v4953
  %v5169 = vmax.f32 %v2810, %v4955
  %v5170 = vmax.f32 %v2811, %v4957
  %v5171 = vmax.f32 %v2812, %v4959
  %v5172 = vmax.f32 %v2813, %v4961
  %v5173 = vmax.f32 %v2814, %v4963
  %v5174 = vmax.f32 %v2815, %v4965
  %v5175 = vmax.f32 %v2816, %v4967
  %v5176 = vmax.f32 %v2817, %v4969
  %v5177 = vmax.f32 %v2818, %v4971
  %v5178 = vmax.f32 %v2819, %v4973
  %v5179 = vmax.f32 %v2820, %v4975
  %v5180 = vmax.f32 %v2821, %v4977
  %v5181 = vmax.f32 %v2822, %v4979
  %v5182 = vmax.f32 %v2823, %v4981
  %v5183 = vmax.f32 %v2824, %v4983
  %v5184 = vmax.f32 %v2825, %v4985
  %v5185 = vmax.f32 %v2826, %v4987
  %v5186 = vmax.f32 %v2827, %v4989
  %v5187 = vmax.f32 %v2828, %v4991
  %v5188 = vmax.f32 %v2829, %v4993
  %v5189 = vmax.f32 %v2830, %v4995
  %v5190 = vmax.f32 %v2831, %v4997
  %v5191 = vmax.f32 %v2832, %v4999
  %v5192 = vmax.f32 %v2833, %v5001
  %v5193 = vmax.f32 %v2834, %v5003
  %v5194 = vmax.f32 %v2835, %v5005
  %v5195 = vmax.f32 %v2836, %v5007
  %v5196 = vmax.f32 %v2837, %v5009
  %v5197 = vmax.f32 %v2838, %v5011
  %v5198 = vmax.f32 %v2839, %v5013
  %v5199 = vmax.f32 %v2840, %v5015
  %v5200 = vmax.f32 %v2841, %v5017
  %v5201 = vmax.f32 %v2842, %v5019
  %v5202 = vmax.f32 %v2843, %v5021
  %v5203 = vmax.f32 %v2844, %v5020
  %vm5295 = vcmask 1043456
  %v5296 = vrot.slane %v5113, 4
  %v5297 = vrot.slane %v5114, 4
  %v5298 = vsel %vm5295, %v5296, %v5297
  %v5299 = vrot.slane %v5115, 4
  %v5300 = vsel %vm5295, %v5297, %v5299
  %v5301 = vrot.slane %v5116, 4
  %v5302 = vsel %vm5295, %v5299, %v5301
  %v5303 = vrot.slane %v5117, 4
  %v5304 = vsel %vm5295, %v5301, %v5303
  %v5305 = vrot.slane %v5118, 4
  %v5306 = vsel %vm5295, %v5303, %v5305
  %v5307 = vrot.slane %v5119, 4
  %v5308 = vsel %vm5295, %v5305, %v5307
  %v5309 = vrot.slane %v5120, 4
  %v5310 = vsel %vm5295, %v5307, %v5309
  %v5311 = vrot.slane %v5121, 4
  %v5312 = vsel %vm5295, %v5309, %v5311
  %v5313 = vrot.slane %v5122, 4
  %v5314 = vsel %vm5295, %v5311, %v5313
  %v5315 = vrot.slane %v5123, 4
  %v5316 = vsel %vm5295, %v5313, %v5315
  %v5317 = vrot.slane %v5124, 4
  %v5318 = vsel %vm5295, %v5315, %v5317
  %v5319 = vrot.slane %v5125, 4
  %v5320 = vsel %vm5295, %v5317, %v5319
  %v5321 = vrot.slane %v5126, 4
  %v5322 = vsel %vm5295, %v5319, %v5321
  %v5323 = vrot.slane %v5127, 4
  %v5324 = vsel %vm5295, %v5321, %v5323
  %v5325 = vrot.slane %v5128, 4
  %v5326 = vsel %vm5295, %v5323, %v5325
  %v5327 = vrot.slane %v5129, 4
  %v5328 = vsel %vm5295, %v5325, %v5327
  %v5329 = vrot.slane %v5130, 4
  %v5330 = vsel %vm5295, %v5327, %v5329
  %v5331 = vrot.slane %v5131, 4
  %v5332 = vsel %vm5295, %v5329, %v5331
  %v5333 = vrot.slane %v5132, 4
  %v5334 = vsel %vm5295, %v5331, %v5333
  %v5335 = vrot.slane %v5133, 4
  %v5336 = vsel %vm5295, %v5333, %v5335
  %v5337 = vrot.slane %v5134, 4
  %v5338 = vsel %vm5295, %v5335, %v5337
  %v5339 = vrot.slane %v5135, 4
  %v5340 = vsel %vm5295, %v5337, %v5339
  %v5341 = vrot.slane %v5136, 4
  %v5342 = vsel %vm5295, %v5339, %v5341
  %v5343 = vrot.slane %v5137, 4
  %v5344 = vsel %vm5295, %v5341, %v5343
  %v5345 = vrot.slane %v5138, 4
  %v5346 = vsel %vm5295, %v5343, %v5345
  %v5347 = vrot.slane %v5139, 4
  %v5348 = vsel %vm5295, %v5345, %v5347
  %v5349 = vrot.slane %v5140, 4
  %v5350 = vsel %vm5295, %v5347, %v5349
  %v5351 = vrot.slane %v5141, 4
  %v5352 = vsel %vm5295, %v5349, %v5351
  %v5353 = vrot.slane %v5142, 4
  %v5354 = vsel %vm5295, %v5351, %v5353
  %v5355 = vrot.slane %v5143, 4
  %v5356 = vsel %vm5295, %v5353, %v5355
  %v5357 = vrot.slane %v5144, 4
  %v5358 = vsel %vm5295, %v5355, %v5357
  %v5359 = vrot.slane %v5145, 4
  %v5360 = vsel %vm5295, %v5357, %v5359
  %v5361 = vrot.slane %v5146, 4
  %v5362 = vsel %vm5295, %v5359, %v5361
  %v5363 = vrot.slane %v5147, 4
  %v5364 = vsel %vm5295, %v5361, %v5363
  %v5365 = vrot.slane %v5148, 4
  %v5366 = vsel %vm5295, %v5363, %v5365
  %v5367 = vrot.slane %v5149, 4
  %v5368 = vsel %vm5295, %v5365, %v5367
  %v5369 = vrot.slane %v5150, 4
  %v5370 = vsel %vm5295, %v5367, %v5369
  %v5371 = vrot.slane %v5151, 4
  %v5372 = vsel %vm5295, %v5369, %v5371
  %v5373 = vrot.slane %v5152, 4
  %v5374 = vsel %vm5295, %v5371, %v5373
  %v5375 = vrot.slane %v5153, 4
  %v5376 = vsel %vm5295, %v5373, %v5375
  %v5377 = vrot.slane %v5154, 4
  %v5378 = vsel %vm5295, %v5375, %v5377
  %v5379 = vrot.slane %v5155, 4
  %v5380 = vsel %vm5295, %v5377, %v5379
  %v5381 = vrot.slane %v5156, 4
  %v5382 = vsel %vm5295, %v5379, %v5381
  %v5383 = vrot.slane %v5157, 4
  %v5384 = vsel %vm5295, %v5381, %v5383
  %v5385 = vrot.slane %v5158, 4
  %v5386 = vsel %vm5295, %v5383, %v5385
  %v5387 = vrot.slane %v5159, 4
  %v5388 = vsel %vm5295, %v5385, %v5387
  %v5389 = vrot.slane %v5160, 4
  %v5390 = vsel %vm5295, %v5387, %v5389
  %v5391 = vrot.slane %v5161, 4
  %v5392 = vsel %vm5295, %v5389, %v5391
  %v5393 = vrot.slane %v5162, 4
  %v5394 = vsel %vm5295, %v5391, %v5393
  %v5395 = vrot.slane %v5163, 4
  %v5396 = vsel %vm5295, %v5393, %v5395
  %v5397 = vrot.slane %v5164, 4
  %v5398 = vsel %vm5295, %v5395, %v5397
  %v5399 = vrot.slane %v5165, 4
  %v5400 = vsel %vm5295, %v5397, %v5399
  %v5401 = vrot.slane %v5166, 4
  %v5402 = vsel %vm5295, %v5399, %v5401
  %v5403 = vrot.slane %v5167, 4
  %v5404 = vsel %vm5295, %v5401, %v5403
  %v5405 = vrot.slane %v5168, 4
  %v5406 = vsel %vm5295, %v5403, %v5405
  %v5407 = vrot.slane %v5169, 4
  %v5408 = vsel %vm5295, %v5405, %v5407
  %v5409 = vrot.slane %v5170, 4
  %v5410 = vsel %vm5295, %v5407, %v5409
  %v5411 = vrot.slane %v5171, 4
  %v5412 = vsel %vm5295, %v5409, %v5411
  %v5413 = vrot.slane %v5172, 4
  %v5414 = vsel %vm5295, %v5411, %v5413
  %v5415 = vrot.slane %v5173, 4
  %v5416 = vsel %vm5295, %v5413, %v5415
  %v5417 = vrot.slane %v5174, 4
  %v5418 = vsel %vm5295, %v5415, %v5417
  %v5419 = vrot.slane %v5175, 4
  %v5420 = vsel %vm5295, %v5417, %v5419
  %v5421 = vrot.slane %v5176, 4
  %v5422 = vsel %vm5295, %v5419, %v5421
  %v5423 = vrot.slane %v5177, 4
  %v5424 = vsel %vm5295, %v5421, %v5423
  %v5425 = vrot.slane %v5178, 4
  %v5426 = vsel %vm5295, %v5423, %v5425
  %v5427 = vrot.slane %v5179, 4
  %v5428 = vsel %vm5295, %v5425, %v5427
  %v5429 = vrot.slane %v5180, 4
  %v5430 = vsel %vm5295, %v5427, %v5429
  %v5431 = vrot.slane %v5181, 4
  %v5432 = vsel %vm5295, %v5429, %v5431
  %v5433 = vrot.slane %v5182, 4
  %v5434 = vsel %vm5295, %v5431, %v5433
  %v5435 = vrot.slane %v5183, 4
  %v5436 = vsel %vm5295, %v5433, %v5435
  %v5437 = vrot.slane %v5184, 4
  %v5438 = vsel %vm5295, %v5435, %v5437
  %v5439 = vrot.slane %v5185, 4
  %v5440 = vsel %vm5295, %v5437, %v5439
  %v5441 = vrot.slane %v5186, 4
  %v5442 = vsel %vm5295, %v5439, %v5441
  %v5443 = vrot.slane %v5187, 4
  %v5444 = vsel %vm5295, %v5441, %v5443
  %v5445 = vrot.slane %v5188, 4
  %v5446 = vsel %vm5295, %v5443, %v5445
  %v5447 = vrot.slane %v5189, 4
  %v5448 = vsel %vm5295, %v5445, %v5447
  %v5449 = vrot.slane %v5190, 4
  %v5450 = vsel %vm5295, %v5447, %v5449
  %v5451 = vrot.slane %v5191, 4
  %v5452 = vsel %vm5295, %v5449, %v5451
  %v5453 = vrot.slane %v5192, 4
  %v5454 = vsel %vm5295, %v5451, %v5453
  %v5455 = vrot.slane %v5193, 4
  %v5456 = vsel %vm5295, %v5453, %v5455
  %v5457 = vrot.slane %v5194, 4
  %v5458 = vsel %vm5295, %v5455, %v5457
  %v5459 = vrot.slane %v5195, 4
  %v5460 = vsel %vm5295, %v5457, %v5459
  %v5461 = vrot.slane %v5196, 4
  %v5462 = vsel %vm5295, %v5459, %v5461
  %v5463 = vrot.slane %v5197, 4
  %v5464 = vsel %vm5295, %v5461, %v5463
  %v5465 = vrot.slane %v5198, 4
  %v5466 = vsel %vm5295, %v5463, %v5465
  %v5467 = vrot.slane %v5199, 4
  %v5468 = vsel %vm5295, %v5465, %v5467
  %v5469 = vrot.slane %v5200, 4
  %v5470 = vsel %vm5295, %v5467, %v5469
  %v5471 = vrot.slane %v5201, 4
  %v5472 = vsel %vm5295, %v5469, %v5471
  %v5473 = vrot.slane %v5202, 4
  %v5474 = vsel %vm5295, %v5471, %v5473
  %v5475 = vrot.slane %v5203, 4
  %v5476 = vsel %vm5295, %v5473, %v5475
  %v5568 = vmax.f32 %v4659, %v5298
  %v5569 = vmax.f32 %v4660, %v5300
  %v5570 = vmax.f32 %v4661, %v5302
  %v5571 = vmax.f32 %v4662, %v5304
  %v5572 = vmax.f32 %v4663, %v5306
  %v5573 = vmax.f32 %v4664, %v5308
  %v5574 = vmax.f32 %v4665, %v5310
  %v5575 = vmax.f32 %v4666, %v5312
  %v5576 = vmax.f32 %v4667, %v5314
  %v5577 = vmax.f32 %v4668, %v5316
  %v5578 = vmax.f32 %v4669, %v5318
  %v5579 = vmax.f32 %v4670, %v5320
  %v5580 = vmax.f32 %v4671, %v5322
  %v5581 = vmax.f32 %v4672, %v5324
  %v5582 = vmax.f32 %v4673, %v5326
  %v5583 = vmax.f32 %v4674, %v5328
  %v5584 = vmax.f32 %v4675, %v5330
  %v5585 = vmax.f32 %v4676, %v5332
  %v5586 = vmax.f32 %v4677, %v5334
  %v5587 = vmax.f32 %v4678, %v5336
  %v5588 = vmax.f32 %v4679, %v5338
  %v5589 = vmax.f32 %v4680, %v5340
  %v5590 = vmax.f32 %v4681, %v5342
  %v5591 = vmax.f32 %v4682, %v5344
  %v5592 = vmax.f32 %v4683, %v5346
  %v5593 = vmax.f32 %v4684, %v5348
  %v5594 = vmax.f32 %v4685, %v5350
  %v5595 = vmax.f32 %v4686, %v5352
  %v5596 = vmax.f32 %v4687, %v5354
  %v5597 = vmax.f32 %v4688, %v5356
  %v5598 = vmax.f32 %v4689, %v5358
  %v5599 = vmax.f32 %v4690, %v5360
  %v5600 = vmax.f32 %v4691, %v5362
  %v5601 = vmax.f32 %v4692, %v5364
  %v5602 = vmax.f32 %v4693, %v5366
  %v5603 = vmax.f32 %v4694, %v5368
  %v5604 = vmax.f32 %v4695, %v5370
  %v5605 = vmax.f32 %v4696, %v5372
  %v5606 = vmax.f32 %v4697, %v5374
  %v5607 = vmax.f32 %v4698, %v5376
  %v5608 = vmax.f32 %v4699, %v5378
  %v5609 = vmax.f32 %v4700, %v5380
  %v5610 = vmax.f32 %v4701, %v5382
  %v5611 = vmax.f32 %v4702, %v5384
  %v5612 = vmax.f32 %v4703, %v5386
  %v5613 = vmax.f32 %v4704, %v5388
  %v5614 = vmax.f32 %v4705, %v5390
  %v5615 = vmax.f32 %v4706, %v5392
  %v5616 = vmax.f32 %v4707, %v5394
  %v5617 = vmax.f32 %v4708, %v5396
  %v5618 = vmax.f32 %v4709, %v5398
  %v5619 = vmax.f32 %v4710, %v5400
  %v5620 = vmax.f32 %v4711, %v5402
  %v5621 = vmax.f32 %v4712, %v5404
  %v5622 = vmax.f32 %v4713, %v5406
  %v5623 = vmax.f32 %v4714, %v5408
  %v5624 = vmax.f32 %v4715, %v5410
  %v5625 = vmax.f32 %v4716, %v5412
  %v5626 = vmax.f32 %v4717, %v5414
  %v5627 = vmax.f32 %v4718, %v5416
  %v5628 = vmax.f32 %v4719, %v5418
  %v5629 = vmax.f32 %v4720, %v5420
  %v5630 = vmax.f32 %v4721, %v5422
  %v5631 = vmax.f32 %v4722, %v5424
  %v5632 = vmax.f32 %v4723, %v5426
  %v5633 = vmax.f32 %v4724, %v5428
  %v5634 = vmax.f32 %v4725, %v5430
  %v5635 = vmax.f32 %v4726, %v5432
  %v5636 = vmax.f32 %v4727, %v5434
  %v5637 = vmax.f32 %v4728, %v5436
  %v5638 = vmax.f32 %v4729, %v5438
  %v5639 = vmax.f32 %v4730, %v5440
  %v5640 = vmax.f32 %v4731, %v5442
  %v5641 = vmax.f32 %v4732, %v5444
  %v5642 = vmax.f32 %v4733, %v5446
  %v5643 = vmax.f32 %v4734, %v5448
  %v5644 = vmax.f32 %v4735, %v5450
  %v5645 = vmax.f32 %v4736, %v5452
  %v5646 = vmax.f32 %v4737, %v5454
  %v5647 = vmax.f32 %v4738, %v5456
  %v5648 = vmax.f32 %v4739, %v5458
  %v5649 = vmax.f32 %v4740, %v5460
  %v5650 = vmax.f32 %v4741, %v5462
  %v5651 = vmax.f32 %v4742, %v5464
  %v5652 = vmax.f32 %v4743, %v5466
  %v5653 = vmax.f32 %v4744, %v5468
  %v5654 = vmax.f32 %v4745, %v5470
  %v5655 = vmax.f32 %v4746, %v5472
  %v5656 = vmax.f32 %v4747, %v5474
  %v5657 = vmax.f32 %v4748, %v5476
  %v5658 = vmax.f32 %v4749, %v5475
  %v5659 = vsub.f32 %v5568, %v4280
  %v5660 = vsub.f32 %v5569, %v4280
  %v5661 = vsub.f32 %v5570, %v4280
  %v5662 = vsub.f32 %v5571, %v4280
  %v5663 = vsub.f32 %v5572, %v4280
  %v5664 = vsub.f32 %v5573, %v4280
  %v5665 = vsub.f32 %v5574, %v4280
  %v5666 = vsub.f32 %v5575, %v4280
  %v5667 = vsub.f32 %v5576, %v4280
  %v5668 = vsub.f32 %v5577, %v4280
  %v5669 = vsub.f32 %v5578, %v4280
  %v5670 = vsub.f32 %v5579, %v4280
  %v5671 = vsub.f32 %v5580, %v4280
  %v5672 = vsub.f32 %v5581, %v4280
  %v5673 = vsub.f32 %v5582, %v4280
  %v5674 = vsub.f32 %v5583, %v4280
  %v5675 = vsub.f32 %v5584, %v4280
  %v5676 = vsub.f32 %v5585, %v4280
  %v5677 = vsub.f32 %v5586, %v4280
  %v5678 = vsub.f32 %v5587, %v4280
  %v5679 = vsub.f32 %v5588, %v4280
  %v5680 = vsub.f32 %v5589, %v4280
  %v5681 = vsub.f32 %v5590, %v4280
  %v5682 = vsub.f32 %v5591, %v4280
  %v5683 = vsub.f32 %v5592, %v4280
  %v5684 = vsub.f32 %v5593, %v4280
  %v5685 = vsub.f32 %v5594, %v4280
  %v5686 = vsub.f32 %v5595, %v4280
  %v5687 = vsub.f32 %v5596, %v4280
  %v5688 = vsub.f32 %v5597, %v4280
  %v5689 = vsub.f32 %v5598, %v4280
  %v5690 = vsub.f32 %v5599, %v4280
  %v5691 = vsub.f32 %v5600, %v4280
  %v5692 = vsub.f32 %v5601, %v4280
  %v5693 = vsub.f32 %v5602, %v4280
  %v5694 = vsub.f32 %v5603, %v4280
  %v5695 = vsub.f32 %v5604, %v4280
  %v5696 = vsub.f32 %v5605, %v4280
  %v5697 = vsub.f32 %v5606, %v4280
  %v5698 = vsub.f32 %v5607, %v4280
  %v5699 = vsub.f32 %v5608, %v4280
  %v5700 = vsub.f32 %v5609, %v4280
  %v5701 = vsub.f32 %v5610, %v4280
  %v5702 = vsub.f32 %v5611, %v4280
  %v5703 = vsub.f32 %v5612, %v4280
  %v5704 = vsub.f32 %v5613, %v4280
  %v5705 = vsub.f32 %v5614, %v4280
  %v5706 = vsub.f32 %v5615, %v4280
  %v5707 = vsub.f32 %v5616, %v4280
  %v5708 = vsub.f32 %v5617, %v4280
  %v5709 = vsub.f32 %v5618, %v4280
  %v5710 = vsub.f32 %v5619, %v4280
  %v5711 = vsub.f32 %v5620, %v4280
  %v5712 = vsub.f32 %v5621, %v4280
  %v5713 = vsub.f32 %v5622, %v4280
  %v5714 = vsub.f32 %v5623, %v4280
  %v5715 = vsub.f32 %v5624, %v4280
  %v5716 = vsub.f32 %v5625, %v4280
  %v5717 = vsub.f32 %v5626, %v4280
  %v5718 = vsub.f32 %v5627, %v4280
  %v5719 = vsub.f32 %v5628, %v4280
  %v5720 = vsub.f32 %v5629, %v4280
  %v5721 = vsub.f32 %v5630, %v4280
  %v5722 = vsub.f32 %v5631, %v4280
  %v5723 = vsub.f32 %v5632, %v4280
  %v5724 = vsub.f32 %v5633, %v4280
  %v5725 = vsub.f32 %v5634, %v4280
  %v5726 = vsub.f32 %v5635, %v4280
  %v5727 = vsub.f32 %v5636, %v4280
  %v5728 = vsub.f32 %v5637, %v4280
  %v5729 = vsub.f32 %v5638, %v4280
  %v5730 = vsub.f32 %v5639, %v4280
  %v5731 = vsub.f32 %v5640, %v4280
  %v5732 = vsub.f32 %v5641, %v4280
  %v5733 = vsub.f32 %v5642, %v4280
  %v5734 = vsub.f32 %v5643, %v4280
  %v5735 = vsub.f32 %v5644, %v4280
  %v5736 = vsub.f32 %v5645, %v4280
  %v5737 = vsub.f32 %v5646, %v4280
  %v5738 = vsub.f32 %v5647, %v4280
  %v5739 = vsub.f32 %v5648, %v4280
  %v5740 = vsub.f32 %v5649, %v4280
  %v5741 = vsub.f32 %v5650, %v4280
  %v5742 = vsub.f32 %v5651, %v4280
  %v5743 = vsub.f32 %v5652, %v4280
  %v5744 = vsub.f32 %v5653, %v4280
  %v5745 = vsub.f32 %v5654, %v4280
  %v5746 = vsub.f32 %v5655, %v4280
  %v5747 = vsub.f32 %v5656, %v4280
  %v5748 = vsub.f32 %v5657, %v4280
  %v5749 = vsub.f32 %v5658, %v4280
  %v5750 = vmul.f32 %v5659, %v4294
  %v5751 = vmul.f32 %v5660, %v4294
  %v5752 = vmul.f32 %v5661, %v4294
  %v5753 = vmul.f32 %v5662, %v4294
  %v5754 = vmul.f32 %v5663, %v4294
  %v5755 = vmul.f32 %v5664, %v4294
  %v5756 = vmul.f32 %v5665, %v4294
  %v5757 = vmul.f32 %v5666, %v4294
  %v5758 = vmul.f32 %v5667, %v4294
  %v5759 = vmul.f32 %v5668, %v4294
  %v5760 = vmul.f32 %v5669, %v4294
  %v5761 = vmul.f32 %v5670, %v4294
  %v5762 = vmul.f32 %v5671, %v4294
  %v5763 = vmul.f32 %v5672, %v4294
  %v5764 = vmul.f32 %v5673, %v4294
  %v5765 = vmul.f32 %v5674, %v4294
  %v5766 = vmul.f32 %v5675, %v4294
  %v5767 = vmul.f32 %v5676, %v4294
  %v5768 = vmul.f32 %v5677, %v4294
  %v5769 = vmul.f32 %v5678, %v4294
  %v5770 = vmul.f32 %v5679, %v4294
  %v5771 = vmul.f32 %v5680, %v4294
  %v5772 = vmul.f32 %v5681, %v4294
  %v5773 = vmul.f32 %v5682, %v4294
  %v5774 = vmul.f32 %v5683, %v4294
  %v5775 = vmul.f32 %v5684, %v4294
  %v5776 = vmul.f32 %v5685, %v4294
  %v5777 = vmul.f32 %v5686, %v4294
  %v5778 = vmul.f32 %v5687, %v4294
  %v5779 = vmul.f32 %v5688, %v4294
  %v5780 = vmul.f32 %v5689, %v4294
  %v5781 = vmul.f32 %v5690, %v4294
  %v5782 = vmul.f32 %v5691, %v4294
  %v5783 = vmul.f32 %v5692, %v4294
  %v5784 = vmul.f32 %v5693, %v4294
  %v5785 = vmul.f32 %v5694, %v4294
  %v5786 = vmul.f32 %v5695, %v4294
  %v5787 = vmul.f32 %v5696, %v4294
  %v5788 = vmul.f32 %v5697, %v4294
  %v5789 = vmul.f32 %v5698, %v4294
  %v5790 = vmul.f32 %v5699, %v4294
  %v5791 = vmul.f32 %v5700, %v4294
  %v5792 = vmul.f32 %v5701, %v4294
  %v5793 = vmul.f32 %v5702, %v4294
  %v5794 = vmul.f32 %v5703, %v4294
  %v5795 = vmul.f32 %v5704, %v4294
  %v5796 = vmul.f32 %v5705, %v4294
  %v5797 = vmul.f32 %v5706, %v4294
  %v5798 = vmul.f32 %v5707, %v4294
  %v5799 = vmul.f32 %v5708, %v4294
  %v5800 = vmul.f32 %v5709, %v4294
  %v5801 = vmul.f32 %v5710, %v4294
  %v5802 = vmul.f32 %v5711, %v4294
  %v5803 = vmul.f32 %v5712, %v4294
  %v5804 = vmul.f32 %v5713, %v4294
  %v5805 = vmul.f32 %v5714, %v4294
  %v5806 = vmul.f32 %v5715, %v4294
  %v5807 = vmul.f32 %v5716, %v4294
  %v5808 = vmul.f32 %v5717, %v4294
  %v5809 = vmul.f32 %v5718, %v4294
  %v5810 = vmul.f32 %v5719, %v4294
  %v5811 = vmul.f32 %v5720, %v4294
  %v5812 = vmul.f32 %v5721, %v4294
  %v5813 = vmul.f32 %v5722, %v4294
  %v5814 = vmul.f32 %v5723, %v4294
  %v5815 = vmul.f32 %v5724, %v4294
  %v5816 = vmul.f32 %v5725, %v4294
  %v5817 = vmul.f32 %v5726, %v4294
  %v5818 = vmul.f32 %v5727, %v4294
  %v5819 = vmul.f32 %v5728, %v4294
  %v5820 = vmul.f32 %v5729, %v4294
  %v5821 = vmul.f32 %v5730, %v4294
  %v5822 = vmul.f32 %v5731, %v4294
  %v5823 = vmul.f32 %v5732, %v4294
  %v5824 = vmul.f32 %v5733, %v4294
  %v5825 = vmul.f32 %v5734, %v4294
  %v5826 = vmul.f32 %v5735, %v4294
  %v5827 = vmul.f32 %v5736, %v4294
  %v5828 = vmul.f32 %v5737, %v4294
  %v5829 = vmul.f32 %v5738, %v4294
  %v5830 = vmul.f32 %v5739, %v4294
  %v5831 = vmul.f32 %v5740, %v4294
  %v5832 = vmul.f32 %v5741, %v4294
  %v5833 = vmul.f32 %v5742, %v4294
  %v5834 = vmul.f32 %v5743, %v4294
  %v5835 = vmul.f32 %v5744, %v4294
  %v5836 = vmul.f32 %v5745, %v4294
  %v5837 = vmul.f32 %v5746, %v4294
  %v5838 = vmul.f32 %v5747, %v4294
  %v5839 = vmul.f32 %v5748, %v4294
  %v5840 = vmul.f32 %v5749, %v4294
  %5841 = vst [vmem:[%s4] sm:$0xff] %v5750
  %5842 = vst [vmem:[%s4 + $0x8] sm:$0xff] %v5751
  %5843 = vst [vmem:[%s4 + $0x10] sm:$0xff] %v5752
  %5844 = vst [vmem:[%s4 + $0x18] sm:$0xff] %v5753
  %5845 = vst [vmem:[%s4 + $0x20] sm:$0xff] %v5754
  %5846 = vst [vmem:[%s4 + $0x28] sm:$0xff] %v5755
  %5847 = vst [vmem:[%s4 + $0x30] sm:$0xff] %v5756
  %5848 = vst [vmem:[%s4 + $0x38] sm:$0xff] %v5757
  %5849 = vst [vmem:[%s4 + $0x40] sm:$0xff] %v5758
  %5850 = vst [vmem:[%s4 + $0x48] sm:$0xff] %v5759
  %5851 = vst [vmem:[%s4 + $0x50] sm:$0xff] %v5760
  %5852 = vst [vmem:[%s4 + $0x58] sm:$0xff] %v5761
  %5853 = vst [vmem:[%s4 + $0x60] sm:$0xff] %v5762
  %5854 = vst [vmem:[%s4 + $0x68] sm:$0xff] %v5763
  %5855 = vst [vmem:[%s4 + $0x70] sm:$0xff] %v5764
  %5856 = vst [vmem:[%s4 + $0x78] sm:$0xff] %v5765
  %5857 = vst [vmem:[%s4 + $0x80] sm:$0xff] %v5766
  %5858 = vst [vmem:[%s4 + $0x88] sm:$0xff] %v5767
  %5859 = vst [vmem:[%s4 + $0x90] sm:$0xff] %v5768
  %5860 = vst [vmem:[%s4 + $0x98] sm:$0xff] %v5769
  %5861 = vst [vmem:[%s4 + $0xa0] sm:$0xff] %v5770
  %5862 = vst [vmem:[%s4 + $0xa8] sm:$0xff] %v5771
  %5863 = vst [vmem:[%s4 + $0xb0] sm:$0xff] %v5772
  %5864 = vst [vmem:[%s4 + $0xb8] sm:$0xff] %v5773
  %5865 = vst [vmem:[%s4 + $0xc0] sm:$0xff] %v5774
  %5866 = vst [vmem:[%s4 + $0xc8] sm:$0xff] %v5775
  %5867 = vst [vmem:[%s4 + $0xd0] sm:$0xff] %v5776
  %5868 = vst [vmem:[%s4 + $0xd8] sm:$0xff] %v5777
  %5869 = vst [vmem:[%s4 + $0xe0] sm:$0xff] %v5778
  %5870 = vst [vmem:[%s4 + $0xe8] sm:$0xff] %v5779
  %5871 = vst [vmem:[%s4 + $0xf0] sm:$0xff] %v5780
  %5872 = vst [vmem:[%s4 + $0xf8] sm:$0xff] %v5781
  %5873 = vst [vmem:[%s4 + $0x100] sm:$0xff] %v5782
  %5874 = vst [vmem:[%s4 + $0x108] sm:$0xff] %v5783
  %5875 = vst [vmem:[%s4 + $0x110] sm:$0xff] %v5784
  %5876 = vst [vmem:[%s4 + $0x118] sm:$0xff] %v5785
  %5877 = vst [vmem:[%s4 + $0x120] sm:$0xff] %v5786
  %5878 = vst [vmem:[%s4 + $0x128] sm:$0xff] %v5787
  %5879 = vst [vmem:[%s4 + $0x130] sm:$0xff] %v5788
  %5880 = vst [vmem:[%s4 + $0x138] sm:$0xff] %v5789
  %5881 = vst [vmem:[%s4 + $0x140] sm:$0xff] %v5790
  %5882 = vst [vmem:[%s4 + $0x148] sm:$0xff] %v5791
  %5883 = vst [vmem:[%s4 + $0x150] sm:$0xff] %v5792
  %5884 = vst [vmem:[%s4 + $0x158] sm:$0xff] %v5793
  %5885 = vst [vmem:[%s4 + $0x160] sm:$0xff] %v5794
  %5886 = vst [vmem:[%s4 + $0x168] sm:$0xff] %v5795
  %5887 = vst [vmem:[%s4 + $0x170] sm:$0xff] %v5796
  %5888 = vst [vmem:[%s4 + $0x178] sm:$0xff] %v5797
  %5889 = vst [vmem:[%s4 + $0x180] sm:$0xff] %v5798
  %5890 = vst [vmem:[%s4 + $0x188] sm:$0xff] %v5799
  %5891 = vst [vmem:[%s4 + $0x190] sm:$0xff] %v5800
  %5892 = vst [vmem:[%s4 + $0x198] sm:$0xff] %v5801
  %5893 = vst [vmem:[%s4 + $0x1a0] sm:$0xff] %v5802
  %5894 = vst [vmem:[%s4 + $0x1a8] sm:$0xff] %v5803
  %5895 = vst [vmem:[%s4 + $0x1b0] sm:$0xff] %v5804
  %5896 = vst [vmem:[%s4 + $0x1b8] sm:$0xff] %v5805
  %5897 = vst [vmem:[%s4 + $0x1c0] sm:$0xff] %v5806
  %5898 = vst [vmem:[%s4 + $0x1c8] sm:$0xff] %v5807
  %5899 = vst [vmem:[%s4 + $0x1d0] sm:$0xff] %v5808
  %5900 = vst [vmem:[%s4 + $0x1d8] sm:$0xff] %v5809
  %5901 = vst [vmem:[%s4 + $0x1e0] sm:$0xff] %v5810
  %5902 = vst [vmem:[%s4 + $0x1e8] sm:$0xff] %v5811
  %5903 = vst [vmem:[%s4 + $0x1f0] sm:$0xff] %v5812
  %5904 = vst [vmem:[%s4 + $0x1f8] sm:$0xff] %v5813
  %5905 = vst [vmem:[%s4 + $0x200] sm:$0xff] %v5814
  %5906 = vst [vmem:[%s4 + $0x208] sm:$0xff] %v5815
  %5907 = vst [vmem:[%s4 + $0x210] sm:$0xff] %v5816
  %5908 = vst [vmem:[%s4 + $0x218] sm:$0xff] %v5817
  %5909 = vst [vmem:[%s4 + $0x220] sm:$0xff] %v5818
  %5910 = vst [vmem:[%s4 + $0x228] sm:$0xff] %v5819
  %5911 = vst [vmem:[%s4 + $0x230] sm:$0xff] %v5820
  %5912 = vst [vmem:[%s4 + $0x238] sm:$0xff] %v5821
  %5913 = vst [vmem:[%s4 + $0x240] sm:$0xff] %v5822
  %5914 = vst [vmem:[%s4 + $0x248] sm:$0xff] %v5823
  %5915 = vst [vmem:[%s4 + $0x250] sm:$0xff] %v5824
  %5916 = vst [vmem:[%s4 + $0x258] sm:$0xff] %v5825
  %5917 = vst [vmem:[%s4 + $0x260] sm:$0xff] %v5826
  %5918 = vst [vmem:[%s4 + $0x268] sm:$0xff] %v5827
  %5919 = vst [vmem:[%s4 + $0x270] sm:$0xff] %v5828
  %5920 = vst [vmem:[%s4 + $0x278] sm:$0xff] %v5829
  %5921 = vst [vmem:[%s4 + $0x280] sm:$0xff] %v5830
  %5922 = vst [vmem:[%s4 + $0x288] sm:$0xff] %v5831
  %5923 = vst [vmem:[%s4 + $0x290] sm:$0xff] %v5832
  %5924 = vst [vmem:[%s4 + $0x298] sm:$0xff] %v5833
  %5925 = vst [vmem:[%s4 + $0x2a0] sm:$0xff] %v5834
  %5926 = vst [vmem:[%s4 + $0x2a8] sm:$0xff] %v5835
  %5927 = vst [vmem:[%s4 + $0x2b0] sm:$0xff] %v5836
  %5928 = vst [vmem:[%s4 + $0x2b8] sm:$0xff] %v5837
  %5929 = vst [vmem:[%s4 + $0x2c0] sm:$0xff] %v5838
  %5930 = vst [vmem:[%s4 + $0x2c8] sm:$0xff] %v5839
  %5931 = vst [vmem:[%s4 + $0x2d0] sm:$0x3] %v5840
  // Predicated region
  $region18: #{forward.2} parent=0 // pred_check
    _
  $region19: #{forward.2} parent=0 // pred_check_branch
    %5933 = sbr.rel (0) target = $region21
  $region20: #{forward.2} parent=0 // pred_region
    _
  $region21: #{forward.2} parent=0 // pred_fallthru
    _
  // Predicated region
  $region22: #{forward.2} parent=0 // pred_check
    _
  $region23: #{forward.2} parent=0 // pred_check_branch
    %5935 = sbr.rel (0) target = $region25
  $region24: #{forward.2} parent=0 // pred_region
    _
  $region25: #{forward.2} parent=0 // pred_fallthru
    _

// kernel: forward.3
$region0: #{forward.3}
  #allocation0 [shape = 'u32[]', space=smem, size = 0x4, offset = 0x4, fixed_abs, tag = 'smem constant byte address 0x4 - core index']
  #allocation1 [shape = 'u32[72,128]{1,0:T(1,128)}', space=vmem, size = 0x9000, scoped, tag = 'internal scratch']
  %s0 = inlined_call_operand.vmem [shape: f32[648,64], index: 0, kind: input, shape index: {}]
  %s1 = inlined_call_operand.vmem [shape: f32[64,128], index: 1, kind: input, shape index: {}]
  %s2 = inlined_call_operand.vmem [shape: f32[1,128], index: 2, kind: input, shape index: {}]
  %s3 = inlined_call_operand.vmem [shape: f32[512,128], index: 3, kind: input, shape index: {}]
  %s4 = inlined_call_operand.vmem [shape: f32[1,128], index: 4, kind: input, shape index: {}]
  %s5 = inlined_call_operand.vmem [shape: f32[152,1], index: 5, kind: input, shape index: {}]
  %s6 = inlined_call_operand.vmem [shape: f32[2048,256], index: 6, kind: input, shape index: {}]
  %s7 = inlined_call_operand.vmem [shape: f32[1,256], index: 7, kind: input, shape index: {}]
  %s8 = inlined_call_operand.vmem [shape: f32[256,128], index: 8, kind: input, shape index: {}]
  %s9 = inlined_call_operand.vmem [shape: f32[1,128], index: 9, kind: input, shape index: {}]
  %s10 = inlined_call_operand.vmem [shape: f32[2,128], index: 10, kind: output, shape index: {}]
  %s11 = sld [smem:[#allocation0]]
  $region50: #{forward.3} parent=0
    _
  %s13 = ssub.s32 1, %s11
  %s14 = scalar_select 0, %s13, %s11
  // Predicated region
  $region2: #{forward.3} parent=0 // pred_check
    _
  $region3: #{forward.3} parent=0 // pred_check_branch
    %16 = sbr.rel (0) target = $region5
  $region4: #{forward.3} parent=0 // pred_region
    _
  $region5: #{forward.3} parent=0 // pred_fallthru
    _
  // Predicated region
  $region6: #{forward.3} parent=0 // pred_check
    _
  $region7: #{forward.3} parent=0 // pred_check_branch
    %18 = sbr.rel (0) target = $region9
  $region8: #{forward.3} parent=0 // pred_region
    _
  $region9: #{forward.3} parent=0 // pred_fallthru
    _
  // Predicated region
  $region10: #{forward.3} parent=0 // pred_check
    _
  $region11: #{forward.3} parent=0 // pred_check_branch
    %20 = sbr.rel (0) target = $region13
  $region12: #{forward.3} parent=0 // pred_region
    _
  $region13: #{forward.3} parent=0 // pred_fallthru
    _
  // Predicated region
  $region14: #{forward.3} parent=0 // pred_check
    _
  $region15: #{forward.3} parent=0 // pred_check_branch
    %22 = sbr.rel (0) target = $region17
  $region16: #{forward.3} parent=0 // pred_region
    _
  $region17: #{forward.3} parent=0 // pred_fallthru
    _
  // Predicated region
  $region18: #{forward.3} parent=0 // pred_check
    _
  $region19: #{forward.3} parent=0 // pred_check_branch
    %24 = sbr.rel (0) target = $region21
  $region20: #{forward.3} parent=0 // pred_region
    _
  $region21: #{forward.3} parent=0 // pred_fallthru
    _
  // Predicated region
  $region22: #{forward.3} parent=0 // pred_check
    _
  $region23: #{forward.3} parent=0 // pred_check_branch
    %26 = sbr.rel (0) target = $region25
  $region24: #{forward.3} parent=0 // pred_region
    _
  $region25: #{forward.3} parent=0 // pred_fallthru
    _
  // Predicated region
  $region26: #{forward.3} parent=0 // pred_check
    _
  $region27: #{forward.3} parent=0 // pred_check_branch
    %28 = sbr.rel (0) target = $region29
  $region28: #{forward.3} parent=0 // pred_region
    _
  $region29: #{forward.3} parent=0 // pred_fallthru
    _
  // Predicated region
  $region30: #{forward.3} parent=0 // pred_check
    _
  $region31: #{forward.3} parent=0 // pred_check_branch
    %30 = sbr.rel (0) target = $region33
  $region32: #{forward.3} parent=0 // pred_region
    _
  $region33: #{forward.3} parent=0 // pred_fallthru
    _
  // Predicated region
  $region34: #{forward.3} parent=0 // pred_check
    _
  $region35: #{forward.3} parent=0 // pred_check_branch
    %32 = sbr.rel (0) target = $region37
  $region36: #{forward.3} parent=0 // pred_region
    _
  $region37: #{forward.3} parent=0 // pred_fallthru
    _
  // Predicated region
  $region38: #{forward.3} parent=0 // pred_check
    _
  $region39: #{forward.3} parent=0 // pred_check_branch
    %34 = sbr.rel (0) target = $region41
  $region40: #{forward.3} parent=0 // pred_region
    _
  $region41: #{forward.3} parent=0 // pred_fallthru
    _
  %v35 = vld [vmem:[%s0] sm:$0xff]
  %v36 = vld [vmem:[%s0 + $0x8] sm:$0xff]
  %v37 = vld [vmem:[%s0 + $0x10] sm:$0xff]
  %v38 = vld [vmem:[%s0 + $0x18] sm:$0xff]
  %v39 = vld [vmem:[%s0 + $0x20] sm:$0xff]
  %v40 = vld [vmem:[%s0 + $0x28] sm:$0xff]
  %v41 = vld [vmem:[%s0 + $0x30] sm:$0xff]
  %v42 = vld [vmem:[%s0 + $0x38] sm:$0xff]
  %v43 = vld [vmem:[%s0 + $0x40] sm:$0xff]
  %v44 = vld [vmem:[%s0 + $0x48] sm:$0xff]
  %v45 = vld [vmem:[%s0 + $0x50] sm:$0xff]
  %v46 = vld [vmem:[%s0 + $0x58] sm:$0xff]
  %v47 = vld [vmem:[%s0 + $0x60] sm:$0xff]
  %v48 = vld [vmem:[%s0 + $0x68] sm:$0xff]
  %v49 = vld [vmem:[%s0 + $0x70] sm:$0xff]
  %v50 = vld [vmem:[%s0 + $0x78] sm:$0xff]
  %v51 = vld [vmem:[%s0 + $0x80] sm:$0xff]
  %v52 = vld [vmem:[%s0 + $0x88] sm:$0xff]
  %v53 = vld [vmem:[%s0 + $0x90] sm:$0xff]
  %v54 = vld [vmem:[%s0 + $0x98] sm:$0xff]
  %v55 = vld [vmem:[%s0 + $0xa0] sm:$0xff]
  %v56 = vld [vmem:[%s0 + $0xa8] sm:$0xff]
  %v57 = vld [vmem:[%s0 + $0xb0] sm:$0xff]
  %v58 = vld [vmem:[%s0 + $0xb8] sm:$0xff]
  %v59 = vld [vmem:[%s0 + $0xc0] sm:$0xff]
  %v60 = vld [vmem:[%s0 + $0xc8] sm:$0xff]
  %v61 = vld [vmem:[%s0 + $0xd0] sm:$0xff]
  %v62 = vld [vmem:[%s0 + $0xd8] sm:$0xff]
  %v63 = vld [vmem:[%s0 + $0xe0] sm:$0xff]
  %v64 = vld [vmem:[%s0 + $0xe8] sm:$0xff]
  %v65 = vld [vmem:[%s0 + $0xf0] sm:$0xff]
  %v66 = vld [vmem:[%s0 + $0xf8] sm:$0xff]
  %v67 = vld [vmem:[%s0 + $0x100] sm:$0xff]
  %v68 = vld [vmem:[%s0 + $0x108] sm:$0xff]
  %v69 = vld [vmem:[%s0 + $0x110] sm:$0xff]
  %v70 = vld [vmem:[%s0 + $0x118] sm:$0xff]
  %v71 = vld [vmem:[%s0 + $0x120] sm:$0xff]
  %v72 = vld [vmem:[%s0 + $0x128] sm:$0xff]
  %v73 = vld [vmem:[%s0 + $0x130] sm:$0xff]
  %v74 = vld [vmem:[%s0 + $0x138] sm:$0xff]
  %v75 = vld [vmem:[%s0 + $0x140] sm:$0xff]
  %v76 = vld [vmem:[%s0 + $0x148] sm:$0xff]
  %v77 = vld [vmem:[%s0 + $0x150] sm:$0xff]
  %v78 = vld [vmem:[%s0 + $0x158] sm:$0xff]
  %v79 = vld [vmem:[%s0 + $0x160] sm:$0xff]
  %v80 = vld [vmem:[%s0 + $0x168] sm:$0xff]
  %v81 = vld [vmem:[%s0 + $0x170] sm:$0xff]
  %v82 = vld [vmem:[%s0 + $0x178] sm:$0xff]
  %v83 = vld [vmem:[%s0 + $0x180] sm:$0xff]
  %v84 = vld [vmem:[%s0 + $0x188] sm:$0xff]
  %v85 = vld [vmem:[%s0 + $0x190] sm:$0xff]
  %v86 = vld [vmem:[%s0 + $0x198] sm:$0xff]
  %v87 = vld [vmem:[%s0 + $0x1a0] sm:$0xff]
  %v88 = vld [vmem:[%s0 + $0x1a8] sm:$0xff]
  %v89 = vld [vmem:[%s0 + $0x1b0] sm:$0xff]
  %v90 = vld [vmem:[%s0 + $0x1b8] sm:$0xff]
  %v91 = vld [vmem:[%s0 + $0x1c0] sm:$0xff]
  %v92 = vld [vmem:[%s0 + $0x1c8] sm:$0xff]
  %v93 = vld [vmem:[%s0 + $0x1d0] sm:$0xff]
  %v94 = vld [vmem:[%s0 + $0x1d8] sm:$0xff]
  %v95 = vld [vmem:[%s0 + $0x1e0] sm:$0xff]
  %v96 = vld [vmem:[%s0 + $0x1e8] sm:$0xff]
  %v97 = vld [vmem:[%s0 + $0x1f0] sm:$0xff]
  %v98 = vld [vmem:[%s0 + $0x1f8] sm:$0xff]
  %v99 = vld [vmem:[%s0 + $0x200] sm:$0xff]
  %v100 = vld [vmem:[%s0 + $0x208] sm:$0xff]
  %v101 = vld [vmem:[%s0 + $0x210] sm:$0xff]
  %v102 = vld [vmem:[%s0 + $0x218] sm:$0xff]
  %v103 = vld [vmem:[%s0 + $0x220] sm:$0xff]
  %v104 = vld [vmem:[%s0 + $0x228] sm:$0xff]
  %v105 = vld [vmem:[%s0 + $0x230] sm:$0xff]
  %v106 = vld [vmem:[%s0 + $0x238] sm:$0xff]
  %v107 = vld [vmem:[%s0 + $0x240] sm:$0xff]
  %v108 = vld [vmem:[%s0 + $0x248] sm:$0xff]
  %v109 = vld [vmem:[%s0 + $0x250] sm:$0xff]
  %v110 = vld [vmem:[%s0 + $0x258] sm:$0xff]
  %v111 = vld [vmem:[%s0 + $0x260] sm:$0xff]
  %v112 = vld [vmem:[%s0 + $0x268] sm:$0xff]
  %v113 = vld [vmem:[%s0 + $0x270] sm:$0xff]
  %v114 = vld [vmem:[%s0 + $0x278] sm:$0xff]
  %v115 = vld [vmem:[%s0 + $0x280] sm:$0xff]
  %v116 = vld [vmem:[%s1] sm:$0xff]
  %v117 = vld [vmem:[%s1 + $0x8] sm:$0xff]
  %v118 = vld [vmem:[%s1 + $0x10] sm:$0xff]
  %v119 = vld [vmem:[%s1 + $0x18] sm:$0xff]
  %v120 = vld [vmem:[%s1 + $0x20] sm:$0xff]
  %v121 = vld [vmem:[%s1 + $0x28] sm:$0xff]
  %v122 = vld [vmem:[%s1 + $0x30] sm:$0xff]
  %v123 = vld [vmem:[%s1 + $0x38] sm:$0xff]
  %v124 = vld [vmem:[%s2] sm:$0x1]
  %v126 = vperm.slane %v124, 0
  %vm128 = vcmask 523264
  %v130 = vsel %vm128, %v35, 0
  %v133 = vsel %vm128, %v36, 0
  %v136 = vsel %vm128, %v37, 0
  %v139 = vsel %vm128, %v38, 0
  %v142 = vsel %vm128, %v39, 0
  %v145 = vsel %vm128, %v40, 0
  %v148 = vsel %vm128, %v41, 0
  %v151 = vsel %vm128, %v42, 0
  %v154 = vsel %vm128, %v43, 0
  %v157 = vsel %vm128, %v44, 0
  %v160 = vsel %vm128, %v45, 0
  %v163 = vsel %vm128, %v46, 0
  %v166 = vsel %vm128, %v47, 0
  %v169 = vsel %vm128, %v48, 0
  %v172 = vsel %vm128, %v49, 0
  %v175 = vsel %vm128, %v50, 0
  %v178 = vsel %vm128, %v51, 0
  %v181 = vsel %vm128, %v52, 0
  %v184 = vsel %vm128, %v53, 0
  %v187 = vsel %vm128, %v54, 0
  %v190 = vsel %vm128, %v55, 0
  %v193 = vsel %vm128, %v56, 0
  %v196 = vsel %vm128, %v57, 0
  %v199 = vsel %vm128, %v58, 0
  %v202 = vsel %vm128, %v59, 0
  %v205 = vsel %vm128, %v60, 0
  %v208 = vsel %vm128, %v61, 0
  %v211 = vsel %vm128, %v62, 0
  %v214 = vsel %vm128, %v63, 0
  %v217 = vsel %vm128, %v64, 0
  %v220 = vsel %vm128, %v65, 0
  %v223 = vsel %vm128, %v66, 0
  %v226 = vsel %vm128, %v67, 0
  %v229 = vsel %vm128, %v68, 0
  %v232 = vsel %vm128, %v69, 0
  %v235 = vsel %vm128, %v70, 0
  %v238 = vsel %vm128, %v71, 0
  %v241 = vsel %vm128, %v72, 0
  %v244 = vsel %vm128, %v73, 0
  %v247 = vsel %vm128, %v74, 0
  %v250 = vsel %vm128, %v75, 0
  %v253 = vsel %vm128, %v76, 0
  %v256 = vsel %vm128, %v77, 0
  %v259 = vsel %vm128, %v78, 0
  %v262 = vsel %vm128, %v79, 0
  %v265 = vsel %vm128, %v80, 0
  %v268 = vsel %vm128, %v81, 0
  %v271 = vsel %vm128, %v82, 0
  %v274 = vsel %vm128, %v83, 0
  %v277 = vsel %vm128, %v84, 0
  %v280 = vsel %vm128, %v85, 0
  %v283 = vsel %vm128, %v86, 0
  %v286 = vsel %vm128, %v87, 0
  %v289 = vsel %vm128, %v88, 0
  %v292 = vsel %vm128, %v89, 0
  %v295 = vsel %vm128, %v90, 0
  %v298 = vsel %vm128, %v91, 0
  %v301 = vsel %vm128, %v92, 0
  %v304 = vsel %vm128, %v93, 0
  %v307 = vsel %vm128, %v94, 0
  %v310 = vsel %vm128, %v95, 0
  %v313 = vsel %vm128, %v96, 0
  %v316 = vsel %vm128, %v97, 0
  %v319 = vsel %vm128, %v98, 0
  %v322 = vsel %vm128, %v99, 0
  %v325 = vsel %vm128, %v100, 0
  %v328 = vsel %vm128, %v101, 0
  %v331 = vsel %vm128, %v102, 0
  %v334 = vsel %vm128, %v103, 0
  %v337 = vsel %vm128, %v104, 0
  %v340 = vsel %vm128, %v105, 0
  %v343 = vsel %vm128, %v106, 0
  %v346 = vsel %vm128, %v107, 0
  %v349 = vsel %vm128, %v108, 0
  %v352 = vsel %vm128, %v109, 0
  %v355 = vsel %vm128, %v110, 0
  %v358 = vsel %vm128, %v111, 0
  %v361 = vsel %vm128, %v112, 0
  %v364 = vsel %vm128, %v113, 0
  %v367 = vsel %vm128, %v114, 0
  %v370 = vsel %vm128, %v115, 0
  %372 = vmatpush.msra.mxu0 0.0
  %373 = vmatpush.msra.mxu0 0.0
  %374 = vmatpush.msra.mxu0 0.0
  %375 = vmatpush.msra.mxu0 0.0
  %376 = vmatpush.msra.mxu0 0.0
  %377 = vmatpush.msra.mxu0 0.0
  %378 = vmatpush.msra.mxu0 0.0
  %379 = vmatpush.msra.mxu0 0.0
  %380 = vmatpush.msra.mxu0 %v123
  %381 = vmatpush.msra.mxu0 %v122
  %382 = vmatpush.msra.mxu0 %v121
  %383 = vmatpush.msra.mxu0 %v120
  %384 = vmatpush.msra.mxu0 %v119
  %385 = vmatpush.msra.mxu0 %v118
  %386 = vmatpush.msra.mxu0 %v117
  %387 = vmatpush.msra.mxu0 %v116
  %388 = vmatmul.f32.gmra.mxu0 %v130
  %v389 = vpop.f32.mrf.mxu0
  %v390 = vadd.f32 %v126, %v389
  %391 = vmatmul.f32.gmra.mxu0 %v133
  %v392 = vpop.f32.mrf.mxu0
  %v393 = vadd.f32 %v126, %v392
  %394 = vmatmul.f32.gmra.mxu0 %v136
  %v395 = vpop.f32.mrf.mxu0
  %v396 = vadd.f32 %v126, %v395
  %397 = vmatmul.f32.gmra.mxu0 %v139
  %v398 = vpop.f32.mrf.mxu0
  %v399 = vadd.f32 %v126, %v398
  %400 = vmatmul.f32.gmra.mxu0 %v142
  %v401 = vpop.f32.mrf.mxu0
  %v402 = vadd.f32 %v126, %v401
  %403 = vmatmul.f32.gmra.mxu0 %v145
  %v404 = vpop.f32.mrf.mxu0
  %v405 = vadd.f32 %v126, %v404
  %406 = vmatmul.f32.gmra.mxu0 %v148
  %v407 = vpop.f32.mrf.mxu0
  %v408 = vadd.f32 %v126, %v407
  %409 = vmatmul.f32.gmra.mxu0 %v151
  %v410 = vpop.f32.mrf.mxu0
  %v411 = vadd.f32 %v126, %v410
  %412 = vmatmul.f32.gmra.mxu0 %v154
  %v413 = vpop.f32.mrf.mxu0
  %v414 = vadd.f32 %v126, %v413
  %415 = vmatmul.f32.gmra.mxu0 %v157
  %v416 = vpop.f32.mrf.mxu0
  %v417 = vadd.f32 %v126, %v416
  %418 = vmatmul.f32.gmra.mxu0 %v160
  %v419 = vpop.f32.mrf.mxu0
  %v420 = vadd.f32 %v126, %v419
  %421 = vmatmul.f32.gmra.mxu0 %v163
  %v422 = vpop.f32.mrf.mxu0
  %v423 = vadd.f32 %v126, %v422
  %424 = vmatmul.f32.gmra.mxu0 %v166
  %v425 = vpop.f32.mrf.mxu0
  %v426 = vadd.f32 %v126, %v425
  %427 = vmatmul.f32.gmra.mxu0 %v169
  %v428 = vpop.f32.mrf.mxu0
  %v429 = vadd.f32 %v126, %v428
  %430 = vmatmul.f32.gmra.mxu0 %v172
  %v431 = vpop.f32.mrf.mxu0
  %v432 = vadd.f32 %v126, %v431
  %433 = vmatmul.f32.gmra.mxu0 %v175
  %v434 = vpop.f32.mrf.mxu0
  %v435 = vadd.f32 %v126, %v434
  %436 = vmatmul.f32.gmra.mxu0 %v178
  %v437 = vpop.f32.mrf.mxu0
  %v438 = vadd.f32 %v126, %v437
  %439 = vmatmul.f32.gmra.mxu0 %v181
  %v440 = vpop.f32.mrf.mxu0
  %v441 = vadd.f32 %v126, %v440
  %442 = vmatmul.f32.gmra.mxu0 %v184
  %v443 = vpop.f32.mrf.mxu0
  %v444 = vadd.f32 %v126, %v443
  %445 = vmatmul.f32.gmra.mxu0 %v187
  %v446 = vpop.f32.mrf.mxu0
  %v447 = vadd.f32 %v126, %v446
  %448 = vmatmul.f32.gmra.mxu0 %v190
  %v449 = vpop.f32.mrf.mxu0
  %v450 = vadd.f32 %v126, %v449
  %451 = vmatmul.f32.gmra.mxu0 %v193
  %v452 = vpop.f32.mrf.mxu0
  %v453 = vadd.f32 %v126, %v452
  %454 = vmatmul.f32.gmra.mxu0 %v196
  %v455 = vpop.f32.mrf.mxu0
  %v456 = vadd.f32 %v126, %v455
  %457 = vmatmul.f32.gmra.mxu0 %v199
  %v458 = vpop.f32.mrf.mxu0
  %v459 = vadd.f32 %v126, %v458
  %460 = vmatmul.f32.gmra.mxu0 %v202
  %v461 = vpop.f32.mrf.mxu0
  %v462 = vadd.f32 %v126, %v461
  %463 = vmatmul.f32.gmra.mxu0 %v205
  %v464 = vpop.f32.mrf.mxu0
  %v465 = vadd.f32 %v126, %v464
  %466 = vmatmul.f32.gmra.mxu0 %v208
  %v467 = vpop.f32.mrf.mxu0
  %v468 = vadd.f32 %v126, %v467
  %469 = vmatmul.f32.gmra.mxu0 %v211
  %v470 = vpop.f32.mrf.mxu0
  %v471 = vadd.f32 %v126, %v470
  %472 = vmatmul.f32.gmra.mxu0 %v214
  %v473 = vpop.f32.mrf.mxu0
  %v474 = vadd.f32 %v126, %v473
  %475 = vmatmul.f32.gmra.mxu0 %v217
  %v476 = vpop.f32.mrf.mxu0
  %v477 = vadd.f32 %v126, %v476
  %478 = vmatmul.f32.gmra.mxu0 %v220
  %v479 = vpop.f32.mrf.mxu0
  %v480 = vadd.f32 %v126, %v479
  %481 = vmatmul.f32.gmra.mxu0 %v223
  %v482 = vpop.f32.mrf.mxu0
  %v483 = vadd.f32 %v126, %v482
  %484 = vmatmul.f32.gmra.mxu0 %v226
  %v485 = vpop.f32.mrf.mxu0
  %v486 = vadd.f32 %v126, %v485
  %487 = vmatmul.f32.gmra.mxu0 %v229
  %v488 = vpop.f32.mrf.mxu0
  %v489 = vadd.f32 %v126, %v488
  %490 = vmatmul.f32.gmra.mxu0 %v232
  %v491 = vpop.f32.mrf.mxu0
  %v492 = vadd.f32 %v126, %v491
  %493 = vmatmul.f32.gmra.mxu0 %v235
  %v494 = vpop.f32.mrf.mxu0
  %v495 = vadd.f32 %v126, %v494
  %496 = vmatmul.f32.gmra.mxu0 %v238
  %v497 = vpop.f32.mrf.mxu0
  %v498 = vadd.f32 %v126, %v497
  %499 = vmatmul.f32.gmra.mxu0 %v241
  %v500 = vpop.f32.mrf.mxu0
  %v501 = vadd.f32 %v126, %v500
  %502 = vmatmul.f32.gmra.mxu0 %v244
  %v503 = vpop.f32.mrf.mxu0
  %v504 = vadd.f32 %v126, %v503
  %505 = vmatmul.f32.gmra.mxu0 %v247
  %v506 = vpop.f32.mrf.mxu0
  %v507 = vadd.f32 %v126, %v506
  %508 = vmatmul.f32.gmra.mxu0 %v250
  %v509 = vpop.f32.mrf.mxu0
  %v510 = vadd.f32 %v126, %v509
  %511 = vmatmul.f32.gmra.mxu0 %v253
  %v512 = vpop.f32.mrf.mxu0
  %v513 = vadd.f32 %v126, %v512
  %514 = vmatmul.f32.gmra.mxu0 %v256
  %v515 = vpop.f32.mrf.mxu0
  %v516 = vadd.f32 %v126, %v515
  %517 = vmatmul.f32.gmra.mxu0 %v259
  %v518 = vpop.f32.mrf.mxu0
  %v519 = vadd.f32 %v126, %v518
  %520 = vmatmul.f32.gmra.mxu0 %v262
  %v521 = vpop.f32.mrf.mxu0
  %v522 = vadd.f32 %v126, %v521
  %523 = vmatmul.f32.gmra.mxu0 %v265
  %v524 = vpop.f32.mrf.mxu0
  %v525 = vadd.f32 %v126, %v524
  %526 = vmatmul.f32.gmra.mxu0 %v268
  %v527 = vpop.f32.mrf.mxu0
  %v528 = vadd.f32 %v126, %v527
  %529 = vmatmul.f32.gmra.mxu0 %v271
  %v530 = vpop.f32.mrf.mxu0
  %v531 = vadd.f32 %v126, %v530
  %532 = vmatmul.f32.gmra.mxu0 %v274
  %v533 = vpop.f32.mrf.mxu0
  %v534 = vadd.f32 %v126, %v533
  %535 = vmatmul.f32.gmra.mxu0 %v277
  %v536 = vpop.f32.mrf.mxu0
  %v537 = vadd.f32 %v126, %v536
  %538 = vmatmul.f32.gmra.mxu0 %v280
  %v539 = vpop.f32.mrf.mxu0
  %v540 = vadd.f32 %v126, %v539
  %541 = vmatmul.f32.gmra.mxu0 %v283
  %v542 = vpop.f32.mrf.mxu0
  %v543 = vadd.f32 %v126, %v542
  %544 = vmatmul.f32.gmra.mxu0 %v286
  %v545 = vpop.f32.mrf.mxu0
  %v546 = vadd.f32 %v126, %v545
  %547 = vmatmul.f32.gmra.mxu0 %v289
  %v548 = vpop.f32.mrf.mxu0
  %v549 = vadd.f32 %v126, %v548
  %550 = vmatmul.f32.gmra.mxu0 %v292
  %v551 = vpop.f32.mrf.mxu0
  %v552 = vadd.f32 %v126, %v551
  %553 = vmatmul.f32.gmra.mxu0 %v295
  %v554 = vpop.f32.mrf.mxu0
  %v555 = vadd.f32 %v126, %v554
  %556 = vmatmul.f32.gmra.mxu0 %v298
  %v557 = vpop.f32.mrf.mxu0
  %v558 = vadd.f32 %v126, %v557
  %559 = vmatmul.f32.gmra.mxu0 %v301
  %v560 = vpop.f32.mrf.mxu0
  %v561 = vadd.f32 %v126, %v560
  %562 = vmatmul.f32.gmra.mxu0 %v304
  %v563 = vpop.f32.mrf.mxu0
  %v564 = vadd.f32 %v126, %v563
  %565 = vmatmul.f32.gmra.mxu0 %v307
  %v566 = vpop.f32.mrf.mxu0
  %v567 = vadd.f32 %v126, %v566
  %568 = vmatmul.f32.gmra.mxu0 %v310
  %v569 = vpop.f32.mrf.mxu0
  %v570 = vadd.f32 %v126, %v569
  %571 = vmatmul.f32.gmra.mxu0 %v313
  %v572 = vpop.f32.mrf.mxu0
  %v573 = vadd.f32 %v126, %v572
  %574 = vmatmul.f32.gmra.mxu0 %v316
  %v575 = vpop.f32.mrf.mxu0
  %v576 = vadd.f32 %v126, %v575
  %577 = vmatmul.f32.gmra.mxu0 %v319
  %v578 = vpop.f32.mrf.mxu0
  %v579 = vadd.f32 %v126, %v578
  %580 = vmatmul.f32.gmra.mxu0 %v322
  %v581 = vpop.f32.mrf.mxu0
  %v582 = vadd.f32 %v126, %v581
  %583 = vmatmul.f32.gmra.mxu0 %v325
  %v584 = vpop.f32.mrf.mxu0
  %v585 = vadd.f32 %v126, %v584
  %586 = vmatmul.f32.gmra.mxu0 %v328
  %v587 = vpop.f32.mrf.mxu0
  %v588 = vadd.f32 %v126, %v587
  %589 = vmatmul.f32.gmra.mxu0 %v331
  %v590 = vpop.f32.mrf.mxu0
  %v591 = vadd.f32 %v126, %v590
  %592 = vmatmul.f32.gmra.mxu0 %v334
  %v593 = vpop.f32.mrf.mxu0
  %v594 = vadd.f32 %v126, %v593
  %595 = vmatmul.f32.gmra.mxu0 %v337
  %v596 = vpop.f32.mrf.mxu0
  %v597 = vadd.f32 %v126, %v596
  %598 = vmatmul.f32.gmra.mxu0 %v340
  %v599 = vpop.f32.mrf.mxu0
  %v600 = vadd.f32 %v126, %v599
  %601 = vmatmul.f32.gmra.mxu0 %v343
  %v602 = vpop.f32.mrf.mxu0
  %v603 = vadd.f32 %v126, %v602
  %604 = vmatmul.f32.gmra.mxu0 %v346
  %v605 = vpop.f32.mrf.mxu0
  %v606 = vadd.f32 %v126, %v605
  %607 = vmatmul.f32.gmra.mxu0 %v349
  %v608 = vpop.f32.mrf.mxu0
  %v609 = vadd.f32 %v126, %v608
  %610 = vmatmul.f32.gmra.mxu0 %v352
  %v611 = vpop.f32.mrf.mxu0
  %v612 = vadd.f32 %v126, %v611
  %613 = vmatmul.f32.gmra.mxu0 %v355
  %v614 = vpop.f32.mrf.mxu0
  %v615 = vadd.f32 %v126, %v614
  %616 = vmatmul.f32.gmra.mxu0 %v358
  %v617 = vpop.f32.mrf.mxu0
  %v618 = vadd.f32 %v126, %v617
  %619 = vmatmul.f32.gmra.mxu0 %v361
  %v620 = vpop.f32.mrf.mxu0
  %v621 = vadd.f32 %v126, %v620
  %622 = vmatmul.f32.gmra.mxu0 %v364
  %v623 = vpop.f32.mrf.mxu0
  %v624 = vadd.f32 %v126, %v623
  %625 = vmatmul.f32.gmra.mxu0 %v367
  %v626 = vpop.f32.mrf.mxu0
  %v627 = vadd.f32 %v126, %v626
  %628 = vmatmul.f32.gmra.mxu0 %v370
  %v629 = vpop.f32.mrf.mxu0
  %v630 = vadd.f32 %v126, %v629
  %631 = vdwg.mxu0
  %v632 = vmax.f32 %v390, 0.0
  %v633 = vmax.f32 %v393, 0.0
  %v634 = vmax.f32 %v396, 0.0
  %v635 = vmax.f32 %v399, 0.0
  %v636 = vmax.f32 %v402, 0.0
  %v637 = vmax.f32 %v405, 0.0
  %v638 = vmax.f32 %v408, 0.0
  %v639 = vmax.f32 %v411, 0.0
  %v640 = vmax.f32 %v414, 0.0
  %v641 = vmax.f32 %v417, 0.0
  %v642 = vmax.f32 %v420, 0.0
  %v643 = vmax.f32 %v423, 0.0
  %v644 = vmax.f32 %v426, 0.0
  %v645 = vmax.f32 %v429, 0.0
  %v646 = vmax.f32 %v432, 0.0
  %v647 = vmax.f32 %v435, 0.0
  %v648 = vmax.f32 %v438, 0.0
  %v649 = vmax.f32 %v441, 0.0
  %v650 = vmax.f32 %v444, 0.0
  %v651 = vmax.f32 %v447, 0.0
  %v652 = vmax.f32 %v450, 0.0
  %v653 = vmax.f32 %v453, 0.0
  %v654 = vmax.f32 %v456, 0.0
  %v655 = vmax.f32 %v459, 0.0
  %v656 = vmax.f32 %v462, 0.0
  %v657 = vmax.f32 %v465, 0.0
  %v658 = vmax.f32 %v468, 0.0
  %v659 = vmax.f32 %v471, 0.0
  %v660 = vmax.f32 %v474, 0.0
  %v661 = vmax.f32 %v477, 0.0
  %v662 = vmax.f32 %v480, 0.0
  %v663 = vmax.f32 %v483, 0.0
  %v664 = vmax.f32 %v486, 0.0
  %v665 = vmax.f32 %v489, 0.0
  %v666 = vmax.f32 %v492, 0.0
  %v667 = vmax.f32 %v495, 0.0
  %v668 = vmax.f32 %v498, 0.0
  %v669 = vmax.f32 %v501, 0.0
  %v670 = vmax.f32 %v504, 0.0
  %v671 = vmax.f32 %v507, 0.0
  %v672 = vmax.f32 %v510, 0.0
  %v673 = vmax.f32 %v513, 0.0
  %v674 = vmax.f32 %v516, 0.0
  %v675 = vmax.f32 %v519, 0.0
  %v676 = vmax.f32 %v522, 0.0
  %v677 = vmax.f32 %v525, 0.0
  %v678 = vmax.f32 %v528, 0.0
  %v679 = vmax.f32 %v531, 0.0
  %v680 = vmax.f32 %v534, 0.0
  %v681 = vmax.f32 %v537, 0.0
  %v682 = vmax.f32 %v540, 0.0
  %v683 = vmax.f32 %v543, 0.0
  %v684 = vmax.f32 %v546, 0.0
  %v685 = vmax.f32 %v549, 0.0
  %v686 = vmax.f32 %v552, 0.0
  %v687 = vmax.f32 %v555, 0.0
  %v688 = vmax.f32 %v558, 0.0
  %v689 = vmax.f32 %v561, 0.0
  %v690 = vmax.f32 %v564, 0.0
  %v691 = vmax.f32 %v567, 0.0
  %v692 = vmax.f32 %v570, 0.0
  %v693 = vmax.f32 %v573, 0.0
  %v694 = vmax.f32 %v576, 0.0
  %v695 = vmax.f32 %v579, 0.0
  %v696 = vmax.f32 %v582, 0.0
  %v697 = vmax.f32 %v585, 0.0
  %v698 = vmax.f32 %v588, 0.0
  %v699 = vmax.f32 %v591, 0.0
  %v700 = vmax.f32 %v594, 0.0
  %v701 = vmax.f32 %v597, 0.0
  %v702 = vmax.f32 %v600, 0.0
  %v703 = vmax.f32 %v603, 0.0
  %v704 = vmax.f32 %v606, 0.0
  %v705 = vmax.f32 %v609, 0.0
  %v706 = vmax.f32 %v612, 0.0
  %v707 = vmax.f32 %v615, 0.0
  %v708 = vmax.f32 %v618, 0.0
  %v709 = vmax.f32 %v621, 0.0
  %v710 = vmax.f32 %v624, 0.0
  %v711 = vmax.f32 %v627, 0.0
  %v712 = vmax.f32 %v630, 0.0
  %v713 = vadd.f32 %v632, %v633
  %v714 = vadd.f32 %v713, %v634
  %v715 = vadd.f32 %v714, %v635
  %v716 = vadd.f32 %v715, %v636
  %v717 = vadd.f32 %v716, %v637
  %v718 = vadd.f32 %v717, %v638
  %v719 = vadd.f32 %v718, %v639
  %v720 = vadd.f32 %v719, %v640
  %v721 = vadd.f32 %v720, %v641
  %v722 = vadd.f32 %v721, %v642
  %v723 = vadd.f32 %v722, %v643
  %v724 = vadd.f32 %v723, %v644
  %v725 = vadd.f32 %v724, %v645
  %v726 = vadd.f32 %v725, %v646
  %v727 = vadd.f32 %v726, %v647
  %v728 = vadd.f32 %v727, %v648
  %v729 = vadd.f32 %v728, %v649
  %v730 = vadd.f32 %v729, %v650
  %v731 = vadd.f32 %v730, %v651
  %v732 = vadd.f32 %v731, %v652
  %v733 = vadd.f32 %v732, %v653
  %v734 = vadd.f32 %v733, %v654
  %v735 = vadd.f32 %v734, %v655
  %v736 = vadd.f32 %v735, %v656
  %v737 = vadd.f32 %v736, %v657
  %v738 = vadd.f32 %v737, %v658
  %v739 = vadd.f32 %v738, %v659
  %v740 = vadd.f32 %v739, %v660
  %v741 = vadd.f32 %v740, %v661
  %v742 = vadd.f32 %v741, %v662
  %v743 = vadd.f32 %v742, %v663
  %v744 = vadd.f32 %v743, %v664
  %v745 = vadd.f32 %v744, %v665
  %v746 = vadd.f32 %v745, %v666
  %v747 = vadd.f32 %v746, %v667
  %v748 = vadd.f32 %v747, %v668
  %v749 = vadd.f32 %v748, %v669
  %v750 = vadd.f32 %v749, %v670
  %v751 = vadd.f32 %v750, %v671
  %v752 = vadd.f32 %v751, %v672
  %v753 = vadd.f32 %v752, %v673
  %v754 = vadd.f32 %v753, %v674
  %v755 = vadd.f32 %v754, %v675
  %v756 = vadd.f32 %v755, %v676
  %v757 = vadd.f32 %v756, %v677
  %v758 = vadd.f32 %v757, %v678
  %v759 = vadd.f32 %v758, %v679
  %v760 = vadd.f32 %v759, %v680
  %v761 = vadd.f32 %v760, %v681
  %v762 = vadd.f32 %v761, %v682
  %v763 = vadd.f32 %v762, %v683
  %v764 = vadd.f32 %v763, %v684
  %v765 = vadd.f32 %v764, %v685
  %v766 = vadd.f32 %v765, %v686
  %v767 = vadd.f32 %v766, %v687
  %v768 = vadd.f32 %v767, %v688
  %v769 = vadd.f32 %v768, %v689
  %v770 = vadd.f32 %v769, %v690
  %v771 = vadd.f32 %v770, %v691
  %v772 = vadd.f32 %v771, %v692
  %v773 = vadd.f32 %v772, %v693
  %v774 = vadd.f32 %v773, %v694
  %v775 = vadd.f32 %v774, %v695
  %v776 = vadd.f32 %v775, %v696
  %v777 = vadd.f32 %v776, %v697
  %v778 = vadd.f32 %v777, %v698
  %v779 = vadd.f32 %v778, %v699
  %v780 = vadd.f32 %v779, %v700
  %v781 = vadd.f32 %v780, %v701
  %v782 = vadd.f32 %v781, %v702
  %v783 = vadd.f32 %v782, %v703
  %v784 = vadd.f32 %v783, %v704
  %v785 = vadd.f32 %v784, %v705
  %v786 = vadd.f32 %v785, %v706
  %v787 = vadd.f32 %v786, %v707
  %v788 = vadd.f32 %v787, %v708
  %v789 = vadd.f32 %v788, %v709
  %v790 = vadd.f32 %v789, %v710
  %v791 = vadd.f32 %v790, %v711
  %v792 = vadd.f32 %v791, %v712
  %v793 = vrot.slane %v792, 4
  %v794 = vadd.f32 %v792, %v793
  %v795 = vrot.slane %v794, 2
  %v796 = vadd.f32 %v794, %v795
  %v797 = vrot.slane %v796, 1
  %v798 = vadd.f32 %v796, %v797
  %v799 = vmul.f32 %v798, 0.0015432099
  %v800 = vmul.f32 %v632, %v632
  %v801 = vmul.f32 %v633, %v633
  %v802 = vmul.f32 %v634, %v634
  %v803 = vmul.f32 %v635, %v635
  %v804 = vmul.f32 %v636, %v636
  %v805 = vmul.f32 %v637, %v637
  %v806 = vmul.f32 %v638, %v638
  %v807 = vmul.f32 %v639, %v639
  %v808 = vmul.f32 %v640, %v640
  %v809 = vmul.f32 %v641, %v641
  %v810 = vmul.f32 %v642, %v642
  %v811 = vmul.f32 %v643, %v643
  %v812 = vmul.f32 %v644, %v644
  %v813 = vmul.f32 %v645, %v645
  %v814 = vmul.f32 %v646, %v646
  %v815 = vmul.f32 %v647, %v647
  %v816 = vmul.f32 %v648, %v648
  %v817 = vmul.f32 %v649, %v649
  %v818 = vmul.f32 %v650, %v650
  %v819 = vmul.f32 %v651, %v651
  %v820 = vmul.f32 %v652, %v652
  %v821 = vmul.f32 %v653, %v653
  %v822 = vmul.f32 %v654, %v654
  %v823 = vmul.f32 %v655, %v655
  %v824 = vmul.f32 %v656, %v656
  %v825 = vmul.f32 %v657, %v657
  %v826 = vmul.f32 %v658, %v658
  %v827 = vmul.f32 %v659, %v659
  %v828 = vmul.f32 %v660, %v660
  %v829 = vmul.f32 %v661, %v661
  %v830 = vmul.f32 %v662, %v662
  %v831 = vmul.f32 %v663, %v663
  %v832 = vmul.f32 %v664, %v664
  %v833 = vmul.f32 %v665, %v665
  %v834 = vmul.f32 %v666, %v666
  %v835 = vmul.f32 %v667, %v667
  %v836 = vmul.f32 %v668, %v668
  %v837 = vmul.f32 %v669, %v669
  %v838 = vmul.f32 %v670, %v670
  %v839 = vmul.f32 %v671, %v671
  %v840 = vmul.f32 %v672, %v672
  %v841 = vmul.f32 %v673, %v673
  %v842 = vmul.f32 %v674, %v674
  %v843 = vmul.f32 %v675, %v675
  %v844 = vmul.f32 %v676, %v676
  %v845 = vmul.f32 %v677, %v677
  %v846 = vmul.f32 %v678, %v678
  %v847 = vmul.f32 %v679, %v679
  %v848 = vmul.f32 %v680, %v680
  %v849 = vmul.f32 %v681, %v681
  %v850 = vmul.f32 %v682, %v682
  %v851 = vmul.f32 %v683, %v683
  %v852 = vmul.f32 %v684, %v684
  %v853 = vmul.f32 %v685, %v685
  %v854 = vmul.f32 %v686, %v686
  %v855 = vmul.f32 %v687, %v687
  %v856 = vmul.f32 %v688, %v688
  %v857 = vmul.f32 %v689, %v689
  %v858 = vmul.f32 %v690, %v690
  %v859 = vmul.f32 %v691, %v691
  %v860 = vmul.f32 %v692, %v692
  %v861 = vmul.f32 %v693, %v693
  %v862 = vmul.f32 %v694, %v694
  %v863 = vmul.f32 %v695, %v695
  %v864 = vmul.f32 %v696, %v696
  %v865 = vmul.f32 %v697, %v697
  %v866 = vmul.f32 %v698, %v698
  %v867 = vmul.f32 %v699, %v699
  %v868 = vmul.f32 %v700, %v700
  %v869 = vmul.f32 %v701, %v701
  %v870 = vmul.f32 %v702, %v702
  %v871 = vmul.f32 %v703, %v703
  %v872 = vmul.f32 %v704, %v704
  %v873 = vmul.f32 %v705, %v705
  %v874 = vmul.f32 %v706, %v706
  %v875 = vmul.f32 %v707, %v707
  %v876 = vmul.f32 %v708, %v708
  %v877 = vmul.f32 %v709, %v709
  %v878 = vmul.f32 %v710, %v710
  %v879 = vmul.f32 %v711, %v711
  %v880 = vmul.f32 %v712, %v712
  %v881 = vadd.f32 %v800, %v801
  %v882 = vadd.f32 %v881, %v802
  %v883 = vadd.f32 %v882, %v803
  %v884 = vadd.f32 %v883, %v804
  %v885 = vadd.f32 %v884, %v805
  %v886 = vadd.f32 %v885, %v806
  %v887 = vadd.f32 %v886, %v807
  %v888 = vadd.f32 %v887, %v808
  %v889 = vadd.f32 %v888, %v809
  %v890 = vadd.f32 %v889, %v810
  %v891 = vadd.f32 %v890, %v811
  %v892 = vadd.f32 %v891, %v812
  %v893 = vadd.f32 %v892, %v813
  %v894 = vadd.f32 %v893, %v814
  %v895 = vadd.f32 %v894, %v815
  %v896 = vadd.f32 %v895, %v816
  %v897 = vadd.f32 %v896, %v817
  %v898 = vadd.f32 %v897, %v818
  %v899 = vadd.f32 %v898, %v819
  %v900 = vadd.f32 %v899, %v820
  %v901 = vadd.f32 %v900, %v821
  %v902 = vadd.f32 %v901, %v822
  %v903 = vadd.f32 %v902, %v823
  %v904 = vadd.f32 %v903, %v824
  %v905 = vadd.f32 %v904, %v825
  %v906 = vadd.f32 %v905, %v826
  %v907 = vadd.f32 %v906, %v827
  %v908 = vadd.f32 %v907, %v828
  %v909 = vadd.f32 %v908, %v829
  %v910 = vadd.f32 %v909, %v830
  %v911 = vadd.f32 %v910, %v831
  %v912 = vadd.f32 %v911, %v832
  %v913 = vadd.f32 %v912, %v833
  %v914 = vadd.f32 %v913, %v834
  %v915 = vadd.f32 %v914, %v835
  %v916 = vadd.f32 %v915, %v836
  %v917 = vadd.f32 %v916, %v837
  %v918 = vadd.f32 %v917, %v838
  %v919 = vadd.f32 %v918, %v839
  %v920 = vadd.f32 %v919, %v840
  %v921 = vadd.f32 %v920, %v841
  %v922 = vadd.f32 %v921, %v842
  %v923 = vadd.f32 %v922, %v843
  %v924 = vadd.f32 %v923, %v844
  %v925 = vadd.f32 %v924, %v845
  %v926 = vadd.f32 %v925, %v846
  %v927 = vadd.f32 %v926, %v847
  %v928 = vadd.f32 %v927, %v848
  %v929 = vadd.f32 %v928, %v849
  %v930 = vadd.f32 %v929, %v850
  %v931 = vadd.f32 %v930, %v851
  %v932 = vadd.f32 %v931, %v852
  %v933 = vadd.f32 %v932, %v853
  %v934 = vadd.f32 %v933, %v854
  %v935 = vadd.f32 %v934, %v855
  %v936 = vadd.f32 %v935, %v856
  %v937 = vadd.f32 %v936, %v857
  %v938 = vadd.f32 %v937, %v858
  %v939 = vadd.f32 %v938, %v859
  %v940 = vadd.f32 %v939, %v860
  %v941 = vadd.f32 %v940, %v861
  %v942 = vadd.f32 %v941, %v862
  %v943 = vadd.f32 %v942, %v863
  %v944 = vadd.f32 %v943, %v864
  %v945 = vadd.f32 %v944, %v865
  %v946 = vadd.f32 %v945, %v866
  %v947 = vadd.f32 %v946, %v867
  %v948 = vadd.f32 %v947, %v868
  %v949 = vadd.f32 %v948, %v869
  %v950 = vadd.f32 %v949, %v870
  %v951 = vadd.f32 %v950, %v871
  %v952 = vadd.f32 %v951, %v872
  %v953 = vadd.f32 %v952, %v873
  %v954 = vadd.f32 %v953, %v874
  %v955 = vadd.f32 %v954, %v875
  %v956 = vadd.f32 %v955, %v876
  %v957 = vadd.f32 %v956, %v877
  %v958 = vadd.f32 %v957, %v878
  %v959 = vadd.f32 %v958, %v879
  %v960 = vadd.f32 %v959, %v880
  %v961 = vrot.slane %v960, 4
  %v962 = vadd.f32 %v960, %v961
  %v963 = vrot.slane %v962, 2
  %v964 = vadd.f32 %v962, %v963
  %v965 = vrot.slane %v964, 1
  %v966 = vadd.f32 %v964, %v965
  %v967 = vmul.f32 %v966, 0.0015432099
  %v968 = vmul.f32 %v799, %v799
  %v969 = vsub.f32 %v967, %v968
  %v970 = vadd.f32 %v969, 1e-05
  %v971 = vrsqrt.pop %v970
  %v972 = vmul.f32 %v971, %v970
  %v973 = vmul.f32 %v972, %v971
  %v974 = vmul.f32 0.5, %v973
  %v975 = vsub.f32 1.5, %v974
  %v976 = vmul.f32 %v971, %v975
  %vm977 = vweird.f32 %v970
  %vm978 = vweird.f32 %v971
  %vm979 = vmor %vm977, %vm978
  %v980 = vsel %vm979, %v971, %v976
  %vm1002 = vcmask 1045504
  %v1003 = vrot.slane %v652, 2
  %v1004 = vrot.slane %v653, 2
  %v1005 = vsel %vm1002, %v1003, %v1004
  %v1006 = vrot.slane %v654, 2
  %v1007 = vsel %vm1002, %v1004, %v1006
  %v1008 = vrot.slane %v655, 2
  %v1009 = vsel %vm1002, %v1006, %v1008
  %v1010 = vrot.slane %v656, 2
  %v1011 = vsel %vm1002, %v1008, %v1010
  %v1012 = vrot.slane %v657, 2
  %v1013 = vsel %vm1002, %v1010, %v1012
  %v1014 = vrot.slane %v658, 2
  %v1015 = vsel %vm1002, %v1012, %v1014
  %v1016 = vrot.slane %v659, 2
  %v1017 = vsel %vm1002, %v1014, %v1016
  %v1018 = vrot.slane %v660, 2
  %v1019 = vsel %vm1002, %v1016, %v1018
  %v1020 = vrot.slane %v661, 2
  %v1021 = vsel %vm1002, %v1018, %v1020
  %v1022 = vrot.slane %v662, 2
  %v1023 = vsel %vm1002, %v1020, %v1022
  %v1024 = vrot.slane %v663, 2
  %v1025 = vsel %vm1002, %v1022, %v1024
  %v1026 = vrot.slane %v664, 2
  %v1027 = vsel %vm1002, %v1024, %v1026
  %v1028 = vrot.slane %v665, 2
  %v1029 = vsel %vm1002, %v1026, %v1028
  %v1030 = vrot.slane %v666, 2
  %v1031 = vsel %vm1002, %v1028, %v1030
  %v1032 = vrot.slane %v667, 2
  %v1033 = vsel %vm1002, %v1030, %v1032
  %v1034 = vrot.slane %v668, 2
  %v1035 = vsel %vm1002, %v1032, %v1034
  %v1036 = vrot.slane %v669, 2
  %v1037 = vsel %vm1002, %v1034, %v1036
  %v1038 = vrot.slane %v670, 2
  %v1039 = vsel %vm1002, %v1036, %v1038
  %v1040 = vrot.slane %v671, 2
  %v1041 = vsel %vm1002, %v1038, %v1040
  %v1042 = vrot.slane %v672, 2
  %v1043 = vsel %vm1002, %v1040, %v1042
  %v1065 = vmax.f32 %v632, %v1005
  %v1066 = vmax.f32 %v633, %v1007
  %v1067 = vmax.f32 %v634, %v1009
  %v1068 = vmax.f32 %v635, %v1011
  %v1069 = vmax.f32 %v636, %v1013
  %v1070 = vmax.f32 %v637, %v1015
  %v1071 = vmax.f32 %v638, %v1017
  %v1072 = vmax.f32 %v639, %v1019
  %v1073 = vmax.f32 %v640, %v1021
  %v1074 = vmax.f32 %v641, %v1023
  %v1075 = vmax.f32 %v642, %v1025
  %v1076 = vmax.f32 %v643, %v1027
  %v1077 = vmax.f32 %v644, %v1029
  %v1078 = vmax.f32 %v645, %v1031
  %v1079 = vmax.f32 %v646, %v1033
  %v1080 = vmax.f32 %v647, %v1035
  %v1081 = vmax.f32 %v648, %v1037
  %v1082 = vmax.f32 %v649, %v1039
  %v1083 = vmax.f32 %v650, %v1041
  %v1084 = vmax.f32 %v651, %v1043
  %v1085 = vmax.f32 %v652, %v1042
  %v1107 = vrot.slane %v692, 2
  %v1108 = vrot.slane %v693, 2
  %v1109 = vsel %vm1002, %v1107, %v1108
  %v1110 = vrot.slane %v694, 2
  %v1111 = vsel %vm1002, %v1108, %v1110
  %v1112 = vrot.slane %v695, 2
  %v1113 = vsel %vm1002, %v1110, %v1112
  %v1114 = vrot.slane %v696, 2
  %v1115 = vsel %vm1002, %v1112, %v1114
  %v1116 = vrot.slane %v697, 2
  %v1117 = vsel %vm1002, %v1114, %v1116
  %v1118 = vrot.slane %v698, 2
  %v1119 = vsel %vm1002, %v1116, %v1118
  %v1120 = vrot.slane %v699, 2
  %v1121 = vsel %vm1002, %v1118, %v1120
  %v1122 = vrot.slane %v700, 2
  %v1123 = vsel %vm1002, %v1120, %v1122
  %v1124 = vrot.slane %v701, 2
  %v1125 = vsel %vm1002, %v1122, %v1124
  %v1126 = vrot.slane %v702, 2
  %v1127 = vsel %vm1002, %v1124, %v1126
  %v1128 = vrot.slane %v703, 2
  %v1129 = vsel %vm1002, %v1126, %v1128
  %v1130 = vrot.slane %v704, 2
  %v1131 = vsel %vm1002, %v1128, %v1130
  %v1132 = vrot.slane %v705, 2
  %v1133 = vsel %vm1002, %v1130, %v1132
  %v1134 = vrot.slane %v706, 2
  %v1135 = vsel %vm1002, %v1132, %v1134
  %v1136 = vrot.slane %v707, 2
  %v1137 = vsel %vm1002, %v1134, %v1136
  %v1138 = vrot.slane %v708, 2
  %v1139 = vsel %vm1002, %v1136, %v1138
  %v1140 = vrot.slane %v709, 2
  %v1141 = vsel %vm1002, %v1138, %v1140
  %v1142 = vrot.slane %v710, 2
  %v1143 = vsel %vm1002, %v1140, %v1142
  %v1144 = vrot.slane %v711, 2
  %v1145 = vsel %vm1002, %v1142, %v1144
  %v1146 = vrot.slane %v712, 2
  %v1147 = vsel %vm1002, %v1144, %v1146
  %v1169 = vmax.f32 %v672, %v1109
  %v1170 = vmax.f32 %v673, %v1111
  %v1171 = vmax.f32 %v674, %v1113
  %v1172 = vmax.f32 %v675, %v1115
  %v1173 = vmax.f32 %v676, %v1117
  %v1174 = vmax.f32 %v677, %v1119
  %v1175 = vmax.f32 %v678, %v1121
  %v1176 = vmax.f32 %v679, %v1123
  %v1177 = vmax.f32 %v680, %v1125
  %v1178 = vmax.f32 %v681, %v1127
  %v1179 = vmax.f32 %v682, %v1129
  %v1180 = vmax.f32 %v683, %v1131
  %v1181 = vmax.f32 %v684, %v1133
  %v1182 = vmax.f32 %v685, %v1135
  %v1183 = vmax.f32 %v686, %v1137
  %v1184 = vmax.f32 %v687, %v1139
  %v1185 = vmax.f32 %v688, %v1141
  %v1186 = vmax.f32 %v689, %v1143
  %v1187 = vmax.f32 %v690, %v1145
  %v1188 = vmax.f32 %v691, %v1147
  %v1189 = vmax.f32 %v692, %v1146
  %vm1211 = vcmask 1043456
  %v1212 = vrot.slane %v1169, 4
  %v1213 = vrot.slane %v1170, 4
  %v1214 = vsel %vm1211, %v1212, %v1213
  %v1215 = vrot.slane %v1171, 4
  %v1216 = vsel %vm1211, %v1213, %v1215
  %v1217 = vrot.slane %v1172, 4
  %v1218 = vsel %vm1211, %v1215, %v1217
  %v1219 = vrot.slane %v1173, 4
  %v1220 = vsel %vm1211, %v1217, %v1219
  %v1221 = vrot.slane %v1174, 4
  %v1222 = vsel %vm1211, %v1219, %v1221
  %v1223 = vrot.slane %v1175, 4
  %v1224 = vsel %vm1211, %v1221, %v1223
  %v1225 = vrot.slane %v1176, 4
  %v1226 = vsel %vm1211, %v1223, %v1225
  %v1227 = vrot.slane %v1177, 4
  %v1228 = vsel %vm1211, %v1225, %v1227
  %v1229 = vrot.slane %v1178, 4
  %v1230 = vsel %vm1211, %v1227, %v1229
  %v1231 = vrot.slane %v1179, 4
  %v1232 = vsel %vm1211, %v1229, %v1231
  %v1233 = vrot.slane %v1180, 4
  %v1234 = vsel %vm1211, %v1231, %v1233
  %v1235 = vrot.slane %v1181, 4
  %v1236 = vsel %vm1211, %v1233, %v1235
  %v1237 = vrot.slane %v1182, 4
  %v1238 = vsel %vm1211, %v1235, %v1237
  %v1239 = vrot.slane %v1183, 4
  %v1240 = vsel %vm1211, %v1237, %v1239
  %v1241 = vrot.slane %v1184, 4
  %v1242 = vsel %vm1211, %v1239, %v1241
  %v1243 = vrot.slane %v1185, 4
  %v1244 = vsel %vm1211, %v1241, %v1243
  %v1245 = vrot.slane %v1186, 4
  %v1246 = vsel %vm1211, %v1243, %v1245
  %v1247 = vrot.slane %v1187, 4
  %v1248 = vsel %vm1211, %v1245, %v1247
  %v1249 = vrot.slane %v1188, 4
  %v1250 = vsel %vm1211, %v1247, %v1249
  %v1251 = vrot.slane %v1189, 4
  %v1252 = vsel %vm1211, %v1249, %v1251
  %v1274 = vmax.f32 %v1065, %v1214
  %v1275 = vmax.f32 %v1066, %v1216
  %v1276 = vmax.f32 %v1067, %v1218
  %v1277 = vmax.f32 %v1068, %v1220
  %v1278 = vmax.f32 %v1069, %v1222
  %v1279 = vmax.f32 %v1070, %v1224
  %v1280 = vmax.f32 %v1071, %v1226
  %v1281 = vmax.f32 %v1072, %v1228
  %v1282 = vmax.f32 %v1073, %v1230
  %v1283 = vmax.f32 %v1074, %v1232
  %v1284 = vmax.f32 %v1075, %v1234
  %v1285 = vmax.f32 %v1076, %v1236
  %v1286 = vmax.f32 %v1077, %v1238
  %v1287 = vmax.f32 %v1078, %v1240
  %v1288 = vmax.f32 %v1079, %v1242
  %v1289 = vmax.f32 %v1080, %v1244
  %v1290 = vmax.f32 %v1081, %v1246
  %v1291 = vmax.f32 %v1082, %v1248
  %v1292 = vmax.f32 %v1083, %v1250
  %v1293 = vmax.f32 %v1084, %v1252
  %v1294 = vmax.f32 %v1085, %v1251
  %v1295 = vsub.f32 %v1274, %v799
  %v1296 = vsub.f32 %v1275, %v799
  %v1297 = vsub.f32 %v1276, %v799
  %v1298 = vsub.f32 %v1277, %v799
  %v1299 = vsub.f32 %v1278, %v799
  %v1300 = vsub.f32 %v1279, %v799
  %v1301 = vsub.f32 %v1280, %v799
  %v1302 = vsub.f32 %v1281, %v799
  %v1303 = vsub.f32 %v1282, %v799
  %v1304 = vsub.f32 %v1283, %v799
  %v1305 = vsub.f32 %v1284, %v799
  %v1306 = vsub.f32 %v1285, %v799
  %v1307 = vsub.f32 %v1286, %v799
  %v1308 = vsub.f32 %v1287, %v799
  %v1309 = vsub.f32 %v1288, %v799
  %v1310 = vsub.f32 %v1289, %v799
  %v1311 = vsub.f32 %v1290, %v799
  %v1312 = vsub.f32 %v1291, %v799
  %v1313 = vsub.f32 %v1292, %v799
  %v1314 = vsub.f32 %v1293, %v799
  %v1315 = vsub.f32 %v1294, %v799
  %v1316 = vmul.f32 %v1295, %v980
  %v1317 = vmul.f32 %v1296, %v980
  %v1318 = vmul.f32 %v1297, %v980
  %v1319 = vmul.f32 %v1298, %v980
  %v1320 = vmul.f32 %v1299, %v980
  %v1321 = vmul.f32 %v1300, %v980
  %v1322 = vmul.f32 %v1301, %v980
  %v1323 = vmul.f32 %v1302, %v980
  %v1324 = vmul.f32 %v1303, %v980
  %v1325 = vmul.f32 %v1304, %v980
  %v1326 = vmul.f32 %v1305, %v980
  %v1327 = vmul.f32 %v1306, %v980
  %v1328 = vmul.f32 %v1307, %v980
  %v1329 = vmul.f32 %v1308, %v980
  %v1330 = vmul.f32 %v1309, %v980
  %v1331 = vmul.f32 %v1310, %v980
  %v1332 = vmul.f32 %v1311, %v980
  %v1333 = vmul.f32 %v1312, %v980
  %v1334 = vmul.f32 %v1313, %v980
  %v1335 = vmul.f32 %v1314, %v980
  %v1336 = vmul.f32 %v1315, %v980
  %v1337 = vld [vmem:[%s3] sm:$0xff]
  %v1338 = vld [vmem:[%s3 + $0x8] sm:$0xff]
  %v1339 = vld [vmem:[%s3 + $0x10] sm:$0xff]
  %v1340 = vld [vmem:[%s3 + $0x18] sm:$0xff]
  %v1341 = vld [vmem:[%s3 + $0x20] sm:$0xff]
  %v1342 = vld [vmem:[%s3 + $0x28] sm:$0xff]
  %v1343 = vld [vmem:[%s3 + $0x30] sm:$0xff]
  %v1344 = vld [vmem:[%s3 + $0x38] sm:$0xff]
  %v1345 = vld [vmem:[%s3 + $0x40] sm:$0xff]
  %v1346 = vld [vmem:[%s3 + $0x48] sm:$0xff]
  %v1347 = vld [vmem:[%s3 + $0x50] sm:$0xff]
  %v1348 = vld [vmem:[%s3 + $0x58] sm:$0xff]
  %v1349 = vld [vmem:[%s3 + $0x60] sm:$0xff]
  %v1350 = vld [vmem:[%s3 + $0x68] sm:$0xff]
  %v1351 = vld [vmem:[%s3 + $0x70] sm:$0xff]
  %v1352 = vld [vmem:[%s3 + $0x78] sm:$0xff]
  %v1353 = vld [vmem:[%s3 + $0x80] sm:$0xff]
  %v1354 = vld [vmem:[%s3 + $0x88] sm:$0xff]
  %v1355 = vld [vmem:[%s3 + $0x90] sm:$0xff]
  %v1356 = vld [vmem:[%s3 + $0x98] sm:$0xff]
  %v1357 = vld [vmem:[%s3 + $0xa0] sm:$0xff]
  %v1358 = vld [vmem:[%s3 + $0xa8] sm:$0xff]
  %v1359 = vld [vmem:[%s3 + $0xb0] sm:$0xff]
  %v1360 = vld [vmem:[%s3 + $0xb8] sm:$0xff]
  %v1361 = vld [vmem:[%s3 + $0xc0] sm:$0xff]
  %v1362 = vld [vmem:[%s3 + $0xc8] sm:$0xff]
  %v1363 = vld [vmem:[%s3 + $0xd0] sm:$0xff]
  %v1364 = vld [vmem:[%s3 + $0xd8] sm:$0xff]
  %v1365 = vld [vmem:[%s3 + $0xe0] sm:$0xff]
  %v1366 = vld [vmem:[%s3 + $0xe8] sm:$0xff]
  %v1367 = vld [vmem:[%s3 + $0xf0] sm:$0xff]
  %v1368 = vld [vmem:[%s3 + $0xf8] sm:$0xff]
  %v1369 = vld [vmem:[%s3 + $0x100] sm:$0xff]
  %v1370 = vld [vmem:[%s3 + $0x108] sm:$0xff]
  %v1371 = vld [vmem:[%s3 + $0x110] sm:$0xff]
  %v1372 = vld [vmem:[%s3 + $0x118] sm:$0xff]
  %v1373 = vld [vmem:[%s3 + $0x120] sm:$0xff]
  %v1374 = vld [vmem:[%s3 + $0x128] sm:$0xff]
  %v1375 = vld [vmem:[%s3 + $0x130] sm:$0xff]
  %v1376 = vld [vmem:[%s3 + $0x138] sm:$0xff]
  %v1377 = vld [vmem:[%s3 + $0x140] sm:$0xff]
  %v1378 = vld [vmem:[%s3 + $0x148] sm:$0xff]
  %v1379 = vld [vmem:[%s3 + $0x150] sm:$0xff]
  %v1380 = vld [vmem:[%s3 + $0x158] sm:$0xff]
  %v1381 = vld [vmem:[%s3 + $0x160] sm:$0xff]
  %v1382 = vld [vmem:[%s3 + $0x168] sm:$0xff]
  %v1383 = vld [vmem:[%s3 + $0x170] sm:$0xff]
  %v1384 = vld [vmem:[%s3 + $0x178] sm:$0xff]
  %v1385 = vld [vmem:[%s3 + $0x180] sm:$0xff]
  %v1386 = vld [vmem:[%s3 + $0x188] sm:$0xff]
  %v1387 = vld [vmem:[%s3 + $0x190] sm:$0xff]
  %v1388 = vld [vmem:[%s3 + $0x198] sm:$0xff]
  %v1389 = vld [vmem:[%s3 + $0x1a0] sm:$0xff]
  %v1390 = vld [vmem:[%s3 + $0x1a8] sm:$0xff]
  %v1391 = vld [vmem:[%s3 + $0x1b0] sm:$0xff]
  %v1392 = vld [vmem:[%s3 + $0x1b8] sm:$0xff]
  %v1393 = vld [vmem:[%s3 + $0x1c0] sm:$0xff]
  %v1394 = vld [vmem:[%s3 + $0x1c8] sm:$0xff]
  %v1395 = vld [vmem:[%s3 + $0x1d0] sm:$0xff]
  %v1396 = vld [vmem:[%s3 + $0x1d8] sm:$0xff]
  %v1397 = vld [vmem:[%s3 + $0x1e0] sm:$0xff]
  %v1398 = vld [vmem:[%s3 + $0x1e8] sm:$0xff]
  %v1399 = vld [vmem:[%s3 + $0x1f0] sm:$0xff]
  %v1400 = vld [vmem:[%s3 + $0x1f8] sm:$0xff]
  %vm1421 = vcmask 1046528
  %v1422 = vrot.slane %v1316, 1
  %v1423 = vrot.slane %v1317, 1
  %v1424 = vsel %vm1421, %v1422, %v1423
  %v1425 = vrot.slane %v1318, 1
  %v1426 = vsel %vm1421, %v1423, %v1425
  %v1427 = vrot.slane %v1319, 1
  %v1428 = vsel %vm1421, %v1425, %v1427
  %v1429 = vrot.slane %v1320, 1
  %v1430 = vsel %vm1421, %v1427, %v1429
  %v1431 = vrot.slane %v1321, 1
  %v1432 = vsel %vm1421, %v1429, %v1431
  %v1433 = vrot.slane %v1322, 1
  %v1434 = vsel %vm1421, %v1431, %v1433
  %v1435 = vrot.slane %v1323, 1
  %v1436 = vsel %vm1421, %v1433, %v1435
  %v1437 = vrot.slane %v1324, 1
  %v1438 = vsel %vm1421, %v1435, %v1437
  %v1439 = vrot.slane %v1325, 1
  %v1440 = vsel %vm1421, %v1437, %v1439
  %v1441 = vrot.slane %v1326, 1
  %v1442 = vsel %vm1421, %v1439, %v1441
  %v1443 = vrot.slane %v1327, 1
  %v1444 = vsel %vm1421, %v1441, %v1443
  %v1445 = vrot.slane %v1328, 1
  %v1446 = vsel %vm1421, %v1443, %v1445
  %v1447 = vrot.slane %v1329, 1
  %v1448 = vsel %vm1421, %v1445, %v1447
  %v1449 = vrot.slane %v1330, 1
  %v1450 = vsel %vm1421, %v1447, %v1449
  %v1451 = vrot.slane %v1331, 1
  %v1452 = vsel %vm1421, %v1449, %v1451
  %v1453 = vrot.slane %v1332, 1
  %v1454 = vsel %vm1421, %v1451, %v1453
  %v1455 = vrot.slane %v1333, 1
  %v1456 = vsel %vm1421, %v1453, %v1455
  %v1457 = vrot.slane %v1334, 1
  %v1458 = vsel %vm1421, %v1455, %v1457
  %v1459 = vrot.slane %v1335, 1
  %v1460 = vsel %vm1421, %v1457, %v1459
  %1480 = vmatpush.msra.mxu0 %v1368
  %1481 = vmatpush.msra.mxu0 %v1367
  %1482 = vmatpush.msra.mxu0 %v1366
  %1483 = vmatpush.msra.mxu0 %v1365
  %1484 = vmatpush.msra.mxu0 %v1364
  %1485 = vmatpush.msra.mxu0 %v1363
  %1486 = vmatpush.msra.mxu0 %v1362
  %1487 = vmatpush.msra.mxu0 %v1361
  %1488 = vmatpush.msra.mxu0 %v1360
  %1489 = vmatpush.msra.mxu0 %v1359
  %1490 = vmatpush.msra.mxu0 %v1358
  %1491 = vmatpush.msra.mxu0 %v1357
  %1492 = vmatpush.msra.mxu0 %v1356
  %1493 = vmatpush.msra.mxu0 %v1355
  %1494 = vmatpush.msra.mxu0 %v1354
  %1495 = vmatpush.msra.mxu0 %v1353
  %1496 = vmatmul.f32.gmra.mxu0 %v1424
  %v1497 = vpop.f32.mrf.mxu0
  %v1498 = vadd.f32 0.0, %v1497
  %1499 = vmatmul.f32.gmra.mxu0 %v1426
  %v1500 = vpop.f32.mrf.mxu0
  %v1501 = vadd.f32 0.0, %v1500
  %1502 = vmatmul.f32.gmra.mxu0 %v1428
  %v1503 = vpop.f32.mrf.mxu0
  %v1504 = vadd.f32 0.0, %v1503
  %1505 = vmatmul.f32.gmra.mxu0 %v1430
  %v1506 = vpop.f32.mrf.mxu0
  %v1507 = vadd.f32 0.0, %v1506
  %1508 = vmatmul.f32.gmra.mxu0 %v1432
  %v1509 = vpop.f32.mrf.mxu0
  %v1510 = vadd.f32 0.0, %v1509
  %1511 = vmatmul.f32.gmra.mxu0 %v1434
  %v1512 = vpop.f32.mrf.mxu0
  %v1513 = vadd.f32 0.0, %v1512
  %1514 = vmatmul.f32.gmra.mxu0 %v1436
  %v1515 = vpop.f32.mrf.mxu0
  %v1516 = vadd.f32 0.0, %v1515
  %1517 = vmatmul.f32.gmra.mxu0 %v1438
  %v1518 = vpop.f32.mrf.mxu0
  %v1519 = vadd.f32 0.0, %v1518
  %1520 = vmatmul.f32.gmra.mxu0 %v1440
  %v1521 = vpop.f32.mrf.mxu0
  %v1522 = vadd.f32 0.0, %v1521
  %1523 = vmatmul.f32.gmra.mxu0 %v1442
  %v1524 = vpop.f32.mrf.mxu0
  %v1525 = vadd.f32 0.0, %v1524
  %1526 = vmatmul.f32.gmra.mxu0 %v1444
  %v1527 = vpop.f32.mrf.mxu0
  %v1528 = vadd.f32 0.0, %v1527
  %1529 = vmatmul.f32.gmra.mxu0 %v1446
  %v1530 = vpop.f32.mrf.mxu0
  %v1531 = vadd.f32 0.0, %v1530
  %1532 = vmatmul.f32.gmra.mxu0 %v1448
  %v1533 = vpop.f32.mrf.mxu0
  %v1534 = vadd.f32 0.0, %v1533
  %1535 = vmatmul.f32.gmra.mxu0 %v1450
  %v1536 = vpop.f32.mrf.mxu0
  %v1537 = vadd.f32 0.0, %v1536
  %1538 = vmatmul.f32.gmra.mxu0 %v1452
  %v1539 = vpop.f32.mrf.mxu0
  %v1540 = vadd.f32 0.0, %v1539
  %1541 = vmatmul.f32.gmra.mxu0 %v1454
  %v1542 = vpop.f32.mrf.mxu0
  %v1543 = vadd.f32 0.0, %v1542
  %1544 = vmatmul.f32.gmra.mxu0 %v1456
  %v1545 = vpop.f32.mrf.mxu0
  %v1546 = vadd.f32 0.0, %v1545
  %1547 = vmatmul.f32.gmra.mxu0 %v1458
  %v1548 = vpop.f32.mrf.mxu0
  %v1549 = vadd.f32 0.0, %v1548
  %1550 = vmatmul.f32.gmra.mxu0 %v1460
  %v1551 = vpop.f32.mrf.mxu0
  %v1552 = vadd.f32 0.0, %v1551
  %1553 = vdwg.mxu0
  %1554 = vmatpush.msra.mxu0 %v1352
  %1555 = vmatpush.msra.mxu0 %v1351
  %1556 = vmatpush.msra.mxu0 %v1350
  %1557 = vmatpush.msra.mxu0 %v1349
  %1558 = vmatpush.msra.mxu0 %v1348
  %1559 = vmatpush.msra.mxu0 %v1347
  %1560 = vmatpush.msra.mxu0 %v1346
  %1561 = vmatpush.msra.mxu0 %v1345
  %1562 = vmatpush.msra.mxu0 %v1344
  %1563 = vmatpush.msra.mxu0 %v1343
  %1564 = vmatpush.msra.mxu0 %v1342
  %1565 = vmatpush.msra.mxu0 %v1341
  %1566 = vmatpush.msra.mxu0 %v1340
  %1567 = vmatpush.msra.mxu0 %v1339
  %1568 = vmatpush.msra.mxu0 %v1338
  %1569 = vmatpush.msra.mxu0 %v1337
  %1570 = vmatmul.f32.gmra.mxu0 %v1316
  %v1571 = vpop.f32.mrf.mxu0
  %v1572 = vadd.f32 %v1498, %v1571
  %1573 = vmatmul.f32.gmra.mxu0 %v1317
  %v1574 = vpop.f32.mrf.mxu0
  %v1575 = vadd.f32 %v1501, %v1574
  %1576 = vmatmul.f32.gmra.mxu0 %v1318
  %v1577 = vpop.f32.mrf.mxu0
  %v1578 = vadd.f32 %v1504, %v1577
  %1579 = vmatmul.f32.gmra.mxu0 %v1319
  %v1580 = vpop.f32.mrf.mxu0
  %v1581 = vadd.f32 %v1507, %v1580
  %1582 = vmatmul.f32.gmra.mxu0 %v1320
  %v1583 = vpop.f32.mrf.mxu0
  %v1584 = vadd.f32 %v1510, %v1583
  %1585 = vmatmul.f32.gmra.mxu0 %v1321
  %v1586 = vpop.f32.mrf.mxu0
  %v1587 = vadd.f32 %v1513, %v1586
  %1588 = vmatmul.f32.gmra.mxu0 %v1322
  %v1589 = vpop.f32.mrf.mxu0
  %v1590 = vadd.f32 %v1516, %v1589
  %1591 = vmatmul.f32.gmra.mxu0 %v1323
  %v1592 = vpop.f32.mrf.mxu0
  %v1593 = vadd.f32 %v1519, %v1592
  %1594 = vmatmul.f32.gmra.mxu0 %v1324
  %v1595 = vpop.f32.mrf.mxu0
  %v1596 = vadd.f32 %v1522, %v1595
  %1597 = vmatmul.f32.gmra.mxu0 %v1325
  %v1598 = vpop.f32.mrf.mxu0
  %v1599 = vadd.f32 %v1525, %v1598
  %1600 = vmatmul.f32.gmra.mxu0 %v1326
  %v1601 = vpop.f32.mrf.mxu0
  %v1602 = vadd.f32 %v1528, %v1601
  %1603 = vmatmul.f32.gmra.mxu0 %v1327
  %v1604 = vpop.f32.mrf.mxu0
  %v1605 = vadd.f32 %v1531, %v1604
  %1606 = vmatmul.f32.gmra.mxu0 %v1328
  %v1607 = vpop.f32.mrf.mxu0
  %v1608 = vadd.f32 %v1534, %v1607
  %1609 = vmatmul.f32.gmra.mxu0 %v1329
  %v1610 = vpop.f32.mrf.mxu0
  %v1611 = vadd.f32 %v1537, %v1610
  %1612 = vmatmul.f32.gmra.mxu0 %v1330
  %v1613 = vpop.f32.mrf.mxu0
  %v1614 = vadd.f32 %v1540, %v1613
  %1615 = vmatmul.f32.gmra.mxu0 %v1331
  %v1616 = vpop.f32.mrf.mxu0
  %v1617 = vadd.f32 %v1543, %v1616
  %1618 = vmatmul.f32.gmra.mxu0 %v1332
  %v1619 = vpop.f32.mrf.mxu0
  %v1620 = vadd.f32 %v1546, %v1619
  %1621 = vmatmul.f32.gmra.mxu0 %v1333
  %v1622 = vpop.f32.mrf.mxu0
  %v1623 = vadd.f32 %v1549, %v1622
  %1624 = vmatmul.f32.gmra.mxu0 %v1334
  %v1625 = vpop.f32.mrf.mxu0
  %v1626 = vadd.f32 %v1552, %v1625
  %1627 = vdwg.mxu0
  %v1629 = vrot.slane %v1336, 1
  %v1630 = vsel %vm1421, %v1459, %v1629
  %1632 = vmatpush.msra.mxu0 %v1384
  %1633 = vmatpush.msra.mxu0 %v1383
  %1634 = vmatpush.msra.mxu0 %v1382
  %1635 = vmatpush.msra.mxu0 %v1381
  %1636 = vmatpush.msra.mxu0 %v1380
  %1637 = vmatpush.msra.mxu0 %v1379
  %1638 = vmatpush.msra.mxu0 %v1378
  %1639 = vmatpush.msra.mxu0 %v1377
  %1640 = vmatpush.msra.mxu0 %v1376
  %1641 = vmatpush.msra.mxu0 %v1375
  %1642 = vmatpush.msra.mxu0 %v1374
  %1643 = vmatpush.msra.mxu0 %v1373
  %1644 = vmatpush.msra.mxu0 %v1372
  %1645 = vmatpush.msra.mxu0 %v1371
  %1646 = vmatpush.msra.mxu0 %v1370
  %1647 = vmatpush.msra.mxu0 %v1369
  %1648 = vmatmul.f32.gmra.mxu0 %v1426
  %v1649 = vpop.f32.mrf.mxu0
  %v1650 = vadd.f32 0.0, %v1649
  %1651 = vmatmul.f32.gmra.mxu0 %v1428
  %v1652 = vpop.f32.mrf.mxu0
  %v1653 = vadd.f32 0.0, %v1652
  %1654 = vmatmul.f32.gmra.mxu0 %v1430
  %v1655 = vpop.f32.mrf.mxu0
  %v1656 = vadd.f32 0.0, %v1655
  %1657 = vmatmul.f32.gmra.mxu0 %v1432
  %v1658 = vpop.f32.mrf.mxu0
  %v1659 = vadd.f32 0.0, %v1658
  %1660 = vmatmul.f32.gmra.mxu0 %v1434
  %v1661 = vpop.f32.mrf.mxu0
  %v1662 = vadd.f32 0.0, %v1661
  %1663 = vmatmul.f32.gmra.mxu0 %v1436
  %v1664 = vpop.f32.mrf.mxu0
  %v1665 = vadd.f32 0.0, %v1664
  %1666 = vmatmul.f32.gmra.mxu0 %v1438
  %v1667 = vpop.f32.mrf.mxu0
  %v1668 = vadd.f32 0.0, %v1667
  %1669 = vmatmul.f32.gmra.mxu0 %v1440
  %v1670 = vpop.f32.mrf.mxu0
  %v1671 = vadd.f32 0.0, %v1670
  %1672 = vmatmul.f32.gmra.mxu0 %v1442
  %v1673 = vpop.f32.mrf.mxu0
  %v1674 = vadd.f32 0.0, %v1673
  %1675 = vmatmul.f32.gmra.mxu0 %v1444
  %v1676 = vpop.f32.mrf.mxu0
  %v1677 = vadd.f32 0.0, %v1676
  %1678 = vmatmul.f32.gmra.mxu0 %v1446
  %v1679 = vpop.f32.mrf.mxu0
  %v1680 = vadd.f32 0.0, %v1679
  %1681 = vmatmul.f32.gmra.mxu0 %v1448
  %v1682 = vpop.f32.mrf.mxu0
  %v1683 = vadd.f32 0.0, %v1682
  %1684 = vmatmul.f32.gmra.mxu0 %v1450
  %v1685 = vpop.f32.mrf.mxu0
  %v1686 = vadd.f32 0.0, %v1685
  %1687 = vmatmul.f32.gmra.mxu0 %v1452
  %v1688 = vpop.f32.mrf.mxu0
  %v1689 = vadd.f32 0.0, %v1688
  %1690 = vmatmul.f32.gmra.mxu0 %v1454
  %v1691 = vpop.f32.mrf.mxu0
  %v1692 = vadd.f32 0.0, %v1691
  %1693 = vmatmul.f32.gmra.mxu0 %v1456
  %v1694 = vpop.f32.mrf.mxu0
  %v1695 = vadd.f32 0.0, %v1694
  %1696 = vmatmul.f32.gmra.mxu0 %v1458
  %v1697 = vpop.f32.mrf.mxu0
  %v1698 = vadd.f32 0.0, %v1697
  %1699 = vmatmul.f32.gmra.mxu0 %v1460
  %v1700 = vpop.f32.mrf.mxu0
  %v1701 = vadd.f32 0.0, %v1700
  %1702 = vmatmul.f32.gmra.mxu0 %v1630
  %v1703 = vpop.f32.mrf.mxu0
  %v1704 = vadd.f32 0.0, %v1703
  %1705 = vdwg.mxu0
  %v1706 = vadd.f32 %v1572, %v1650
  %v1707 = vadd.f32 %v1575, %v1653
  %v1708 = vadd.f32 %v1578, %v1656
  %v1709 = vadd.f32 %v1581, %v1659
  %v1710 = vadd.f32 %v1584, %v1662
  %v1711 = vadd.f32 %v1587, %v1665
  %v1712 = vadd.f32 %v1590, %v1668
  %v1713 = vadd.f32 %v1593, %v1671
  %v1714 = vadd.f32 %v1596, %v1674
  %v1715 = vadd.f32 %v1599, %v1677
  %v1716 = vadd.f32 %v1602, %v1680
  %v1717 = vadd.f32 %v1605, %v1683
  %v1718 = vadd.f32 %v1608, %v1686
  %v1719 = vadd.f32 %v1611, %v1689
  %v1720 = vadd.f32 %v1614, %v1692
  %v1721 = vadd.f32 %v1617, %v1695
  %v1722 = vadd.f32 %v1620, %v1698
  %v1723 = vadd.f32 %v1623, %v1701
  %v1724 = vadd.f32 %v1626, %v1704
  %v1725 = vrot.slane %v1317, 2
  %v1726 = vrot.slane %v1318, 2
  %v1727 = vsel %vm1002, %v1725, %v1726
  %v1728 = vrot.slane %v1319, 2
  %v1729 = vsel %vm1002, %v1726, %v1728
  %v1730 = vrot.slane %v1320, 2
  %v1731 = vsel %vm1002, %v1728, %v1730
  %v1732 = vrot.slane %v1321, 2
  %v1733 = vsel %vm1002, %v1730, %v1732
  %v1734 = vrot.slane %v1322, 2
  %v1735 = vsel %vm1002, %v1732, %v1734
  %v1736 = vrot.slane %v1323, 2
  %v1737 = vsel %vm1002, %v1734, %v1736
  %v1738 = vrot.slane %v1324, 2
  %v1739 = vsel %vm1002, %v1736, %v1738
  %v1740 = vrot.slane %v1325, 2
  %v1741 = vsel %vm1002, %v1738, %v1740
  %v1742 = vrot.slane %v1326, 2
  %v1743 = vsel %vm1002, %v1740, %v1742
  %v1744 = vrot.slane %v1327, 2
  %v1745 = vsel %vm1002, %v1742, %v1744
  %v1746 = vrot.slane %v1328, 2
  %v1747 = vsel %vm1002, %v1744, %v1746
  %v1748 = vrot.slane %v1329, 2
  %v1749 = vsel %vm1002, %v1746, %v1748
  %v1750 = vrot.slane %v1330, 2
  %v1751 = vsel %vm1002, %v1748, %v1750
  %v1752 = vrot.slane %v1331, 2
  %v1753 = vsel %vm1002, %v1750, %v1752
  %v1754 = vrot.slane %v1332, 2
  %v1755 = vsel %vm1002, %v1752, %v1754
  %v1756 = vrot.slane %v1333, 2
  %v1757 = vsel %vm1002, %v1754, %v1756
  %v1758 = vrot.slane %v1334, 2
  %v1759 = vsel %vm1002, %v1756, %v1758
  %v1760 = vrot.slane %v1335, 2
  %v1761 = vsel %vm1002, %v1758, %v1760
  %v1762 = vrot.slane %v1336, 2
  %v1763 = vsel %vm1002, %v1760, %v1762
  %1783 = vmatpush.msra.mxu0 %v1400
  %1784 = vmatpush.msra.mxu0 %v1399
  %1785 = vmatpush.msra.mxu0 %v1398
  %1786 = vmatpush.msra.mxu0 %v1397
  %1787 = vmatpush.msra.mxu0 %v1396
  %1788 = vmatpush.msra.mxu0 %v1395
  %1789 = vmatpush.msra.mxu0 %v1394
  %1790 = vmatpush.msra.mxu0 %v1393
  %1791 = vmatpush.msra.mxu0 %v1392
  %1792 = vmatpush.msra.mxu0 %v1391
  %1793 = vmatpush.msra.mxu0 %v1390
  %1794 = vmatpush.msra.mxu0 %v1389
  %1795 = vmatpush.msra.mxu0 %v1388
  %1796 = vmatpush.msra.mxu0 %v1387
  %1797 = vmatpush.msra.mxu0 %v1386
  %1798 = vmatpush.msra.mxu0 %v1385
  %1799 = vmatmul.f32.gmra.mxu0 %v1727
  %v1800 = vpop.f32.mrf.mxu0
  %v1801 = vadd.f32 0.0, %v1800
  %1802 = vmatmul.f32.gmra.mxu0 %v1729
  %v1803 = vpop.f32.mrf.mxu0
  %v1804 = vadd.f32 0.0, %v1803
  %1805 = vmatmul.f32.gmra.mxu0 %v1731
  %v1806 = vpop.f32.mrf.mxu0
  %v1807 = vadd.f32 0.0, %v1806
  %1808 = vmatmul.f32.gmra.mxu0 %v1733
  %v1809 = vpop.f32.mrf.mxu0
  %v1810 = vadd.f32 0.0, %v1809
  %1811 = vmatmul.f32.gmra.mxu0 %v1735
  %v1812 = vpop.f32.mrf.mxu0
  %v1813 = vadd.f32 0.0, %v1812
  %1814 = vmatmul.f32.gmra.mxu0 %v1737
  %v1815 = vpop.f32.mrf.mxu0
  %v1816 = vadd.f32 0.0, %v1815
  %1817 = vmatmul.f32.gmra.mxu0 %v1739
  %v1818 = vpop.f32.mrf.mxu0
  %v1819 = vadd.f32 0.0, %v1818
  %1820 = vmatmul.f32.gmra.mxu0 %v1741
  %v1821 = vpop.f32.mrf.mxu0
  %v1822 = vadd.f32 0.0, %v1821
  %1823 = vmatmul.f32.gmra.mxu0 %v1743
  %v1824 = vpop.f32.mrf.mxu0
  %v1825 = vadd.f32 0.0, %v1824
  %1826 = vmatmul.f32.gmra.mxu0 %v1745
  %v1827 = vpop.f32.mrf.mxu0
  %v1828 = vadd.f32 0.0, %v1827
  %1829 = vmatmul.f32.gmra.mxu0 %v1747
  %v1830 = vpop.f32.mrf.mxu0
  %v1831 = vadd.f32 0.0, %v1830
  %1832 = vmatmul.f32.gmra.mxu0 %v1749
  %v1833 = vpop.f32.mrf.mxu0
  %v1834 = vadd.f32 0.0, %v1833
  %1835 = vmatmul.f32.gmra.mxu0 %v1751
  %v1836 = vpop.f32.mrf.mxu0
  %v1837 = vadd.f32 0.0, %v1836
  %1838 = vmatmul.f32.gmra.mxu0 %v1753
  %v1839 = vpop.f32.mrf.mxu0
  %v1840 = vadd.f32 0.0, %v1839
  %1841 = vmatmul.f32.gmra.mxu0 %v1755
  %v1842 = vpop.f32.mrf.mxu0
  %v1843 = vadd.f32 0.0, %v1842
  %1844 = vmatmul.f32.gmra.mxu0 %v1757
  %v1845 = vpop.f32.mrf.mxu0
  %v1846 = vadd.f32 0.0, %v1845
  %1847 = vmatmul.f32.gmra.mxu0 %v1759
  %v1848 = vpop.f32.mrf.mxu0
  %v1849 = vadd.f32 0.0, %v1848
  %1850 = vmatmul.f32.gmra.mxu0 %v1761
  %v1851 = vpop.f32.mrf.mxu0
  %v1852 = vadd.f32 0.0, %v1851
  %1853 = vmatmul.f32.gmra.mxu0 %v1763
  %v1854 = vpop.f32.mrf.mxu0
  %v1855 = vadd.f32 0.0, %v1854
  %1856 = vdwg.mxu0
  %v1857 = vadd.f32 %v1706, %v1801
  %v1858 = vadd.f32 %v1707, %v1804
  %v1859 = vadd.f32 %v1708, %v1807
  %v1860 = vadd.f32 %v1709, %v1810
  %v1861 = vadd.f32 %v1710, %v1813
  %v1862 = vadd.f32 %v1711, %v1816
  %v1863 = vadd.f32 %v1712, %v1819
  %v1864 = vadd.f32 %v1713, %v1822
  %v1865 = vadd.f32 %v1714, %v1825
  %v1866 = vadd.f32 %v1715, %v1828
  %v1867 = vadd.f32 %v1716, %v1831
  %v1868 = vadd.f32 %v1717, %v1834
  %v1869 = vadd.f32 %v1718, %v1837
  %v1870 = vadd.f32 %v1719, %v1840
  %v1871 = vadd.f32 %v1720, %v1843
  %v1872 = vadd.f32 %v1721, %v1846
  %v1873 = vadd.f32 %v1722, %v1849
  %v1874 = vadd.f32 %v1723, %v1852
  %v1875 = vadd.f32 %v1724, %v1855
  %v1876 = vld [vmem:[%s4] sm:$0x1]
  %v1878 = vperm.slane %v1876, 0
  %v1880 = vadd.f32 %v1857, %v1878
  %v1881 = vadd.f32 %v1858, %v1878
  %v1882 = vadd.f32 %v1859, %v1878
  %v1883 = vadd.f32 %v1860, %v1878
  %v1884 = vadd.f32 %v1861, %v1878
  %v1885 = vadd.f32 %v1862, %v1878
  %v1886 = vadd.f32 %v1863, %v1878
  %v1887 = vadd.f32 %v1864, %v1878
  %v1888 = vadd.f32 %v1865, %v1878
  %v1889 = vadd.f32 %v1866, %v1878
  %v1890 = vadd.f32 %v1867, %v1878
  %v1891 = vadd.f32 %v1868, %v1878
  %v1892 = vadd.f32 %v1869, %v1878
  %v1893 = vadd.f32 %v1870, %v1878
  %v1894 = vadd.f32 %v1871, %v1878
  %v1895 = vadd.f32 %v1872, %v1878
  %v1896 = vadd.f32 %v1873, %v1878
  %v1897 = vadd.f32 %v1874, %v1878
  %v1898 = vadd.f32 %v1875, %v1878
  %v1899 = vmax.f32 %v1880, 0.0
  %v1900 = vmax.f32 %v1881, 0.0
  %v1901 = vmax.f32 %v1882, 0.0
  %v1902 = vmax.f32 %v1883, 0.0
  %v1903 = vmax.f32 %v1884, 0.0
  %v1904 = vmax.f32 %v1885, 0.0
  %v1905 = vmax.f32 %v1886, 0.0
  %v1906 = vmax.f32 %v1887, 0.0
  %v1907 = vmax.f32 %v1888, 0.0
  %v1908 = vmax.f32 %v1889, 0.0
  %v1909 = vmax.f32 %v1890, 0.0
  %v1910 = vmax.f32 %v1891, 0.0
  %v1911 = vmax.f32 %v1892, 0.0
  %v1912 = vmax.f32 %v1893, 0.0
  %v1913 = vmax.f32 %v1894, 0.0
  %v1914 = vmax.f32 %v1895, 0.0
  %v1915 = vmax.f32 %v1896, 0.0
  %v1916 = vmax.f32 %v1897, 0.0
  %v1917 = vmax.f32 %v1898, 0.0
  %v1918 = vld [vmem:[%s5] sm:$0xff]
  %v1919 = vld [vmem:[%s5 + $0x8] sm:$0xff]
  %v1920 = vld [vmem:[%s5 + $0x10] sm:$0xff]
  %v1921 = vld [vmem:[%s5 + $0x18] sm:$0xff]
  %v1922 = vld [vmem:[%s5 + $0x20] sm:$0xff]
  %v1923 = vld [vmem:[%s5 + $0x28] sm:$0xff]
  %v1924 = vld [vmem:[%s5 + $0x30] sm:$0xff]
  %v1925 = vld [vmem:[%s5 + $0x38] sm:$0xff]
  %v1926 = vld [vmem:[%s5 + $0x40] sm:$0xff]
  %v1927 = vld [vmem:[%s5 + $0x48] sm:$0xff]
  %v1928 = vld [vmem:[%s5 + $0x50] sm:$0xff]
  %v1929 = vld [vmem:[%s5 + $0x58] sm:$0xff]
  %v1930 = vld [vmem:[%s5 + $0x60] sm:$0xff]
  %v1931 = vld [vmem:[%s5 + $0x68] sm:$0xff]
  %v1932 = vld [vmem:[%s5 + $0x70] sm:$0xff]
  %v1933 = vld [vmem:[%s5 + $0x78] sm:$0xff]
  %v1934 = vld [vmem:[%s5 + $0x80] sm:$0xff]
  %v1935 = vld [vmem:[%s5 + $0x88] sm:$0xff]
  %v1936 = vld [vmem:[%s5 + $0x90] sm:$0xff]
  %1938 = vset.pattern.permute.xlu0 0
  %1939 = vperm.xlu0 %1938, %v1918
  %v1940 = vpop.permute.xlu0 %1939
  %1943 = vset.pattern.permute.xlu0 0
  %1944 = vperm.xlu0 %1943, %v1919
  %v1945 = vpop.permute.xlu0 %1944
  %1948 = vset.pattern.permute.xlu0 0
  %1949 = vperm.xlu0 %1948, %v1920
  %v1950 = vpop.permute.xlu0 %1949
  %1953 = vset.pattern.permute.xlu0 0
  %1954 = vperm.xlu0 %1953, %v1921
  %v1955 = vpop.permute.xlu0 %1954
  %1958 = vset.pattern.permute.xlu0 0
  %1959 = vperm.xlu0 %1958, %v1922
  %v1960 = vpop.permute.xlu0 %1959
  %1963 = vset.pattern.permute.xlu0 0
  %1964 = vperm.xlu0 %1963, %v1923
  %v1965 = vpop.permute.xlu0 %1964
  %1968 = vset.pattern.permute.xlu0 0
  %1969 = vperm.xlu0 %1968, %v1924
  %v1970 = vpop.permute.xlu0 %1969
  %1973 = vset.pattern.permute.xlu0 0
  %1974 = vperm.xlu0 %1973, %v1925
  %v1975 = vpop.permute.xlu0 %1974
  %1978 = vset.pattern.permute.xlu0 0
  %1979 = vperm.xlu0 %1978, %v1926
  %v1980 = vpop.permute.xlu0 %1979
  %1983 = vset.pattern.permute.xlu0 0
  %1984 = vperm.xlu0 %1983, %v1927
  %v1985 = vpop.permute.xlu0 %1984
  %1988 = vset.pattern.permute.xlu0 0
  %1989 = vperm.xlu0 %1988, %v1928
  %v1990 = vpop.permute.xlu0 %1989
  %1993 = vset.pattern.permute.xlu0 0
  %1994 = vperm.xlu0 %1993, %v1929
  %v1995 = vpop.permute.xlu0 %1994
  %1998 = vset.pattern.permute.xlu0 0
  %1999 = vperm.xlu0 %1998, %v1930
  %v2000 = vpop.permute.xlu0 %1999
  %2003 = vset.pattern.permute.xlu0 0
  %2004 = vperm.xlu0 %2003, %v1931
  %v2005 = vpop.permute.xlu0 %2004
  %2008 = vset.pattern.permute.xlu0 0
  %2009 = vperm.xlu0 %2008, %v1932
  %v2010 = vpop.permute.xlu0 %2009
  %2013 = vset.pattern.permute.xlu0 0
  %2014 = vperm.xlu0 %2013, %v1933
  %v2015 = vpop.permute.xlu0 %2014
  %2018 = vset.pattern.permute.xlu0 0
  %2019 = vperm.xlu0 %2018, %v1934
  %v2020 = vpop.permute.xlu0 %2019
  %2023 = vset.pattern.permute.xlu0 0
  %2024 = vperm.xlu0 %2023, %v1935
  %v2025 = vpop.permute.xlu0 %2024
  %2028 = vset.pattern.permute.xlu0 0
  %2029 = vperm.xlu0 %2028, %v1936
  %v2030 = vpop.permute.xlu0 %2029
  %v2032 = vmul.f32 %v1899, %v1940
  %v2033 = vmul.f32 %v1900, %v1945
  %v2034 = vmul.f32 %v1901, %v1950
  %v2035 = vmul.f32 %v1902, %v1955
  %v2036 = vmul.f32 %v1903, %v1960
  %v2037 = vmul.f32 %v1904, %v1965
  %v2038 = vmul.f32 %v1905, %v1970
  %v2039 = vmul.f32 %v1906, %v1975
  %v2040 = vmul.f32 %v1907, %v1980
  %v2041 = vmul.f32 %v1908, %v1985
  %v2042 = vmul.f32 %v1909, %v1990
  %v2043 = vmul.f32 %v1910, %v1995
  %v2044 = vmul.f32 %v1911, %v2000
  %v2045 = vmul.f32 %v1912, %v2005
  %v2046 = vmul.f32 %v1913, %v2010
  %v2047 = vmul.f32 %v1914, %v2015
  %v2048 = vmul.f32 %v1915, %v2020
  %v2049 = vmul.f32 %v1916, %v2025
  %v2050 = vmul.f32 %v1917, %v2030
  %v2051 = vadd.f32 %v2032, %v2033
  %v2052 = vadd.f32 %v2051, %v2034
  %v2053 = vadd.f32 %v2052, %v2035
  %v2054 = vadd.f32 %v2053, %v2036
  %v2055 = vadd.f32 %v2054, %v2037
  %v2056 = vadd.f32 %v2055, %v2038
  %v2057 = vadd.f32 %v2056, %v2039
  %v2058 = vadd.f32 %v2057, %v2040
  %v2059 = vadd.f32 %v2058, %v2041
  %v2060 = vadd.f32 %v2059, %v2042
  %v2061 = vadd.f32 %v2060, %v2043
  %v2062 = vadd.f32 %v2061, %v2044
  %v2063 = vadd.f32 %v2062, %v2045
  %v2064 = vadd.f32 %v2063, %v2046
  %v2065 = vadd.f32 %v2064, %v2047
  %v2066 = vadd.f32 %v2065, %v2048
  %v2067 = vadd.f32 %v2066, %v2049
  %v2068 = vadd.f32 %v2067, %v2050
  %v2069 = vrot.slane %v2068, 4
  %v2070 = vadd.f32 %v2068, %v2069
  %v2071 = vrot.slane %v2070, 2
  %v2072 = vadd.f32 %v2070, %v2071
  %v2073 = vrot.slane %v2072, 1
  %v2074 = vadd.f32 %v2072, %v2073
  %v2075 = vmul.f32 %v2074, 0.0078125
  %v2076 = vmul.f32 %v2032, %v1899
  %v2077 = vmul.f32 %v2033, %v1900
  %v2078 = vmul.f32 %v2034, %v1901
  %v2079 = vmul.f32 %v2035, %v1902
  %v2080 = vmul.f32 %v2036, %v1903
  %v2081 = vmul.f32 %v2037, %v1904
  %v2082 = vmul.f32 %v2038, %v1905
  %v2083 = vmul.f32 %v2039, %v1906
  %v2084 = vmul.f32 %v2040, %v1907
  %v2085 = vmul.f32 %v2041, %v1908
  %v2086 = vmul.f32 %v2042, %v1909
  %v2087 = vmul.f32 %v2043, %v1910
  %v2088 = vmul.f32 %v2044, %v1911
  %v2089 = vmul.f32 %v2045, %v1912
  %v2090 = vmul.f32 %v2046, %v1913
  %v2091 = vmul.f32 %v2047, %v1914
  %v2092 = vmul.f32 %v2048, %v1915
  %v2093 = vmul.f32 %v2049, %v1916
  %v2094 = vmul.f32 %v2050, %v1917
  %v2095 = vadd.f32 %v2076, %v2077
  %v2096 = vadd.f32 %v2095, %v2078
  %v2097 = vadd.f32 %v2096, %v2079
  %v2098 = vadd.f32 %v2097, %v2080
  %v2099 = vadd.f32 %v2098, %v2081
  %v2100 = vadd.f32 %v2099, %v2082
  %v2101 = vadd.f32 %v2100, %v2083
  %v2102 = vadd.f32 %v2101, %v2084
  %v2103 = vadd.f32 %v2102, %v2085
  %v2104 = vadd.f32 %v2103, %v2086
  %v2105 = vadd.f32 %v2104, %v2087
  %v2106 = vadd.f32 %v2105, %v2088
  %v2107 = vadd.f32 %v2106, %v2089
  %v2108 = vadd.f32 %v2107, %v2090
  %v2109 = vadd.f32 %v2108, %v2091
  %v2110 = vadd.f32 %v2109, %v2092
  %v2111 = vadd.f32 %v2110, %v2093
  %v2112 = vadd.f32 %v2111, %v2094
  %v2113 = vrot.slane %v2112, 4
  %v2114 = vadd.f32 %v2112, %v2113
  %v2115 = vrot.slane %v2114, 2
  %v2116 = vadd.f32 %v2114, %v2115
  %v2117 = vrot.slane %v2116, 1
  %v2118 = vadd.f32 %v2116, %v2117
  %v2119 = vmul.f32 %v2118, 0.0078125
  %v2120 = vmul.f32 %v2075, %v2075
  %v2121 = vsub.f32 %v2119, %v2120
  %v2122 = vadd.f32 %v2121, 1e-05
  %v2123 = vrsqrt.pop %v2122
  %v2124 = vmul.f32 %v2123, %v2122
  %v2125 = vmul.f32 %v2124, %v2123
  %v2126 = vmul.f32 0.5, %v2125
  %v2127 = vsub.f32 1.5, %v2126
  %v2128 = vmul.f32 %v2123, %v2127
  %vm2129 = vweird.f32 %v2122
  %vm2130 = vweird.f32 %v2123
  %vm2131 = vmor %vm2129, %vm2130
  %v2132 = vsel %vm2131, %v2123, %v2128
  %v2150 = vrot.slane %v1899, 1
  %v2151 = vrot.slane %v1900, 1
  %v2152 = vsel %vm1421, %v2150, %v2151
  %v2153 = vrot.slane %v1901, 1
  %v2154 = vrot.slane %v1902, 1
  %v2155 = vsel %vm1421, %v2153, %v2154
  %v2156 = vrot.slane %v1903, 1
  %v2157 = vsel %vm1421, %v2154, %v2156
  %v2158 = vrot.slane %v1904, 1
  %v2159 = vsel %vm1421, %v2156, %v2158
  %v2160 = vrot.slane %v1905, 1
  %v2161 = vsel %vm1421, %v2158, %v2160
  %v2162 = vrot.slane %v1906, 1
  %v2163 = vsel %vm1421, %v2160, %v2162
  %v2164 = vrot.slane %v1907, 1
  %v2165 = vsel %vm1421, %v2162, %v2164
  %v2166 = vrot.slane %v1909, 1
  %v2167 = vrot.slane %v1910, 1
  %v2168 = vsel %vm1421, %v2166, %v2167
  %v2169 = vrot.slane %v1911, 1
  %v2170 = vrot.slane %v1912, 1
  %v2171 = vsel %vm1421, %v2169, %v2170
  %v2172 = vrot.slane %v1913, 1
  %v2173 = vsel %vm1421, %v2170, %v2172
  %v2174 = vrot.slane %v1914, 1
  %v2175 = vsel %vm1421, %v2172, %v2174
  %v2176 = vrot.slane %v1915, 1
  %v2177 = vsel %vm1421, %v2174, %v2176
  %v2178 = vrot.slane %v1916, 1
  %v2179 = vsel %vm1421, %v2176, %v2178
  %v2194 = vmax.f32 %v1899, %v2152
  %v2195 = vmax.f32 %v1901, %v2155
  %v2196 = vmax.f32 %v1902, %v2157
  %v2197 = vmax.f32 %v1903, %v2159
  %v2198 = vmax.f32 %v1904, %v2161
  %v2199 = vmax.f32 %v1905, %v2163
  %v2200 = vmax.f32 %v1906, %v2165
  %v2201 = vmax.f32 %v1909, %v2168
  %v2202 = vmax.f32 %v1911, %v2171
  %v2203 = vmax.f32 %v1912, %v2173
  %v2204 = vmax.f32 %v1913, %v2175
  %v2205 = vmax.f32 %v1914, %v2177
  %v2206 = vmax.f32 %v1915, %v2179
  %v2207 = vmax.f32 %v1916, %v2178
  %v2210 = vsel %vm1421, %v2151, %v2153
  %v2211 = vrot.slane %v1908, 1
  %v2212 = vsel %vm1421, %v2164, %v2211
  %v2213 = vsel %vm1421, %v2211, %v2166
  %v2214 = vsel %vm1421, %v2167, %v2169
  %v2215 = vrot.slane %v1917, 1
  %v2216 = vsel %vm1421, %v2178, %v2215
  %v2223 = vmax.f32 %v1900, %v2210
  %v2224 = vmax.f32 %v1907, %v2212
  %v2225 = vmax.f32 %v1908, %v2213
  %v2226 = vmax.f32 %v1910, %v2214
  %v2227 = vmax.f32 %v1916, %v2216
  %v2228 = vmax.f32 %v1917, %v2215
  %v2246 = vrot.slane %v2223, 1
  %v2247 = vrot.slane %v2195, 1
  %v2248 = vsel %vm1421, %v2246, %v2247
  %v2249 = vrot.slane %v2196, 1
  %v2250 = vrot.slane %v2197, 1
  %v2251 = vsel %vm1421, %v2249, %v2250
  %v2252 = vrot.slane %v2198, 1
  %v2253 = vsel %vm1421, %v2250, %v2252
  %v2254 = vrot.slane %v2199, 1
  %v2255 = vsel %vm1421, %v2252, %v2254
  %v2256 = vrot.slane %v2200, 1
  %v2257 = vsel %vm1421, %v2254, %v2256
  %v2258 = vrot.slane %v2224, 1
  %v2259 = vsel %vm1421, %v2256, %v2258
  %v2260 = vrot.slane %v2225, 1
  %v2261 = vsel %vm1421, %v2258, %v2260
  %v2262 = vrot.slane %v2226, 1
  %v2263 = vrot.slane %v2202, 1
  %v2264 = vsel %vm1421, %v2262, %v2263
  %v2265 = vrot.slane %v2203, 1
  %v2266 = vrot.slane %v2204, 1
  %v2267 = vsel %vm1421, %v2265, %v2266
  %v2268 = vrot.slane %v2205, 1
  %v2269 = vsel %vm1421, %v2266, %v2268
  %v2270 = vrot.slane %v2206, 1
  %v2271 = vsel %vm1421, %v2268, %v2270
  %v2272 = vrot.slane %v2227, 1
  %v2273 = vsel %vm1421, %v2270, %v2272
  %v2274 = vrot.slane %v2228, 1
  %v2275 = vsel %vm1421, %v2272, %v2274
  %v2290 = vmax.f32 %v2194, %v2248
  %v2291 = vmax.f32 %v2195, %v2251
  %v2292 = vmax.f32 %v2196, %v2253
  %v2293 = vmax.f32 %v2197, %v2255
  %v2294 = vmax.f32 %v2198, %v2257
  %v2295 = vmax.f32 %v2199, %v2259
  %v2296 = vmax.f32 %v2200, %v2261
  %v2297 = vmax.f32 %v2201, %v2264
  %v2298 = vmax.f32 %v2202, %v2267
  %v2299 = vmax.f32 %v2203, %v2269
  %v2300 = vmax.f32 %v2204, %v2271
  %v2301 = vmax.f32 %v2205, %v2273
  %v2302 = vmax.f32 %v2206, %v2275
  %v2303 = vmax.f32 %v2207, %v2274
  %v2304 = vsub.f32 %v2290, %v2075
  %v2305 = vsub.f32 %v2291, %v2075
  %v2306 = vsub.f32 %v2292, %v2075
  %v2307 = vsub.f32 %v2293, %v2075
  %v2308 = vsub.f32 %v2294, %v2075
  %v2309 = vsub.f32 %v2295, %v2075
  %v2310 = vsub.f32 %v2296, %v2075
  %v2311 = vsub.f32 %v2297, %v2075
  %v2312 = vsub.f32 %v2298, %v2075
  %v2313 = vsub.f32 %v2299, %v2075
  %v2314 = vsub.f32 %v2300, %v2075
  %v2315 = vsub.f32 %v2301, %v2075
  %v2316 = vsub.f32 %v2302, %v2075
  %v2317 = vsub.f32 %v2303, %v2075
  %v2318 = vmul.f32 %v2304, %v2132
  %v2319 = vmul.f32 %v2305, %v2132
  %v2320 = vmul.f32 %v2306, %v2132
  %v2321 = vmul.f32 %v2307, %v2132
  %v2322 = vmul.f32 %v2308, %v2132
  %v2323 = vmul.f32 %v2309, %v2132
  %v2324 = vmul.f32 %v2310, %v2132
  %v2325 = vmul.f32 %v2311, %v2132
  %v2326 = vmul.f32 %v2312, %v2132
  %v2327 = vmul.f32 %v2313, %v2132
  %v2328 = vmul.f32 %v2314, %v2132
  %v2329 = vmul.f32 %v2315, %v2132
  %v2330 = vmul.f32 %v2316, %v2132
  %v2331 = vmul.f32 %v2317, %v2132
  %vm2332 = vcmask 1040384
  %v2333 = vsel %vm2332, %v2318, %v2325
  %v2335 = vrot.slane %v2318, 2
  %v2338 = vrot.slane %v2325, 2
  %v2340 = vsel %vm2332, %v2335, %v2338
  %v2341 = vrot.slane %v2318, 4
  %v2343 = vrot.slane %v2325, 4
  %v2345 = vsel %vm2332, %v2341, %v2343
  %v2346 = vrot.slane %v2318, 6
  %v2348 = vrot.slane %v2325, 6
  %v2350 = vsel %vm2332, %v2346, %v2348
  %v2352 = vrot.slane %v2319, 2
  %v2355 = vrot.slane %v2326, 2
  %v2357 = vsel %vm2332, %v2352, %v2355
  %v2358 = vrot.slane %v2319, 4
  %v2360 = vrot.slane %v2326, 4
  %v2362 = vsel %vm2332, %v2358, %v2360
  %v2363 = vrot.slane %v2319, 6
  %v2365 = vrot.slane %v2326, 6
  %v2367 = vsel %vm2332, %v2363, %v2365
  %v2368 = vsel %vm2332, %v2320, %v2327
  %v2370 = vrot.slane %v2321, 4
  %v2373 = vrot.slane %v2328, 4
  %v2375 = vsel %vm2332, %v2370, %v2373
  %v2376 = vrot.slane %v2321, 6
  %v2378 = vrot.slane %v2328, 6
  %v2380 = vsel %vm2332, %v2376, %v2378
  %v2381 = vsel %vm2332, %v2322, %v2329
  %v2383 = vrot.slane %v2322, 2
  %v2386 = vrot.slane %v2329, 2
  %v2388 = vsel %vm2332, %v2383, %v2386
  %v2390 = vrot.slane %v2323, 6
  %v2393 = vrot.slane %v2330, 6
  %v2395 = vsel %vm2332, %v2390, %v2393
  %v2396 = vsel %vm2332, %v2324, %v2331
  %v2398 = vrot.slane %v2324, 2
  %v2401 = vrot.slane %v2331, 2
  %v2403 = vsel %vm2332, %v2398, %v2401
  %v2404 = vrot.slane %v2324, 4
  %v2406 = vrot.slane %v2331, 4
  %v2408 = vsel %vm2332, %v2404, %v2406
  %v2409 = vld [vmem:[%s6] sm:$0xff]
  %v2410 = vld [vmem:[%s6 + $0x8] sm:$0xff]
  %v2411 = vld [vmem:[%s6 + $0x10] sm:$0xff]
  %v2412 = vld [vmem:[%s6 + $0x18] sm:$0xff]
  %v2413 = vld [vmem:[%s6 + $0x20] sm:$0xff]
  %v2414 = vld [vmem:[%s6 + $0x28] sm:$0xff]
  %v2415 = vld [vmem:[%s6 + $0x30] sm:$0xff]
  %v2416 = vld [vmem:[%s6 + $0x38] sm:$0xff]
  %v2417 = vld [vmem:[%s6 + $0x40] sm:$0xff]
  %v2418 = vld [vmem:[%s6 + $0x48] sm:$0xff]
  %v2419 = vld [vmem:[%s6 + $0x50] sm:$0xff]
  %v2420 = vld [vmem:[%s6 + $0x58] sm:$0xff]
  %v2421 = vld [vmem:[%s6 + $0x60] sm:$0xff]
  %v2422 = vld [vmem:[%s6 + $0x68] sm:$0xff]
  %v2423 = vld [vmem:[%s6 + $0x70] sm:$0xff]
  %v2424 = vld [vmem:[%s6 + $0x78] sm:$0xff]
  %v2425 = vld [vmem:[%s6 + $0x80] sm:$0xff]
  %v2426 = vld [vmem:[%s6 + $0x88] sm:$0xff]
  %v2427 = vld [vmem:[%s6 + $0x90] sm:$0xff]
  %v2428 = vld [vmem:[%s6 + $0x98] sm:$0xff]
  %v2429 = vld [vmem:[%s6 + $0xa0] sm:$0xff]
  %v2430 = vld [vmem:[%s6 + $0xa8] sm:$0xff]
  %v2431 = vld [vmem:[%s6 + $0xb0] sm:$0xff]
  %v2432 = vld [vmem:[%s6 + $0xb8] sm:$0xff]
  %v2433 = vld [vmem:[%s6 + $0xc0] sm:$0xff]
  %v2434 = vld [vmem:[%s6 + $0xc8] sm:$0xff]
  %v2435 = vld [vmem:[%s6 + $0xd0] sm:$0xff]
  %v2436 = vld [vmem:[%s6 + $0xd8] sm:$0xff]
  %v2437 = vld [vmem:[%s6 + $0xe0] sm:$0xff]
  %v2438 = vld [vmem:[%s6 + $0xe8] sm:$0xff]
  %v2439 = vld [vmem:[%s6 + $0xf0] sm:$0xff]
  %v2440 = vld [vmem:[%s6 + $0xf8] sm:$0xff]
  %v2441 = vld [vmem:[%s6 + $0x100] sm:$0xff]
  %v2442 = vld [vmem:[%s6 + $0x108] sm:$0xff]
  %v2443 = vld [vmem:[%s6 + $0x110] sm:$0xff]
  %v2444 = vld [vmem:[%s6 + $0x118] sm:$0xff]
  %v2445 = vld [vmem:[%s6 + $0x120] sm:$0xff]
  %v2446 = vld [vmem:[%s6 + $0x128] sm:$0xff]
  %v2447 = vld [vmem:[%s6 + $0x130] sm:$0xff]
  %v2448 = vld [vmem:[%s6 + $0x138] sm:$0xff]
  %v2449 = vld [vmem:[%s6 + $0x140] sm:$0xff]
  %v2450 = vld [vmem:[%s6 + $0x148] sm:$0xff]
  %v2451 = vld [vmem:[%s6 + $0x150] sm:$0xff]
  %v2452 = vld [vmem:[%s6 + $0x158] sm:$0xff]
  %v2453 = vld [vmem:[%s6 + $0x160] sm:$0xff]
  %v2454 = vld [vmem:[%s6 + $0x168] sm:$0xff]
  %v2455 = vld [vmem:[%s6 + $0x170] sm:$0xff]
  %v2456 = vld [vmem:[%s6 + $0x178] sm:$0xff]
  %v2457 = vld [vmem:[%s6 + $0x180] sm:$0xff]
  %v2458 = vld [vmem:[%s6 + $0x188] sm:$0xff]
  %v2459 = vld [vmem:[%s6 + $0x190] sm:$0xff]
  %v2460 = vld [vmem:[%s6 + $0x198] sm:$0xff]
  %v2461 = vld [vmem:[%s6 + $0x1a0] sm:$0xff]
  %v2462 = vld [vmem:[%s6 + $0x1a8] sm:$0xff]
  %v2463 = vld [vmem:[%s6 + $0x1b0] sm:$0xff]
  %v2464 = vld [vmem:[%s6 + $0x1b8] sm:$0xff]
  %v2465 = vld [vmem:[%s6 + $0x1c0] sm:$0xff]
  %v2466 = vld [vmem:[%s6 + $0x1c8] sm:$0xff]
  %v2467 = vld [vmem:[%s6 + $0x1d0] sm:$0xff]
  %v2468 = vld [vmem:[%s6 + $0x1d8] sm:$0xff]
  %v2469 = vld [vmem:[%s6 + $0x1e0] sm:$0xff]
  %v2470 = vld [vmem:[%s6 + $0x1e8] sm:$0xff]
  %v2471 = vld [vmem:[%s6 + $0x1f0] sm:$0xff]
  %v2472 = vld [vmem:[%s6 + $0x1f8] sm:$0xff]
  %v2473 = vld [vmem:[%s6 + $0x200] sm:$0xff]
  %v2474 = vld [vmem:[%s6 + $0x208] sm:$0xff]
  %v2475 = vld [vmem:[%s6 + $0x210] sm:$0xff]
  %v2476 = vld [vmem:[%s6 + $0x218] sm:$0xff]
  %v2477 = vld [vmem:[%s6 + $0x220] sm:$0xff]
  %v2478 = vld [vmem:[%s6 + $0x228] sm:$0xff]
  %v2479 = vld [vmem:[%s6 + $0x230] sm:$0xff]
  %v2480 = vld [vmem:[%s6 + $0x238] sm:$0xff]
  %v2481 = vld [vmem:[%s6 + $0x240] sm:$0xff]
  %v2482 = vld [vmem:[%s6 + $0x248] sm:$0xff]
  %v2483 = vld [vmem:[%s6 + $0x250] sm:$0xff]
  %v2484 = vld [vmem:[%s6 + $0x258] sm:$0xff]
  %v2485 = vld [vmem:[%s6 + $0x260] sm:$0xff]
  %v2486 = vld [vmem:[%s6 + $0x268] sm:$0xff]
  %v2487 = vld [vmem:[%s6 + $0x270] sm:$0xff]
  %v2488 = vld [vmem:[%s6 + $0x278] sm:$0xff]
  %v2489 = vld [vmem:[%s6 + $0x280] sm:$0xff]
  %v2490 = vld [vmem:[%s6 + $0x288] sm:$0xff]
  %v2491 = vld [vmem:[%s6 + $0x290] sm:$0xff]
  %v2492 = vld [vmem:[%s6 + $0x298] sm:$0xff]
  %v2493 = vld [vmem:[%s6 + $0x2a0] sm:$0xff]
  %v2494 = vld [vmem:[%s6 + $0x2a8] sm:$0xff]
  %v2495 = vld [vmem:[%s6 + $0x2b0] sm:$0xff]
  %v2496 = vld [vmem:[%s6 + $0x2b8] sm:$0xff]
  %v2497 = vld [vmem:[%s6 + $0x2c0] sm:$0xff]
  %v2498 = vld [vmem:[%s6 + $0x2c8] sm:$0xff]
  %v2499 = vld [vmem:[%s6 + $0x2d0] sm:$0xff]
  %v2500 = vld [vmem:[%s6 + $0x2d8] sm:$0xff]
  %v2501 = vld [vmem:[%s6 + $0x2e0] sm:$0xff]
  %v2502 = vld [vmem:[%s6 + $0x2e8] sm:$0xff]
  %v2503 = vld [vmem:[%s6 + $0x2f0] sm:$0xff]
  %v2504 = vld [vmem:[%s6 + $0x2f8] sm:$0xff]
  %v2505 = vld [vmem:[%s6 + $0x300] sm:$0xff]
  %v2506 = vld [vmem:[%s6 + $0x308] sm:$0xff]
  %v2507 = vld [vmem:[%s6 + $0x310] sm:$0xff]
  %v2508 = vld [vmem:[%s6 + $0x318] sm:$0xff]
  %v2509 = vld [vmem:[%s6 + $0x320] sm:$0xff]
  %v2510 = vld [vmem:[%s6 + $0x328] sm:$0xff]
  %v2511 = vld [vmem:[%s6 + $0x330] sm:$0xff]
  %v2512 = vld [vmem:[%s6 + $0x338] sm:$0xff]
  %v2513 = vld [vmem:[%s6 + $0x340] sm:$0xff]
  %v2514 = vld [vmem:[%s6 + $0x348] sm:$0xff]
  %v2515 = vld [vmem:[%s6 + $0x350] sm:$0xff]
  %v2516 = vld [vmem:[%s6 + $0x358] sm:$0xff]
  %v2517 = vld [vmem:[%s6 + $0x360] sm:$0xff]
  %v2518 = vld [vmem:[%s6 + $0x368] sm:$0xff]
  %v2519 = vld [vmem:[%s6 + $0x370] sm:$0xff]
  %v2520 = vld [vmem:[%s6 + $0x378] sm:$0xff]
  %v2521 = vld [vmem:[%s6 + $0x380] sm:$0xff]
  %v2522 = vld [vmem:[%s6 + $0x388] sm:$0xff]
  %v2523 = vld [vmem:[%s6 + $0x390] sm:$0xff]
  %v2524 = vld [vmem:[%s6 + $0x398] sm:$0xff]
  %v2525 = vld [vmem:[%s6 + $0x3a0] sm:$0xff]
  %v2526 = vld [vmem:[%s6 + $0x3a8] sm:$0xff]
  %v2527 = vld [vmem:[%s6 + $0x3b0] sm:$0xff]
  %v2528 = vld [vmem:[%s6 + $0x3b8] sm:$0xff]
  %v2529 = vld [vmem:[%s6 + $0x3c0] sm:$0xff]
  %v2530 = vld [vmem:[%s6 + $0x3c8] sm:$0xff]
  %v2531 = vld [vmem:[%s6 + $0x3d0] sm:$0xff]
  %v2532 = vld [vmem:[%s6 + $0x3d8] sm:$0xff]
  %v2533 = vld [vmem:[%s6 + $0x3e0] sm:$0xff]
  %v2534 = vld [vmem:[%s6 + $0x3e8] sm:$0xff]
  %v2535 = vld [vmem:[%s6 + $0x3f0] sm:$0xff]
  %v2536 = vld [vmem:[%s6 + $0x3f8] sm:$0xff]
  %v2537 = vld [vmem:[%s6 + $0x400] sm:$0xff]
  %v2538 = vld [vmem:[%s6 + $0x408] sm:$0xff]
  %v2539 = vld [vmem:[%s6 + $0x410] sm:$0xff]
  %v2540 = vld [vmem:[%s6 + $0x418] sm:$0xff]
  %v2541 = vld [vmem:[%s6 + $0x420] sm:$0xff]
  %v2542 = vld [vmem:[%s6 + $0x428] sm:$0xff]
  %v2543 = vld [vmem:[%s6 + $0x430] sm:$0xff]
  %v2544 = vld [vmem:[%s6 + $0x438] sm:$0xff]
  %v2545 = vld [vmem:[%s6 + $0x440] sm:$0xff]
  %v2546 = vld [vmem:[%s6 + $0x448] sm:$0xff]
  %v2547 = vld [vmem:[%s6 + $0x450] sm:$0xff]
  %v2548 = vld [vmem:[%s6 + $0x458] sm:$0xff]
  %v2549 = vld [vmem:[%s6 + $0x460] sm:$0xff]
  %v2550 = vld [vmem:[%s6 + $0x468] sm:$0xff]
  %v2551 = vld [vmem:[%s6 + $0x470] sm:$0xff]
  %v2552 = vld [vmem:[%s6 + $0x478] sm:$0xff]
  %v2553 = vld [vmem:[%s6 + $0x480] sm:$0xff]
  %v2554 = vld [vmem:[%s6 + $0x488] sm:$0xff]
  %v2555 = vld [vmem:[%s6 + $0x490] sm:$0xff]
  %v2556 = vld [vmem:[%s6 + $0x498] sm:$0xff]
  %v2557 = vld [vmem:[%s6 + $0x4a0] sm:$0xff]
  %v2558 = vld [vmem:[%s6 + $0x4a8] sm:$0xff]
  %v2559 = vld [vmem:[%s6 + $0x4b0] sm:$0xff]
  %v2560 = vld [vmem:[%s6 + $0x4b8] sm:$0xff]
  %v2561 = vld [vmem:[%s6 + $0x4c0] sm:$0xff]
  %v2562 = vld [vmem:[%s6 + $0x4c8] sm:$0xff]
  %v2563 = vld [vmem:[%s6 + $0x4d0] sm:$0xff]
  %v2564 = vld [vmem:[%s6 + $0x4d8] sm:$0xff]
  %v2565 = vld [vmem:[%s6 + $0x4e0] sm:$0xff]
  %v2566 = vld [vmem:[%s6 + $0x4e8] sm:$0xff]
  %v2567 = vld [vmem:[%s6 + $0x4f0] sm:$0xff]
  %v2568 = vld [vmem:[%s6 + $0x4f8] sm:$0xff]
  %v2569 = vld [vmem:[%s6 + $0x500] sm:$0xff]
  %v2570 = vld [vmem:[%s6 + $0x508] sm:$0xff]
  %v2571 = vld [vmem:[%s6 + $0x510] sm:$0xff]
  %v2572 = vld [vmem:[%s6 + $0x518] sm:$0xff]
  %v2573 = vld [vmem:[%s6 + $0x520] sm:$0xff]
  %v2574 = vld [vmem:[%s6 + $0x528] sm:$0xff]
  %v2575 = vld [vmem:[%s6 + $0x530] sm:$0xff]
  %v2576 = vld [vmem:[%s6 + $0x538] sm:$0xff]
  %v2577 = vld [vmem:[%s6 + $0x540] sm:$0xff]
  %v2578 = vld [vmem:[%s6 + $0x548] sm:$0xff]
  %v2579 = vld [vmem:[%s6 + $0x550] sm:$0xff]
  %v2580 = vld [vmem:[%s6 + $0x558] sm:$0xff]
  %v2581 = vld [vmem:[%s6 + $0x560] sm:$0xff]
  %v2582 = vld [vmem:[%s6 + $0x568] sm:$0xff]
  %v2583 = vld [vmem:[%s6 + $0x570] sm:$0xff]
  %v2584 = vld [vmem:[%s6 + $0x578] sm:$0xff]
  %v2585 = vld [vmem:[%s6 + $0x580] sm:$0xff]
  %v2586 = vld [vmem:[%s6 + $0x588] sm:$0xff]
  %v2587 = vld [vmem:[%s6 + $0x590] sm:$0xff]
  %v2588 = vld [vmem:[%s6 + $0x598] sm:$0xff]
  %v2589 = vld [vmem:[%s6 + $0x5a0] sm:$0xff]
  %v2590 = vld [vmem:[%s6 + $0x5a8] sm:$0xff]
  %v2591 = vld [vmem:[%s6 + $0x5b0] sm:$0xff]
  %v2592 = vld [vmem:[%s6 + $0x5b8] sm:$0xff]
  %v2593 = vld [vmem:[%s6 + $0x5c0] sm:$0xff]
  %v2594 = vld [vmem:[%s6 + $0x5c8] sm:$0xff]
  %v2595 = vld [vmem:[%s6 + $0x5d0] sm:$0xff]
  %v2596 = vld [vmem:[%s6 + $0x5d8] sm:$0xff]
  %v2597 = vld [vmem:[%s6 + $0x5e0] sm:$0xff]
  %v2598 = vld [vmem:[%s6 + $0x5e8] sm:$0xff]
  %v2599 = vld [vmem:[%s6 + $0x5f0] sm:$0xff]
  %v2600 = vld [vmem:[%s6 + $0x5f8] sm:$0xff]
  %v2601 = vld [vmem:[%s6 + $0x600] sm:$0xff]
  %v2602 = vld [vmem:[%s6 + $0x608] sm:$0xff]
  %v2603 = vld [vmem:[%s6 + $0x610] sm:$0xff]
  %v2604 = vld [vmem:[%s6 + $0x618] sm:$0xff]
  %v2605 = vld [vmem:[%s6 + $0x620] sm:$0xff]
  %v2606 = vld [vmem:[%s6 + $0x628] sm:$0xff]
  %v2607 = vld [vmem:[%s6 + $0x630] sm:$0xff]
  %v2608 = vld [vmem:[%s6 + $0x638] sm:$0xff]
  %v2609 = vld [vmem:[%s6 + $0x640] sm:$0xff]
  %v2610 = vld [vmem:[%s6 + $0x648] sm:$0xff]
  %v2611 = vld [vmem:[%s6 + $0x650] sm:$0xff]
  %v2612 = vld [vmem:[%s6 + $0x658] sm:$0xff]
  %v2613 = vld [vmem:[%s6 + $0x660] sm:$0xff]
  %v2614 = vld [vmem:[%s6 + $0x668] sm:$0xff]
  %v2615 = vld [vmem:[%s6 + $0x670] sm:$0xff]
  %v2616 = vld [vmem:[%s6 + $0x678] sm:$0xff]
  %v2617 = vld [vmem:[%s6 + $0x680] sm:$0xff]
  %v2618 = vld [vmem:[%s6 + $0x688] sm:$0xff]
  %v2619 = vld [vmem:[%s6 + $0x690] sm:$0xff]
  %v2620 = vld [vmem:[%s6 + $0x698] sm:$0xff]
  %v2621 = vld [vmem:[%s6 + $0x6a0] sm:$0xff]
  %v2622 = vld [vmem:[%s6 + $0x6a8] sm:$0xff]
  %v2623 = vld [vmem:[%s6 + $0x6b0] sm:$0xff]
  %v2624 = vld [vmem:[%s6 + $0x6b8] sm:$0xff]
  %v2625 = vld [vmem:[%s6 + $0x6c0] sm:$0xff]
  %v2626 = vld [vmem:[%s6 + $0x6c8] sm:$0xff]
  %v2627 = vld [vmem:[%s6 + $0x6d0] sm:$0xff]
  %v2628 = vld [vmem:[%s6 + $0x6d8] sm:$0xff]
  %v2629 = vld [vmem:[%s6 + $0x6e0] sm:$0xff]
  %v2630 = vld [vmem:[%s6 + $0x6e8] sm:$0xff]
  %v2631 = vld [vmem:[%s6 + $0x6f0] sm:$0xff]
  %v2632 = vld [vmem:[%s6 + $0x6f8] sm:$0xff]
  %v2633 = vld [vmem:[%s6 + $0x700] sm:$0xff]
  %v2634 = vld [vmem:[%s6 + $0x708] sm:$0xff]
  %v2635 = vld [vmem:[%s6 + $0x710] sm:$0xff]
  %v2636 = vld [vmem:[%s6 + $0x718] sm:$0xff]
  %v2637 = vld [vmem:[%s6 + $0x720] sm:$0xff]
  %v2638 = vld [vmem:[%s6 + $0x728] sm:$0xff]
  %v2639 = vld [vmem:[%s6 + $0x730] sm:$0xff]
  %v2640 = vld [vmem:[%s6 + $0x738] sm:$0xff]
  %v2641 = vld [vmem:[%s6 + $0x740] sm:$0xff]
  %v2642 = vld [vmem:[%s6 + $0x748] sm:$0xff]
  %v2643 = vld [vmem:[%s6 + $0x750] sm:$0xff]
  %v2644 = vld [vmem:[%s6 + $0x758] sm:$0xff]
  %v2645 = vld [vmem:[%s6 + $0x760] sm:$0xff]
  %v2646 = vld [vmem:[%s6 + $0x768] sm:$0xff]
  %v2647 = vld [vmem:[%s6 + $0x770] sm:$0xff]
  %v2648 = vld [vmem:[%s6 + $0x778] sm:$0xff]
  %v2649 = vld [vmem:[%s6 + $0x780] sm:$0xff]
  %v2650 = vld [vmem:[%s6 + $0x788] sm:$0xff]
  %v2651 = vld [vmem:[%s6 + $0x790] sm:$0xff]
  %v2652 = vld [vmem:[%s6 + $0x798] sm:$0xff]
  %v2653 = vld [vmem:[%s6 + $0x7a0] sm:$0xff]
  %v2654 = vld [vmem:[%s6 + $0x7a8] sm:$0xff]
  %v2655 = vld [vmem:[%s6 + $0x7b0] sm:$0xff]
  %v2656 = vld [vmem:[%s6 + $0x7b8] sm:$0xff]
  %v2657 = vld [vmem:[%s6 + $0x7c0] sm:$0xff]
  %v2658 = vld [vmem:[%s6 + $0x7c8] sm:$0xff]
  %v2659 = vld [vmem:[%s6 + $0x7d0] sm:$0xff]
  %v2660 = vld [vmem:[%s6 + $0x7d8] sm:$0xff]
  %v2661 = vld [vmem:[%s6 + $0x7e0] sm:$0xff]
  %v2662 = vld [vmem:[%s6 + $0x7e8] sm:$0xff]
  %v2663 = vld [vmem:[%s6 + $0x7f0] sm:$0xff]
  %v2664 = vld [vmem:[%s6 + $0x7f8] sm:$0xff]
  %v2665 = vld [vmem:[%s6 + $0x800] sm:$0xff]
  %v2666 = vld [vmem:[%s6 + $0x808] sm:$0xff]
  %v2667 = vld [vmem:[%s6 + $0x810] sm:$0xff]
  %v2668 = vld [vmem:[%s6 + $0x818] sm:$0xff]
  %v2669 = vld [vmem:[%s6 + $0x820] sm:$0xff]
  %v2670 = vld [vmem:[%s6 + $0x828] sm:$0xff]
  %v2671 = vld [vmem:[%s6 + $0x830] sm:$0xff]
  %v2672 = vld [vmem:[%s6 + $0x838] sm:$0xff]
  %v2673 = vld [vmem:[%s6 + $0x840] sm:$0xff]
  %v2674 = vld [vmem:[%s6 + $0x848] sm:$0xff]
  %v2675 = vld [vmem:[%s6 + $0x850] sm:$0xff]
  %v2676 = vld [vmem:[%s6 + $0x858] sm:$0xff]
  %v2677 = vld [vmem:[%s6 + $0x860] sm:$0xff]
  %v2678 = vld [vmem:[%s6 + $0x868] sm:$0xff]
  %v2679 = vld [vmem:[%s6 + $0x870] sm:$0xff]
  %v2680 = vld [vmem:[%s6 + $0x878] sm:$0xff]
  %v2681 = vld [vmem:[%s6 + $0x880] sm:$0xff]
  %v2682 = vld [vmem:[%s6 + $0x888] sm:$0xff]
  %v2683 = vld [vmem:[%s6 + $0x890] sm:$0xff]
  %v2684 = vld [vmem:[%s6 + $0x898] sm:$0xff]
  %v2685 = vld [vmem:[%s6 + $0x8a0] sm:$0xff]
  %v2686 = vld [vmem:[%s6 + $0x8a8] sm:$0xff]
  %v2687 = vld [vmem:[%s6 + $0x8b0] sm:$0xff]
  %v2688 = vld [vmem:[%s6 + $0x8b8] sm:$0xff]
  %v2689 = vld [vmem:[%s6 + $0x8c0] sm:$0xff]
  %v2690 = vld [vmem:[%s6 + $0x8c8] sm:$0xff]
  %v2691 = vld [vmem:[%s6 + $0x8d0] sm:$0xff]
  %v2692 = vld [vmem:[%s6 + $0x8d8] sm:$0xff]
  %v2693 = vld [vmem:[%s6 + $0x8e0] sm:$0xff]
  %v2694 = vld [vmem:[%s6 + $0x8e8] sm:$0xff]
  %v2695 = vld [vmem:[%s6 + $0x8f0] sm:$0xff]
  %v2696 = vld [vmem:[%s6 + $0x8f8] sm:$0xff]
  %v2697 = vld [vmem:[%s6 + $0x900] sm:$0xff]
  %v2698 = vld [vmem:[%s6 + $0x908] sm:$0xff]
  %v2699 = vld [vmem:[%s6 + $0x910] sm:$0xff]
  %v2700 = vld [vmem:[%s6 + $0x918] sm:$0xff]
  %v2701 = vld [vmem:[%s6 + $0x920] sm:$0xff]
  %v2702 = vld [vmem:[%s6 + $0x928] sm:$0xff]
  %v2703 = vld [vmem:[%s6 + $0x930] sm:$0xff]
  %v2704 = vld [vmem:[%s6 + $0x938] sm:$0xff]
  %v2705 = vld [vmem:[%s6 + $0x940] sm:$0xff]
  %v2706 = vld [vmem:[%s6 + $0x948] sm:$0xff]
  %v2707 = vld [vmem:[%s6 + $0x950] sm:$0xff]
  %v2708 = vld [vmem:[%s6 + $0x958] sm:$0xff]
  %v2709 = vld [vmem:[%s6 + $0x960] sm:$0xff]
  %v2710 = vld [vmem:[%s6 + $0x968] sm:$0xff]
  %v2711 = vld [vmem:[%s6 + $0x970] sm:$0xff]
  %v2712 = vld [vmem:[%s6 + $0x978] sm:$0xff]
  %v2713 = vld [vmem:[%s6 + $0x980] sm:$0xff]
  %v2714 = vld [vmem:[%s6 + $0x988] sm:$0xff]
  %v2715 = vld [vmem:[%s6 + $0x990] sm:$0xff]
  %v2716 = vld [vmem:[%s6 + $0x998] sm:$0xff]
  %v2717 = vld [vmem:[%s6 + $0x9a0] sm:$0xff]
  %v2718 = vld [vmem:[%s6 + $0x9a8] sm:$0xff]
  %v2719 = vld [vmem:[%s6 + $0x9b0] sm:$0xff]
  %v2720 = vld [vmem:[%s6 + $0x9b8] sm:$0xff]
  %v2721 = vld [vmem:[%s6 + $0x9c0] sm:$0xff]
  %v2722 = vld [vmem:[%s6 + $0x9c8] sm:$0xff]
  %v2723 = vld [vmem:[%s6 + $0x9d0] sm:$0xff]
  %v2724 = vld [vmem:[%s6 + $0x9d8] sm:$0xff]
  %v2725 = vld [vmem:[%s6 + $0x9e0] sm:$0xff]
  %v2726 = vld [vmem:[%s6 + $0x9e8] sm:$0xff]
  %v2727 = vld [vmem:[%s6 + $0x9f0] sm:$0xff]
  %v2728 = vld [vmem:[%s6 + $0x9f8] sm:$0xff]
  %v2729 = vld [vmem:[%s6 + $0xa00] sm:$0xff]
  %v2730 = vld [vmem:[%s6 + $0xa08] sm:$0xff]
  %v2731 = vld [vmem:[%s6 + $0xa10] sm:$0xff]
  %v2732 = vld [vmem:[%s6 + $0xa18] sm:$0xff]
  %v2733 = vld [vmem:[%s6 + $0xa20] sm:$0xff]
  %v2734 = vld [vmem:[%s6 + $0xa28] sm:$0xff]
  %v2735 = vld [vmem:[%s6 + $0xa30] sm:$0xff]
  %v2736 = vld [vmem:[%s6 + $0xa38] sm:$0xff]
  %v2737 = vld [vmem:[%s6 + $0xa40] sm:$0xff]
  %v2738 = vld [vmem:[%s6 + $0xa48] sm:$0xff]
  %v2739 = vld [vmem:[%s6 + $0xa50] sm:$0xff]
  %v2740 = vld [vmem:[%s6 + $0xa58] sm:$0xff]
  %v2741 = vld [vmem:[%s6 + $0xa60] sm:$0xff]
  %v2742 = vld [vmem:[%s6 + $0xa68] sm:$0xff]
  %v2743 = vld [vmem:[%s6 + $0xa70] sm:$0xff]
  %v2744 = vld [vmem:[%s6 + $0xa78] sm:$0xff]
  %v2745 = vld [vmem:[%s6 + $0xa80] sm:$0xff]
  %v2746 = vld [vmem:[%s6 + $0xa88] sm:$0xff]
  %v2747 = vld [vmem:[%s6 + $0xa90] sm:$0xff]
  %v2748 = vld [vmem:[%s6 + $0xa98] sm:$0xff]
  %v2749 = vld [vmem:[%s6 + $0xaa0] sm:$0xff]
  %v2750 = vld [vmem:[%s6 + $0xaa8] sm:$0xff]
  %v2751 = vld [vmem:[%s6 + $0xab0] sm:$0xff]
  %v2752 = vld [vmem:[%s6 + $0xab8] sm:$0xff]
  %v2753 = vld [vmem:[%s6 + $0xac0] sm:$0xff]
  %v2754 = vld [vmem:[%s6 + $0xac8] sm:$0xff]
  %v2755 = vld [vmem:[%s6 + $0xad0] sm:$0xff]
  %v2756 = vld [vmem:[%s6 + $0xad8] sm:$0xff]
  %v2757 = vld [vmem:[%s6 + $0xae0] sm:$0xff]
  %v2758 = vld [vmem:[%s6 + $0xae8] sm:$0xff]
  %v2759 = vld [vmem:[%s6 + $0xaf0] sm:$0xff]
  %v2760 = vld [vmem:[%s6 + $0xaf8] sm:$0xff]
  %v2761 = vld [vmem:[%s6 + $0xb00] sm:$0xff]
  %v2762 = vld [vmem:[%s6 + $0xb08] sm:$0xff]
  %v2763 = vld [vmem:[%s6 + $0xb10] sm:$0xff]
  %v2764 = vld [vmem:[%s6 + $0xb18] sm:$0xff]
  %v2765 = vld [vmem:[%s6 + $0xb20] sm:$0xff]
  %v2766 = vld [vmem:[%s6 + $0xb28] sm:$0xff]
  %v2767 = vld [vmem:[%s6 + $0xb30] sm:$0xff]
  %v2768 = vld [vmem:[%s6 + $0xb38] sm:$0xff]
  %v2769 = vld [vmem:[%s6 + $0xb40] sm:$0xff]
  %v2770 = vld [vmem:[%s6 + $0xb48] sm:$0xff]
  %v2771 = vld [vmem:[%s6 + $0xb50] sm:$0xff]
  %v2772 = vld [vmem:[%s6 + $0xb58] sm:$0xff]
  %v2773 = vld [vmem:[%s6 + $0xb60] sm:$0xff]
  %v2774 = vld [vmem:[%s6 + $0xb68] sm:$0xff]
  %v2775 = vld [vmem:[%s6 + $0xb70] sm:$0xff]
  %v2776 = vld [vmem:[%s6 + $0xb78] sm:$0xff]
  %v2777 = vld [vmem:[%s6 + $0xb80] sm:$0xff]
  %v2778 = vld [vmem:[%s6 + $0xb88] sm:$0xff]
  %v2779 = vld [vmem:[%s6 + $0xb90] sm:$0xff]
  %v2780 = vld [vmem:[%s6 + $0xb98] sm:$0xff]
  %v2781 = vld [vmem:[%s6 + $0xba0] sm:$0xff]
  %v2782 = vld [vmem:[%s6 + $0xba8] sm:$0xff]
  %v2783 = vld [vmem:[%s6 + $0xbb0] sm:$0xff]
  %v2784 = vld [vmem:[%s6 + $0xbb8] sm:$0xff]
  %v2785 = vld [vmem:[%s6 + $0xbc0] sm:$0xff]
  %v2786 = vld [vmem:[%s6 + $0xbc8] sm:$0xff]
  %v2787 = vld [vmem:[%s6 + $0xbd0] sm:$0xff]
  %v2788 = vld [vmem:[%s6 + $0xbd8] sm:$0xff]
  %v2789 = vld [vmem:[%s6 + $0xbe0] sm:$0xff]
  %v2790 = vld [vmem:[%s6 + $0xbe8] sm:$0xff]
  %v2791 = vld [vmem:[%s6 + $0xbf0] sm:$0xff]
  %v2792 = vld [vmem:[%s6 + $0xbf8] sm:$0xff]
  %v2793 = vld [vmem:[%s6 + $0xc00] sm:$0xff]
  %v2794 = vld [vmem:[%s6 + $0xc08] sm:$0xff]
  %v2795 = vld [vmem:[%s6 + $0xc10] sm:$0xff]
  %v2796 = vld [vmem:[%s6 + $0xc18] sm:$0xff]
  %v2797 = vld [vmem:[%s6 + $0xc20] sm:$0xff]
  %v2798 = vld [vmem:[%s6 + $0xc28] sm:$0xff]
  %v2799 = vld [vmem:[%s6 + $0xc30] sm:$0xff]
  %v2800 = vld [vmem:[%s6 + $0xc38] sm:$0xff]
  %v2801 = vld [vmem:[%s6 + $0xc40] sm:$0xff]
  %v2802 = vld [vmem:[%s6 + $0xc48] sm:$0xff]
  %v2803 = vld [vmem:[%s6 + $0xc50] sm:$0xff]
  %v2804 = vld [vmem:[%s6 + $0xc58] sm:$0xff]
  %v2805 = vld [vmem:[%s6 + $0xc60] sm:$0xff]
  %v2806 = vld [vmem:[%s6 + $0xc68] sm:$0xff]
  %v2807 = vld [vmem:[%s6 + $0xc70] sm:$0xff]
  %v2808 = vld [vmem:[%s6 + $0xc78] sm:$0xff]
  %v2809 = vld [vmem:[%s6 + $0xc80] sm:$0xff]
  %v2810 = vld [vmem:[%s6 + $0xc88] sm:$0xff]
  %v2811 = vld [vmem:[%s6 + $0xc90] sm:$0xff]
  %v2812 = vld [vmem:[%s6 + $0xc98] sm:$0xff]
  %v2813 = vld [vmem:[%s6 + $0xca0] sm:$0xff]
  %v2814 = vld [vmem:[%s6 + $0xca8] sm:$0xff]
  %v2815 = vld [vmem:[%s6 + $0xcb0] sm:$0xff]
  %v2816 = vld [vmem:[%s6 + $0xcb8] sm:$0xff]
  %v2817 = vld [vmem:[%s6 + $0xcc0] sm:$0xff]
  %v2818 = vld [vmem:[%s6 + $0xcc8] sm:$0xff]
  %v2819 = vld [vmem:[%s6 + $0xcd0] sm:$0xff]
  %v2820 = vld [vmem:[%s6 + $0xcd8] sm:$0xff]
  %v2821 = vld [vmem:[%s6 + $0xce0] sm:$0xff]
  %v2822 = vld [vmem:[%s6 + $0xce8] sm:$0xff]
  %v2823 = vld [vmem:[%s6 + $0xcf0] sm:$0xff]
  %v2824 = vld [vmem:[%s6 + $0xcf8] sm:$0xff]
  %v2825 = vld [vmem:[%s6 + $0xd00] sm:$0xff]
  %v2826 = vld [vmem:[%s6 + $0xd08] sm:$0xff]
  %v2827 = vld [vmem:[%s6 + $0xd10] sm:$0xff]
  %v2828 = vld [vmem:[%s6 + $0xd18] sm:$0xff]
  %v2829 = vld [vmem:[%s6 + $0xd20] sm:$0xff]
  %v2830 = vld [vmem:[%s6 + $0xd28] sm:$0xff]
  %v2831 = vld [vmem:[%s6 + $0xd30] sm:$0xff]
  %v2832 = vld [vmem:[%s6 + $0xd38] sm:$0xff]
  %v2833 = vld [vmem:[%s6 + $0xd40] sm:$0xff]
  %v2834 = vld [vmem:[%s6 + $0xd48] sm:$0xff]
  %v2835 = vld [vmem:[%s6 + $0xd50] sm:$0xff]
  %v2836 = vld [vmem:[%s6 + $0xd58] sm:$0xff]
  %v2837 = vld [vmem:[%s6 + $0xd60] sm:$0xff]
  %v2838 = vld [vmem:[%s6 + $0xd68] sm:$0xff]
  %v2839 = vld [vmem:[%s6 + $0xd70] sm:$0xff]
  %v2840 = vld [vmem:[%s6 + $0xd78] sm:$0xff]
  %v2841 = vld [vmem:[%s6 + $0xd80] sm:$0xff]
  %v2842 = vld [vmem:[%s6 + $0xd88] sm:$0xff]
  %v2843 = vld [vmem:[%s6 + $0xd90] sm:$0xff]
  %v2844 = vld [vmem:[%s6 + $0xd98] sm:$0xff]
  %v2845 = vld [vmem:[%s6 + $0xda0] sm:$0xff]
  %v2846 = vld [vmem:[%s6 + $0xda8] sm:$0xff]
  %v2847 = vld [vmem:[%s6 + $0xdb0] sm:$0xff]
  %v2848 = vld [vmem:[%s6 + $0xdb8] sm:$0xff]
  %v2849 = vld [vmem:[%s6 + $0xdc0] sm:$0xff]
  %v2850 = vld [vmem:[%s6 + $0xdc8] sm:$0xff]
  %v2851 = vld [vmem:[%s6 + $0xdd0] sm:$0xff]
  %v2852 = vld [vmem:[%s6 + $0xdd8] sm:$0xff]
  %v2853 = vld [vmem:[%s6 + $0xde0] sm:$0xff]
  %v2854 = vld [vmem:[%s6 + $0xde8] sm:$0xff]
  %v2855 = vld [vmem:[%s6 + $0xdf0] sm:$0xff]
  %v2856 = vld [vmem:[%s6 + $0xdf8] sm:$0xff]
  %v2857 = vld [vmem:[%s6 + $0xe00] sm:$0xff]
  %v2858 = vld [vmem:[%s6 + $0xe08] sm:$0xff]
  %v2859 = vld [vmem:[%s6 + $0xe10] sm:$0xff]
  %v2860 = vld [vmem:[%s6 + $0xe18] sm:$0xff]
  %v2861 = vld [vmem:[%s6 + $0xe20] sm:$0xff]
  %v2862 = vld [vmem:[%s6 + $0xe28] sm:$0xff]
  %v2863 = vld [vmem:[%s6 + $0xe30] sm:$0xff]
  %v2864 = vld [vmem:[%s6 + $0xe38] sm:$0xff]
  %v2865 = vld [vmem:[%s6 + $0xe40] sm:$0xff]
  %v2866 = vld [vmem:[%s6 + $0xe48] sm:$0xff]
  %v2867 = vld [vmem:[%s6 + $0xe50] sm:$0xff]
  %v2868 = vld [vmem:[%s6 + $0xe58] sm:$0xff]
  %v2869 = vld [vmem:[%s6 + $0xe60] sm:$0xff]
  %v2870 = vld [vmem:[%s6 + $0xe68] sm:$0xff]
  %v2871 = vld [vmem:[%s6 + $0xe70] sm:$0xff]
  %v2872 = vld [vmem:[%s6 + $0xe78] sm:$0xff]
  %v2873 = vld [vmem:[%s6 + $0xe80] sm:$0xff]
  %v2874 = vld [vmem:[%s6 + $0xe88] sm:$0xff]
  %v2875 = vld [vmem:[%s6 + $0xe90] sm:$0xff]
  %v2876 = vld [vmem:[%s6 + $0xe98] sm:$0xff]
  %v2877 = vld [vmem:[%s6 + $0xea0] sm:$0xff]
  %v2878 = vld [vmem:[%s6 + $0xea8] sm:$0xff]
  %v2879 = vld [vmem:[%s6 + $0xeb0] sm:$0xff]
  %v2880 = vld [vmem:[%s6 + $0xeb8] sm:$0xff]
  %v2881 = vld [vmem:[%s6 + $0xec0] sm:$0xff]
  %v2882 = vld [vmem:[%s6 + $0xec8] sm:$0xff]
  %v2883 = vld [vmem:[%s6 + $0xed0] sm:$0xff]
  %v2884 = vld [vmem:[%s6 + $0xed8] sm:$0xff]
  %v2885 = vld [vmem:[%s6 + $0xee0] sm:$0xff]
  %v2886 = vld [vmem:[%s6 + $0xee8] sm:$0xff]
  %v2887 = vld [vmem:[%s6 + $0xef0] sm:$0xff]
  %v2888 = vld [vmem:[%s6 + $0xef8] sm:$0xff]
  %v2889 = vld [vmem:[%s6 + $0xf00] sm:$0xff]
  %v2890 = vld [vmem:[%s6 + $0xf08] sm:$0xff]
  %v2891 = vld [vmem:[%s6 + $0xf10] sm:$0xff]
  %v2892 = vld [vmem:[%s6 + $0xf18] sm:$0xff]
  %v2893 = vld [vmem:[%s6 + $0xf20] sm:$0xff]
  %v2894 = vld [vmem:[%s6 + $0xf28] sm:$0xff]
  %v2895 = vld [vmem:[%s6 + $0xf30] sm:$0xff]
  %v2896 = vld [vmem:[%s6 + $0xf38] sm:$0xff]
  %v2897 = vld [vmem:[%s6 + $0xf40] sm:$0xff]
  %v2898 = vld [vmem:[%s6 + $0xf48] sm:$0xff]
  %v2899 = vld [vmem:[%s6 + $0xf50] sm:$0xff]
  %v2900 = vld [vmem:[%s6 + $0xf58] sm:$0xff]
  %v2901 = vld [vmem:[%s6 + $0xf60] sm:$0xff]
  %v2902 = vld [vmem:[%s6 + $0xf68] sm:$0xff]
  %v2903 = vld [vmem:[%s6 + $0xf70] sm:$0xff]
  %v2904 = vld [vmem:[%s6 + $0xf78] sm:$0xff]
  %v2905 = vld [vmem:[%s6 + $0xf80] sm:$0xff]
  %v2906 = vld [vmem:[%s6 + $0xf88] sm:$0xff]
  %v2907 = vld [vmem:[%s6 + $0xf90] sm:$0xff]
  %v2908 = vld [vmem:[%s6 + $0xf98] sm:$0xff]
  %v2909 = vld [vmem:[%s6 + $0xfa0] sm:$0xff]
  %v2910 = vld [vmem:[%s6 + $0xfa8] sm:$0xff]
  %v2911 = vld [vmem:[%s6 + $0xfb0] sm:$0xff]
  %v2912 = vld [vmem:[%s6 + $0xfb8] sm:$0xff]
  %v2913 = vld [vmem:[%s6 + $0xfc0] sm:$0xff]
  %v2914 = vld [vmem:[%s6 + $0xfc8] sm:$0xff]
  %v2915 = vld [vmem:[%s6 + $0xfd0] sm:$0xff]
  %v2916 = vld [vmem:[%s6 + $0xfd8] sm:$0xff]
  %v2917 = vld [vmem:[%s6 + $0xfe0] sm:$0xff]
  %v2918 = vld [vmem:[%s6 + $0xfe8] sm:$0xff]
  %v2919 = vld [vmem:[%s6 + $0xff0] sm:$0xff]
  %v2920 = vld [vmem:[%s6 + $0xff8] sm:$0xff]
  %v2921 = vld [vmem:[%s7] sm:$0x3]
  %v2923 = vperm.slane %v2921, 0
  %v2924 = vperm.slane %v2921, 1
  %2927 = vmatpush.msra.mxu0 %v2439
  %2928 = vmatpush.msra.mxu0 %v2437
  %2929 = vmatpush.msra.mxu0 %v2435
  %2930 = vmatpush.msra.mxu0 %v2433
  %2931 = vmatpush.msra.mxu0 %v2431
  %2932 = vmatpush.msra.mxu0 %v2429
  %2933 = vmatpush.msra.mxu0 %v2427
  %2934 = vmatpush.msra.mxu0 %v2425
  %2935 = vmatpush.msra.mxu0 %v2423
  %2936 = vmatpush.msra.mxu0 %v2421
  %2937 = vmatpush.msra.mxu0 %v2419
  %2938 = vmatpush.msra.mxu0 %v2417
  %2939 = vmatpush.msra.mxu0 %v2415
  %2940 = vmatpush.msra.mxu0 %v2413
  %2941 = vmatpush.msra.mxu0 %v2411
  %2942 = vmatpush.msra.mxu0 %v2409
  %2943 = vmatmul.f32.gmra.mxu0 %v2333
  %v2944 = vpop.f32.mrf.mxu0
  %v2945 = vadd.f32 %v2923, %v2944
  %2946 = vdwg.mxu0
  %2947 = vmatpush.msra.mxu0 %v2471
  %2948 = vmatpush.msra.mxu0 %v2469
  %2949 = vmatpush.msra.mxu0 %v2467
  %2950 = vmatpush.msra.mxu0 %v2465
  %2951 = vmatpush.msra.mxu0 %v2463
  %2952 = vmatpush.msra.mxu0 %v2461
  %2953 = vmatpush.msra.mxu0 %v2459
  %2954 = vmatpush.msra.mxu0 %v2457
  %2955 = vmatpush.msra.mxu0 %v2455
  %2956 = vmatpush.msra.mxu0 %v2453
  %2957 = vmatpush.msra.mxu0 %v2451
  %2958 = vmatpush.msra.mxu0 %v2449
  %2959 = vmatpush.msra.mxu0 %v2447
  %2960 = vmatpush.msra.mxu0 %v2445
  %2961 = vmatpush.msra.mxu0 %v2443
  %2962 = vmatpush.msra.mxu0 %v2441
  %2963 = vmatmul.f32.gmra.mxu0 %v2340
  %v2964 = vpop.f32.mrf.mxu0
  %v2965 = vadd.f32 %v2945, %v2964
  %2966 = vdwg.mxu0
  %2967 = vmatpush.msra.mxu0 %v2503
  %2968 = vmatpush.msra.mxu0 %v2501
  %2969 = vmatpush.msra.mxu0 %v2499
  %2970 = vmatpush.msra.mxu0 %v2497
  %2971 = vmatpush.msra.mxu0 %v2495
  %2972 = vmatpush.msra.mxu0 %v2493
  %2973 = vmatpush.msra.mxu0 %v2491
  %2974 = vmatpush.msra.mxu0 %v2489
  %2975 = vmatpush.msra.mxu0 %v2487
  %2976 = vmatpush.msra.mxu0 %v2485
  %2977 = vmatpush.msra.mxu0 %v2483
  %2978 = vmatpush.msra.mxu0 %v2481
  %2979 = vmatpush.msra.mxu0 %v2479
  %2980 = vmatpush.msra.mxu0 %v2477
  %2981 = vmatpush.msra.mxu0 %v2475
  %2982 = vmatpush.msra.mxu0 %v2473
  %2983 = vmatmul.f32.gmra.mxu0 %v2345
  %v2984 = vpop.f32.mrf.mxu0
  %v2985 = vadd.f32 %v2965, %v2984
  %2986 = vdwg.mxu0
  %2987 = vmatpush.msra.mxu0 %v2535
  %2988 = vmatpush.msra.mxu0 %v2533
  %2989 = vmatpush.msra.mxu0 %v2531
  %2990 = vmatpush.msra.mxu0 %v2529
  %2991 = vmatpush.msra.mxu0 %v2527
  %2992 = vmatpush.msra.mxu0 %v2525
  %2993 = vmatpush.msra.mxu0 %v2523
  %2994 = vmatpush.msra.mxu0 %v2521
  %2995 = vmatpush.msra.mxu0 %v2519
  %2996 = vmatpush.msra.mxu0 %v2517
  %2997 = vmatpush.msra.mxu0 %v2515
  %2998 = vmatpush.msra.mxu0 %v2513
  %2999 = vmatpush.msra.mxu0 %v2511
  %3000 = vmatpush.msra.mxu0 %v2509
  %3001 = vmatpush.msra.mxu0 %v2507
  %3002 = vmatpush.msra.mxu0 %v2505
  %3003 = vmatmul.f32.gmra.mxu0 %v2350
  %v3004 = vpop.f32.mrf.mxu0
  %v3005 = vadd.f32 %v2985, %v3004
  %3006 = vdwg.mxu0
  %3007 = vmatpush.msra.mxu0 %v2567
  %3008 = vmatpush.msra.mxu0 %v2565
  %3009 = vmatpush.msra.mxu0 %v2563
  %3010 = vmatpush.msra.mxu0 %v2561
  %3011 = vmatpush.msra.mxu0 %v2559
  %3012 = vmatpush.msra.mxu0 %v2557
  %3013 = vmatpush.msra.mxu0 %v2555
  %3014 = vmatpush.msra.mxu0 %v2553
  %3015 = vmatpush.msra.mxu0 %v2551
  %3016 = vmatpush.msra.mxu0 %v2549
  %3017 = vmatpush.msra.mxu0 %v2547
  %3018 = vmatpush.msra.mxu0 %v2545
  %3019 = vmatpush.msra.mxu0 %v2543
  %3020 = vmatpush.msra.mxu0 %v2541
  %3021 = vmatpush.msra.mxu0 %v2539
  %3022 = vmatpush.msra.mxu0 %v2537
  %3023 = vmatmul.f32.gmra.mxu0 %v2357
  %v3024 = vpop.f32.mrf.mxu0
  %v3025 = vadd.f32 %v3005, %v3024
  %3026 = vdwg.mxu0
  %3027 = vmatpush.msra.mxu0 %v2599
  %3028 = vmatpush.msra.mxu0 %v2597
  %3029 = vmatpush.msra.mxu0 %v2595
  %3030 = vmatpush.msra.mxu0 %v2593
  %3031 = vmatpush.msra.mxu0 %v2591
  %3032 = vmatpush.msra.mxu0 %v2589
  %3033 = vmatpush.msra.mxu0 %v2587
  %3034 = vmatpush.msra.mxu0 %v2585
  %3035 = vmatpush.msra.mxu0 %v2583
  %3036 = vmatpush.msra.mxu0 %v2581
  %3037 = vmatpush.msra.mxu0 %v2579
  %3038 = vmatpush.msra.mxu0 %v2577
  %3039 = vmatpush.msra.mxu0 %v2575
  %3040 = vmatpush.msra.mxu0 %v2573
  %3041 = vmatpush.msra.mxu0 %v2571
  %3042 = vmatpush.msra.mxu0 %v2569
  %3043 = vmatmul.f32.gmra.mxu0 %v2362
  %v3044 = vpop.f32.mrf.mxu0
  %v3045 = vadd.f32 %v3025, %v3044
  %3046 = vdwg.mxu0
  %3047 = vmatpush.msra.mxu0 %v2631
  %3048 = vmatpush.msra.mxu0 %v2629
  %3049 = vmatpush.msra.mxu0 %v2627
  %3050 = vmatpush.msra.mxu0 %v2625
  %3051 = vmatpush.msra.mxu0 %v2623
  %3052 = vmatpush.msra.mxu0 %v2621
  %3053 = vmatpush.msra.mxu0 %v2619
  %3054 = vmatpush.msra.mxu0 %v2617
  %3055 = vmatpush.msra.mxu0 %v2615
  %3056 = vmatpush.msra.mxu0 %v2613
  %3057 = vmatpush.msra.mxu0 %v2611
  %3058 = vmatpush.msra.mxu0 %v2609
  %3059 = vmatpush.msra.mxu0 %v2607
  %3060 = vmatpush.msra.mxu0 %v2605
  %3061 = vmatpush.msra.mxu0 %v2603
  %3062 = vmatpush.msra.mxu0 %v2601
  %3063 = vmatmul.f32.gmra.mxu0 %v2367
  %v3064 = vpop.f32.mrf.mxu0
  %v3065 = vadd.f32 %v3045, %v3064
  %3066 = vdwg.mxu0
  %3067 = vmatpush.msra.mxu0 %v2663
  %3068 = vmatpush.msra.mxu0 %v2661
  %3069 = vmatpush.msra.mxu0 %v2659
  %3070 = vmatpush.msra.mxu0 %v2657
  %3071 = vmatpush.msra.mxu0 %v2655
  %3072 = vmatpush.msra.mxu0 %v2653
  %3073 = vmatpush.msra.mxu0 %v2651
  %3074 = vmatpush.msra.mxu0 %v2649
  %3075 = vmatpush.msra.mxu0 %v2647
  %3076 = vmatpush.msra.mxu0 %v2645
  %3077 = vmatpush.msra.mxu0 %v2643
  %3078 = vmatpush.msra.mxu0 %v2641
  %3079 = vmatpush.msra.mxu0 %v2639
  %3080 = vmatpush.msra.mxu0 %v2637
  %3081 = vmatpush.msra.mxu0 %v2635
  %3082 = vmatpush.msra.mxu0 %v2633
  %3083 = vmatmul.f32.gmra.mxu0 %v2368
  %v3084 = vpop.f32.mrf.mxu0
  %v3085 = vadd.f32 %v3065, %v3084
  %3086 = vdwg.mxu0
  %3087 = vmatpush.msra.mxu0 %v2695
  %3088 = vmatpush.msra.mxu0 %v2693
  %3089 = vmatpush.msra.mxu0 %v2691
  %3090 = vmatpush.msra.mxu0 %v2689
  %3091 = vmatpush.msra.mxu0 %v2687
  %3092 = vmatpush.msra.mxu0 %v2685
  %3093 = vmatpush.msra.mxu0 %v2683
  %3094 = vmatpush.msra.mxu0 %v2681
  %3095 = vmatpush.msra.mxu0 %v2679
  %3096 = vmatpush.msra.mxu0 %v2677
  %3097 = vmatpush.msra.mxu0 %v2675
  %3098 = vmatpush.msra.mxu0 %v2673
  %3099 = vmatpush.msra.mxu0 %v2671
  %3100 = vmatpush.msra.mxu0 %v2669
  %3101 = vmatpush.msra.mxu0 %v2667
  %3102 = vmatpush.msra.mxu0 %v2665
  %3103 = vmatmul.f32.gmra.mxu0 %v2375
  %v3104 = vpop.f32.mrf.mxu0
  %v3105 = vadd.f32 %v3085, %v3104
  %3106 = vdwg.mxu0
  %3107 = vmatpush.msra.mxu0 %v2727
  %3108 = vmatpush.msra.mxu0 %v2725
  %3109 = vmatpush.msra.mxu0 %v2723
  %3110 = vmatpush.msra.mxu0 %v2721
  %3111 = vmatpush.msra.mxu0 %v2719
  %3112 = vmatpush.msra.mxu0 %v2717
  %3113 = vmatpush.msra.mxu0 %v2715
  %3114 = vmatpush.msra.mxu0 %v2713
  %3115 = vmatpush.msra.mxu0 %v2711
  %3116 = vmatpush.msra.mxu0 %v2709
  %3117 = vmatpush.msra.mxu0 %v2707
  %3118 = vmatpush.msra.mxu0 %v2705
  %3119 = vmatpush.msra.mxu0 %v2703
  %3120 = vmatpush.msra.mxu0 %v2701
  %3121 = vmatpush.msra.mxu0 %v2699
  %3122 = vmatpush.msra.mxu0 %v2697
  %3123 = vmatmul.f32.gmra.mxu0 %v2380
  %v3124 = vpop.f32.mrf.mxu0
  %v3125 = vadd.f32 %v3105, %v3124
  %3126 = vdwg.mxu0
  %3127 = vmatpush.msra.mxu0 %v2759
  %3128 = vmatpush.msra.mxu0 %v2757
  %3129 = vmatpush.msra.mxu0 %v2755
  %3130 = vmatpush.msra.mxu0 %v2753
  %3131 = vmatpush.msra.mxu0 %v2751
  %3132 = vmatpush.msra.mxu0 %v2749
  %3133 = vmatpush.msra.mxu0 %v2747
  %3134 = vmatpush.msra.mxu0 %v2745
  %3135 = vmatpush.msra.mxu0 %v2743
  %3136 = vmatpush.msra.mxu0 %v2741
  %3137 = vmatpush.msra.mxu0 %v2739
  %3138 = vmatpush.msra.mxu0 %v2737
  %3139 = vmatpush.msra.mxu0 %v2735
  %3140 = vmatpush.msra.mxu0 %v2733
  %3141 = vmatpush.msra.mxu0 %v2731
  %3142 = vmatpush.msra.mxu0 %v2729
  %3143 = vmatmul.f32.gmra.mxu0 %v2381
  %v3144 = vpop.f32.mrf.mxu0
  %v3145 = vadd.f32 %v3125, %v3144
  %3146 = vdwg.mxu0
  %3147 = vmatpush.msra.mxu0 %v2791
  %3148 = vmatpush.msra.mxu0 %v2789
  %3149 = vmatpush.msra.mxu0 %v2787
  %3150 = vmatpush.msra.mxu0 %v2785
  %3151 = vmatpush.msra.mxu0 %v2783
  %3152 = vmatpush.msra.mxu0 %v2781
  %3153 = vmatpush.msra.mxu0 %v2779
  %3154 = vmatpush.msra.mxu0 %v2777
  %3155 = vmatpush.msra.mxu0 %v2775
  %3156 = vmatpush.msra.mxu0 %v2773
  %3157 = vmatpush.msra.mxu0 %v2771
  %3158 = vmatpush.msra.mxu0 %v2769
  %3159 = vmatpush.msra.mxu0 %v2767
  %3160 = vmatpush.msra.mxu0 %v2765
  %3161 = vmatpush.msra.mxu0 %v2763
  %3162 = vmatpush.msra.mxu0 %v2761
  %3163 = vmatmul.f32.gmra.mxu0 %v2388
  %v3164 = vpop.f32.mrf.mxu0
  %v3165 = vadd.f32 %v3145, %v3164
  %3166 = vdwg.mxu0
  %3167 = vmatpush.msra.mxu0 %v2823
  %3168 = vmatpush.msra.mxu0 %v2821
  %3169 = vmatpush.msra.mxu0 %v2819
  %3170 = vmatpush.msra.mxu0 %v2817
  %3171 = vmatpush.msra.mxu0 %v2815
  %3172 = vmatpush.msra.mxu0 %v2813
  %3173 = vmatpush.msra.mxu0 %v2811
  %3174 = vmatpush.msra.mxu0 %v2809
  %3175 = vmatpush.msra.mxu0 %v2807
  %3176 = vmatpush.msra.mxu0 %v2805
  %3177 = vmatpush.msra.mxu0 %v2803
  %3178 = vmatpush.msra.mxu0 %v2801
  %3179 = vmatpush.msra.mxu0 %v2799
  %3180 = vmatpush.msra.mxu0 %v2797
  %3181 = vmatpush.msra.mxu0 %v2795
  %3182 = vmatpush.msra.mxu0 %v2793
  %3183 = vmatmul.f32.gmra.mxu0 %v2395
  %v3184 = vpop.f32.mrf.mxu0
  %v3185 = vadd.f32 %v3165, %v3184
  %3186 = vdwg.mxu0
  %3187 = vmatpush.msra.mxu0 %v2855
  %3188 = vmatpush.msra.mxu0 %v2853
  %3189 = vmatpush.msra.mxu0 %v2851
  %3190 = vmatpush.msra.mxu0 %v2849
  %3191 = vmatpush.msra.mxu0 %v2847
  %3192 = vmatpush.msra.mxu0 %v2845
  %3193 = vmatpush.msra.mxu0 %v2843
  %3194 = vmatpush.msra.mxu0 %v2841
  %3195 = vmatpush.msra.mxu0 %v2839
  %3196 = vmatpush.msra.mxu0 %v2837
  %3197 = vmatpush.msra.mxu0 %v2835
  %3198 = vmatpush.msra.mxu0 %v2833
  %3199 = vmatpush.msra.mxu0 %v2831
  %3200 = vmatpush.msra.mxu0 %v2829
  %3201 = vmatpush.msra.mxu0 %v2827
  %3202 = vmatpush.msra.mxu0 %v2825
  %3203 = vmatmul.f32.gmra.mxu0 %v2396
  %v3204 = vpop.f32.mrf.mxu0
  %v3205 = vadd.f32 %v3185, %v3204
  %3206 = vdwg.mxu0
  %3207 = vmatpush.msra.mxu0 %v2887
  %3208 = vmatpush.msra.mxu0 %v2885
  %3209 = vmatpush.msra.mxu0 %v2883
  %3210 = vmatpush.msra.mxu0 %v2881
  %3211 = vmatpush.msra.mxu0 %v2879
  %3212 = vmatpush.msra.mxu0 %v2877
  %3213 = vmatpush.msra.mxu0 %v2875
  %3214 = vmatpush.msra.mxu0 %v2873
  %3215 = vmatpush.msra.mxu0 %v2871
  %3216 = vmatpush.msra.mxu0 %v2869
  %3217 = vmatpush.msra.mxu0 %v2867
  %3218 = vmatpush.msra.mxu0 %v2865
  %3219 = vmatpush.msra.mxu0 %v2863
  %3220 = vmatpush.msra.mxu0 %v2861
  %3221 = vmatpush.msra.mxu0 %v2859
  %3222 = vmatpush.msra.mxu0 %v2857
  %3223 = vmatmul.f32.gmra.mxu0 %v2403
  %v3224 = vpop.f32.mrf.mxu0
  %v3225 = vadd.f32 %v3205, %v3224
  %3226 = vdwg.mxu0
  %3227 = vmatpush.msra.mxu0 %v2919
  %3228 = vmatpush.msra.mxu0 %v2917
  %3229 = vmatpush.msra.mxu0 %v2915
  %3230 = vmatpush.msra.mxu0 %v2913
  %3231 = vmatpush.msra.mxu0 %v2911
  %3232 = vmatpush.msra.mxu0 %v2909
  %3233 = vmatpush.msra.mxu0 %v2907
  %3234 = vmatpush.msra.mxu0 %v2905
  %3235 = vmatpush.msra.mxu0 %v2903
  %3236 = vmatpush.msra.mxu0 %v2901
  %3237 = vmatpush.msra.mxu0 %v2899
  %3238 = vmatpush.msra.mxu0 %v2897
  %3239 = vmatpush.msra.mxu0 %v2895
  %3240 = vmatpush.msra.mxu0 %v2893
  %3241 = vmatpush.msra.mxu0 %v2891
  %3242 = vmatpush.msra.mxu0 %v2889
  %3243 = vmatmul.f32.gmra.mxu0 %v2408
  %v3244 = vpop.f32.mrf.mxu0
  %v3245 = vadd.f32 %v3225, %v3244
  %3246 = vdwg.mxu0
  %3247 = vmatpush.msra.mxu0 %v2440
  %3248 = vmatpush.msra.mxu0 %v2438
  %3249 = vmatpush.msra.mxu0 %v2436
  %3250 = vmatpush.msra.mxu0 %v2434
  %3251 = vmatpush.msra.mxu0 %v2432
  %3252 = vmatpush.msra.mxu0 %v2430
  %3253 = vmatpush.msra.mxu0 %v2428
  %3254 = vmatpush.msra.mxu0 %v2426
  %3255 = vmatpush.msra.mxu0 %v2424
  %3256 = vmatpush.msra.mxu0 %v2422
  %3257 = vmatpush.msra.mxu0 %v2420
  %3258 = vmatpush.msra.mxu0 %v2418
  %3259 = vmatpush.msra.mxu0 %v2416
  %3260 = vmatpush.msra.mxu0 %v2414
  %3261 = vmatpush.msra.mxu0 %v2412
  %3262 = vmatpush.msra.mxu0 %v2410
  %3263 = vmatmul.f32.gmra.mxu0 %v2333
  %v3264 = vpop.f32.mrf.mxu0
  %v3265 = vadd.f32 %v2924, %v3264
  %3266 = vdwg.mxu0
  %3267 = vmatpush.msra.mxu0 %v2472
  %3268 = vmatpush.msra.mxu0 %v2470
  %3269 = vmatpush.msra.mxu0 %v2468
  %3270 = vmatpush.msra.mxu0 %v2466
  %3271 = vmatpush.msra.mxu0 %v2464
  %3272 = vmatpush.msra.mxu0 %v2462
  %3273 = vmatpush.msra.mxu0 %v2460
  %3274 = vmatpush.msra.mxu0 %v2458
  %3275 = vmatpush.msra.mxu0 %v2456
  %3276 = vmatpush.msra.mxu0 %v2454
  %3277 = vmatpush.msra.mxu0 %v2452
  %3278 = vmatpush.msra.mxu0 %v2450
  %3279 = vmatpush.msra.mxu0 %v2448
  %3280 = vmatpush.msra.mxu0 %v2446
  %3281 = vmatpush.msra.mxu0 %v2444
  %3282 = vmatpush.msra.mxu0 %v2442
  %3283 = vmatmul.f32.gmra.mxu0 %v2340
  %v3284 = vpop.f32.mrf.mxu0
  %v3285 = vadd.f32 %v3265, %v3284
  %3286 = vdwg.mxu0
  %3287 = vmatpush.msra.mxu0 %v2504
  %3288 = vmatpush.msra.mxu0 %v2502
  %3289 = vmatpush.msra.mxu0 %v2500
  %3290 = vmatpush.msra.mxu0 %v2498
  %3291 = vmatpush.msra.mxu0 %v2496
  %3292 = vmatpush.msra.mxu0 %v2494
  %3293 = vmatpush.msra.mxu0 %v2492
  %3294 = vmatpush.msra.mxu0 %v2490
  %3295 = vmatpush.msra.mxu0 %v2488
  %3296 = vmatpush.msra.mxu0 %v2486
  %3297 = vmatpush.msra.mxu0 %v2484
  %3298 = vmatpush.msra.mxu0 %v2482
  %3299 = vmatpush.msra.mxu0 %v2480
  %3300 = vmatpush.msra.mxu0 %v2478
  %3301 = vmatpush.msra.mxu0 %v2476
  %3302 = vmatpush.msra.mxu0 %v2474
  %3303 = vmatmul.f32.gmra.mxu0 %v2345
  %v3304 = vpop.f32.mrf.mxu0
  %v3305 = vadd.f32 %v3285, %v3304
  %3306 = vdwg.mxu0
  %3307 = vmatpush.msra.mxu0 %v2536
  %3308 = vmatpush.msra.mxu0 %v2534
  %3309 = vmatpush.msra.mxu0 %v2532
  %3310 = vmatpush.msra.mxu0 %v2530
  %3311 = vmatpush.msra.mxu0 %v2528
  %3312 = vmatpush.msra.mxu0 %v2526
  %3313 = vmatpush.msra.mxu0 %v2524
  %3314 = vmatpush.msra.mxu0 %v2522
  %3315 = vmatpush.msra.mxu0 %v2520
  %3316 = vmatpush.msra.mxu0 %v2518
  %3317 = vmatpush.msra.mxu0 %v2516
  %3318 = vmatpush.msra.mxu0 %v2514
  %3319 = vmatpush.msra.mxu0 %v2512
  %3320 = vmatpush.msra.mxu0 %v2510
  %3321 = vmatpush.msra.mxu0 %v2508
  %3322 = vmatpush.msra.mxu0 %v2506
  %3323 = vmatmul.f32.gmra.mxu0 %v2350
  %v3324 = vpop.f32.mrf.mxu0
  %v3325 = vadd.f32 %v3305, %v3324
  %3326 = vdwg.mxu0
  %3327 = vmatpush.msra.mxu0 %v2568
  %3328 = vmatpush.msra.mxu0 %v2566
  %3329 = vmatpush.msra.mxu0 %v2564
  %3330 = vmatpush.msra.mxu0 %v2562
  %3331 = vmatpush.msra.mxu0 %v2560
  %3332 = vmatpush.msra.mxu0 %v2558
  %3333 = vmatpush.msra.mxu0 %v2556
  %3334 = vmatpush.msra.mxu0 %v2554
  %3335 = vmatpush.msra.mxu0 %v2552
  %3336 = vmatpush.msra.mxu0 %v2550
  %3337 = vmatpush.msra.mxu0 %v2548
  %3338 = vmatpush.msra.mxu0 %v2546
  %3339 = vmatpush.msra.mxu0 %v2544
  %3340 = vmatpush.msra.mxu0 %v2542
  %3341 = vmatpush.msra.mxu0 %v2540
  %3342 = vmatpush.msra.mxu0 %v2538
  %3343 = vmatmul.f32.gmra.mxu0 %v2357
  %v3344 = vpop.f32.mrf.mxu0
  %v3345 = vadd.f32 %v3325, %v3344
  %3346 = vdwg.mxu0
  %3347 = vmatpush.msra.mxu0 %v2600
  %3348 = vmatpush.msra.mxu0 %v2598
  %3349 = vmatpush.msra.mxu0 %v2596
  %3350 = vmatpush.msra.mxu0 %v2594
  %3351 = vmatpush.msra.mxu0 %v2592
  %3352 = vmatpush.msra.mxu0 %v2590
  %3353 = vmatpush.msra.mxu0 %v2588
  %3354 = vmatpush.msra.mxu0 %v2586
  %3355 = vmatpush.msra.mxu0 %v2584
  %3356 = vmatpush.msra.mxu0 %v2582
  %3357 = vmatpush.msra.mxu0 %v2580
  %3358 = vmatpush.msra.mxu0 %v2578
  %3359 = vmatpush.msra.mxu0 %v2576
  %3360 = vmatpush.msra.mxu0 %v2574
  %3361 = vmatpush.msra.mxu0 %v2572
  %3362 = vmatpush.msra.mxu0 %v2570
  %3363 = vmatmul.f32.gmra.mxu0 %v2362
  %v3364 = vpop.f32.mrf.mxu0
  %v3365 = vadd.f32 %v3345, %v3364
  %3366 = vdwg.mxu0
  %3367 = vmatpush.msra.mxu0 %v2632
  %3368 = vmatpush.msra.mxu0 %v2630
  %3369 = vmatpush.msra.mxu0 %v2628
  %3370 = vmatpush.msra.mxu0 %v2626
  %3371 = vmatpush.msra.mxu0 %v2624
  %3372 = vmatpush.msra.mxu0 %v2622
  %3373 = vmatpush.msra.mxu0 %v2620
  %3374 = vmatpush.msra.mxu0 %v2618
  %3375 = vmatpush.msra.mxu0 %v2616
  %3376 = vmatpush.msra.mxu0 %v2614
  %3377 = vmatpush.msra.mxu0 %v2612
  %3378 = vmatpush.msra.mxu0 %v2610
  %3379 = vmatpush.msra.mxu0 %v2608
  %3380 = vmatpush.msra.mxu0 %v2606
  %3381 = vmatpush.msra.mxu0 %v2604
  %3382 = vmatpush.msra.mxu0 %v2602
  %3383 = vmatmul.f32.gmra.mxu0 %v2367
  %v3384 = vpop.f32.mrf.mxu0
  %v3385 = vadd.f32 %v3365, %v3384
  %3386 = vdwg.mxu0
  %3387 = vmatpush.msra.mxu0 %v2664
  %3388 = vmatpush.msra.mxu0 %v2662
  %3389 = vmatpush.msra.mxu0 %v2660
  %3390 = vmatpush.msra.mxu0 %v2658
  %3391 = vmatpush.msra.mxu0 %v2656
  %3392 = vmatpush.msra.mxu0 %v2654
  %3393 = vmatpush.msra.mxu0 %v2652
  %3394 = vmatpush.msra.mxu0 %v2650
  %3395 = vmatpush.msra.mxu0 %v2648
  %3396 = vmatpush.msra.mxu0 %v2646
  %3397 = vmatpush.msra.mxu0 %v2644
  %3398 = vmatpush.msra.mxu0 %v2642
  %3399 = vmatpush.msra.mxu0 %v2640
  %3400 = vmatpush.msra.mxu0 %v2638
  %3401 = vmatpush.msra.mxu0 %v2636
  %3402 = vmatpush.msra.mxu0 %v2634
  %3403 = vmatmul.f32.gmra.mxu0 %v2368
  %v3404 = vpop.f32.mrf.mxu0
  %v3405 = vadd.f32 %v3385, %v3404
  %3406 = vdwg.mxu0
  %3407 = vmatpush.msra.mxu0 %v2696
  %3408 = vmatpush.msra.mxu0 %v2694
  %3409 = vmatpush.msra.mxu0 %v2692
  %3410 = vmatpush.msra.mxu0 %v2690
  %3411 = vmatpush.msra.mxu0 %v2688
  %3412 = vmatpush.msra.mxu0 %v2686
  %3413 = vmatpush.msra.mxu0 %v2684
  %3414 = vmatpush.msra.mxu0 %v2682
  %3415 = vmatpush.msra.mxu0 %v2680
  %3416 = vmatpush.msra.mxu0 %v2678
  %3417 = vmatpush.msra.mxu0 %v2676
  %3418 = vmatpush.msra.mxu0 %v2674
  %3419 = vmatpush.msra.mxu0 %v2672
  %3420 = vmatpush.msra.mxu0 %v2670
  %3421 = vmatpush.msra.mxu0 %v2668
  %3422 = vmatpush.msra.mxu0 %v2666
  %3423 = vmatmul.f32.gmra.mxu0 %v2375
  %v3424 = vpop.f32.mrf.mxu0
  %v3425 = vadd.f32 %v3405, %v3424
  %3426 = vdwg.mxu0
  %3427 = vmatpush.msra.mxu0 %v2728
  %3428 = vmatpush.msra.mxu0 %v2726
  %3429 = vmatpush.msra.mxu0 %v2724
  %3430 = vmatpush.msra.mxu0 %v2722
  %3431 = vmatpush.msra.mxu0 %v2720
  %3432 = vmatpush.msra.mxu0 %v2718
  %3433 = vmatpush.msra.mxu0 %v2716
  %3434 = vmatpush.msra.mxu0 %v2714
  %3435 = vmatpush.msra.mxu0 %v2712
  %3436 = vmatpush.msra.mxu0 %v2710
  %3437 = vmatpush.msra.mxu0 %v2708
  %3438 = vmatpush.msra.mxu0 %v2706
  %3439 = vmatpush.msra.mxu0 %v2704
  %3440 = vmatpush.msra.mxu0 %v2702
  %3441 = vmatpush.msra.mxu0 %v2700
  %3442 = vmatpush.msra.mxu0 %v2698
  %3443 = vmatmul.f32.gmra.mxu0 %v2380
  %v3444 = vpop.f32.mrf.mxu0
  %v3445 = vadd.f32 %v3425, %v3444
  %3446 = vdwg.mxu0
  %3447 = vmatpush.msra.mxu0 %v2760
  %3448 = vmatpush.msra.mxu0 %v2758
  %3449 = vmatpush.msra.mxu0 %v2756
  %3450 = vmatpush.msra.mxu0 %v2754
  %3451 = vmatpush.msra.mxu0 %v2752
  %3452 = vmatpush.msra.mxu0 %v2750
  %3453 = vmatpush.msra.mxu0 %v2748
  %3454 = vmatpush.msra.mxu0 %v2746
  %3455 = vmatpush.msra.mxu0 %v2744
  %3456 = vmatpush.msra.mxu0 %v2742
  %3457 = vmatpush.msra.mxu0 %v2740
  %3458 = vmatpush.msra.mxu0 %v2738
  %3459 = vmatpush.msra.mxu0 %v2736
  %3460 = vmatpush.msra.mxu0 %v2734
  %3461 = vmatpush.msra.mxu0 %v2732
  %3462 = vmatpush.msra.mxu0 %v2730
  %3463 = vmatmul.f32.gmra.mxu0 %v2381
  %v3464 = vpop.f32.mrf.mxu0
  %v3465 = vadd.f32 %v3445, %v3464
  %3466 = vdwg.mxu0
  %3467 = vmatpush.msra.mxu0 %v2792
  %3468 = vmatpush.msra.mxu0 %v2790
  %3469 = vmatpush.msra.mxu0 %v2788
  %3470 = vmatpush.msra.mxu0 %v2786
  %3471 = vmatpush.msra.mxu0 %v2784
  %3472 = vmatpush.msra.mxu0 %v2782
  %3473 = vmatpush.msra.mxu0 %v2780
  %3474 = vmatpush.msra.mxu0 %v2778
  %3475 = vmatpush.msra.mxu0 %v2776
  %3476 = vmatpush.msra.mxu0 %v2774
  %3477 = vmatpush.msra.mxu0 %v2772
  %3478 = vmatpush.msra.mxu0 %v2770
  %3479 = vmatpush.msra.mxu0 %v2768
  %3480 = vmatpush.msra.mxu0 %v2766
  %3481 = vmatpush.msra.mxu0 %v2764
  %3482 = vmatpush.msra.mxu0 %v2762
  %3483 = vmatmul.f32.gmra.mxu0 %v2388
  %v3484 = vpop.f32.mrf.mxu0
  %v3485 = vadd.f32 %v3465, %v3484
  %3486 = vdwg.mxu0
  %3487 = vmatpush.msra.mxu0 %v2824
  %3488 = vmatpush.msra.mxu0 %v2822
  %3489 = vmatpush.msra.mxu0 %v2820
  %3490 = vmatpush.msra.mxu0 %v2818
  %3491 = vmatpush.msra.mxu0 %v2816
  %3492 = vmatpush.msra.mxu0 %v2814
  %3493 = vmatpush.msra.mxu0 %v2812
  %3494 = vmatpush.msra.mxu0 %v2810
  %3495 = vmatpush.msra.mxu0 %v2808
  %3496 = vmatpush.msra.mxu0 %v2806
  %3497 = vmatpush.msra.mxu0 %v2804
  %3498 = vmatpush.msra.mxu0 %v2802
  %3499 = vmatpush.msra.mxu0 %v2800
  %3500 = vmatpush.msra.mxu0 %v2798
  %3501 = vmatpush.msra.mxu0 %v2796
  %3502 = vmatpush.msra.mxu0 %v2794
  %3503 = vmatmul.f32.gmra.mxu0 %v2395
  %v3504 = vpop.f32.mrf.mxu0
  %v3505 = vadd.f32 %v3485, %v3504
  %3506 = vdwg.mxu0
  %3507 = vmatpush.msra.mxu0 %v2856
  %3508 = vmatpush.msra.mxu0 %v2854
  %3509 = vmatpush.msra.mxu0 %v2852
  %3510 = vmatpush.msra.mxu0 %v2850
  %3511 = vmatpush.msra.mxu0 %v2848
  %3512 = vmatpush.msra.mxu0 %v2846
  %3513 = vmatpush.msra.mxu0 %v2844
  %3514 = vmatpush.msra.mxu0 %v2842
  %3515 = vmatpush.msra.mxu0 %v2840
  %3516 = vmatpush.msra.mxu0 %v2838
  %3517 = vmatpush.msra.mxu0 %v2836
  %3518 = vmatpush.msra.mxu0 %v2834
  %3519 = vmatpush.msra.mxu0 %v2832
  %3520 = vmatpush.msra.mxu0 %v2830
  %3521 = vmatpush.msra.mxu0 %v2828
  %3522 = vmatpush.msra.mxu0 %v2826
  %3523 = vmatmul.f32.gmra.mxu0 %v2396
  %v3524 = vpop.f32.mrf.mxu0
  %v3525 = vadd.f32 %v3505, %v3524
  %3526 = vdwg.mxu0
  %3527 = vmatpush.msra.mxu0 %v2888
  %3528 = vmatpush.msra.mxu0 %v2886
  %3529 = vmatpush.msra.mxu0 %v2884
  %3530 = vmatpush.msra.mxu0 %v2882
  %3531 = vmatpush.msra.mxu0 %v2880
  %3532 = vmatpush.msra.mxu0 %v2878
  %3533 = vmatpush.msra.mxu0 %v2876
  %3534 = vmatpush.msra.mxu0 %v2874
  %3535 = vmatpush.msra.mxu0 %v2872
  %3536 = vmatpush.msra.mxu0 %v2870
  %3537 = vmatpush.msra.mxu0 %v2868
  %3538 = vmatpush.msra.mxu0 %v2866
  %3539 = vmatpush.msra.mxu0 %v2864
  %3540 = vmatpush.msra.mxu0 %v2862
  %3541 = vmatpush.msra.mxu0 %v2860
  %3542 = vmatpush.msra.mxu0 %v2858
  %3543 = vmatmul.f32.gmra.mxu0 %v2403
  %v3544 = vpop.f32.mrf.mxu0
  %v3545 = vadd.f32 %v3525, %v3544
  %3546 = vdwg.mxu0
  %3547 = vmatpush.msra.mxu0 %v2920
  %3548 = vmatpush.msra.mxu0 %v2918
  %3549 = vmatpush.msra.mxu0 %v2916
  %3550 = vmatpush.msra.mxu0 %v2914
  %3551 = vmatpush.msra.mxu0 %v2912
  %3552 = vmatpush.msra.mxu0 %v2910
  %3553 = vmatpush.msra.mxu0 %v2908
  %3554 = vmatpush.msra.mxu0 %v2906
  %3555 = vmatpush.msra.mxu0 %v2904
  %3556 = vmatpush.msra.mxu0 %v2902
  %3557 = vmatpush.msra.mxu0 %v2900
  %3558 = vmatpush.msra.mxu0 %v2898
  %3559 = vmatpush.msra.mxu0 %v2896
  %3560 = vmatpush.msra.mxu0 %v2894
  %3561 = vmatpush.msra.mxu0 %v2892
  %3562 = vmatpush.msra.mxu0 %v2890
  %3563 = vmatmul.f32.gmra.mxu0 %v2408
  %v3564 = vpop.f32.mrf.mxu0
  %v3565 = vadd.f32 %v3545, %v3564
  %3566 = vdwg.mxu0
  %v3567 = vmax.f32 %v3245, 0.0
  %v3568 = vmax.f32 %v3565, 0.0
  %v3569 = vld [vmem:[%s8] sm:$0xff]
  %v3570 = vld [vmem:[%s8 + $0x8] sm:$0xff]
  %v3571 = vld [vmem:[%s8 + $0x10] sm:$0xff]
  %v3572 = vld [vmem:[%s8 + $0x18] sm:$0xff]
  %v3573 = vld [vmem:[%s8 + $0x20] sm:$0xff]
  %v3574 = vld [vmem:[%s8 + $0x28] sm:$0xff]
  %v3575 = vld [vmem:[%s8 + $0x30] sm:$0xff]
  %v3576 = vld [vmem:[%s8 + $0x38] sm:$0xff]
  %v3577 = vld [vmem:[%s8 + $0x40] sm:$0xff]
  %v3578 = vld [vmem:[%s8 + $0x48] sm:$0xff]
  %v3579 = vld [vmem:[%s8 + $0x50] sm:$0xff]
  %v3580 = vld [vmem:[%s8 + $0x58] sm:$0xff]
  %v3581 = vld [vmem:[%s8 + $0x60] sm:$0xff]
  %v3582 = vld [vmem:[%s8 + $0x68] sm:$0xff]
  %v3583 = vld [vmem:[%s8 + $0x70] sm:$0xff]
  %v3584 = vld [vmem:[%s8 + $0x78] sm:$0xff]
  %v3585 = vld [vmem:[%s8 + $0x80] sm:$0xff]
  %v3586 = vld [vmem:[%s8 + $0x88] sm:$0xff]
  %v3587 = vld [vmem:[%s8 + $0x90] sm:$0xff]
  %v3588 = vld [vmem:[%s8 + $0x98] sm:$0xff]
  %v3589 = vld [vmem:[%s8 + $0xa0] sm:$0xff]
  %v3590 = vld [vmem:[%s8 + $0xa8] sm:$0xff]
  %v3591 = vld [vmem:[%s8 + $0xb0] sm:$0xff]
  %v3592 = vld [vmem:[%s8 + $0xb8] sm:$0xff]
  %v3593 = vld [vmem:[%s8 + $0xc0] sm:$0xff]
  %v3594 = vld [vmem:[%s8 + $0xc8] sm:$0xff]
  %v3595 = vld [vmem:[%s8 + $0xd0] sm:$0xff]
  %v3596 = vld [vmem:[%s8 + $0xd8] sm:$0xff]
  %v3597 = vld [vmem:[%s8 + $0xe0] sm:$0xff]
  %v3598 = vld [vmem:[%s8 + $0xe8] sm:$0xff]
  %v3599 = vld [vmem:[%s8 + $0xf0] sm:$0xff]
  %v3600 = vld [vmem:[%s8 + $0xf8] sm:$0xff]
  %v3601 = vld [vmem:[%s9] sm:$0x1]
  %v3603 = vperm.slane %v3601, 0
  %3605 = vmatpush.msra.mxu0 %v3584
  %3606 = vmatpush.msra.mxu0 %v3583
  %3607 = vmatpush.msra.mxu0 %v3582
  %3608 = vmatpush.msra.mxu0 %v3581
  %3609 = vmatpush.msra.mxu0 %v3580
  %3610 = vmatpush.msra.mxu0 %v3579
  %3611 = vmatpush.msra.mxu0 %v3578
  %3612 = vmatpush.msra.mxu0 %v3577
  %3613 = vmatpush.msra.mxu0 %v3576
  %3614 = vmatpush.msra.mxu0 %v3575
  %3615 = vmatpush.msra.mxu0 %v3574
  %3616 = vmatpush.msra.mxu0 %v3573
  %3617 = vmatpush.msra.mxu0 %v3572
  %3618 = vmatpush.msra.mxu0 %v3571
  %3619 = vmatpush.msra.mxu0 %v3570
  %3620 = vmatpush.msra.mxu0 %v3569
  %3621 = vmatmul.f32.gmra.mxu0 %v3567
  %v3622 = vpop.f32.mrf.mxu0
  %v3623 = vadd.f32 %v3603, %v3622
  %3624 = vdwg.mxu0
  %3625 = vmatpush.msra.mxu0 %v3600
  %3626 = vmatpush.msra.mxu0 %v3599
  %3627 = vmatpush.msra.mxu0 %v3598
  %3628 = vmatpush.msra.mxu0 %v3597
  %3629 = vmatpush.msra.mxu0 %v3596
  %3630 = vmatpush.msra.mxu0 %v3595
  %3631 = vmatpush.msra.mxu0 %v3594
  %3632 = vmatpush.msra.mxu0 %v3593
  %3633 = vmatpush.msra.mxu0 %v3592
  %3634 = vmatpush.msra.mxu0 %v3591
  %3635 = vmatpush.msra.mxu0 %v3590
  %3636 = vmatpush.msra.mxu0 %v3589
  %3637 = vmatpush.msra.mxu0 %v3588
  %3638 = vmatpush.msra.mxu0 %v3587
  %3639 = vmatpush.msra.mxu0 %v3586
  %3640 = vmatpush.msra.mxu0 %v3585
  %3641 = vmatmul.f32.gmra.mxu0 %v3568
  %v3642 = vpop.f32.mrf.mxu0
  %v3643 = vadd.f32 %v3623, %v3642
  %3644 = vdwg.mxu0
  %3645 = vst [vmem:[%s10] sm:$0x3] %v3643
  // Predicated region
  $region42: #{forward.3} parent=0 // pred_check
    _
  $region43: #{forward.3} parent=0 // pred_check_branch
    %3647 = sbr.rel (0) target = $region45
  $region44: #{forward.3} parent=0 // pred_region
    _
  $region45: #{forward.3} parent=0 // pred_fallthru
    _
  // Predicated region
  $region46: #{forward.3} parent=0 // pred_check
    _
  $region47: #{forward.3} parent=0 // pred_check_branch
    %3649 = sbr.rel (0) target = $region49
  $region48: #{forward.3} parent=0 // pred_region
    _
  $region49: #{forward.3} parent=0 // pred_fallthru
    _

</llo_original>
